<compile_context>
chip_gen: v7x
topology: tpu7x:2x2x1
jax: 0.10.0
libtpu: 0.0.40
codegen_flags: <defaults>
</compile_context>

<pallas_src>
import jax
import jax.numpy as jnp
import numpy as np
from jax.experimental import pallas as pl
from jax.experimental.pallas import tpu as pltpu

EPS = 1e-5


def _make_kernel(N, H, W, C, HE, WE):
    """Build the fused ResidualBlock kernel for static shapes.

    HE = H + 2 (extended conv1 rows), WE = W + 2 rounded up to a multiple of 8
    (extended conv1 cols; the extra columns are dead and masked out).  Evaluating
    conv1 on the extended grid and masking its ring to zero gives exactly the
    zero-padded input conv2 expects, so no padded VMEM scratch / partial stores
    are needed.
    """
    inv_count = 1.0 / (N * H * W)

    def im2col_dot(x4d, w_flat, ho, wo):
        # x4d: (N, >=ho+2, >=wo+2, c) bf16 -> (N*ho*wo, Cout) f32, one MXU call.
        c = x4d.shape[-1]
        taps = [x4d[:, kh:kh + ho, kw:kw + wo, :]
                for kh in range(3) for kw in range(3)]
        patch = jnp.concatenate(taps, axis=-1).reshape(N * ho * wo, 9 * c)
        return jnp.dot(patch, w_flat, preferred_element_type=jnp.float32)

    def bn_relu(flat, gamma, beta, mask=None):
        # Single-pass training-mode BN (biased variance) + affine + ReLU, all f32.
        fm = flat if mask is None else flat * mask
        s1 = jnp.sum(fm, axis=0, keepdims=True) * inv_count           # E[x]
        s2 = jnp.sum(fm * flat, axis=0, keepdims=True) * inv_count    # E[x^2]
        var = jnp.maximum(s2 - s1 * s1, 0.0)                          # clamp cancellation
        y = (flat - s1) * (jax.lax.rsqrt(var + EPS) * gamma) + beta
        return jnp.maximum(y, 0.0)

    def kernel(xp_ref, res_ref, w1_ref, g1_ref, b1_ref,
               w2_ref, g2_ref, b2_ref, o_ref):
        # Interior mask over the extended (HE, WE) conv1 grid:
        # 1 on the valid H x W interior, 0 on the 1-px ring / alignment columns.
        row = jax.lax.broadcasted_iota(jnp.int32, (N, HE, WE, 1), 1)
        col = jax.lax.broadcasted_iota(jnp.int32, (N, HE, WE, 1), 2)
        interior = (row >= 1) & (row <= H) & (col >= 1) & (col <= W)
        mask = jnp.where(interior, 1.0, 0.0).reshape(N * HE * WE, 1)

        # --- conv1 + BN1 + ReLU on the extended grid; masked ring == zero padding ---
        flat1 = im2col_dot(xp_ref[...], w1_ref[...], HE, WE)          # (N*HE*WE, C) f32
        out1 = bn_relu(flat1, g1_ref[...], b1_ref[...], mask) * mask
        o1 = out1.reshape(N, HE, WE, C).astype(jnp.bfloat16)          # bf16 at MXU boundary

        # --- conv2 + BN2 + ReLU on the valid H x W interior ---
        flat2 = im2col_dot(o1, w2_ref[...], H, W)                     # (N*H*W, C) f32
        out2 = bn_relu(flat2, g2_ref[...], b2_ref[...])

        # --- identity residual (separate unpadded f32 input) + final ReLU ---
        # TODO(synk): fold the store to (N*H, W*C) for a fully lane-dense output
        # once the (w, c) -> (w*c) minor-dim fold is layout-safe here.
        o_ref[...] = jnp.maximum(out2 + res_ref[...], 0.0).astype(o_ref.dtype)

    return kernel


def residual_block(x_nchw, w1_oihw, g1, b1, w2_oihw, g2, b2):
    """ResidualBlock forward (stride=1, downsample=None).  x_nchw: (N, C, H, W)."""
    N, C, H, W = x_nchw.shape
    Cout = w1_oihw.shape[0]
    assert Cout == C and w1_oihw.shape[1] == C and w2_oihw.shape[:2] == (C, C), (
        "identity residual requires in_channels == out_channels (stride=1, no downsample)")

    HE = H + 2                            # extended conv1 rows (leading dim)
    WE = ((W + 2 + 7) // 8) * 8           # extended conv1 cols, 8-aligned for clean reshapes

    x_nhwc = jnp.transpose(x_nchw, (0, 2, 3, 1))
    # 2-deep halo for the extended conv1 grid; bf16 halves the input footprint/DMA.
    xp = jnp.pad(x_nhwc, ((0, 0), (2, 2), (2, WE - W), (0, 0))).astype(jnp.bfloat16)
    res = x_nhwc.reshape(N * H * W, C)    # identity residual, kept f32 for the VPU add

    def flat_w(w_oihw):                   # OIHW -> HWIO -> (9*Cin, Cout), bf16 for the MXU
        return (jnp.transpose(w_oihw, (2, 3, 1, 0))
                .reshape(9 * w_oihw.shape[1], w_oihw.shape[0]).astype(jnp.bfloat16))

    vmem = pl.BlockSpec(memory_space=pltpu.MemorySpace.VMEM)
    kernel = _make_kernel(N, H, W, C, HE, WE)

    # TODO(synk): at real ResNet sizes, split into two pallas_calls
    # (conv1 + BN1 stats, then normalize + conv2 + BN2 + residual) with an H-tiled
    # grid (1-row halo via index_map), a two-phase BN reduction, and
    # dimension_semantics=("parallel", ...) so v7x's two TensorCores both get work.
    # A single VMEM-resident call is the right shape for these small sizes.
    out_flat = pl.pallas_call(
        kernel,
        out_shape=jax.ShapeDtypeStruct((N * H * W, C), x_nchw.dtype),
        in_specs=[vmem] * 8,
        out_specs=vmem,
        compiler_params=pltpu.CompilerParams(vmem_limit_bytes=32 * 1024 * 1024),
    )(xp, res, flat_w(w1_oihw), g1.reshape(1, C), b1.reshape(1, C),
      flat_w(w2_oihw), g2.reshape(1, C), b2.reshape(1, C))

    return jnp.transpose(out_flat.reshape(N, H, W, C), (0, 3, 1, 2))   # back to NCHW


def ref_forward(x, w1, g1, b1, w2, g2, b2):
    """Pure-JAX f32 reference mirroring the PyTorch module (NCHW)."""
    def conv(x, w):
        return jax.lax.conv_general_dilated(
            x, w, window_strides=(1, 1), padding=((1, 1), (1, 1)),
            dimension_numbers=("NCHW", "OIHW", "NCHW"))

    def bn_relu(x, g, b):
        mean = jnp.mean(x, axis=(0, 2, 3), keepdims=True)
        var = jnp.mean((x - mean) ** 2, axis=(0, 2, 3), keepdims=True)
        y = (x - mean) / jnp.sqrt(var + EPS) * g.reshape(1, -1, 1, 1) \
            + b.reshape(1, -1, 1, 1)
        return jnp.maximum(y, 0.0)

    out = bn_relu(conv(x, w1), g1, b1)
    out = bn_relu(conv(out, w2), g2, b2)
    return jnp.maximum(out + x, 0.0)


if __name__ == "__main__":
    key = jax.random.PRNGKey(0)
    k_x, k_w1, k_w2 = jax.random.split(key, 3)

    N, C, H, W = 2, 4, 16, 16           # in_channels == out_channels, stride=1
    x = jax.random.normal(k_x, (N, C, H, W), jnp.float32)

    # conv weights in PyTorch OIHW layout, deterministic init
    w1 = jax.random.normal(k_w1, (C, C, 3, 3), jnp.float32) * 0.2
    w2 = jax.random.normal(k_w2, (C, C, 3, 3), jnp.float32) * 0.2
    # BatchNorm2d default affine init
    g1 = jnp.ones((C,), jnp.float32)
    b1 = jnp.zeros((C,), jnp.float32)
    g2 = jnp.ones((C,), jnp.float32)
    b2 = jnp.zeros((C,), jnp.float32)

    out = jax.block_until_ready(residual_block(x, w1, g1, b1, w2, g2, b2))

    ref = ref_forward(x, w1, g1, b1, w2, g2, b2)
    # bf16 MXU operands vs. f32 reference -> slightly relaxed tolerance
    np.testing.assert_allclose(np.asarray(out), np.asarray(ref), rtol=2e-2, atol=2e-2)
    print("KERNEL_OK")
</pallas_src>

<mosaic_0001>
module attributes {stable_mosaic.version = 11 : i64} {
  func.func @kernel(%arg0: memref<2x20x26x4xbf16, #tpu.memory_space<vmem>>, %arg1: memref<512x4xf32, #tpu.memory_space<vmem>>, %arg2: memref<36x4xbf16, #tpu.memory_space<vmem>>, %arg3: memref<1x4xf32, #tpu.memory_space<vmem>>, %arg4: memref<1x4xf32, #tpu.memory_space<vmem>>, %arg5: memref<36x4xbf16, #tpu.memory_space<vmem>>, %arg6: memref<1x4xf32, #tpu.memory_space<vmem>>, %arg7: memref<1x4xf32, #tpu.memory_space<vmem>>, %arg8: memref<512x4xf32, #tpu.memory_space<vmem>>) attributes {dimension_semantics = [], scalar_prefetch = 0 : i64, scratch_operands = 0 : i64, tpu.core_type = #tpu.core_type<tc>} {
    %0 = tpu.iota {dimensions = array<i32: 1>} : vector<2x18x24x1xi32>
    %1 = tpu.iota {dimensions = array<i32: 2>} : vector<2x18x24x1xi32>
    %c1_i32 = arith.constant 1 : i32
    %2 = vector.broadcast %c1_i32 : i32 to vector<2x18x24x1xi32>
    %3 = arith.cmpi sge, %0, %2 : vector<2x18x24x1xi32>
    %c16_i32 = arith.constant 16 : i32
    %4 = vector.broadcast %c16_i32 : i32 to vector<2x18x24x1xi32>
    %5 = arith.cmpi sle, %0, %4 : vector<2x18x24x1xi32>
    %6 = arith.andi %3, %5 : vector<2x18x24x1xi1>
    %c1_i32_0 = arith.constant 1 : i32
    %7 = vector.broadcast %c1_i32_0 : i32 to vector<2x18x24x1xi32>
    %8 = arith.cmpi sge, %1, %7 : vector<2x18x24x1xi32>
    %9 = arith.andi %6, %8 : vector<2x18x24x1xi1>
    %c16_i32_1 = arith.constant 16 : i32
    %10 = vector.broadcast %c16_i32_1 : i32 to vector<2x18x24x1xi32>
    %11 = arith.cmpi sle, %1, %10 : vector<2x18x24x1xi32>
    %12 = arith.andi %9, %11 : vector<2x18x24x1xi1>
    %cst = arith.constant 1.000000e+00 : f32
    %cst_2 = arith.constant 0.000000e+00 : f32
    %13 = vector.broadcast %cst : f32 to vector<2x18x24x1xf32>
    %14 = vector.broadcast %cst_2 : f32 to vector<2x18x24x1xf32>
    %15 = arith.select %12, %13, %14 : vector<2x18x24x1xi1>, vector<2x18x24x1xf32>
    %16 = vector.shape_cast %15 : vector<2x18x24x1xf32> to vector<864x1xf32>
    %c0 = arith.constant 0 : index
    %c0_3 = arith.constant 0 : index
    %c0_4 = arith.constant 0 : index
    %c0_5 = arith.constant 0 : index
    %17 = vector.load %arg0[%c0, %c0_3, %c0_4, %c0_5] : memref<2x20x26x4xbf16, #tpu.memory_space<vmem>>, vector<2x20x26x4xbf16>
    %c0_6 = arith.constant 0 : index
    %c0_7 = arith.constant 0 : index
    %18 = vector.load %arg2[%c0_6, %c0_7] : memref<36x4xbf16, #tpu.memory_space<vmem>>, vector<36x4xbf16>
    %19 = vector.extract_strided_slice %17 {offsets = [0, 0, 0, 0], sizes = [2, 18, 24, 4], strides = [1, 1, 1, 1]} : vector<2x20x26x4xbf16> to vector<2x18x24x4xbf16>
    %20 = vector.extract_strided_slice %17 {offsets = [0, 0, 1, 0], sizes = [2, 18, 24, 4], strides = [1, 1, 1, 1]} : vector<2x20x26x4xbf16> to vector<2x18x24x4xbf16>
    %21 = vector.extract_strided_slice %17 {offsets = [0, 0, 2, 0], sizes = [2, 18, 24, 4], strides = [1, 1, 1, 1]} : vector<2x20x26x4xbf16> to vector<2x18x24x4xbf16>
    %22 = vector.extract_strided_slice %17 {offsets = [0, 1, 0, 0], sizes = [2, 18, 24, 4], strides = [1, 1, 1, 1]} : vector<2x20x26x4xbf16> to vector<2x18x24x4xbf16>
    %23 = vector.extract_strided_slice %17 {offsets = [0, 1, 1, 0], sizes = [2, 18, 24, 4], strides = [1, 1, 1, 1]} : vector<2x20x26x4xbf16> to vector<2x18x24x4xbf16>
    %24 = vector.extract_strided_slice %17 {offsets = [0, 1, 2, 0], sizes = [2, 18, 24, 4], strides = [1, 1, 1, 1]} : vector<2x20x26x4xbf16> to vector<2x18x24x4xbf16>
    %25 = vector.extract_strided_slice %17 {offsets = [0, 2, 0, 0], sizes = [2, 18, 24, 4], strides = [1, 1, 1, 1]} : vector<2x20x26x4xbf16> to vector<2x18x24x4xbf16>
    %26 = vector.extract_strided_slice %17 {offsets = [0, 2, 1, 0], sizes = [2, 18, 24, 4], strides = [1, 1, 1, 1]} : vector<2x20x26x4xbf16> to vector<2x18x24x4xbf16>
    %27 = vector.extract_strided_slice %17 {offsets = [0, 2, 2, 0], sizes = [2, 18, 24, 4], strides = [1, 1, 1, 1]} : vector<2x20x26x4xbf16> to vector<2x18x24x4xbf16>
    %28 = tpu.concatenate %19, %20, %21, %22, %23, %24, %25, %26, %27 in 3 : vector<2x18x24x4xbf16>, vector<2x18x24x4xbf16>, vector<2x18x24x4xbf16>, vector<2x18x24x4xbf16>, vector<2x18x24x4xbf16>, vector<2x18x24x4xbf16>, vector<2x18x24x4xbf16>, vector<2x18x24x4xbf16>, vector<2x18x24x4xbf16> -> vector<2x18x24x36xbf16>
    %29 = vector.shape_cast %28 : vector<2x18x24x36xbf16> to vector<864x36xbf16>
    %cst_8 = arith.constant dense<0.000000e+00> : vector<864x4xf32>
    %30 = tpu.matmul %29, %18, %cst_8 {dimension_numbers = #tpu.dot_dimension_numbers<[1], [0], [0], [1], [0, 0, 1, 1], [], []>} : vector<864x36xbf16>, vector<36x4xbf16>, vector<864x4xf32> -> vector<864x4xf32>
    %c0_9 = arith.constant 0 : index
    %c0_10 = arith.constant 0 : index
    %31 = vector.load %arg3[%c0_9, %c0_10] : memref<1x4xf32, #tpu.memory_space<vmem>>, vector<1x4xf32>
    %c0_11 = arith.constant 0 : index
    %c0_12 = arith.constant 0 : index
    %32 = vector.load %arg4[%c0_11, %c0_12] : memref<1x4xf32, #tpu.memory_space<vmem>>, vector<1x4xf32>
    %33 = vector.broadcast %16 : vector<864x1xf32> to vector<864x4xf32>
    %34 = arith.mulf %30, %33 : vector<864x4xf32>
    %cst_13 = arith.constant dense<0.000000e+00> : vector<4xf32>
    %35 = vector.multi_reduction <add>, %34, %cst_13 [0] : vector<864x4xf32> to vector<4xf32>
    %36 = vector.shape_cast %35 : vector<4xf32> to vector<1x4xf32>
    %cst_14 = arith.constant 0.001953125 : f32
    %37 = vector.broadcast %cst_14 : f32 to vector<1x4xf32>
    %38 = arith.mulf %36, %37 : vector<1x4xf32>
    %39 = arith.mulf %34, %30 : vector<864x4xf32>
    %cst_15 = arith.constant dense<0.000000e+00> : vector<4xf32>
    %40 = vector.multi_reduction <add>, %39, %cst_15 [0] : vector<864x4xf32> to vector<4xf32>
    %41 = vector.shape_cast %40 : vector<4xf32> to vector<1x4xf32>
    %cst_16 = arith.constant 0.001953125 : f32
    %42 = vector.broadcast %cst_16 : f32 to vector<1x4xf32>
    %43 = arith.mulf %41, %42 : vector<1x4xf32>
    %44 = arith.mulf %38, %38 : vector<1x4xf32>
    %45 = arith.subf %43, %44 : vector<1x4xf32>
    %cst_17 = arith.constant 0.000000e+00 : f32
    %46 = vector.broadcast %cst_17 : f32 to vector<1x4xf32>
    %47 = arith.maximumf %45, %46 : vector<1x4xf32>
    %48 = vector.broadcast %38 : vector<1x4xf32> to vector<864x4xf32>
    %49 = arith.subf %30, %48 : vector<864x4xf32>
    %cst_18 = arith.constant 9.99999974E-6 : f32
    %50 = vector.broadcast %cst_18 : f32 to vector<1x4xf32>
    %51 = arith.addf %47, %50 : vector<1x4xf32>
    %52 = math.rsqrt %51 : vector<1x4xf32>
    %53 = arith.mulf %52, %31 : vector<1x4xf32>
    %54 = vector.broadcast %53 : vector<1x4xf32> to vector<864x4xf32>
    %55 = arith.mulf %49, %54 : vector<864x4xf32>
    %56 = vector.broadcast %32 : vector<1x4xf32> to vector<864x4xf32>
    %57 = arith.addf %55, %56 : vector<864x4xf32>
    %cst_19 = arith.constant 0.000000e+00 : f32
    %58 = vector.broadcast %cst_19 : f32 to vector<864x4xf32>
    %59 = arith.maximumf %57, %58 : vector<864x4xf32>
    %60 = vector.broadcast %16 : vector<864x1xf32> to vector<864x4xf32>
    %61 = arith.mulf %59, %60 : vector<864x4xf32>
    %62 = vector.shape_cast %61 : vector<864x4xf32> to vector<2x18x24x4xf32>
    %63 = arith.truncf %62 : vector<2x18x24x4xf32> to vector<2x18x24x4xbf16>
    %c0_20 = arith.constant 0 : index
    %c0_21 = arith.constant 0 : index
    %64 = vector.load %arg5[%c0_20, %c0_21] : memref<36x4xbf16, #tpu.memory_space<vmem>>, vector<36x4xbf16>
    %65 = vector.extract_strided_slice %63 {offsets = [0, 0, 0, 0], sizes = [2, 16, 16, 4], strides = [1, 1, 1, 1]} : vector<2x18x24x4xbf16> to vector<2x16x16x4xbf16>
    %66 = vector.extract_strided_slice %63 {offsets = [0, 0, 1, 0], sizes = [2, 16, 16, 4], strides = [1, 1, 1, 1]} : vector<2x18x24x4xbf16> to vector<2x16x16x4xbf16>
    %67 = vector.extract_strided_slice %63 {offsets = [0, 0, 2, 0], sizes = [2, 16, 16, 4], strides = [1, 1, 1, 1]} : vector<2x18x24x4xbf16> to vector<2x16x16x4xbf16>
    %68 = vector.extract_strided_slice %63 {offsets = [0, 1, 0, 0], sizes = [2, 16, 16, 4], strides = [1, 1, 1, 1]} : vector<2x18x24x4xbf16> to vector<2x16x16x4xbf16>
    %69 = vector.extract_strided_slice %63 {offsets = [0, 1, 1, 0], sizes = [2, 16, 16, 4], strides = [1, 1, 1, 1]} : vector<2x18x24x4xbf16> to vector<2x16x16x4xbf16>
    %70 = vector.extract_strided_slice %63 {offsets = [0, 1, 2, 0], sizes = [2, 16, 16, 4], strides = [1, 1, 1, 1]} : vector<2x18x24x4xbf16> to vector<2x16x16x4xbf16>
    %71 = vector.extract_strided_slice %63 {offsets = [0, 2, 0, 0], sizes = [2, 16, 16, 4], strides = [1, 1, 1, 1]} : vector<2x18x24x4xbf16> to vector<2x16x16x4xbf16>
    %72 = vector.extract_strided_slice %63 {offsets = [0, 2, 1, 0], sizes = [2, 16, 16, 4], strides = [1, 1, 1, 1]} : vector<2x18x24x4xbf16> to vector<2x16x16x4xbf16>
    %73 = vector.extract_strided_slice %63 {offsets = [0, 2, 2, 0], sizes = [2, 16, 16, 4], strides = [1, 1, 1, 1]} : vector<2x18x24x4xbf16> to vector<2x16x16x4xbf16>
    %74 = tpu.concatenate %65, %66, %67, %68, %69, %70, %71, %72, %73 in 3 : vector<2x16x16x4xbf16>, vector<2x16x16x4xbf16>, vector<2x16x16x4xbf16>, vector<2x16x16x4xbf16>, vector<2x16x16x4xbf16>, vector<2x16x16x4xbf16>, vector<2x16x16x4xbf16>, vector<2x16x16x4xbf16>, vector<2x16x16x4xbf16> -> vector<2x16x16x36xbf16>
    %75 = vector.shape_cast %74 : vector<2x16x16x36xbf16> to vector<512x36xbf16>
    %cst_22 = arith.constant dense<0.000000e+00> : vector<512x4xf32>
    %76 = tpu.matmul %75, %64, %cst_22 {dimension_numbers = #tpu.dot_dimension_numbers<[1], [0], [0], [1], [0, 0, 1, 1], [], []>} : vector<512x36xbf16>, vector<36x4xbf16>, vector<512x4xf32> -> vector<512x4xf32>
    %c0_23 = arith.constant 0 : index
    %c0_24 = arith.constant 0 : index
    %77 = vector.load %arg6[%c0_23, %c0_24] : memref<1x4xf32, #tpu.memory_space<vmem>>, vector<1x4xf32>
    %c0_25 = arith.constant 0 : index
    %c0_26 = arith.constant 0 : index
    %78 = vector.load %arg7[%c0_25, %c0_26] : memref<1x4xf32, #tpu.memory_space<vmem>>, vector<1x4xf32>
    %cst_27 = arith.constant dense<0.000000e+00> : vector<4xf32>
    %79 = vector.multi_reduction <add>, %76, %cst_27 [0] : vector<512x4xf32> to vector<4xf32>
    %80 = vector.shape_cast %79 : vector<4xf32> to vector<1x4xf32>
    %cst_28 = arith.constant 0.001953125 : f32
    %81 = vector.broadcast %cst_28 : f32 to vector<1x4xf32>
    %82 = arith.mulf %80, %81 : vector<1x4xf32>
    %83 = arith.mulf %76, %76 : vector<512x4xf32>
    %cst_29 = arith.constant dense<0.000000e+00> : vector<4xf32>
    %84 = vector.multi_reduction <add>, %83, %cst_29 [0] : vector<512x4xf32> to vector<4xf32>
    %85 = vector.shape_cast %84 : vector<4xf32> to vector<1x4xf32>
    %cst_30 = arith.constant 0.001953125 : f32
    %86 = vector.broadcast %cst_30 : f32 to vector<1x4xf32>
    %87 = arith.mulf %85, %86 : vector<1x4xf32>
    %88 = arith.mulf %82, %82 : vector<1x4xf32>
    %89 = arith.subf %87, %88 : vector<1x4xf32>
    %cst_31 = arith.constant 0.000000e+00 : f32
    %90 = vector.broadcast %cst_31 : f32 to vector<1x4xf32>
    %91 = arith.maximumf %89, %90 : vector<1x4xf32>
    %92 = vector.broadcast %82 : vector<1x4xf32> to vector<512x4xf32>
    %93 = arith.subf %76, %92 : vector<512x4xf32>
    %cst_32 = arith.constant 9.99999974E-6 : f32
    %94 = vector.broadcast %cst_32 : f32 to vector<1x4xf32>
    %95 = arith.addf %91, %94 : vector<1x4xf32>
    %96 = math.rsqrt %95 : vector<1x4xf32>
    %97 = arith.mulf %96, %77 : vector<1x4xf32>
    %98 = vector.broadcast %97 : vector<1x4xf32> to vector<512x4xf32>
    %99 = arith.mulf %93, %98 : vector<512x4xf32>
    %100 = vector.broadcast %78 : vector<1x4xf32> to vector<512x4xf32>
    %101 = arith.addf %99, %100 : vector<512x4xf32>
    %cst_33 = arith.constant 0.000000e+00 : f32
    %102 = vector.broadcast %cst_33 : f32 to vector<512x4xf32>
    %103 = arith.maximumf %101, %102 : vector<512x4xf32>
    %c0_34 = arith.constant 0 : index
    %c0_35 = arith.constant 0 : index
    %104 = vector.load %arg1[%c0_34, %c0_35] : memref<512x4xf32, #tpu.memory_space<vmem>>, vector<512x4xf32>
    %105 = arith.addf %103, %104 : vector<512x4xf32>
    %cst_36 = arith.constant 0.000000e+00 : f32
    %106 = vector.broadcast %cst_36 : f32 to vector<512x4xf32>
    %107 = arith.maximumf %105, %106 : vector<512x4xf32>
    %c0_37 = arith.constant 0 : index
    %c0_38 = arith.constant 0 : index
    %108 = vector.load %arg8[%c0_37, %c0_38] : memref<512x4xf32, #tpu.memory_space<vmem>>, vector<512x4xf32>
    tpu.vector_store %arg8[%c0_37, %c0_38], %107 {strides = array<i32>} : memref<512x4xf32, #tpu.memory_space<vmem>>, vector<512x4xf32>,
    return
  }
}

</mosaic_0001>

<llo_original>
// kernel: tpu_custom_call.1
$region0: #{tpu_custom_call.1}
  #allocation0 [shape = 'u32[]', space=smem, size = 0x4, offset = 0x4, fixed_abs, tag = 'smem constant byte address 0x4 - core index']
  #allocation1 [shape = 'u32[144,128]{1,0:T(1,128)}', space=vmem, size = 0x12000, scoped, tag = 'internal scratch']
  %s0 = inlined_call_operand.vmem [shape: bf16[2,20,26,4], index: 0, kind: input, shape index: {}]
  %s1 = inlined_call_operand.vmem [shape: f32[512,4], index: 1, kind: input, shape index: {}]
  %s2 = inlined_call_operand.vmem [shape: bf16[36,4], index: 2, kind: input, shape index: {}]
  %s3 = inlined_call_operand.vmem [shape: f32[1,4], index: 3, kind: input, shape index: {}]
  %s4 = inlined_call_operand.vmem [shape: f32[1,4], index: 4, kind: input, shape index: {}]
  %s5 = inlined_call_operand.vmem [shape: bf16[36,4], index: 5, kind: input, shape index: {}]
  %s6 = inlined_call_operand.vmem [shape: f32[1,4], index: 6, kind: input, shape index: {}]
  %s7 = inlined_call_operand.vmem [shape: f32[1,4], index: 7, kind: input, shape index: {}]
  %s8 = inlined_call_operand.vmem [shape: f32[512,4], index: 8, kind: output, shape index: {}]
  %s9 = sld [smem:[#allocation0]]
  $region42: #{tpu_custom_call.1} parent=0
    _
  %s11 = ssub.s32 1, %s9
  %s12 = scalar_select 0, %s11, %s9
  // Predicated region
  $region2: #{tpu_custom_call.1} parent=0 // pred_check
    _
  $region3: #{tpu_custom_call.1} parent=0 // pred_check_branch
    %14 = sbr.rel (0) target = $region5
  $region4: #{tpu_custom_call.1} parent=0 // pred_region
    _
  $region5: #{tpu_custom_call.1} parent=0 // pred_fallthru
    _
  // Predicated region
  $region6: #{tpu_custom_call.1} parent=0 // pred_check
    _
  $region7: #{tpu_custom_call.1} parent=0 // pred_check_branch
    %16 = sbr.rel (0) target = $region9
  $region8: #{tpu_custom_call.1} parent=0 // pred_region
    _
  $region9: #{tpu_custom_call.1} parent=0 // pred_fallthru
    _
  // Predicated region
  $region10: #{tpu_custom_call.1} parent=0 // pred_check
    _
  $region11: #{tpu_custom_call.1} parent=0 // pred_check_branch
    %18 = sbr.rel (0) target = $region13
  $region12: #{tpu_custom_call.1} parent=0 // pred_region
    _
  $region13: #{tpu_custom_call.1} parent=0 // pred_fallthru
    _
  // Predicated region
  $region14: #{tpu_custom_call.1} parent=0 // pred_check
    _
  $region15: #{tpu_custom_call.1} parent=0 // pred_check_branch
    %20 = sbr.rel (0) target = $region17
  $region16: #{tpu_custom_call.1} parent=0 // pred_region
    _
  $region17: #{tpu_custom_call.1} parent=0 // pred_fallthru
    _
  // Predicated region
  $region18: #{tpu_custom_call.1} parent=0 // pred_check
    _
  $region19: #{tpu_custom_call.1} parent=0 // pred_check_branch
    %22 = sbr.rel (0) target = $region21
  $region20: #{tpu_custom_call.1} parent=0 // pred_region
    _
  $region21: #{tpu_custom_call.1} parent=0 // pred_fallthru
    _
  // Predicated region
  $region22: #{tpu_custom_call.1} parent=0 // pred_check
    _
  $region23: #{tpu_custom_call.1} parent=0 // pred_check_branch
    %24 = sbr.rel (0) target = $region25
  $region24: #{tpu_custom_call.1} parent=0 // pred_region
    _
  $region25: #{tpu_custom_call.1} parent=0 // pred_fallthru
    _
  // Predicated region
  $region26: #{tpu_custom_call.1} parent=0 // pred_check
    _
  $region27: #{tpu_custom_call.1} parent=0 // pred_check_branch
    %26 = sbr.rel (0) target = $region29
  $region28: #{tpu_custom_call.1} parent=0 // pred_region
    _
  $region29: #{tpu_custom_call.1} parent=0 // pred_fallthru
    _
  // Predicated region
  $region30: #{tpu_custom_call.1} parent=0 // pred_check
    _
  $region31: #{tpu_custom_call.1} parent=0 // pred_check_branch
    %28 = sbr.rel (0) target = $region33
  $region32: #{tpu_custom_call.1} parent=0 // pred_region
    _
  $region33: #{tpu_custom_call.1} parent=0 // pred_fallthru
    _
  %v30 = vlaneseq
  %v31 = vshrl.u32 %v30, 7
  %v32 = vadd.s32 %v31, 8
  %v33 = vadd.s32 %v31, 16
  %vm34 = vcmp.ge.s32.totalorder %v31, 1
  %vm35 = vcmp.ge.s32.totalorder %v32, 1
  %vm36 = vcmp.ge.s32.totalorder %v33, 1
  %vm37 = vmand 0, %vm34
  %vm38 = vmand 0, %vm35
  %vm39 = vmand 0, %vm36
  %vm40 = vmand 1, %vm34
  %vm41 = vmand 1, %vm35
  %vm42 = vmand 1, %vm36
  %vm43 = vcmp.le.s32.totalorder %v31, 16
  %vm44 = vcmp.le.s32.totalorder %v32, 16
  %vm45 = vcmp.le.s32.totalorder %v33, 16
  %vm46 = vmand %vm37, %vm43
  %vm47 = vmand %vm38, %vm44
  %vm48 = vmand %vm39, %vm45
  %vm49 = vmand %vm40, %vm43
  %vm50 = vmand %vm41, %vm44
  %vm51 = vmand %vm42, %vm45
  %v52 = vsel %vm46, 1.0, 0.0
  %v53 = vsel %vm47, 1.0, 0.0
  %v54 = vsel %vm48, 1.0, 0.0
  %v55 = vsel %vm49, 1.0, 0.0
  %v56 = vsel %vm50, 1.0, 0.0
  %v57 = vsel %vm51, 1.0, 0.0
  %v58 = vld [vmem:[%s0] sm:$0xf]
  %v59 = vld [vmem:[%s0 + $0x4] sm:$0xf]
  %v60 = vld [vmem:[%s0 + $0x8] sm:$0xf]
  %v61 = vld [vmem:[%s0 + $0xc] sm:$0x1]
  %v62 = vld [vmem:[%s0 + $0x10] sm:$0xf]
  %v63 = vld [vmem:[%s0 + $0x14] sm:$0xf]
  %v64 = vld [vmem:[%s0 + $0x18] sm:$0xf]
  %v65 = vld [vmem:[%s0 + $0x1c] sm:$0x1]
  %v66 = vld [vmem:[%s0 + $0x20] sm:$0xf]
  %v67 = vld [vmem:[%s0 + $0x24] sm:$0xf]
  %v68 = vld [vmem:[%s0 + $0x28] sm:$0xf]
  %v69 = vld [vmem:[%s0 + $0x2c] sm:$0x1]
  %v70 = vld [vmem:[%s0 + $0x30] sm:$0xf]
  %v71 = vld [vmem:[%s0 + $0x34] sm:$0xf]
  %v72 = vld [vmem:[%s0 + $0x38] sm:$0xf]
  %v73 = vld [vmem:[%s0 + $0x3c] sm:$0x1]
  %v74 = vld [vmem:[%s0 + $0x40] sm:$0xf]
  %v75 = vld [vmem:[%s0 + $0x44] sm:$0xf]
  %v76 = vld [vmem:[%s0 + $0x48] sm:$0xf]
  %v77 = vld [vmem:[%s0 + $0x4c] sm:$0x1]
  %v78 = vld [vmem:[%s0 + $0x50] sm:$0xf]
  %v79 = vld [vmem:[%s0 + $0x54] sm:$0xf]
  %v80 = vld [vmem:[%s0 + $0x58] sm:$0xf]
  %v81 = vld [vmem:[%s0 + $0x5c] sm:$0x1]
  %v82 = vld [vmem:[%s0 + $0x60] sm:$0xf]
  %v83 = vld [vmem:[%s0 + $0x64] sm:$0xf]
  %v84 = vld [vmem:[%s0 + $0x68] sm:$0xf]
  %v85 = vld [vmem:[%s0 + $0x6c] sm:$0x1]
  %v86 = vld [vmem:[%s0 + $0x70] sm:$0xf]
  %v87 = vld [vmem:[%s0 + $0x74] sm:$0xf]
  %v88 = vld [vmem:[%s0 + $0x78] sm:$0xf]
  %v89 = vld [vmem:[%s0 + $0x7c] sm:$0x1]
  %v90 = vld [vmem:[%s0 + $0x80] sm:$0xf]
  %v91 = vld [vmem:[%s0 + $0x84] sm:$0xf]
  %v92 = vld [vmem:[%s0 + $0x88] sm:$0xf]
  %v93 = vld [vmem:[%s0 + $0x8c] sm:$0x1]
  %v94 = vld [vmem:[%s0 + $0x90] sm:$0xf]
  %v95 = vld [vmem:[%s0 + $0x94] sm:$0xf]
  %v96 = vld [vmem:[%s0 + $0x98] sm:$0xf]
  %v97 = vld [vmem:[%s0 + $0x9c] sm:$0x1]
  %v98 = vld [vmem:[%s0 + $0xa0] sm:$0xf]
  %v99 = vld [vmem:[%s0 + $0xa4] sm:$0xf]
  %v100 = vld [vmem:[%s0 + $0xa8] sm:$0xf]
  %v101 = vld [vmem:[%s0 + $0xac] sm:$0x1]
  %v102 = vld [vmem:[%s0 + $0xb0] sm:$0xf]
  %v103 = vld [vmem:[%s0 + $0xb4] sm:$0xf]
  %v104 = vld [vmem:[%s0 + $0xb8] sm:$0xf]
  %v105 = vld [vmem:[%s0 + $0xbc] sm:$0x1]
  %v106 = vld [vmem:[%s0 + $0xc0] sm:$0xf]
  %v107 = vld [vmem:[%s0 + $0xc4] sm:$0xf]
  %v108 = vld [vmem:[%s0 + $0xc8] sm:$0xf]
  %v109 = vld [vmem:[%s0 + $0xcc] sm:$0x1]
  %v110 = vld [vmem:[%s0 + $0xd0] sm:$0xf]
  %v111 = vld [vmem:[%s0 + $0xd4] sm:$0xf]
  %v112 = vld [vmem:[%s0 + $0xd8] sm:$0xf]
  %v113 = vld [vmem:[%s0 + $0xdc] sm:$0x1]
  %v114 = vld [vmem:[%s0 + $0xe0] sm:$0xf]
  %v115 = vld [vmem:[%s0 + $0xe4] sm:$0xf]
  %v116 = vld [vmem:[%s0 + $0xe8] sm:$0xf]
  %v117 = vld [vmem:[%s0 + $0xec] sm:$0x1]
  %v118 = vld [vmem:[%s0 + $0xf0] sm:$0xf]
  %v119 = vld [vmem:[%s0 + $0xf4] sm:$0xf]
  %v120 = vld [vmem:[%s0 + $0xf8] sm:$0xf]
  %v121 = vld [vmem:[%s0 + $0xfc] sm:$0x1]
  %v122 = vld [vmem:[%s0 + $0x100] sm:$0xf]
  %v123 = vld [vmem:[%s0 + $0x104] sm:$0xf]
  %v124 = vld [vmem:[%s0 + $0x108] sm:$0xf]
  %v125 = vld [vmem:[%s0 + $0x10c] sm:$0x1]
  %v126 = vld [vmem:[%s0 + $0x110] sm:$0xf]
  %v127 = vld [vmem:[%s0 + $0x114] sm:$0xf]
  %v128 = vld [vmem:[%s0 + $0x118] sm:$0xf]
  %v129 = vld [vmem:[%s0 + $0x11c] sm:$0x1]
  %v130 = vld [vmem:[%s0 + $0x120] sm:$0xf]
  %v131 = vld [vmem:[%s0 + $0x124] sm:$0xf]
  %v132 = vld [vmem:[%s0 + $0x128] sm:$0xf]
  %v133 = vld [vmem:[%s0 + $0x12c] sm:$0x1]
  %v134 = vld [vmem:[%s0 + $0x130] sm:$0xf]
  %v135 = vld [vmem:[%s0 + $0x134] sm:$0xf]
  %v136 = vld [vmem:[%s0 + $0x138] sm:$0xf]
  %v137 = vld [vmem:[%s0 + $0x13c] sm:$0x1]
  %v138 = vld [vmem:[%s0 + $0x140] sm:$0xf]
  %v139 = vld [vmem:[%s0 + $0x144] sm:$0xf]
  %v140 = vld [vmem:[%s0 + $0x148] sm:$0xf]
  %v141 = vld [vmem:[%s0 + $0x14c] sm:$0x1]
  %v142 = vld [vmem:[%s0 + $0x150] sm:$0xf]
  %v143 = vld [vmem:[%s0 + $0x154] sm:$0xf]
  %v144 = vld [vmem:[%s0 + $0x158] sm:$0xf]
  %v145 = vld [vmem:[%s0 + $0x15c] sm:$0x1]
  %v146 = vld [vmem:[%s0 + $0x160] sm:$0xf]
  %v147 = vld [vmem:[%s0 + $0x164] sm:$0xf]
  %v148 = vld [vmem:[%s0 + $0x168] sm:$0xf]
  %v149 = vld [vmem:[%s0 + $0x16c] sm:$0x1]
  %v150 = vld [vmem:[%s0 + $0x170] sm:$0xf]
  %v151 = vld [vmem:[%s0 + $0x174] sm:$0xf]
  %v152 = vld [vmem:[%s0 + $0x178] sm:$0xf]
  %v153 = vld [vmem:[%s0 + $0x17c] sm:$0x1]
  %v154 = vld [vmem:[%s0 + $0x180] sm:$0xf]
  %v155 = vld [vmem:[%s0 + $0x184] sm:$0xf]
  %v156 = vld [vmem:[%s0 + $0x188] sm:$0xf]
  %v157 = vld [vmem:[%s0 + $0x18c] sm:$0x1]
  %v158 = vld [vmem:[%s0 + $0x190] sm:$0xf]
  %v159 = vld [vmem:[%s0 + $0x194] sm:$0xf]
  %v160 = vld [vmem:[%s0 + $0x198] sm:$0xf]
  %v161 = vld [vmem:[%s0 + $0x19c] sm:$0x1]
  %v162 = vld [vmem:[%s0 + $0x1a0] sm:$0xf]
  %v163 = vld [vmem:[%s0 + $0x1a4] sm:$0xf]
  %v164 = vld [vmem:[%s0 + $0x1a8] sm:$0xf]
  %v165 = vld [vmem:[%s0 + $0x1ac] sm:$0x1]
  %v166 = vld [vmem:[%s0 + $0x1b0] sm:$0xf]
  %v167 = vld [vmem:[%s0 + $0x1b4] sm:$0xf]
  %v168 = vld [vmem:[%s0 + $0x1b8] sm:$0xf]
  %v169 = vld [vmem:[%s0 + $0x1bc] sm:$0x1]
  %v170 = vld [vmem:[%s0 + $0x1c0] sm:$0xf]
  %v171 = vld [vmem:[%s0 + $0x1c4] sm:$0xf]
  %v172 = vld [vmem:[%s0 + $0x1c8] sm:$0xf]
  %v173 = vld [vmem:[%s0 + $0x1cc] sm:$0x1]
  %v174 = vld [vmem:[%s0 + $0x1d0] sm:$0xf]
  %v175 = vld [vmem:[%s0 + $0x1d4] sm:$0xf]
  %v176 = vld [vmem:[%s0 + $0x1d8] sm:$0xf]
  %v177 = vld [vmem:[%s0 + $0x1dc] sm:$0x1]
  %v178 = vld [vmem:[%s0 + $0x1e0] sm:$0xf]
  %v179 = vld [vmem:[%s0 + $0x1e4] sm:$0xf]
  %v180 = vld [vmem:[%s0 + $0x1e8] sm:$0xf]
  %v181 = vld [vmem:[%s0 + $0x1ec] sm:$0x1]
  %v182 = vld [vmem:[%s0 + $0x1f0] sm:$0xf]
  %v183 = vld [vmem:[%s0 + $0x1f4] sm:$0xf]
  %v184 = vld [vmem:[%s0 + $0x1f8] sm:$0xf]
  %v185 = vld [vmem:[%s0 + $0x1fc] sm:$0x1]
  %v186 = vld [vmem:[%s0 + $0x200] sm:$0xf]
  %v187 = vld [vmem:[%s0 + $0x204] sm:$0xf]
  %v188 = vld [vmem:[%s0 + $0x208] sm:$0xf]
  %v189 = vld [vmem:[%s0 + $0x20c] sm:$0x1]
  %v190 = vld [vmem:[%s0 + $0x210] sm:$0xf]
  %v191 = vld [vmem:[%s0 + $0x214] sm:$0xf]
  %v192 = vld [vmem:[%s0 + $0x218] sm:$0xf]
  %v193 = vld [vmem:[%s0 + $0x21c] sm:$0x1]
  %v194 = vld [vmem:[%s0 + $0x220] sm:$0xf]
  %v195 = vld [vmem:[%s0 + $0x224] sm:$0xf]
  %v196 = vld [vmem:[%s0 + $0x228] sm:$0xf]
  %v197 = vld [vmem:[%s0 + $0x22c] sm:$0x1]
  %v198 = vld [vmem:[%s0 + $0x230] sm:$0xf]
  %v199 = vld [vmem:[%s0 + $0x234] sm:$0xf]
  %v200 = vld [vmem:[%s0 + $0x238] sm:$0xf]
  %v201 = vld [vmem:[%s0 + $0x23c] sm:$0x1]
  %v202 = vld [vmem:[%s0 + $0x240] sm:$0xf]
  %v203 = vld [vmem:[%s0 + $0x244] sm:$0xf]
  %v204 = vld [vmem:[%s0 + $0x248] sm:$0xf]
  %v205 = vld [vmem:[%s0 + $0x24c] sm:$0x1]
  %v206 = vld [vmem:[%s0 + $0x250] sm:$0xf]
  %v207 = vld [vmem:[%s0 + $0x254] sm:$0xf]
  %v208 = vld [vmem:[%s0 + $0x258] sm:$0xf]
  %v209 = vld [vmem:[%s0 + $0x25c] sm:$0x1]
  %v210 = vld [vmem:[%s0 + $0x260] sm:$0xf]
  %v211 = vld [vmem:[%s0 + $0x264] sm:$0xf]
  %v212 = vld [vmem:[%s0 + $0x268] sm:$0xf]
  %v213 = vld [vmem:[%s0 + $0x26c] sm:$0x1]
  %v214 = vld [vmem:[%s0 + $0x270] sm:$0xf]
  %v215 = vld [vmem:[%s0 + $0x274] sm:$0xf]
  %v216 = vld [vmem:[%s0 + $0x278] sm:$0xf]
  %v217 = vld [vmem:[%s0 + $0x27c] sm:$0x1]
  %v218 = vld [vmem:[%s2] sm:$0xf]
  %v219 = vld [vmem:[%s2 + $0x4] sm:$0xf]
  %v220 = vld [vmem:[%s2 + $0x8] sm:$0xf]
  %v221 = vld [vmem:[%s2 + $0xc] sm:$0xf]
  %v222 = vld [vmem:[%s2 + $0x10] sm:$0x3]
  %v331 = vunpack.c.l.b16 %v58
  %v332 = vunpack.c.l.b16 %v59
  %v333 = vunpack.c.l.b16 %v60
  %v334 = vunpack.c.l.b16 %v62
  %v335 = vunpack.c.l.b16 %v63
  %v336 = vunpack.c.l.b16 %v64
  %v337 = vunpack.c.l.b16 %v66
  %v338 = vunpack.c.l.b16 %v67
  %v339 = vunpack.c.l.b16 %v68
  %v340 = vunpack.c.l.b16 %v70
  %v341 = vunpack.c.l.b16 %v71
  %v342 = vunpack.c.l.b16 %v72
  %v343 = vunpack.c.l.b16 %v74
  %v344 = vunpack.c.l.b16 %v75
  %v345 = vunpack.c.l.b16 %v76
  %v346 = vunpack.c.l.b16 %v78
  %v347 = vunpack.c.l.b16 %v79
  %v348 = vunpack.c.l.b16 %v80
  %v349 = vunpack.c.l.b16 %v82
  %v350 = vunpack.c.l.b16 %v83
  %v351 = vunpack.c.l.b16 %v84
  %v352 = vunpack.c.l.b16 %v86
  %v353 = vunpack.c.l.b16 %v87
  %v354 = vunpack.c.l.b16 %v88
  %v355 = vunpack.c.l.b16 %v90
  %v356 = vunpack.c.l.b16 %v91
  %v357 = vunpack.c.l.b16 %v92
  %v358 = vunpack.c.l.b16 %v94
  %v359 = vunpack.c.l.b16 %v95
  %v360 = vunpack.c.l.b16 %v96
  %v361 = vunpack.c.l.b16 %v98
  %v362 = vunpack.c.l.b16 %v99
  %v363 = vunpack.c.l.b16 %v100
  %v364 = vunpack.c.l.b16 %v102
  %v365 = vunpack.c.l.b16 %v103
  %v366 = vunpack.c.l.b16 %v104
  %v367 = vunpack.c.l.b16 %v106
  %v368 = vunpack.c.l.b16 %v107
  %v369 = vunpack.c.l.b16 %v108
  %v370 = vunpack.c.l.b16 %v110
  %v371 = vunpack.c.l.b16 %v111
  %v372 = vunpack.c.l.b16 %v112
  %v373 = vunpack.c.l.b16 %v114
  %v374 = vunpack.c.l.b16 %v115
  %v375 = vunpack.c.l.b16 %v116
  %v376 = vunpack.c.l.b16 %v118
  %v377 = vunpack.c.l.b16 %v119
  %v378 = vunpack.c.l.b16 %v120
  %v379 = vunpack.c.l.b16 %v122
  %v380 = vunpack.c.l.b16 %v123
  %v381 = vunpack.c.l.b16 %v124
  %v382 = vunpack.c.l.b16 %v126
  %v383 = vunpack.c.l.b16 %v127
  %v384 = vunpack.c.l.b16 %v128
  %v385 = vunpack.c.l.b16 %v138
  %v386 = vunpack.c.l.b16 %v139
  %v387 = vunpack.c.l.b16 %v140
  %v388 = vunpack.c.l.b16 %v142
  %v389 = vunpack.c.l.b16 %v143
  %v390 = vunpack.c.l.b16 %v144
  %v391 = vunpack.c.l.b16 %v146
  %v392 = vunpack.c.l.b16 %v147
  %v393 = vunpack.c.l.b16 %v148
  %v394 = vunpack.c.l.b16 %v150
  %v395 = vunpack.c.l.b16 %v151
  %v396 = vunpack.c.l.b16 %v152
  %v397 = vunpack.c.l.b16 %v154
  %v398 = vunpack.c.l.b16 %v155
  %v399 = vunpack.c.l.b16 %v156
  %v400 = vunpack.c.l.b16 %v158
  %v401 = vunpack.c.l.b16 %v159
  %v402 = vunpack.c.l.b16 %v160
  %v403 = vunpack.c.l.b16 %v162
  %v404 = vunpack.c.l.b16 %v163
  %v405 = vunpack.c.l.b16 %v164
  %v406 = vunpack.c.l.b16 %v166
  %v407 = vunpack.c.l.b16 %v167
  %v408 = vunpack.c.l.b16 %v168
  %v409 = vunpack.c.l.b16 %v170
  %v410 = vunpack.c.l.b16 %v171
  %v411 = vunpack.c.l.b16 %v172
  %v412 = vunpack.c.l.b16 %v174
  %v413 = vunpack.c.l.b16 %v175
  %v414 = vunpack.c.l.b16 %v176
  %v415 = vunpack.c.l.b16 %v178
  %v416 = vunpack.c.l.b16 %v179
  %v417 = vunpack.c.l.b16 %v180
  %v418 = vunpack.c.l.b16 %v182
  %v419 = vunpack.c.l.b16 %v183
  %v420 = vunpack.c.l.b16 %v184
  %v421 = vunpack.c.l.b16 %v186
  %v422 = vunpack.c.l.b16 %v187
  %v423 = vunpack.c.l.b16 %v188
  %v424 = vunpack.c.l.b16 %v190
  %v425 = vunpack.c.l.b16 %v191
  %v426 = vunpack.c.l.b16 %v192
  %v427 = vunpack.c.l.b16 %v194
  %v428 = vunpack.c.l.b16 %v195
  %v429 = vunpack.c.l.b16 %v196
  %v430 = vunpack.c.l.b16 %v198
  %v431 = vunpack.c.l.b16 %v199
  %v432 = vunpack.c.l.b16 %v200
  %v433 = vunpack.c.l.b16 %v202
  %v434 = vunpack.c.l.b16 %v203
  %v435 = vunpack.c.l.b16 %v204
  %v436 = vunpack.c.l.b16 %v206
  %v437 = vunpack.c.l.b16 %v207
  %v438 = vunpack.c.l.b16 %v208
  %v439 = vpack.c.b16 %v332, %v331
  %v440 = vpack.c.b16 %v333, %v333
  %v441 = vpack.c.b16 %v335, %v334
  %v442 = vpack.c.b16 %v336, %v336
  %v443 = vpack.c.b16 %v338, %v337
  %v444 = vpack.c.b16 %v339, %v339
  %v445 = vpack.c.b16 %v341, %v340
  %v446 = vpack.c.b16 %v342, %v342
  %v447 = vpack.c.b16 %v344, %v343
  %v448 = vpack.c.b16 %v345, %v345
  %v449 = vpack.c.b16 %v347, %v346
  %v450 = vpack.c.b16 %v348, %v348
  %v451 = vpack.c.b16 %v350, %v349
  %v452 = vpack.c.b16 %v351, %v351
  %v453 = vpack.c.b16 %v353, %v352
  %v454 = vpack.c.b16 %v354, %v354
  %v455 = vpack.c.b16 %v356, %v355
  %v456 = vpack.c.b16 %v357, %v357
  %v457 = vpack.c.b16 %v359, %v358
  %v458 = vpack.c.b16 %v360, %v360
  %v459 = vpack.c.b16 %v362, %v361
  %v460 = vpack.c.b16 %v363, %v363
  %v461 = vpack.c.b16 %v365, %v364
  %v462 = vpack.c.b16 %v366, %v366
  %v463 = vpack.c.b16 %v368, %v367
  %v464 = vpack.c.b16 %v369, %v369
  %v465 = vpack.c.b16 %v371, %v370
  %v466 = vpack.c.b16 %v372, %v372
  %v467 = vpack.c.b16 %v374, %v373
  %v468 = vpack.c.b16 %v375, %v375
  %v469 = vpack.c.b16 %v377, %v376
  %v470 = vpack.c.b16 %v378, %v378
  %v471 = vpack.c.b16 %v380, %v379
  %v472 = vpack.c.b16 %v381, %v381
  %v473 = vpack.c.b16 %v383, %v382
  %v474 = vpack.c.b16 %v384, %v384
  %v475 = vpack.c.b16 %v386, %v385
  %v476 = vpack.c.b16 %v387, %v387
  %v477 = vpack.c.b16 %v389, %v388
  %v478 = vpack.c.b16 %v390, %v390
  %v479 = vpack.c.b16 %v392, %v391
  %v480 = vpack.c.b16 %v393, %v393
  %v481 = vpack.c.b16 %v395, %v394
  %v482 = vpack.c.b16 %v396, %v396
  %v483 = vpack.c.b16 %v398, %v397
  %v484 = vpack.c.b16 %v399, %v399
  %v485 = vpack.c.b16 %v401, %v400
  %v486 = vpack.c.b16 %v402, %v402
  %v487 = vpack.c.b16 %v404, %v403
  %v488 = vpack.c.b16 %v405, %v405
  %v489 = vpack.c.b16 %v407, %v406
  %v490 = vpack.c.b16 %v408, %v408
  %v491 = vpack.c.b16 %v410, %v409
  %v492 = vpack.c.b16 %v411, %v411
  %v493 = vpack.c.b16 %v413, %v412
  %v494 = vpack.c.b16 %v414, %v414
  %v495 = vpack.c.b16 %v416, %v415
  %v496 = vpack.c.b16 %v417, %v417
  %v497 = vpack.c.b16 %v419, %v418
  %v498 = vpack.c.b16 %v420, %v420
  %v499 = vpack.c.b16 %v422, %v421
  %v500 = vpack.c.b16 %v423, %v423
  %v501 = vpack.c.b16 %v425, %v424
  %v502 = vpack.c.b16 %v426, %v426
  %v503 = vpack.c.b16 %v428, %v427
  %v504 = vpack.c.b16 %v429, %v429
  %v505 = vpack.c.b16 %v431, %v430
  %v506 = vpack.c.b16 %v432, %v432
  %v507 = vpack.c.b16 %v434, %v433
  %v508 = vpack.c.b16 %v435, %v435
  %v509 = vpack.c.b16 %v437, %v436
  %v510 = vpack.c.b16 %v438, %v438
  %v547 = vunpack.c.l.b16 %v61
  %v548 = vunpack.c.l.b16 %v65
  %v549 = vunpack.c.l.b16 %v69
  %v550 = vunpack.c.l.b16 %v73
  %v551 = vunpack.c.l.b16 %v77
  %v552 = vunpack.c.l.b16 %v81
  %v553 = vunpack.c.l.b16 %v85
  %v554 = vunpack.c.l.b16 %v89
  %v555 = vunpack.c.l.b16 %v93
  %v556 = vunpack.c.l.b16 %v97
  %v557 = vunpack.c.l.b16 %v101
  %v558 = vunpack.c.l.b16 %v105
  %v559 = vunpack.c.l.b16 %v109
  %v560 = vunpack.c.l.b16 %v113
  %v561 = vunpack.c.l.b16 %v117
  %v562 = vunpack.c.l.b16 %v121
  %v563 = vunpack.c.l.b16 %v125
  %v564 = vunpack.c.l.b16 %v129
  %v565 = vunpack.c.l.b16 %v141
  %v566 = vunpack.c.l.b16 %v145
  %v567 = vunpack.c.l.b16 %v149
  %v568 = vunpack.c.l.b16 %v153
  %v569 = vunpack.c.l.b16 %v157
  %v570 = vunpack.c.l.b16 %v161
  %v571 = vunpack.c.l.b16 %v165
  %v572 = vunpack.c.l.b16 %v169
  %v573 = vunpack.c.l.b16 %v173
  %v574 = vunpack.c.l.b16 %v177
  %v575 = vunpack.c.l.b16 %v181
  %v576 = vunpack.c.l.b16 %v185
  %v577 = vunpack.c.l.b16 %v189
  %v578 = vunpack.c.l.b16 %v193
  %v579 = vunpack.c.l.b16 %v197
  %v580 = vunpack.c.l.b16 %v201
  %v581 = vunpack.c.l.b16 %v205
  %v582 = vunpack.c.l.b16 %v209
  %v583 = vpack.c.b16 %v547, %v333
  %v584 = vpack.c.b16 %v548, %v336
  %v585 = vpack.c.b16 %v549, %v339
  %v586 = vpack.c.b16 %v550, %v342
  %v587 = vpack.c.b16 %v551, %v345
  %v588 = vpack.c.b16 %v552, %v348
  %v589 = vpack.c.b16 %v553, %v351
  %v590 = vpack.c.b16 %v554, %v354
  %v591 = vpack.c.b16 %v555, %v357
  %v592 = vpack.c.b16 %v556, %v360
  %v593 = vpack.c.b16 %v557, %v363
  %v594 = vpack.c.b16 %v558, %v366
  %v595 = vpack.c.b16 %v559, %v369
  %v596 = vpack.c.b16 %v560, %v372
  %v597 = vpack.c.b16 %v561, %v375
  %v598 = vpack.c.b16 %v562, %v378
  %v599 = vpack.c.b16 %v563, %v381
  %v600 = vpack.c.b16 %v564, %v384
  %v601 = vpack.c.b16 %v565, %v387
  %v602 = vpack.c.b16 %v566, %v390
  %v603 = vpack.c.b16 %v567, %v393
  %v604 = vpack.c.b16 %v568, %v396
  %v605 = vpack.c.b16 %v569, %v399
  %v606 = vpack.c.b16 %v570, %v402
  %v607 = vpack.c.b16 %v571, %v405
  %v608 = vpack.c.b16 %v572, %v408
  %v609 = vpack.c.b16 %v573, %v411
  %v610 = vpack.c.b16 %v574, %v414
  %v611 = vpack.c.b16 %v575, %v417
  %v612 = vpack.c.b16 %v576, %v420
  %v613 = vpack.c.b16 %v577, %v423
  %v614 = vpack.c.b16 %v578, %v426
  %v615 = vpack.c.b16 %v579, %v429
  %v616 = vpack.c.b16 %v580, %v432
  %v617 = vpack.c.b16 %v581, %v435
  %v618 = vpack.c.b16 %v582, %v438
  %vm619 = vsmask.f32 7424
  %v621 = vshrl.u32 %v439, 16
  %v623 = vshll.u32 %v439, 16
  %v625 = vrot.slane %v623, 1
  %v626 = vor.u32 %v621, %v625
  %v628 = vshll.u32 %v583, 16
  %v630 = vrot.slane %v628, 1
  %v631 = vsel %vm619, %v626, %v630
  %v632 = vshrl.u32 %v583, 16
  %v634 = vor.u32 %v632, %v630
  %v636 = vshrl.u32 %v441, 16
  %v638 = vshll.u32 %v441, 16
  %v640 = vrot.slane %v638, 1
  %v641 = vor.u32 %v636, %v640
  %v643 = vshll.u32 %v584, 16
  %v645 = vrot.slane %v643, 1
  %v646 = vsel %vm619, %v641, %v645
  %v647 = vshrl.u32 %v584, 16
  %v649 = vor.u32 %v647, %v645
  %v651 = vshrl.u32 %v443, 16
  %v653 = vshll.u32 %v443, 16
  %v655 = vrot.slane %v653, 1
  %v656 = vor.u32 %v651, %v655
  %v658 = vshll.u32 %v585, 16
  %v660 = vrot.slane %v658, 1
  %v661 = vsel %vm619, %v656, %v660
  %v662 = vshrl.u32 %v585, 16
  %v664 = vor.u32 %v662, %v660
  %v666 = vshrl.u32 %v445, 16
  %v668 = vshll.u32 %v445, 16
  %v670 = vrot.slane %v668, 1
  %v671 = vor.u32 %v666, %v670
  %v673 = vshll.u32 %v586, 16
  %v675 = vrot.slane %v673, 1
  %v676 = vsel %vm619, %v671, %v675
  %v677 = vshrl.u32 %v586, 16
  %v679 = vor.u32 %v677, %v675
  %v681 = vshrl.u32 %v447, 16
  %v683 = vshll.u32 %v447, 16
  %v685 = vrot.slane %v683, 1
  %v686 = vor.u32 %v681, %v685
  %v688 = vshll.u32 %v587, 16
  %v690 = vrot.slane %v688, 1
  %v691 = vsel %vm619, %v686, %v690
  %v692 = vshrl.u32 %v587, 16
  %v694 = vor.u32 %v692, %v690
  %v696 = vshrl.u32 %v449, 16
  %v698 = vshll.u32 %v449, 16
  %v700 = vrot.slane %v698, 1
  %v701 = vor.u32 %v696, %v700
  %v703 = vshll.u32 %v588, 16
  %v705 = vrot.slane %v703, 1
  %v706 = vsel %vm619, %v701, %v705
  %v707 = vshrl.u32 %v588, 16
  %v709 = vor.u32 %v707, %v705
  %v711 = vshrl.u32 %v451, 16
  %v713 = vshll.u32 %v451, 16
  %v715 = vrot.slane %v713, 1
  %v716 = vor.u32 %v711, %v715
  %v718 = vshll.u32 %v589, 16
  %v720 = vrot.slane %v718, 1
  %v721 = vsel %vm619, %v716, %v720
  %v722 = vshrl.u32 %v589, 16
  %v724 = vor.u32 %v722, %v720
  %v726 = vshrl.u32 %v453, 16
  %v728 = vshll.u32 %v453, 16
  %v730 = vrot.slane %v728, 1
  %v731 = vor.u32 %v726, %v730
  %v733 = vshll.u32 %v590, 16
  %v735 = vrot.slane %v733, 1
  %v736 = vsel %vm619, %v731, %v735
  %v737 = vshrl.u32 %v590, 16
  %v739 = vor.u32 %v737, %v735
  %v741 = vshrl.u32 %v455, 16
  %v743 = vshll.u32 %v455, 16
  %v745 = vrot.slane %v743, 1
  %v746 = vor.u32 %v741, %v745
  %v748 = vshll.u32 %v591, 16
  %v750 = vrot.slane %v748, 1
  %v751 = vsel %vm619, %v746, %v750
  %v752 = vshrl.u32 %v591, 16
  %v754 = vor.u32 %v752, %v750
  %v756 = vshrl.u32 %v457, 16
  %v758 = vshll.u32 %v457, 16
  %v760 = vrot.slane %v758, 1
  %v761 = vor.u32 %v756, %v760
  %v763 = vshll.u32 %v592, 16
  %v765 = vrot.slane %v763, 1
  %v766 = vsel %vm619, %v761, %v765
  %v767 = vshrl.u32 %v592, 16
  %v769 = vor.u32 %v767, %v765
  %v771 = vshrl.u32 %v459, 16
  %v773 = vshll.u32 %v459, 16
  %v775 = vrot.slane %v773, 1
  %v776 = vor.u32 %v771, %v775
  %v778 = vshll.u32 %v593, 16
  %v780 = vrot.slane %v778, 1
  %v781 = vsel %vm619, %v776, %v780
  %v782 = vshrl.u32 %v593, 16
  %v784 = vor.u32 %v782, %v780
  %v786 = vshrl.u32 %v461, 16
  %v788 = vshll.u32 %v461, 16
  %v790 = vrot.slane %v788, 1
  %v791 = vor.u32 %v786, %v790
  %v793 = vshll.u32 %v594, 16
  %v795 = vrot.slane %v793, 1
  %v796 = vsel %vm619, %v791, %v795
  %v797 = vshrl.u32 %v594, 16
  %v799 = vor.u32 %v797, %v795
  %v801 = vshrl.u32 %v463, 16
  %v803 = vshll.u32 %v463, 16
  %v805 = vrot.slane %v803, 1
  %v806 = vor.u32 %v801, %v805
  %v808 = vshll.u32 %v595, 16
  %v810 = vrot.slane %v808, 1
  %v811 = vsel %vm619, %v806, %v810
  %v812 = vshrl.u32 %v595, 16
  %v814 = vor.u32 %v812, %v810
  %v816 = vshrl.u32 %v465, 16
  %v818 = vshll.u32 %v465, 16
  %v820 = vrot.slane %v818, 1
  %v821 = vor.u32 %v816, %v820
  %v823 = vshll.u32 %v596, 16
  %v825 = vrot.slane %v823, 1
  %v826 = vsel %vm619, %v821, %v825
  %v827 = vshrl.u32 %v596, 16
  %v829 = vor.u32 %v827, %v825
  %v831 = vshrl.u32 %v467, 16
  %v833 = vshll.u32 %v467, 16
  %v835 = vrot.slane %v833, 1
  %v836 = vor.u32 %v831, %v835
  %v838 = vshll.u32 %v597, 16
  %v840 = vrot.slane %v838, 1
  %v841 = vsel %vm619, %v836, %v840
  %v842 = vshrl.u32 %v597, 16
  %v844 = vor.u32 %v842, %v840
  %v846 = vshrl.u32 %v469, 16
  %v848 = vshll.u32 %v469, 16
  %v850 = vrot.slane %v848, 1
  %v851 = vor.u32 %v846, %v850
  %v853 = vshll.u32 %v598, 16
  %v855 = vrot.slane %v853, 1
  %v856 = vsel %vm619, %v851, %v855
  %v857 = vshrl.u32 %v598, 16
  %v859 = vor.u32 %v857, %v855
  %v861 = vshrl.u32 %v471, 16
  %v863 = vshll.u32 %v471, 16
  %v865 = vrot.slane %v863, 1
  %v866 = vor.u32 %v861, %v865
  %v868 = vshll.u32 %v599, 16
  %v870 = vrot.slane %v868, 1
  %v871 = vsel %vm619, %v866, %v870
  %v872 = vshrl.u32 %v599, 16
  %v874 = vor.u32 %v872, %v870
  %v876 = vshrl.u32 %v473, 16
  %v878 = vshll.u32 %v473, 16
  %v880 = vrot.slane %v878, 1
  %v881 = vor.u32 %v876, %v880
  %v883 = vshll.u32 %v600, 16
  %v885 = vrot.slane %v883, 1
  %v886 = vsel %vm619, %v881, %v885
  %v887 = vshrl.u32 %v600, 16
  %v889 = vor.u32 %v887, %v885
  %v891 = vshrl.u32 %v475, 16
  %v893 = vshll.u32 %v475, 16
  %v895 = vrot.slane %v893, 1
  %v896 = vor.u32 %v891, %v895
  %v898 = vshll.u32 %v601, 16
  %v900 = vrot.slane %v898, 1
  %v901 = vsel %vm619, %v896, %v900
  %v902 = vshrl.u32 %v601, 16
  %v904 = vor.u32 %v902, %v900
  %v906 = vshrl.u32 %v477, 16
  %v908 = vshll.u32 %v477, 16
  %v910 = vrot.slane %v908, 1
  %v911 = vor.u32 %v906, %v910
  %v913 = vshll.u32 %v602, 16
  %v915 = vrot.slane %v913, 1
  %v916 = vsel %vm619, %v911, %v915
  %v917 = vshrl.u32 %v602, 16
  %v919 = vor.u32 %v917, %v915
  %v921 = vshrl.u32 %v479, 16
  %v923 = vshll.u32 %v479, 16
  %v925 = vrot.slane %v923, 1
  %v926 = vor.u32 %v921, %v925
  %v928 = vshll.u32 %v603, 16
  %v930 = vrot.slane %v928, 1
  %v931 = vsel %vm619, %v926, %v930
  %v932 = vshrl.u32 %v603, 16
  %v934 = vor.u32 %v932, %v930
  %v936 = vshrl.u32 %v481, 16
  %v938 = vshll.u32 %v481, 16
  %v940 = vrot.slane %v938, 1
  %v941 = vor.u32 %v936, %v940
  %v943 = vshll.u32 %v604, 16
  %v945 = vrot.slane %v943, 1
  %v946 = vsel %vm619, %v941, %v945
  %v947 = vshrl.u32 %v604, 16
  %v949 = vor.u32 %v947, %v945
  %v951 = vshrl.u32 %v483, 16
  %v953 = vshll.u32 %v483, 16
  %v955 = vrot.slane %v953, 1
  %v956 = vor.u32 %v951, %v955
  %v958 = vshll.u32 %v605, 16
  %v960 = vrot.slane %v958, 1
  %v961 = vsel %vm619, %v956, %v960
  %v962 = vshrl.u32 %v605, 16
  %v964 = vor.u32 %v962, %v960
  %v966 = vshrl.u32 %v485, 16
  %v968 = vshll.u32 %v485, 16
  %v970 = vrot.slane %v968, 1
  %v971 = vor.u32 %v966, %v970
  %v973 = vshll.u32 %v606, 16
  %v975 = vrot.slane %v973, 1
  %v976 = vsel %vm619, %v971, %v975
  %v977 = vshrl.u32 %v606, 16
  %v979 = vor.u32 %v977, %v975
  %v981 = vshrl.u32 %v487, 16
  %v983 = vshll.u32 %v487, 16
  %v985 = vrot.slane %v983, 1
  %v986 = vor.u32 %v981, %v985
  %v988 = vshll.u32 %v607, 16
  %v990 = vrot.slane %v988, 1
  %v991 = vsel %vm619, %v986, %v990
  %v992 = vshrl.u32 %v607, 16
  %v994 = vor.u32 %v992, %v990
  %v996 = vshrl.u32 %v489, 16
  %v998 = vshll.u32 %v489, 16
  %v1000 = vrot.slane %v998, 1
  %v1001 = vor.u32 %v996, %v1000
  %v1003 = vshll.u32 %v608, 16
  %v1005 = vrot.slane %v1003, 1
  %v1006 = vsel %vm619, %v1001, %v1005
  %v1007 = vshrl.u32 %v608, 16
  %v1009 = vor.u32 %v1007, %v1005
  %v1011 = vshrl.u32 %v491, 16
  %v1013 = vshll.u32 %v491, 16
  %v1015 = vrot.slane %v1013, 1
  %v1016 = vor.u32 %v1011, %v1015
  %v1018 = vshll.u32 %v609, 16
  %v1020 = vrot.slane %v1018, 1
  %v1021 = vsel %vm619, %v1016, %v1020
  %v1022 = vshrl.u32 %v609, 16
  %v1024 = vor.u32 %v1022, %v1020
  %v1026 = vshrl.u32 %v493, 16
  %v1028 = vshll.u32 %v493, 16
  %v1030 = vrot.slane %v1028, 1
  %v1031 = vor.u32 %v1026, %v1030
  %v1033 = vshll.u32 %v610, 16
  %v1035 = vrot.slane %v1033, 1
  %v1036 = vsel %vm619, %v1031, %v1035
  %v1037 = vshrl.u32 %v610, 16
  %v1039 = vor.u32 %v1037, %v1035
  %v1041 = vshrl.u32 %v495, 16
  %v1043 = vshll.u32 %v495, 16
  %v1045 = vrot.slane %v1043, 1
  %v1046 = vor.u32 %v1041, %v1045
  %v1048 = vshll.u32 %v611, 16
  %v1050 = vrot.slane %v1048, 1
  %v1051 = vsel %vm619, %v1046, %v1050
  %v1052 = vshrl.u32 %v611, 16
  %v1054 = vor.u32 %v1052, %v1050
  %v1056 = vshrl.u32 %v497, 16
  %v1058 = vshll.u32 %v497, 16
  %v1060 = vrot.slane %v1058, 1
  %v1061 = vor.u32 %v1056, %v1060
  %v1063 = vshll.u32 %v612, 16
  %v1065 = vrot.slane %v1063, 1
  %v1066 = vsel %vm619, %v1061, %v1065
  %v1067 = vshrl.u32 %v612, 16
  %v1069 = vor.u32 %v1067, %v1065
  %v1071 = vshrl.u32 %v499, 16
  %v1073 = vshll.u32 %v499, 16
  %v1075 = vrot.slane %v1073, 1
  %v1076 = vor.u32 %v1071, %v1075
  %v1078 = vshll.u32 %v613, 16
  %v1080 = vrot.slane %v1078, 1
  %v1081 = vsel %vm619, %v1076, %v1080
  %v1082 = vshrl.u32 %v613, 16
  %v1084 = vor.u32 %v1082, %v1080
  %v1086 = vshrl.u32 %v501, 16
  %v1088 = vshll.u32 %v501, 16
  %v1090 = vrot.slane %v1088, 1
  %v1091 = vor.u32 %v1086, %v1090
  %v1093 = vshll.u32 %v614, 16
  %v1095 = vrot.slane %v1093, 1
  %v1096 = vsel %vm619, %v1091, %v1095
  %v1097 = vshrl.u32 %v614, 16
  %v1099 = vor.u32 %v1097, %v1095
  %v1101 = vshrl.u32 %v503, 16
  %v1103 = vshll.u32 %v503, 16
  %v1105 = vrot.slane %v1103, 1
  %v1106 = vor.u32 %v1101, %v1105
  %v1108 = vshll.u32 %v615, 16
  %v1110 = vrot.slane %v1108, 1
  %v1111 = vsel %vm619, %v1106, %v1110
  %v1112 = vshrl.u32 %v615, 16
  %v1114 = vor.u32 %v1112, %v1110
  %v1116 = vshrl.u32 %v505, 16
  %v1118 = vshll.u32 %v505, 16
  %v1120 = vrot.slane %v1118, 1
  %v1121 = vor.u32 %v1116, %v1120
  %v1123 = vshll.u32 %v616, 16
  %v1125 = vrot.slane %v1123, 1
  %v1126 = vsel %vm619, %v1121, %v1125
  %v1127 = vshrl.u32 %v616, 16
  %v1129 = vor.u32 %v1127, %v1125
  %v1131 = vshrl.u32 %v507, 16
  %v1133 = vshll.u32 %v507, 16
  %v1135 = vrot.slane %v1133, 1
  %v1136 = vor.u32 %v1131, %v1135
  %v1138 = vshll.u32 %v617, 16
  %v1140 = vrot.slane %v1138, 1
  %v1141 = vsel %vm619, %v1136, %v1140
  %v1142 = vshrl.u32 %v617, 16
  %v1144 = vor.u32 %v1142, %v1140
  %v1146 = vshrl.u32 %v509, 16
  %v1148 = vshll.u32 %v509, 16
  %v1150 = vrot.slane %v1148, 1
  %v1151 = vor.u32 %v1146, %v1150
  %v1153 = vshll.u32 %v618, 16
  %v1155 = vrot.slane %v1153, 1
  %v1156 = vsel %vm619, %v1151, %v1155
  %v1157 = vshrl.u32 %v618, 16
  %v1159 = vor.u32 %v1157, %v1155
  %1160 = vrot.lane.b32.xlu0 %v631, 4
  %v1161 = vpop.permute.xlu0 %1160
  %1162 = vrot.lane.b32.xlu0 %v634, 4
  %v1163 = vpop.permute.xlu0 %1162
  %1164 = vrot.lane.b32.xlu0 %v646, 4
  %v1165 = vpop.permute.xlu0 %1164
  %1166 = vrot.lane.b32.xlu0 %v649, 4
  %v1167 = vpop.permute.xlu0 %1166
  %1168 = vrot.lane.b32.xlu0 %v661, 4
  %v1169 = vpop.permute.xlu0 %1168
  %1170 = vrot.lane.b32.xlu0 %v664, 4
  %v1171 = vpop.permute.xlu0 %1170
  %1172 = vrot.lane.b32.xlu0 %v676, 4
  %v1173 = vpop.permute.xlu0 %1172
  %1174 = vrot.lane.b32.xlu0 %v679, 4
  %v1175 = vpop.permute.xlu0 %1174
  %1176 = vrot.lane.b32.xlu0 %v691, 4
  %v1177 = vpop.permute.xlu0 %1176
  %1178 = vrot.lane.b32.xlu0 %v694, 4
  %v1179 = vpop.permute.xlu0 %1178
  %1180 = vrot.lane.b32.xlu0 %v706, 4
  %v1181 = vpop.permute.xlu0 %1180
  %1182 = vrot.lane.b32.xlu0 %v709, 4
  %v1183 = vpop.permute.xlu0 %1182
  %1184 = vrot.lane.b32.xlu0 %v721, 4
  %v1185 = vpop.permute.xlu0 %1184
  %1186 = vrot.lane.b32.xlu0 %v724, 4
  %v1187 = vpop.permute.xlu0 %1186
  %1188 = vrot.lane.b32.xlu0 %v736, 4
  %v1189 = vpop.permute.xlu0 %1188
  %1190 = vrot.lane.b32.xlu0 %v739, 4
  %v1191 = vpop.permute.xlu0 %1190
  %1192 = vrot.lane.b32.xlu0 %v751, 4
  %v1193 = vpop.permute.xlu0 %1192
  %1194 = vrot.lane.b32.xlu0 %v754, 4
  %v1195 = vpop.permute.xlu0 %1194
  %1196 = vrot.lane.b32.xlu0 %v766, 4
  %v1197 = vpop.permute.xlu0 %1196
  %1198 = vrot.lane.b32.xlu0 %v769, 4
  %v1199 = vpop.permute.xlu0 %1198
  %1200 = vrot.lane.b32.xlu0 %v781, 4
  %v1201 = vpop.permute.xlu0 %1200
  %1202 = vrot.lane.b32.xlu0 %v784, 4
  %v1203 = vpop.permute.xlu0 %1202
  %1204 = vrot.lane.b32.xlu0 %v796, 4
  %v1205 = vpop.permute.xlu0 %1204
  %1206 = vrot.lane.b32.xlu0 %v799, 4
  %v1207 = vpop.permute.xlu0 %1206
  %1208 = vrot.lane.b32.xlu0 %v811, 4
  %v1209 = vpop.permute.xlu0 %1208
  %1210 = vrot.lane.b32.xlu0 %v814, 4
  %v1211 = vpop.permute.xlu0 %1210
  %1212 = vrot.lane.b32.xlu0 %v826, 4
  %v1213 = vpop.permute.xlu0 %1212
  %1214 = vrot.lane.b32.xlu0 %v829, 4
  %v1215 = vpop.permute.xlu0 %1214
  %1216 = vrot.lane.b32.xlu0 %v841, 4
  %v1217 = vpop.permute.xlu0 %1216
  %1218 = vrot.lane.b32.xlu0 %v844, 4
  %v1219 = vpop.permute.xlu0 %1218
  %1220 = vrot.lane.b32.xlu0 %v856, 4
  %v1221 = vpop.permute.xlu0 %1220
  %1222 = vrot.lane.b32.xlu0 %v859, 4
  %v1223 = vpop.permute.xlu0 %1222
  %1224 = vrot.lane.b32.xlu0 %v871, 4
  %v1225 = vpop.permute.xlu0 %1224
  %1226 = vrot.lane.b32.xlu0 %v874, 4
  %v1227 = vpop.permute.xlu0 %1226
  %1228 = vrot.lane.b32.xlu0 %v886, 4
  %v1229 = vpop.permute.xlu0 %1228
  %1230 = vrot.lane.b32.xlu0 %v889, 4
  %v1231 = vpop.permute.xlu0 %1230
  %1232 = vrot.lane.b32.xlu0 %v901, 4
  %v1233 = vpop.permute.xlu0 %1232
  %1234 = vrot.lane.b32.xlu0 %v904, 4
  %v1235 = vpop.permute.xlu0 %1234
  %1236 = vrot.lane.b32.xlu0 %v916, 4
  %v1237 = vpop.permute.xlu0 %1236
  %1238 = vrot.lane.b32.xlu0 %v919, 4
  %v1239 = vpop.permute.xlu0 %1238
  %1240 = vrot.lane.b32.xlu0 %v931, 4
  %v1241 = vpop.permute.xlu0 %1240
  %1242 = vrot.lane.b32.xlu0 %v934, 4
  %v1243 = vpop.permute.xlu0 %1242
  %1244 = vrot.lane.b32.xlu0 %v946, 4
  %v1245 = vpop.permute.xlu0 %1244
  %1246 = vrot.lane.b32.xlu0 %v949, 4
  %v1247 = vpop.permute.xlu0 %1246
  %1248 = vrot.lane.b32.xlu0 %v961, 4
  %v1249 = vpop.permute.xlu0 %1248
  %1250 = vrot.lane.b32.xlu0 %v964, 4
  %v1251 = vpop.permute.xlu0 %1250
  %1252 = vrot.lane.b32.xlu0 %v976, 4
  %v1253 = vpop.permute.xlu0 %1252
  %1254 = vrot.lane.b32.xlu0 %v979, 4
  %v1255 = vpop.permute.xlu0 %1254
  %1256 = vrot.lane.b32.xlu0 %v991, 4
  %v1257 = vpop.permute.xlu0 %1256
  %1258 = vrot.lane.b32.xlu0 %v994, 4
  %v1259 = vpop.permute.xlu0 %1258
  %1260 = vrot.lane.b32.xlu0 %v1006, 4
  %v1261 = vpop.permute.xlu0 %1260
  %1262 = vrot.lane.b32.xlu0 %v1009, 4
  %v1263 = vpop.permute.xlu0 %1262
  %1264 = vrot.lane.b32.xlu0 %v1021, 4
  %v1265 = vpop.permute.xlu0 %1264
  %1266 = vrot.lane.b32.xlu0 %v1024, 4
  %v1267 = vpop.permute.xlu0 %1266
  %1268 = vrot.lane.b32.xlu0 %v1036, 4
  %v1269 = vpop.permute.xlu0 %1268
  %1270 = vrot.lane.b32.xlu0 %v1039, 4
  %v1271 = vpop.permute.xlu0 %1270
  %1272 = vrot.lane.b32.xlu0 %v1051, 4
  %v1273 = vpop.permute.xlu0 %1272
  %1274 = vrot.lane.b32.xlu0 %v1054, 4
  %v1275 = vpop.permute.xlu0 %1274
  %1276 = vrot.lane.b32.xlu0 %v1066, 4
  %v1277 = vpop.permute.xlu0 %1276
  %1278 = vrot.lane.b32.xlu0 %v1069, 4
  %v1279 = vpop.permute.xlu0 %1278
  %1280 = vrot.lane.b32.xlu0 %v1081, 4
  %v1281 = vpop.permute.xlu0 %1280
  %1282 = vrot.lane.b32.xlu0 %v1084, 4
  %v1283 = vpop.permute.xlu0 %1282
  %1284 = vrot.lane.b32.xlu0 %v1096, 4
  %v1285 = vpop.permute.xlu0 %1284
  %1286 = vrot.lane.b32.xlu0 %v1099, 4
  %v1287 = vpop.permute.xlu0 %1286
  %1288 = vrot.lane.b32.xlu0 %v1111, 4
  %v1289 = vpop.permute.xlu0 %1288
  %1290 = vrot.lane.b32.xlu0 %v1114, 4
  %v1291 = vpop.permute.xlu0 %1290
  %1292 = vrot.lane.b32.xlu0 %v1126, 4
  %v1293 = vpop.permute.xlu0 %1292
  %1294 = vrot.lane.b32.xlu0 %v1129, 4
  %v1295 = vpop.permute.xlu0 %1294
  %1296 = vrot.lane.b32.xlu0 %v1141, 4
  %v1297 = vpop.permute.xlu0 %1296
  %1298 = vrot.lane.b32.xlu0 %v1144, 4
  %v1299 = vpop.permute.xlu0 %1298
  %1300 = vrot.lane.b32.xlu0 %v1156, 4
  %v1301 = vpop.permute.xlu0 %1300
  %1302 = vrot.lane.b32.xlu0 %v1159, 4
  %v1303 = vpop.permute.xlu0 %1302
  %vm1304 = vcmask 1046528
  %v1305 = vrot.slane %v439, 1
  %v1306 = vrot.slane %v583, 1
  %v1307 = vsel %vm1304, %v1305, %v1306
  %v1308 = vrot.slane %v441, 1
  %v1309 = vrot.slane %v584, 1
  %v1310 = vsel %vm1304, %v1308, %v1309
  %v1311 = vrot.slane %v443, 1
  %v1312 = vrot.slane %v585, 1
  %v1313 = vsel %vm1304, %v1311, %v1312
  %v1314 = vrot.slane %v445, 1
  %v1315 = vrot.slane %v586, 1
  %v1316 = vsel %vm1304, %v1314, %v1315
  %v1317 = vrot.slane %v447, 1
  %v1318 = vrot.slane %v587, 1
  %v1319 = vsel %vm1304, %v1317, %v1318
  %v1320 = vrot.slane %v449, 1
  %v1321 = vrot.slane %v588, 1
  %v1322 = vsel %vm1304, %v1320, %v1321
  %v1323 = vrot.slane %v451, 1
  %v1324 = vrot.slane %v589, 1
  %v1325 = vsel %vm1304, %v1323, %v1324
  %v1326 = vrot.slane %v453, 1
  %v1327 = vrot.slane %v590, 1
  %v1328 = vsel %vm1304, %v1326, %v1327
  %v1329 = vrot.slane %v455, 1
  %v1330 = vrot.slane %v591, 1
  %v1331 = vsel %vm1304, %v1329, %v1330
  %v1332 = vrot.slane %v457, 1
  %v1333 = vrot.slane %v592, 1
  %v1334 = vsel %vm1304, %v1332, %v1333
  %v1335 = vrot.slane %v459, 1
  %v1336 = vrot.slane %v593, 1
  %v1337 = vsel %vm1304, %v1335, %v1336
  %v1338 = vrot.slane %v461, 1
  %v1339 = vrot.slane %v594, 1
  %v1340 = vsel %vm1304, %v1338, %v1339
  %v1341 = vrot.slane %v463, 1
  %v1342 = vrot.slane %v595, 1
  %v1343 = vsel %vm1304, %v1341, %v1342
  %v1344 = vrot.slane %v465, 1
  %v1345 = vrot.slane %v596, 1
  %v1346 = vsel %vm1304, %v1344, %v1345
  %v1347 = vrot.slane %v467, 1
  %v1348 = vrot.slane %v597, 1
  %v1349 = vsel %vm1304, %v1347, %v1348
  %v1350 = vrot.slane %v469, 1
  %v1351 = vrot.slane %v598, 1
  %v1352 = vsel %vm1304, %v1350, %v1351
  %v1353 = vrot.slane %v471, 1
  %v1354 = vrot.slane %v599, 1
  %v1355 = vsel %vm1304, %v1353, %v1354
  %v1356 = vrot.slane %v473, 1
  %v1357 = vrot.slane %v600, 1
  %v1358 = vsel %vm1304, %v1356, %v1357
  %v1359 = vrot.slane %v475, 1
  %v1360 = vrot.slane %v601, 1
  %v1361 = vsel %vm1304, %v1359, %v1360
  %v1362 = vrot.slane %v477, 1
  %v1363 = vrot.slane %v602, 1
  %v1364 = vsel %vm1304, %v1362, %v1363
  %v1365 = vrot.slane %v479, 1
  %v1366 = vrot.slane %v603, 1
  %v1367 = vsel %vm1304, %v1365, %v1366
  %v1368 = vrot.slane %v481, 1
  %v1369 = vrot.slane %v604, 1
  %v1370 = vsel %vm1304, %v1368, %v1369
  %v1371 = vrot.slane %v483, 1
  %v1372 = vrot.slane %v605, 1
  %v1373 = vsel %vm1304, %v1371, %v1372
  %v1374 = vrot.slane %v485, 1
  %v1375 = vrot.slane %v606, 1
  %v1376 = vsel %vm1304, %v1374, %v1375
  %v1377 = vrot.slane %v487, 1
  %v1378 = vrot.slane %v607, 1
  %v1379 = vsel %vm1304, %v1377, %v1378
  %v1380 = vrot.slane %v489, 1
  %v1381 = vrot.slane %v608, 1
  %v1382 = vsel %vm1304, %v1380, %v1381
  %v1383 = vrot.slane %v491, 1
  %v1384 = vrot.slane %v609, 1
  %v1385 = vsel %vm1304, %v1383, %v1384
  %v1386 = vrot.slane %v493, 1
  %v1387 = vrot.slane %v610, 1
  %v1388 = vsel %vm1304, %v1386, %v1387
  %v1389 = vrot.slane %v495, 1
  %v1390 = vrot.slane %v611, 1
  %v1391 = vsel %vm1304, %v1389, %v1390
  %v1392 = vrot.slane %v497, 1
  %v1393 = vrot.slane %v612, 1
  %v1394 = vsel %vm1304, %v1392, %v1393
  %v1395 = vrot.slane %v499, 1
  %v1396 = vrot.slane %v613, 1
  %v1397 = vsel %vm1304, %v1395, %v1396
  %v1398 = vrot.slane %v501, 1
  %v1399 = vrot.slane %v614, 1
  %v1400 = vsel %vm1304, %v1398, %v1399
  %v1401 = vrot.slane %v503, 1
  %v1402 = vrot.slane %v615, 1
  %v1403 = vsel %vm1304, %v1401, %v1402
  %v1404 = vrot.slane %v505, 1
  %v1405 = vrot.slane %v616, 1
  %v1406 = vsel %vm1304, %v1404, %v1405
  %v1407 = vrot.slane %v507, 1
  %v1408 = vrot.slane %v617, 1
  %v1409 = vsel %vm1304, %v1407, %v1408
  %v1410 = vrot.slane %v509, 1
  %v1411 = vrot.slane %v618, 1
  %v1412 = vsel %vm1304, %v1410, %v1411
  %1413 = vrot.lane.b32.xlu0 %v1307, 8
  %v1414 = vpop.permute.xlu0 %1413
  %1415 = vrot.lane.b32.xlu0 %v1306, 8
  %v1416 = vpop.permute.xlu0 %1415
  %1417 = vrot.lane.b32.xlu0 %v1310, 8
  %v1418 = vpop.permute.xlu0 %1417
  %1419 = vrot.lane.b32.xlu0 %v1309, 8
  %v1420 = vpop.permute.xlu0 %1419
  %1421 = vrot.lane.b32.xlu0 %v1313, 8
  %v1422 = vpop.permute.xlu0 %1421
  %1423 = vrot.lane.b32.xlu0 %v1312, 8
  %v1424 = vpop.permute.xlu0 %1423
  %1425 = vrot.lane.b32.xlu0 %v1316, 8
  %v1426 = vpop.permute.xlu0 %1425
  %1427 = vrot.lane.b32.xlu0 %v1315, 8
  %v1428 = vpop.permute.xlu0 %1427
  %1429 = vrot.lane.b32.xlu0 %v1319, 8
  %v1430 = vpop.permute.xlu0 %1429
  %1431 = vrot.lane.b32.xlu0 %v1318, 8
  %v1432 = vpop.permute.xlu0 %1431
  %1433 = vrot.lane.b32.xlu0 %v1322, 8
  %v1434 = vpop.permute.xlu0 %1433
  %1435 = vrot.lane.b32.xlu0 %v1321, 8
  %v1436 = vpop.permute.xlu0 %1435
  %1437 = vrot.lane.b32.xlu0 %v1325, 8
  %v1438 = vpop.permute.xlu0 %1437
  %1439 = vrot.lane.b32.xlu0 %v1324, 8
  %v1440 = vpop.permute.xlu0 %1439
  %1441 = vrot.lane.b32.xlu0 %v1328, 8
  %v1442 = vpop.permute.xlu0 %1441
  %1443 = vrot.lane.b32.xlu0 %v1327, 8
  %v1444 = vpop.permute.xlu0 %1443
  %1445 = vrot.lane.b32.xlu0 %v1331, 8
  %v1446 = vpop.permute.xlu0 %1445
  %1447 = vrot.lane.b32.xlu0 %v1330, 8
  %v1448 = vpop.permute.xlu0 %1447
  %1449 = vrot.lane.b32.xlu0 %v1334, 8
  %v1450 = vpop.permute.xlu0 %1449
  %1451 = vrot.lane.b32.xlu0 %v1333, 8
  %v1452 = vpop.permute.xlu0 %1451
  %1453 = vrot.lane.b32.xlu0 %v1337, 8
  %v1454 = vpop.permute.xlu0 %1453
  %1455 = vrot.lane.b32.xlu0 %v1336, 8
  %v1456 = vpop.permute.xlu0 %1455
  %1457 = vrot.lane.b32.xlu0 %v1340, 8
  %v1458 = vpop.permute.xlu0 %1457
  %1459 = vrot.lane.b32.xlu0 %v1339, 8
  %v1460 = vpop.permute.xlu0 %1459
  %1461 = vrot.lane.b32.xlu0 %v1343, 8
  %v1462 = vpop.permute.xlu0 %1461
  %1463 = vrot.lane.b32.xlu0 %v1342, 8
  %v1464 = vpop.permute.xlu0 %1463
  %1465 = vrot.lane.b32.xlu0 %v1346, 8
  %v1466 = vpop.permute.xlu0 %1465
  %1467 = vrot.lane.b32.xlu0 %v1345, 8
  %v1468 = vpop.permute.xlu0 %1467
  %1469 = vrot.lane.b32.xlu0 %v1349, 8
  %v1470 = vpop.permute.xlu0 %1469
  %1471 = vrot.lane.b32.xlu0 %v1348, 8
  %v1472 = vpop.permute.xlu0 %1471
  %1473 = vrot.lane.b32.xlu0 %v1352, 8
  %v1474 = vpop.permute.xlu0 %1473
  %1475 = vrot.lane.b32.xlu0 %v1351, 8
  %v1476 = vpop.permute.xlu0 %1475
  %1477 = vrot.lane.b32.xlu0 %v1355, 8
  %v1478 = vpop.permute.xlu0 %1477
  %1479 = vrot.lane.b32.xlu0 %v1354, 8
  %v1480 = vpop.permute.xlu0 %1479
  %1481 = vrot.lane.b32.xlu0 %v1358, 8
  %v1482 = vpop.permute.xlu0 %1481
  %1483 = vrot.lane.b32.xlu0 %v1357, 8
  %v1484 = vpop.permute.xlu0 %1483
  %1485 = vrot.lane.b32.xlu0 %v1361, 8
  %v1486 = vpop.permute.xlu0 %1485
  %1487 = vrot.lane.b32.xlu0 %v1360, 8
  %v1488 = vpop.permute.xlu0 %1487
  %1489 = vrot.lane.b32.xlu0 %v1364, 8
  %v1490 = vpop.permute.xlu0 %1489
  %1491 = vrot.lane.b32.xlu0 %v1363, 8
  %v1492 = vpop.permute.xlu0 %1491
  %1493 = vrot.lane.b32.xlu0 %v1367, 8
  %v1494 = vpop.permute.xlu0 %1493
  %1495 = vrot.lane.b32.xlu0 %v1366, 8
  %v1496 = vpop.permute.xlu0 %1495
  %1497 = vrot.lane.b32.xlu0 %v1370, 8
  %v1498 = vpop.permute.xlu0 %1497
  %1499 = vrot.lane.b32.xlu0 %v1369, 8
  %v1500 = vpop.permute.xlu0 %1499
  %1501 = vrot.lane.b32.xlu0 %v1373, 8
  %v1502 = vpop.permute.xlu0 %1501
  %1503 = vrot.lane.b32.xlu0 %v1372, 8
  %v1504 = vpop.permute.xlu0 %1503
  %1505 = vrot.lane.b32.xlu0 %v1376, 8
  %v1506 = vpop.permute.xlu0 %1505
  %1507 = vrot.lane.b32.xlu0 %v1375, 8
  %v1508 = vpop.permute.xlu0 %1507
  %1509 = vrot.lane.b32.xlu0 %v1379, 8
  %v1510 = vpop.permute.xlu0 %1509
  %1511 = vrot.lane.b32.xlu0 %v1378, 8
  %v1512 = vpop.permute.xlu0 %1511
  %1513 = vrot.lane.b32.xlu0 %v1382, 8
  %v1514 = vpop.permute.xlu0 %1513
  %1515 = vrot.lane.b32.xlu0 %v1381, 8
  %v1516 = vpop.permute.xlu0 %1515
  %1517 = vrot.lane.b32.xlu0 %v1385, 8
  %v1518 = vpop.permute.xlu0 %1517
  %1519 = vrot.lane.b32.xlu0 %v1384, 8
  %v1520 = vpop.permute.xlu0 %1519
  %1521 = vrot.lane.b32.xlu0 %v1388, 8
  %v1522 = vpop.permute.xlu0 %1521
  %1523 = vrot.lane.b32.xlu0 %v1387, 8
  %v1524 = vpop.permute.xlu0 %1523
  %1525 = vrot.lane.b32.xlu0 %v1391, 8
  %v1526 = vpop.permute.xlu0 %1525
  %1527 = vrot.lane.b32.xlu0 %v1390, 8
  %v1528 = vpop.permute.xlu0 %1527
  %1529 = vrot.lane.b32.xlu0 %v1394, 8
  %v1530 = vpop.permute.xlu0 %1529
  %1531 = vrot.lane.b32.xlu0 %v1393, 8
  %v1532 = vpop.permute.xlu0 %1531
  %1533 = vrot.lane.b32.xlu0 %v1397, 8
  %v1534 = vpop.permute.xlu0 %1533
  %1535 = vrot.lane.b32.xlu0 %v1396, 8
  %v1536 = vpop.permute.xlu0 %1535
  %1537 = vrot.lane.b32.xlu0 %v1400, 8
  %v1538 = vpop.permute.xlu0 %1537
  %1539 = vrot.lane.b32.xlu0 %v1399, 8
  %v1540 = vpop.permute.xlu0 %1539
  %1541 = vrot.lane.b32.xlu0 %v1403, 8
  %v1542 = vpop.permute.xlu0 %1541
  %1543 = vrot.lane.b32.xlu0 %v1402, 8
  %v1544 = vpop.permute.xlu0 %1543
  %1545 = vrot.lane.b32.xlu0 %v1406, 8
  %v1546 = vpop.permute.xlu0 %1545
  %1547 = vrot.lane.b32.xlu0 %v1405, 8
  %v1548 = vpop.permute.xlu0 %1547
  %1549 = vrot.lane.b32.xlu0 %v1409, 8
  %v1550 = vpop.permute.xlu0 %1549
  %1551 = vrot.lane.b32.xlu0 %v1408, 8
  %v1552 = vpop.permute.xlu0 %1551
  %1553 = vrot.lane.b32.xlu0 %v1412, 8
  %v1554 = vpop.permute.xlu0 %1553
  %1555 = vrot.lane.b32.xlu0 %v1411, 8
  %v1556 = vpop.permute.xlu0 %1555
  %v1563 = vunpack.c.l.b16 %v130
  %v1564 = vunpack.c.l.b16 %v131
  %v1565 = vunpack.c.l.b16 %v132
  %v1566 = vunpack.c.l.b16 %v210
  %v1567 = vunpack.c.l.b16 %v211
  %v1568 = vunpack.c.l.b16 %v212
  %v1569 = vpack.c.b16 %v1564, %v1563
  %v1570 = vpack.c.b16 %v1565, %v1565
  %v1571 = vpack.c.b16 %v1567, %v1566
  %v1572 = vpack.c.b16 %v1568, %v1568
  %1573 = vrot.lane.b32.xlu0 %v441, 12
  %v1574 = vpop.permute.xlu0 %1573
  %1575 = vrot.lane.b32.xlu0 %v442, 12
  %v1576 = vpop.permute.xlu0 %1575
  %1577 = vrot.lane.b32.xlu0 %v443, 12
  %v1578 = vpop.permute.xlu0 %1577
  %1579 = vrot.lane.b32.xlu0 %v444, 12
  %v1580 = vpop.permute.xlu0 %1579
  %1581 = vrot.lane.b32.xlu0 %v445, 12
  %v1582 = vpop.permute.xlu0 %1581
  %1583 = vrot.lane.b32.xlu0 %v446, 12
  %v1584 = vpop.permute.xlu0 %1583
  %1585 = vrot.lane.b32.xlu0 %v447, 12
  %v1586 = vpop.permute.xlu0 %1585
  %1587 = vrot.lane.b32.xlu0 %v448, 12
  %v1588 = vpop.permute.xlu0 %1587
  %1589 = vrot.lane.b32.xlu0 %v449, 12
  %v1590 = vpop.permute.xlu0 %1589
  %1591 = vrot.lane.b32.xlu0 %v450, 12
  %v1592 = vpop.permute.xlu0 %1591
  %1593 = vrot.lane.b32.xlu0 %v451, 12
  %v1594 = vpop.permute.xlu0 %1593
  %1595 = vrot.lane.b32.xlu0 %v452, 12
  %v1596 = vpop.permute.xlu0 %1595
  %1597 = vrot.lane.b32.xlu0 %v453, 12
  %v1598 = vpop.permute.xlu0 %1597
  %1599 = vrot.lane.b32.xlu0 %v454, 12
  %v1600 = vpop.permute.xlu0 %1599
  %1601 = vrot.lane.b32.xlu0 %v455, 12
  %v1602 = vpop.permute.xlu0 %1601
  %1603 = vrot.lane.b32.xlu0 %v456, 12
  %v1604 = vpop.permute.xlu0 %1603
  %1605 = vrot.lane.b32.xlu0 %v457, 12
  %v1606 = vpop.permute.xlu0 %1605
  %1607 = vrot.lane.b32.xlu0 %v458, 12
  %v1608 = vpop.permute.xlu0 %1607
  %1609 = vrot.lane.b32.xlu0 %v459, 12
  %v1610 = vpop.permute.xlu0 %1609
  %1611 = vrot.lane.b32.xlu0 %v460, 12
  %v1612 = vpop.permute.xlu0 %1611
  %1613 = vrot.lane.b32.xlu0 %v461, 12
  %v1614 = vpop.permute.xlu0 %1613
  %1615 = vrot.lane.b32.xlu0 %v462, 12
  %v1616 = vpop.permute.xlu0 %1615
  %1617 = vrot.lane.b32.xlu0 %v463, 12
  %v1618 = vpop.permute.xlu0 %1617
  %1619 = vrot.lane.b32.xlu0 %v464, 12
  %v1620 = vpop.permute.xlu0 %1619
  %1621 = vrot.lane.b32.xlu0 %v465, 12
  %v1622 = vpop.permute.xlu0 %1621
  %1623 = vrot.lane.b32.xlu0 %v466, 12
  %v1624 = vpop.permute.xlu0 %1623
  %1625 = vrot.lane.b32.xlu0 %v467, 12
  %v1626 = vpop.permute.xlu0 %1625
  %1627 = vrot.lane.b32.xlu0 %v468, 12
  %v1628 = vpop.permute.xlu0 %1627
  %1629 = vrot.lane.b32.xlu0 %v469, 12
  %v1630 = vpop.permute.xlu0 %1629
  %1631 = vrot.lane.b32.xlu0 %v470, 12
  %v1632 = vpop.permute.xlu0 %1631
  %1633 = vrot.lane.b32.xlu0 %v471, 12
  %v1634 = vpop.permute.xlu0 %1633
  %1635 = vrot.lane.b32.xlu0 %v472, 12
  %v1636 = vpop.permute.xlu0 %1635
  %1637 = vrot.lane.b32.xlu0 %v473, 12
  %v1638 = vpop.permute.xlu0 %1637
  %1639 = vrot.lane.b32.xlu0 %v474, 12
  %v1640 = vpop.permute.xlu0 %1639
  %1641 = vrot.lane.b32.xlu0 %v1569, 12
  %v1642 = vpop.permute.xlu0 %1641
  %1643 = vrot.lane.b32.xlu0 %v1570, 12
  %v1644 = vpop.permute.xlu0 %1643
  %1645 = vrot.lane.b32.xlu0 %v477, 12
  %v1646 = vpop.permute.xlu0 %1645
  %1647 = vrot.lane.b32.xlu0 %v478, 12
  %v1648 = vpop.permute.xlu0 %1647
  %1649 = vrot.lane.b32.xlu0 %v479, 12
  %v1650 = vpop.permute.xlu0 %1649
  %1651 = vrot.lane.b32.xlu0 %v480, 12
  %v1652 = vpop.permute.xlu0 %1651
  %1653 = vrot.lane.b32.xlu0 %v481, 12
  %v1654 = vpop.permute.xlu0 %1653
  %1655 = vrot.lane.b32.xlu0 %v482, 12
  %v1656 = vpop.permute.xlu0 %1655
  %1657 = vrot.lane.b32.xlu0 %v483, 12
  %v1658 = vpop.permute.xlu0 %1657
  %1659 = vrot.lane.b32.xlu0 %v484, 12
  %v1660 = vpop.permute.xlu0 %1659
  %1661 = vrot.lane.b32.xlu0 %v485, 12
  %v1662 = vpop.permute.xlu0 %1661
  %1663 = vrot.lane.b32.xlu0 %v486, 12
  %v1664 = vpop.permute.xlu0 %1663
  %1665 = vrot.lane.b32.xlu0 %v487, 12
  %v1666 = vpop.permute.xlu0 %1665
  %1667 = vrot.lane.b32.xlu0 %v488, 12
  %v1668 = vpop.permute.xlu0 %1667
  %1669 = vrot.lane.b32.xlu0 %v489, 12
  %v1670 = vpop.permute.xlu0 %1669
  %1671 = vrot.lane.b32.xlu0 %v490, 12
  %v1672 = vpop.permute.xlu0 %1671
  %1673 = vrot.lane.b32.xlu0 %v491, 12
  %v1674 = vpop.permute.xlu0 %1673
  %1675 = vrot.lane.b32.xlu0 %v492, 12
  %v1676 = vpop.permute.xlu0 %1675
  %1677 = vrot.lane.b32.xlu0 %v493, 12
  %v1678 = vpop.permute.xlu0 %1677
  %1679 = vrot.lane.b32.xlu0 %v494, 12
  %v1680 = vpop.permute.xlu0 %1679
  %1681 = vrot.lane.b32.xlu0 %v495, 12
  %v1682 = vpop.permute.xlu0 %1681
  %1683 = vrot.lane.b32.xlu0 %v496, 12
  %v1684 = vpop.permute.xlu0 %1683
  %1685 = vrot.lane.b32.xlu0 %v497, 12
  %v1686 = vpop.permute.xlu0 %1685
  %1687 = vrot.lane.b32.xlu0 %v498, 12
  %v1688 = vpop.permute.xlu0 %1687
  %1689 = vrot.lane.b32.xlu0 %v499, 12
  %v1690 = vpop.permute.xlu0 %1689
  %1691 = vrot.lane.b32.xlu0 %v500, 12
  %v1692 = vpop.permute.xlu0 %1691
  %1693 = vrot.lane.b32.xlu0 %v501, 12
  %v1694 = vpop.permute.xlu0 %1693
  %1695 = vrot.lane.b32.xlu0 %v502, 12
  %v1696 = vpop.permute.xlu0 %1695
  %1697 = vrot.lane.b32.xlu0 %v503, 12
  %v1698 = vpop.permute.xlu0 %1697
  %1699 = vrot.lane.b32.xlu0 %v504, 12
  %v1700 = vpop.permute.xlu0 %1699
  %1701 = vrot.lane.b32.xlu0 %v505, 12
  %v1702 = vpop.permute.xlu0 %1701
  %1703 = vrot.lane.b32.xlu0 %v506, 12
  %v1704 = vpop.permute.xlu0 %1703
  %1705 = vrot.lane.b32.xlu0 %v507, 12
  %v1706 = vpop.permute.xlu0 %1705
  %1707 = vrot.lane.b32.xlu0 %v508, 12
  %v1708 = vpop.permute.xlu0 %1707
  %1709 = vrot.lane.b32.xlu0 %v509, 12
  %v1710 = vpop.permute.xlu0 %1709
  %1711 = vrot.lane.b32.xlu0 %v510, 12
  %v1712 = vpop.permute.xlu0 %1711
  %1713 = vrot.lane.b32.xlu0 %v1571, 12
  %v1714 = vpop.permute.xlu0 %1713
  %1715 = vrot.lane.b32.xlu0 %v1572, 12
  %v1716 = vpop.permute.xlu0 %1715
  %v1719 = vunpack.c.l.b16 %v133
  %v1720 = vunpack.c.l.b16 %v213
  %v1721 = vpack.c.b16 %v1719, %v1565
  %v1722 = vpack.c.b16 %v1720, %v1568
  %v1724 = vshrl.u32 %v1569, 16
  %v1726 = vshll.u32 %v1569, 16
  %v1728 = vrot.slane %v1726, 1
  %v1729 = vor.u32 %v1724, %v1728
  %v1731 = vshll.u32 %v1721, 16
  %v1733 = vrot.slane %v1731, 1
  %v1734 = vsel %vm619, %v1729, %v1733
  %v1735 = vshrl.u32 %v1721, 16
  %v1737 = vor.u32 %v1735, %v1733
  %v1739 = vshrl.u32 %v1571, 16
  %v1741 = vshll.u32 %v1571, 16
  %v1743 = vrot.slane %v1741, 1
  %v1744 = vor.u32 %v1739, %v1743
  %v1746 = vshll.u32 %v1722, 16
  %v1748 = vrot.slane %v1746, 1
  %v1749 = vsel %vm619, %v1744, %v1748
  %v1750 = vshrl.u32 %v1722, 16
  %v1752 = vor.u32 %v1750, %v1748
  %1753 = vrot.lane.b32.xlu0 %v646, 16
  %v1754 = vpop.permute.xlu0 %1753
  %1755 = vrot.lane.b32.xlu0 %v649, 16
  %v1756 = vpop.permute.xlu0 %1755
  %1757 = vrot.lane.b32.xlu0 %v661, 16
  %v1758 = vpop.permute.xlu0 %1757
  %1759 = vrot.lane.b32.xlu0 %v664, 16
  %v1760 = vpop.permute.xlu0 %1759
  %1761 = vrot.lane.b32.xlu0 %v676, 16
  %v1762 = vpop.permute.xlu0 %1761
  %1763 = vrot.lane.b32.xlu0 %v679, 16
  %v1764 = vpop.permute.xlu0 %1763
  %1765 = vrot.lane.b32.xlu0 %v691, 16
  %v1766 = vpop.permute.xlu0 %1765
  %1767 = vrot.lane.b32.xlu0 %v694, 16
  %v1768 = vpop.permute.xlu0 %1767
  %1769 = vrot.lane.b32.xlu0 %v706, 16
  %v1770 = vpop.permute.xlu0 %1769
  %1771 = vrot.lane.b32.xlu0 %v709, 16
  %v1772 = vpop.permute.xlu0 %1771
  %1773 = vrot.lane.b32.xlu0 %v721, 16
  %v1774 = vpop.permute.xlu0 %1773
  %1775 = vrot.lane.b32.xlu0 %v724, 16
  %v1776 = vpop.permute.xlu0 %1775
  %1777 = vrot.lane.b32.xlu0 %v736, 16
  %v1778 = vpop.permute.xlu0 %1777
  %1779 = vrot.lane.b32.xlu0 %v739, 16
  %v1780 = vpop.permute.xlu0 %1779
  %1781 = vrot.lane.b32.xlu0 %v751, 16
  %v1782 = vpop.permute.xlu0 %1781
  %1783 = vrot.lane.b32.xlu0 %v754, 16
  %v1784 = vpop.permute.xlu0 %1783
  %1785 = vrot.lane.b32.xlu0 %v766, 16
  %v1786 = vpop.permute.xlu0 %1785
  %1787 = vrot.lane.b32.xlu0 %v769, 16
  %v1788 = vpop.permute.xlu0 %1787
  %1789 = vrot.lane.b32.xlu0 %v781, 16
  %v1790 = vpop.permute.xlu0 %1789
  %1791 = vrot.lane.b32.xlu0 %v784, 16
  %v1792 = vpop.permute.xlu0 %1791
  %1793 = vrot.lane.b32.xlu0 %v796, 16
  %v1794 = vpop.permute.xlu0 %1793
  %1795 = vrot.lane.b32.xlu0 %v799, 16
  %v1796 = vpop.permute.xlu0 %1795
  %1797 = vrot.lane.b32.xlu0 %v811, 16
  %v1798 = vpop.permute.xlu0 %1797
  %1799 = vrot.lane.b32.xlu0 %v814, 16
  %v1800 = vpop.permute.xlu0 %1799
  %1801 = vrot.lane.b32.xlu0 %v826, 16
  %v1802 = vpop.permute.xlu0 %1801
  %1803 = vrot.lane.b32.xlu0 %v829, 16
  %v1804 = vpop.permute.xlu0 %1803
  %1805 = vrot.lane.b32.xlu0 %v841, 16
  %v1806 = vpop.permute.xlu0 %1805
  %1807 = vrot.lane.b32.xlu0 %v844, 16
  %v1808 = vpop.permute.xlu0 %1807
  %1809 = vrot.lane.b32.xlu0 %v856, 16
  %v1810 = vpop.permute.xlu0 %1809
  %1811 = vrot.lane.b32.xlu0 %v859, 16
  %v1812 = vpop.permute.xlu0 %1811
  %1813 = vrot.lane.b32.xlu0 %v871, 16
  %v1814 = vpop.permute.xlu0 %1813
  %1815 = vrot.lane.b32.xlu0 %v874, 16
  %v1816 = vpop.permute.xlu0 %1815
  %1817 = vrot.lane.b32.xlu0 %v886, 16
  %v1818 = vpop.permute.xlu0 %1817
  %1819 = vrot.lane.b32.xlu0 %v889, 16
  %v1820 = vpop.permute.xlu0 %1819
  %1821 = vrot.lane.b32.xlu0 %v1734, 16
  %v1822 = vpop.permute.xlu0 %1821
  %1823 = vrot.lane.b32.xlu0 %v1737, 16
  %v1824 = vpop.permute.xlu0 %1823
  %1825 = vrot.lane.b32.xlu0 %v916, 16
  %v1826 = vpop.permute.xlu0 %1825
  %1827 = vrot.lane.b32.xlu0 %v919, 16
  %v1828 = vpop.permute.xlu0 %1827
  %1829 = vrot.lane.b32.xlu0 %v931, 16
  %v1830 = vpop.permute.xlu0 %1829
  %1831 = vrot.lane.b32.xlu0 %v934, 16
  %v1832 = vpop.permute.xlu0 %1831
  %1833 = vrot.lane.b32.xlu0 %v946, 16
  %v1834 = vpop.permute.xlu0 %1833
  %1835 = vrot.lane.b32.xlu0 %v949, 16
  %v1836 = vpop.permute.xlu0 %1835
  %1837 = vrot.lane.b32.xlu0 %v961, 16
  %v1838 = vpop.permute.xlu0 %1837
  %1839 = vrot.lane.b32.xlu0 %v964, 16
  %v1840 = vpop.permute.xlu0 %1839
  %1841 = vrot.lane.b32.xlu0 %v976, 16
  %v1842 = vpop.permute.xlu0 %1841
  %1843 = vrot.lane.b32.xlu0 %v979, 16
  %v1844 = vpop.permute.xlu0 %1843
  %1845 = vrot.lane.b32.xlu0 %v991, 16
  %v1846 = vpop.permute.xlu0 %1845
  %1847 = vrot.lane.b32.xlu0 %v994, 16
  %v1848 = vpop.permute.xlu0 %1847
  %1849 = vrot.lane.b32.xlu0 %v1006, 16
  %v1850 = vpop.permute.xlu0 %1849
  %1851 = vrot.lane.b32.xlu0 %v1009, 16
  %v1852 = vpop.permute.xlu0 %1851
  %1853 = vrot.lane.b32.xlu0 %v1021, 16
  %v1854 = vpop.permute.xlu0 %1853
  %1855 = vrot.lane.b32.xlu0 %v1024, 16
  %v1856 = vpop.permute.xlu0 %1855
  %1857 = vrot.lane.b32.xlu0 %v1036, 16
  %v1858 = vpop.permute.xlu0 %1857
  %1859 = vrot.lane.b32.xlu0 %v1039, 16
  %v1860 = vpop.permute.xlu0 %1859
  %1861 = vrot.lane.b32.xlu0 %v1051, 16
  %v1862 = vpop.permute.xlu0 %1861
  %1863 = vrot.lane.b32.xlu0 %v1054, 16
  %v1864 = vpop.permute.xlu0 %1863
  %1865 = vrot.lane.b32.xlu0 %v1066, 16
  %v1866 = vpop.permute.xlu0 %1865
  %1867 = vrot.lane.b32.xlu0 %v1069, 16
  %v1868 = vpop.permute.xlu0 %1867
  %1869 = vrot.lane.b32.xlu0 %v1081, 16
  %v1870 = vpop.permute.xlu0 %1869
  %1871 = vrot.lane.b32.xlu0 %v1084, 16
  %v1872 = vpop.permute.xlu0 %1871
  %1873 = vrot.lane.b32.xlu0 %v1096, 16
  %v1874 = vpop.permute.xlu0 %1873
  %1875 = vrot.lane.b32.xlu0 %v1099, 16
  %v1876 = vpop.permute.xlu0 %1875
  %1877 = vrot.lane.b32.xlu0 %v1111, 16
  %v1878 = vpop.permute.xlu0 %1877
  %1879 = vrot.lane.b32.xlu0 %v1114, 16
  %v1880 = vpop.permute.xlu0 %1879
  %1881 = vrot.lane.b32.xlu0 %v1126, 16
  %v1882 = vpop.permute.xlu0 %1881
  %1883 = vrot.lane.b32.xlu0 %v1129, 16
  %v1884 = vpop.permute.xlu0 %1883
  %1885 = vrot.lane.b32.xlu0 %v1141, 16
  %v1886 = vpop.permute.xlu0 %1885
  %1887 = vrot.lane.b32.xlu0 %v1144, 16
  %v1888 = vpop.permute.xlu0 %1887
  %1889 = vrot.lane.b32.xlu0 %v1156, 16
  %v1890 = vpop.permute.xlu0 %1889
  %1891 = vrot.lane.b32.xlu0 %v1159, 16
  %v1892 = vpop.permute.xlu0 %1891
  %1893 = vrot.lane.b32.xlu0 %v1749, 16
  %v1894 = vpop.permute.xlu0 %1893
  %1895 = vrot.lane.b32.xlu0 %v1752, 16
  %v1896 = vpop.permute.xlu0 %1895
  %v1897 = vrot.slane %v1569, 1
  %v1898 = vrot.slane %v1721, 1
  %v1899 = vsel %vm1304, %v1897, %v1898
  %v1900 = vrot.slane %v1571, 1
  %v1901 = vrot.slane %v1722, 1
  %v1902 = vsel %vm1304, %v1900, %v1901
  %1903 = vrot.lane.b32.xlu0 %v1310, 20
  %v1904 = vpop.permute.xlu0 %1903
  %1905 = vrot.lane.b32.xlu0 %v1309, 20
  %v1906 = vpop.permute.xlu0 %1905
  %1907 = vrot.lane.b32.xlu0 %v1313, 20
  %v1908 = vpop.permute.xlu0 %1907
  %1909 = vrot.lane.b32.xlu0 %v1312, 20
  %v1910 = vpop.permute.xlu0 %1909
  %1911 = vrot.lane.b32.xlu0 %v1316, 20
  %v1912 = vpop.permute.xlu0 %1911
  %1913 = vrot.lane.b32.xlu0 %v1315, 20
  %v1914 = vpop.permute.xlu0 %1913
  %1915 = vrot.lane.b32.xlu0 %v1319, 20
  %v1916 = vpop.permute.xlu0 %1915
  %1917 = vrot.lane.b32.xlu0 %v1318, 20
  %v1918 = vpop.permute.xlu0 %1917
  %1919 = vrot.lane.b32.xlu0 %v1322, 20
  %v1920 = vpop.permute.xlu0 %1919
  %1921 = vrot.lane.b32.xlu0 %v1321, 20
  %v1922 = vpop.permute.xlu0 %1921
  %1923 = vrot.lane.b32.xlu0 %v1325, 20
  %v1924 = vpop.permute.xlu0 %1923
  %1925 = vrot.lane.b32.xlu0 %v1324, 20
  %v1926 = vpop.permute.xlu0 %1925
  %1927 = vrot.lane.b32.xlu0 %v1328, 20
  %v1928 = vpop.permute.xlu0 %1927
  %1929 = vrot.lane.b32.xlu0 %v1327, 20
  %v1930 = vpop.permute.xlu0 %1929
  %1931 = vrot.lane.b32.xlu0 %v1331, 20
  %v1932 = vpop.permute.xlu0 %1931
  %1933 = vrot.lane.b32.xlu0 %v1330, 20
  %v1934 = vpop.permute.xlu0 %1933
  %1935 = vrot.lane.b32.xlu0 %v1334, 20
  %v1936 = vpop.permute.xlu0 %1935
  %1937 = vrot.lane.b32.xlu0 %v1333, 20
  %v1938 = vpop.permute.xlu0 %1937
  %1939 = vrot.lane.b32.xlu0 %v1337, 20
  %v1940 = vpop.permute.xlu0 %1939
  %1941 = vrot.lane.b32.xlu0 %v1336, 20
  %v1942 = vpop.permute.xlu0 %1941
  %1943 = vrot.lane.b32.xlu0 %v1340, 20
  %v1944 = vpop.permute.xlu0 %1943
  %1945 = vrot.lane.b32.xlu0 %v1339, 20
  %v1946 = vpop.permute.xlu0 %1945
  %1947 = vrot.lane.b32.xlu0 %v1343, 20
  %v1948 = vpop.permute.xlu0 %1947
  %1949 = vrot.lane.b32.xlu0 %v1342, 20
  %v1950 = vpop.permute.xlu0 %1949
  %1951 = vrot.lane.b32.xlu0 %v1346, 20
  %v1952 = vpop.permute.xlu0 %1951
  %1953 = vrot.lane.b32.xlu0 %v1345, 20
  %v1954 = vpop.permute.xlu0 %1953
  %1955 = vrot.lane.b32.xlu0 %v1349, 20
  %v1956 = vpop.permute.xlu0 %1955
  %1957 = vrot.lane.b32.xlu0 %v1348, 20
  %v1958 = vpop.permute.xlu0 %1957
  %1959 = vrot.lane.b32.xlu0 %v1352, 20
  %v1960 = vpop.permute.xlu0 %1959
  %1961 = vrot.lane.b32.xlu0 %v1351, 20
  %v1962 = vpop.permute.xlu0 %1961
  %1963 = vrot.lane.b32.xlu0 %v1355, 20
  %v1964 = vpop.permute.xlu0 %1963
  %1965 = vrot.lane.b32.xlu0 %v1354, 20
  %v1966 = vpop.permute.xlu0 %1965
  %1967 = vrot.lane.b32.xlu0 %v1358, 20
  %v1968 = vpop.permute.xlu0 %1967
  %1969 = vrot.lane.b32.xlu0 %v1357, 20
  %v1970 = vpop.permute.xlu0 %1969
  %1971 = vrot.lane.b32.xlu0 %v1899, 20
  %v1972 = vpop.permute.xlu0 %1971
  %1973 = vrot.lane.b32.xlu0 %v1898, 20
  %v1974 = vpop.permute.xlu0 %1973
  %1975 = vrot.lane.b32.xlu0 %v1364, 20
  %v1976 = vpop.permute.xlu0 %1975
  %1977 = vrot.lane.b32.xlu0 %v1363, 20
  %v1978 = vpop.permute.xlu0 %1977
  %1979 = vrot.lane.b32.xlu0 %v1367, 20
  %v1980 = vpop.permute.xlu0 %1979
  %1981 = vrot.lane.b32.xlu0 %v1366, 20
  %v1982 = vpop.permute.xlu0 %1981
  %1983 = vrot.lane.b32.xlu0 %v1370, 20
  %v1984 = vpop.permute.xlu0 %1983
  %1985 = vrot.lane.b32.xlu0 %v1369, 20
  %v1986 = vpop.permute.xlu0 %1985
  %1987 = vrot.lane.b32.xlu0 %v1373, 20
  %v1988 = vpop.permute.xlu0 %1987
  %1989 = vrot.lane.b32.xlu0 %v1372, 20
  %v1990 = vpop.permute.xlu0 %1989
  %1991 = vrot.lane.b32.xlu0 %v1376, 20
  %v1992 = vpop.permute.xlu0 %1991
  %1993 = vrot.lane.b32.xlu0 %v1375, 20
  %v1994 = vpop.permute.xlu0 %1993
  %1995 = vrot.lane.b32.xlu0 %v1379, 20
  %v1996 = vpop.permute.xlu0 %1995
  %1997 = vrot.lane.b32.xlu0 %v1378, 20
  %v1998 = vpop.permute.xlu0 %1997
  %1999 = vrot.lane.b32.xlu0 %v1382, 20
  %v2000 = vpop.permute.xlu0 %1999
  %2001 = vrot.lane.b32.xlu0 %v1381, 20
  %v2002 = vpop.permute.xlu0 %2001
  %2003 = vrot.lane.b32.xlu0 %v1385, 20
  %v2004 = vpop.permute.xlu0 %2003
  %2005 = vrot.lane.b32.xlu0 %v1384, 20
  %v2006 = vpop.permute.xlu0 %2005
  %2007 = vrot.lane.b32.xlu0 %v1388, 20
  %v2008 = vpop.permute.xlu0 %2007
  %2009 = vrot.lane.b32.xlu0 %v1387, 20
  %v2010 = vpop.permute.xlu0 %2009
  %2011 = vrot.lane.b32.xlu0 %v1391, 20
  %v2012 = vpop.permute.xlu0 %2011
  %2013 = vrot.lane.b32.xlu0 %v1390, 20
  %v2014 = vpop.permute.xlu0 %2013
  %2015 = vrot.lane.b32.xlu0 %v1394, 20
  %v2016 = vpop.permute.xlu0 %2015
  %2017 = vrot.lane.b32.xlu0 %v1393, 20
  %v2018 = vpop.permute.xlu0 %2017
  %2019 = vrot.lane.b32.xlu0 %v1397, 20
  %v2020 = vpop.permute.xlu0 %2019
  %2021 = vrot.lane.b32.xlu0 %v1396, 20
  %v2022 = vpop.permute.xlu0 %2021
  %2023 = vrot.lane.b32.xlu0 %v1400, 20
  %v2024 = vpop.permute.xlu0 %2023
  %2025 = vrot.lane.b32.xlu0 %v1399, 20
  %v2026 = vpop.permute.xlu0 %2025
  %2027 = vrot.lane.b32.xlu0 %v1403, 20
  %v2028 = vpop.permute.xlu0 %2027
  %2029 = vrot.lane.b32.xlu0 %v1402, 20
  %v2030 = vpop.permute.xlu0 %2029
  %2031 = vrot.lane.b32.xlu0 %v1406, 20
  %v2032 = vpop.permute.xlu0 %2031
  %2033 = vrot.lane.b32.xlu0 %v1405, 20
  %v2034 = vpop.permute.xlu0 %2033
  %2035 = vrot.lane.b32.xlu0 %v1409, 20
  %v2036 = vpop.permute.xlu0 %2035
  %2037 = vrot.lane.b32.xlu0 %v1408, 20
  %v2038 = vpop.permute.xlu0 %2037
  %2039 = vrot.lane.b32.xlu0 %v1412, 20
  %v2040 = vpop.permute.xlu0 %2039
  %2041 = vrot.lane.b32.xlu0 %v1411, 20
  %v2042 = vpop.permute.xlu0 %2041
  %2043 = vrot.lane.b32.xlu0 %v1902, 20
  %v2044 = vpop.permute.xlu0 %2043
  %2045 = vrot.lane.b32.xlu0 %v1901, 20
  %v2046 = vpop.permute.xlu0 %2045
  %v2053 = vunpack.c.l.b16 %v134
  %v2054 = vunpack.c.l.b16 %v135
  %v2055 = vunpack.c.l.b16 %v136
  %v2056 = vunpack.c.l.b16 %v214
  %v2057 = vunpack.c.l.b16 %v215
  %v2058 = vunpack.c.l.b16 %v216
  %v2059 = vpack.c.b16 %v2054, %v2053
  %v2060 = vpack.c.b16 %v2055, %v2055
  %v2061 = vpack.c.b16 %v2057, %v2056
  %v2062 = vpack.c.b16 %v2058, %v2058
  %2063 = vrot.lane.b32.xlu0 %v443, 24
  %v2064 = vpop.permute.xlu0 %2063
  %2065 = vrot.lane.b32.xlu0 %v444, 24
  %v2066 = vpop.permute.xlu0 %2065
  %2067 = vrot.lane.b32.xlu0 %v445, 24
  %v2068 = vpop.permute.xlu0 %2067
  %2069 = vrot.lane.b32.xlu0 %v446, 24
  %v2070 = vpop.permute.xlu0 %2069
  %2071 = vrot.lane.b32.xlu0 %v447, 24
  %v2072 = vpop.permute.xlu0 %2071
  %2073 = vrot.lane.b32.xlu0 %v448, 24
  %v2074 = vpop.permute.xlu0 %2073
  %2075 = vrot.lane.b32.xlu0 %v449, 24
  %v2076 = vpop.permute.xlu0 %2075
  %2077 = vrot.lane.b32.xlu0 %v450, 24
  %v2078 = vpop.permute.xlu0 %2077
  %2079 = vrot.lane.b32.xlu0 %v451, 24
  %v2080 = vpop.permute.xlu0 %2079
  %2081 = vrot.lane.b32.xlu0 %v452, 24
  %v2082 = vpop.permute.xlu0 %2081
  %2083 = vrot.lane.b32.xlu0 %v453, 24
  %v2084 = vpop.permute.xlu0 %2083
  %2085 = vrot.lane.b32.xlu0 %v454, 24
  %v2086 = vpop.permute.xlu0 %2085
  %2087 = vrot.lane.b32.xlu0 %v455, 24
  %v2088 = vpop.permute.xlu0 %2087
  %2089 = vrot.lane.b32.xlu0 %v456, 24
  %v2090 = vpop.permute.xlu0 %2089
  %2091 = vrot.lane.b32.xlu0 %v457, 24
  %v2092 = vpop.permute.xlu0 %2091
  %2093 = vrot.lane.b32.xlu0 %v458, 24
  %v2094 = vpop.permute.xlu0 %2093
  %2095 = vrot.lane.b32.xlu0 %v459, 24
  %v2096 = vpop.permute.xlu0 %2095
  %2097 = vrot.lane.b32.xlu0 %v460, 24
  %v2098 = vpop.permute.xlu0 %2097
  %2099 = vrot.lane.b32.xlu0 %v461, 24
  %v2100 = vpop.permute.xlu0 %2099
  %2101 = vrot.lane.b32.xlu0 %v462, 24
  %v2102 = vpop.permute.xlu0 %2101
  %2103 = vrot.lane.b32.xlu0 %v463, 24
  %v2104 = vpop.permute.xlu0 %2103
  %2105 = vrot.lane.b32.xlu0 %v464, 24
  %v2106 = vpop.permute.xlu0 %2105
  %2107 = vrot.lane.b32.xlu0 %v465, 24
  %v2108 = vpop.permute.xlu0 %2107
  %2109 = vrot.lane.b32.xlu0 %v466, 24
  %v2110 = vpop.permute.xlu0 %2109
  %2111 = vrot.lane.b32.xlu0 %v467, 24
  %v2112 = vpop.permute.xlu0 %2111
  %2113 = vrot.lane.b32.xlu0 %v468, 24
  %v2114 = vpop.permute.xlu0 %2113
  %2115 = vrot.lane.b32.xlu0 %v469, 24
  %v2116 = vpop.permute.xlu0 %2115
  %2117 = vrot.lane.b32.xlu0 %v470, 24
  %v2118 = vpop.permute.xlu0 %2117
  %2119 = vrot.lane.b32.xlu0 %v471, 24
  %v2120 = vpop.permute.xlu0 %2119
  %2121 = vrot.lane.b32.xlu0 %v472, 24
  %v2122 = vpop.permute.xlu0 %2121
  %2123 = vrot.lane.b32.xlu0 %v473, 24
  %v2124 = vpop.permute.xlu0 %2123
  %2125 = vrot.lane.b32.xlu0 %v474, 24
  %v2126 = vpop.permute.xlu0 %2125
  %2127 = vrot.lane.b32.xlu0 %v1569, 24
  %v2128 = vpop.permute.xlu0 %2127
  %2129 = vrot.lane.b32.xlu0 %v1570, 24
  %v2130 = vpop.permute.xlu0 %2129
  %2131 = vrot.lane.b32.xlu0 %v2059, 24
  %v2132 = vpop.permute.xlu0 %2131
  %2133 = vrot.lane.b32.xlu0 %v2060, 24
  %v2134 = vpop.permute.xlu0 %2133
  %2135 = vrot.lane.b32.xlu0 %v479, 24
  %v2136 = vpop.permute.xlu0 %2135
  %2137 = vrot.lane.b32.xlu0 %v480, 24
  %v2138 = vpop.permute.xlu0 %2137
  %2139 = vrot.lane.b32.xlu0 %v481, 24
  %v2140 = vpop.permute.xlu0 %2139
  %2141 = vrot.lane.b32.xlu0 %v482, 24
  %v2142 = vpop.permute.xlu0 %2141
  %2143 = vrot.lane.b32.xlu0 %v483, 24
  %v2144 = vpop.permute.xlu0 %2143
  %2145 = vrot.lane.b32.xlu0 %v484, 24
  %v2146 = vpop.permute.xlu0 %2145
  %2147 = vrot.lane.b32.xlu0 %v485, 24
  %v2148 = vpop.permute.xlu0 %2147
  %2149 = vrot.lane.b32.xlu0 %v486, 24
  %v2150 = vpop.permute.xlu0 %2149
  %2151 = vrot.lane.b32.xlu0 %v487, 24
  %v2152 = vpop.permute.xlu0 %2151
  %2153 = vrot.lane.b32.xlu0 %v488, 24
  %v2154 = vpop.permute.xlu0 %2153
  %2155 = vrot.lane.b32.xlu0 %v489, 24
  %v2156 = vpop.permute.xlu0 %2155
  %2157 = vrot.lane.b32.xlu0 %v490, 24
  %v2158 = vpop.permute.xlu0 %2157
  %2159 = vrot.lane.b32.xlu0 %v491, 24
  %v2160 = vpop.permute.xlu0 %2159
  %2161 = vrot.lane.b32.xlu0 %v492, 24
  %v2162 = vpop.permute.xlu0 %2161
  %2163 = vrot.lane.b32.xlu0 %v493, 24
  %v2164 = vpop.permute.xlu0 %2163
  %2165 = vrot.lane.b32.xlu0 %v494, 24
  %v2166 = vpop.permute.xlu0 %2165
  %2167 = vrot.lane.b32.xlu0 %v495, 24
  %v2168 = vpop.permute.xlu0 %2167
  %2169 = vrot.lane.b32.xlu0 %v496, 24
  %v2170 = vpop.permute.xlu0 %2169
  %2171 = vrot.lane.b32.xlu0 %v497, 24
  %v2172 = vpop.permute.xlu0 %2171
  %2173 = vrot.lane.b32.xlu0 %v498, 24
  %v2174 = vpop.permute.xlu0 %2173
  %2175 = vrot.lane.b32.xlu0 %v499, 24
  %v2176 = vpop.permute.xlu0 %2175
  %2177 = vrot.lane.b32.xlu0 %v500, 24
  %v2178 = vpop.permute.xlu0 %2177
  %2179 = vrot.lane.b32.xlu0 %v501, 24
  %v2180 = vpop.permute.xlu0 %2179
  %2181 = vrot.lane.b32.xlu0 %v502, 24
  %v2182 = vpop.permute.xlu0 %2181
  %2183 = vrot.lane.b32.xlu0 %v503, 24
  %v2184 = vpop.permute.xlu0 %2183
  %2185 = vrot.lane.b32.xlu0 %v504, 24
  %v2186 = vpop.permute.xlu0 %2185
  %2187 = vrot.lane.b32.xlu0 %v505, 24
  %v2188 = vpop.permute.xlu0 %2187
  %2189 = vrot.lane.b32.xlu0 %v506, 24
  %v2190 = vpop.permute.xlu0 %2189
  %2191 = vrot.lane.b32.xlu0 %v507, 24
  %v2192 = vpop.permute.xlu0 %2191
  %2193 = vrot.lane.b32.xlu0 %v508, 24
  %v2194 = vpop.permute.xlu0 %2193
  %2195 = vrot.lane.b32.xlu0 %v509, 24
  %v2196 = vpop.permute.xlu0 %2195
  %2197 = vrot.lane.b32.xlu0 %v510, 24
  %v2198 = vpop.permute.xlu0 %2197
  %2199 = vrot.lane.b32.xlu0 %v1571, 24
  %v2200 = vpop.permute.xlu0 %2199
  %2201 = vrot.lane.b32.xlu0 %v1572, 24
  %v2202 = vpop.permute.xlu0 %2201
  %2203 = vrot.lane.b32.xlu0 %v2061, 24
  %v2204 = vpop.permute.xlu0 %2203
  %2205 = vrot.lane.b32.xlu0 %v2062, 24
  %v2206 = vpop.permute.xlu0 %2205
  %v2209 = vunpack.c.l.b16 %v137
  %v2210 = vunpack.c.l.b16 %v217
  %v2211 = vpack.c.b16 %v2209, %v2055
  %v2212 = vpack.c.b16 %v2210, %v2058
  %v2214 = vshrl.u32 %v2059, 16
  %v2216 = vshll.u32 %v2059, 16
  %v2218 = vrot.slane %v2216, 1
  %v2219 = vor.u32 %v2214, %v2218
  %v2221 = vshll.u32 %v2211, 16
  %v2223 = vrot.slane %v2221, 1
  %v2224 = vsel %vm619, %v2219, %v2223
  %v2225 = vshrl.u32 %v2211, 16
  %v2227 = vor.u32 %v2225, %v2223
  %v2229 = vshrl.u32 %v2061, 16
  %v2231 = vshll.u32 %v2061, 16
  %v2233 = vrot.slane %v2231, 1
  %v2234 = vor.u32 %v2229, %v2233
  %v2236 = vshll.u32 %v2212, 16
  %v2238 = vrot.slane %v2236, 1
  %v2239 = vsel %vm619, %v2234, %v2238
  %v2240 = vshrl.u32 %v2212, 16
  %v2242 = vor.u32 %v2240, %v2238
  %2243 = vrot.lane.b32.xlu0 %v661, 28
  %v2244 = vpop.permute.xlu0 %2243
  %2245 = vrot.lane.b32.xlu0 %v664, 28
  %v2246 = vpop.permute.xlu0 %2245
  %2247 = vrot.lane.b32.xlu0 %v676, 28
  %v2248 = vpop.permute.xlu0 %2247
  %2249 = vrot.lane.b32.xlu0 %v679, 28
  %v2250 = vpop.permute.xlu0 %2249
  %2251 = vrot.lane.b32.xlu0 %v691, 28
  %v2252 = vpop.permute.xlu0 %2251
  %2253 = vrot.lane.b32.xlu0 %v694, 28
  %v2254 = vpop.permute.xlu0 %2253
  %2255 = vrot.lane.b32.xlu0 %v706, 28
  %v2256 = vpop.permute.xlu0 %2255
  %2257 = vrot.lane.b32.xlu0 %v709, 28
  %v2258 = vpop.permute.xlu0 %2257
  %2259 = vrot.lane.b32.xlu0 %v721, 28
  %v2260 = vpop.permute.xlu0 %2259
  %2261 = vrot.lane.b32.xlu0 %v724, 28
  %v2262 = vpop.permute.xlu0 %2261
  %2263 = vrot.lane.b32.xlu0 %v736, 28
  %v2264 = vpop.permute.xlu0 %2263
  %2265 = vrot.lane.b32.xlu0 %v739, 28
  %v2266 = vpop.permute.xlu0 %2265
  %2267 = vrot.lane.b32.xlu0 %v751, 28
  %v2268 = vpop.permute.xlu0 %2267
  %2269 = vrot.lane.b32.xlu0 %v754, 28
  %v2270 = vpop.permute.xlu0 %2269
  %2271 = vrot.lane.b32.xlu0 %v766, 28
  %v2272 = vpop.permute.xlu0 %2271
  %2273 = vrot.lane.b32.xlu0 %v769, 28
  %v2274 = vpop.permute.xlu0 %2273
  %2275 = vrot.lane.b32.xlu0 %v781, 28
  %v2276 = vpop.permute.xlu0 %2275
  %2277 = vrot.lane.b32.xlu0 %v784, 28
  %v2278 = vpop.permute.xlu0 %2277
  %2279 = vrot.lane.b32.xlu0 %v796, 28
  %v2280 = vpop.permute.xlu0 %2279
  %2281 = vrot.lane.b32.xlu0 %v799, 28
  %v2282 = vpop.permute.xlu0 %2281
  %2283 = vrot.lane.b32.xlu0 %v811, 28
  %v2284 = vpop.permute.xlu0 %2283
  %2285 = vrot.lane.b32.xlu0 %v814, 28
  %v2286 = vpop.permute.xlu0 %2285
  %2287 = vrot.lane.b32.xlu0 %v826, 28
  %v2288 = vpop.permute.xlu0 %2287
  %2289 = vrot.lane.b32.xlu0 %v829, 28
  %v2290 = vpop.permute.xlu0 %2289
  %2291 = vrot.lane.b32.xlu0 %v841, 28
  %v2292 = vpop.permute.xlu0 %2291
  %2293 = vrot.lane.b32.xlu0 %v844, 28
  %v2294 = vpop.permute.xlu0 %2293
  %2295 = vrot.lane.b32.xlu0 %v856, 28
  %v2296 = vpop.permute.xlu0 %2295
  %2297 = vrot.lane.b32.xlu0 %v859, 28
  %v2298 = vpop.permute.xlu0 %2297
  %2299 = vrot.lane.b32.xlu0 %v871, 28
  %v2300 = vpop.permute.xlu0 %2299
  %2301 = vrot.lane.b32.xlu0 %v874, 28
  %v2302 = vpop.permute.xlu0 %2301
  %2303 = vrot.lane.b32.xlu0 %v886, 28
  %v2304 = vpop.permute.xlu0 %2303
  %2305 = vrot.lane.b32.xlu0 %v889, 28
  %v2306 = vpop.permute.xlu0 %2305
  %2307 = vrot.lane.b32.xlu0 %v1734, 28
  %v2308 = vpop.permute.xlu0 %2307
  %2309 = vrot.lane.b32.xlu0 %v1737, 28
  %v2310 = vpop.permute.xlu0 %2309
  %2311 = vrot.lane.b32.xlu0 %v2224, 28
  %v2312 = vpop.permute.xlu0 %2311
  %2313 = vrot.lane.b32.xlu0 %v2227, 28
  %v2314 = vpop.permute.xlu0 %2313
  %2315 = vrot.lane.b32.xlu0 %v931, 28
  %v2316 = vpop.permute.xlu0 %2315
  %2317 = vrot.lane.b32.xlu0 %v934, 28
  %v2318 = vpop.permute.xlu0 %2317
  %2319 = vrot.lane.b32.xlu0 %v946, 28
  %v2320 = vpop.permute.xlu0 %2319
  %2321 = vrot.lane.b32.xlu0 %v949, 28
  %v2322 = vpop.permute.xlu0 %2321
  %2323 = vrot.lane.b32.xlu0 %v961, 28
  %v2324 = vpop.permute.xlu0 %2323
  %2325 = vrot.lane.b32.xlu0 %v964, 28
  %v2326 = vpop.permute.xlu0 %2325
  %2327 = vrot.lane.b32.xlu0 %v976, 28
  %v2328 = vpop.permute.xlu0 %2327
  %2329 = vrot.lane.b32.xlu0 %v979, 28
  %v2330 = vpop.permute.xlu0 %2329
  %2331 = vrot.lane.b32.xlu0 %v991, 28
  %v2332 = vpop.permute.xlu0 %2331
  %2333 = vrot.lane.b32.xlu0 %v994, 28
  %v2334 = vpop.permute.xlu0 %2333
  %2335 = vrot.lane.b32.xlu0 %v1006, 28
  %v2336 = vpop.permute.xlu0 %2335
  %2337 = vrot.lane.b32.xlu0 %v1009, 28
  %v2338 = vpop.permute.xlu0 %2337
  %2339 = vrot.lane.b32.xlu0 %v1021, 28
  %v2340 = vpop.permute.xlu0 %2339
  %2341 = vrot.lane.b32.xlu0 %v1024, 28
  %v2342 = vpop.permute.xlu0 %2341
  %2343 = vrot.lane.b32.xlu0 %v1036, 28
  %v2344 = vpop.permute.xlu0 %2343
  %2345 = vrot.lane.b32.xlu0 %v1039, 28
  %v2346 = vpop.permute.xlu0 %2345
  %2347 = vrot.lane.b32.xlu0 %v1051, 28
  %v2348 = vpop.permute.xlu0 %2347
  %2349 = vrot.lane.b32.xlu0 %v1054, 28
  %v2350 = vpop.permute.xlu0 %2349
  %2351 = vrot.lane.b32.xlu0 %v1066, 28
  %v2352 = vpop.permute.xlu0 %2351
  %2353 = vrot.lane.b32.xlu0 %v1069, 28
  %v2354 = vpop.permute.xlu0 %2353
  %2355 = vrot.lane.b32.xlu0 %v1081, 28
  %v2356 = vpop.permute.xlu0 %2355
  %2357 = vrot.lane.b32.xlu0 %v1084, 28
  %v2358 = vpop.permute.xlu0 %2357
  %2359 = vrot.lane.b32.xlu0 %v1096, 28
  %v2360 = vpop.permute.xlu0 %2359
  %2361 = vrot.lane.b32.xlu0 %v1099, 28
  %v2362 = vpop.permute.xlu0 %2361
  %2363 = vrot.lane.b32.xlu0 %v1111, 28
  %v2364 = vpop.permute.xlu0 %2363
  %2365 = vrot.lane.b32.xlu0 %v1114, 28
  %v2366 = vpop.permute.xlu0 %2365
  %2367 = vrot.lane.b32.xlu0 %v1126, 28
  %v2368 = vpop.permute.xlu0 %2367
  %2369 = vrot.lane.b32.xlu0 %v1129, 28
  %v2370 = vpop.permute.xlu0 %2369
  %2371 = vrot.lane.b32.xlu0 %v1141, 28
  %v2372 = vpop.permute.xlu0 %2371
  %2373 = vrot.lane.b32.xlu0 %v1144, 28
  %v2374 = vpop.permute.xlu0 %2373
  %2375 = vrot.lane.b32.xlu0 %v1156, 28
  %v2376 = vpop.permute.xlu0 %2375
  %2377 = vrot.lane.b32.xlu0 %v1159, 28
  %v2378 = vpop.permute.xlu0 %2377
  %2379 = vrot.lane.b32.xlu0 %v1749, 28
  %v2380 = vpop.permute.xlu0 %2379
  %2381 = vrot.lane.b32.xlu0 %v1752, 28
  %v2382 = vpop.permute.xlu0 %2381
  %2383 = vrot.lane.b32.xlu0 %v2239, 28
  %v2384 = vpop.permute.xlu0 %2383
  %2385 = vrot.lane.b32.xlu0 %v2242, 28
  %v2386 = vpop.permute.xlu0 %2385
  %v2387 = vrot.slane %v2059, 1
  %v2388 = vrot.slane %v2211, 1
  %v2389 = vsel %vm1304, %v2387, %v2388
  %v2390 = vrot.slane %v2061, 1
  %v2391 = vrot.slane %v2212, 1
  %v2392 = vsel %vm1304, %v2390, %v2391
  %2393 = vrot.lane.b32.xlu0 %v1313, 32
  %v2394 = vpop.permute.xlu0 %2393
  %2395 = vrot.lane.b32.xlu0 %v1312, 32
  %v2396 = vpop.permute.xlu0 %2395
  %2397 = vrot.lane.b32.xlu0 %v1316, 32
  %v2398 = vpop.permute.xlu0 %2397
  %2399 = vrot.lane.b32.xlu0 %v1315, 32
  %v2400 = vpop.permute.xlu0 %2399
  %2401 = vrot.lane.b32.xlu0 %v1319, 32
  %v2402 = vpop.permute.xlu0 %2401
  %2403 = vrot.lane.b32.xlu0 %v1318, 32
  %v2404 = vpop.permute.xlu0 %2403
  %2405 = vrot.lane.b32.xlu0 %v1322, 32
  %v2406 = vpop.permute.xlu0 %2405
  %2407 = vrot.lane.b32.xlu0 %v1321, 32
  %v2408 = vpop.permute.xlu0 %2407
  %2409 = vrot.lane.b32.xlu0 %v1325, 32
  %v2410 = vpop.permute.xlu0 %2409
  %2411 = vrot.lane.b32.xlu0 %v1324, 32
  %v2412 = vpop.permute.xlu0 %2411
  %2413 = vrot.lane.b32.xlu0 %v1328, 32
  %v2414 = vpop.permute.xlu0 %2413
  %2415 = vrot.lane.b32.xlu0 %v1327, 32
  %v2416 = vpop.permute.xlu0 %2415
  %2417 = vrot.lane.b32.xlu0 %v1331, 32
  %v2418 = vpop.permute.xlu0 %2417
  %2419 = vrot.lane.b32.xlu0 %v1330, 32
  %v2420 = vpop.permute.xlu0 %2419
  %2421 = vrot.lane.b32.xlu0 %v1334, 32
  %v2422 = vpop.permute.xlu0 %2421
  %2423 = vrot.lane.b32.xlu0 %v1333, 32
  %v2424 = vpop.permute.xlu0 %2423
  %2425 = vrot.lane.b32.xlu0 %v1337, 32
  %v2426 = vpop.permute.xlu0 %2425
  %2427 = vrot.lane.b32.xlu0 %v1336, 32
  %v2428 = vpop.permute.xlu0 %2427
  %2429 = vrot.lane.b32.xlu0 %v1340, 32
  %v2430 = vpop.permute.xlu0 %2429
  %2431 = vrot.lane.b32.xlu0 %v1339, 32
  %v2432 = vpop.permute.xlu0 %2431
  %2433 = vrot.lane.b32.xlu0 %v1343, 32
  %v2434 = vpop.permute.xlu0 %2433
  %2435 = vrot.lane.b32.xlu0 %v1342, 32
  %v2436 = vpop.permute.xlu0 %2435
  %2437 = vrot.lane.b32.xlu0 %v1346, 32
  %v2438 = vpop.permute.xlu0 %2437
  %2439 = vrot.lane.b32.xlu0 %v1345, 32
  %v2440 = vpop.permute.xlu0 %2439
  %2441 = vrot.lane.b32.xlu0 %v1349, 32
  %v2442 = vpop.permute.xlu0 %2441
  %2443 = vrot.lane.b32.xlu0 %v1348, 32
  %v2444 = vpop.permute.xlu0 %2443
  %2445 = vrot.lane.b32.xlu0 %v1352, 32
  %v2446 = vpop.permute.xlu0 %2445
  %2447 = vrot.lane.b32.xlu0 %v1351, 32
  %v2448 = vpop.permute.xlu0 %2447
  %2449 = vrot.lane.b32.xlu0 %v1355, 32
  %v2450 = vpop.permute.xlu0 %2449
  %2451 = vrot.lane.b32.xlu0 %v1354, 32
  %v2452 = vpop.permute.xlu0 %2451
  %2453 = vrot.lane.b32.xlu0 %v1358, 32
  %v2454 = vpop.permute.xlu0 %2453
  %2455 = vrot.lane.b32.xlu0 %v1357, 32
  %v2456 = vpop.permute.xlu0 %2455
  %2457 = vrot.lane.b32.xlu0 %v1899, 32
  %v2458 = vpop.permute.xlu0 %2457
  %2459 = vrot.lane.b32.xlu0 %v1898, 32
  %v2460 = vpop.permute.xlu0 %2459
  %2461 = vrot.lane.b32.xlu0 %v2389, 32
  %v2462 = vpop.permute.xlu0 %2461
  %2463 = vrot.lane.b32.xlu0 %v2388, 32
  %v2464 = vpop.permute.xlu0 %2463
  %2465 = vrot.lane.b32.xlu0 %v1367, 32
  %v2466 = vpop.permute.xlu0 %2465
  %2467 = vrot.lane.b32.xlu0 %v1366, 32
  %v2468 = vpop.permute.xlu0 %2467
  %2469 = vrot.lane.b32.xlu0 %v1370, 32
  %v2470 = vpop.permute.xlu0 %2469
  %2471 = vrot.lane.b32.xlu0 %v1369, 32
  %v2472 = vpop.permute.xlu0 %2471
  %2473 = vrot.lane.b32.xlu0 %v1373, 32
  %v2474 = vpop.permute.xlu0 %2473
  %2475 = vrot.lane.b32.xlu0 %v1372, 32
  %v2476 = vpop.permute.xlu0 %2475
  %2477 = vrot.lane.b32.xlu0 %v1376, 32
  %v2478 = vpop.permute.xlu0 %2477
  %2479 = vrot.lane.b32.xlu0 %v1375, 32
  %v2480 = vpop.permute.xlu0 %2479
  %2481 = vrot.lane.b32.xlu0 %v1379, 32
  %v2482 = vpop.permute.xlu0 %2481
  %2483 = vrot.lane.b32.xlu0 %v1378, 32
  %v2484 = vpop.permute.xlu0 %2483
  %2485 = vrot.lane.b32.xlu0 %v1382, 32
  %v2486 = vpop.permute.xlu0 %2485
  %2487 = vrot.lane.b32.xlu0 %v1381, 32
  %v2488 = vpop.permute.xlu0 %2487
  %2489 = vrot.lane.b32.xlu0 %v1385, 32
  %v2490 = vpop.permute.xlu0 %2489
  %2491 = vrot.lane.b32.xlu0 %v1384, 32
  %v2492 = vpop.permute.xlu0 %2491
  %2493 = vrot.lane.b32.xlu0 %v1388, 32
  %v2494 = vpop.permute.xlu0 %2493
  %2495 = vrot.lane.b32.xlu0 %v1387, 32
  %v2496 = vpop.permute.xlu0 %2495
  %2497 = vrot.lane.b32.xlu0 %v1391, 32
  %v2498 = vpop.permute.xlu0 %2497
  %2499 = vrot.lane.b32.xlu0 %v1390, 32
  %v2500 = vpop.permute.xlu0 %2499
  %2501 = vrot.lane.b32.xlu0 %v1394, 32
  %v2502 = vpop.permute.xlu0 %2501
  %2503 = vrot.lane.b32.xlu0 %v1393, 32
  %v2504 = vpop.permute.xlu0 %2503
  %2505 = vrot.lane.b32.xlu0 %v1397, 32
  %v2506 = vpop.permute.xlu0 %2505
  %2507 = vrot.lane.b32.xlu0 %v1396, 32
  %v2508 = vpop.permute.xlu0 %2507
  %2509 = vrot.lane.b32.xlu0 %v1400, 32
  %v2510 = vpop.permute.xlu0 %2509
  %2511 = vrot.lane.b32.xlu0 %v1399, 32
  %v2512 = vpop.permute.xlu0 %2511
  %2513 = vrot.lane.b32.xlu0 %v1403, 32
  %v2514 = vpop.permute.xlu0 %2513
  %2515 = vrot.lane.b32.xlu0 %v1402, 32
  %v2516 = vpop.permute.xlu0 %2515
  %2517 = vrot.lane.b32.xlu0 %v1406, 32
  %v2518 = vpop.permute.xlu0 %2517
  %2519 = vrot.lane.b32.xlu0 %v1405, 32
  %v2520 = vpop.permute.xlu0 %2519
  %2521 = vrot.lane.b32.xlu0 %v1409, 32
  %v2522 = vpop.permute.xlu0 %2521
  %2523 = vrot.lane.b32.xlu0 %v1408, 32
  %v2524 = vpop.permute.xlu0 %2523
  %2525 = vrot.lane.b32.xlu0 %v1412, 32
  %v2526 = vpop.permute.xlu0 %2525
  %2527 = vrot.lane.b32.xlu0 %v1411, 32
  %v2528 = vpop.permute.xlu0 %2527
  %2529 = vrot.lane.b32.xlu0 %v1902, 32
  %v2530 = vpop.permute.xlu0 %2529
  %2531 = vrot.lane.b32.xlu0 %v1901, 32
  %v2532 = vpop.permute.xlu0 %2531
  %2533 = vrot.lane.b32.xlu0 %v2392, 32
  %v2534 = vpop.permute.xlu0 %2533
  %2535 = vrot.lane.b32.xlu0 %v2391, 32
  %v2536 = vpop.permute.xlu0 %2535
  %vm2537 = vcmask 31744
  %v2539 = vsel %vm2537, %v439, %v1161
  %v2542 = vsel %vm2537, %v440, %v1163
  %v2544 = vsel %vm2537, %v441, %v1165
  %v2547 = vsel %vm2537, %v442, %v1167
  %v2549 = vsel %vm2537, %v443, %v1169
  %v2552 = vsel %vm2537, %v444, %v1171
  %v2554 = vsel %vm2537, %v445, %v1173
  %v2557 = vsel %vm2537, %v446, %v1175
  %v2559 = vsel %vm2537, %v447, %v1177
  %v2562 = vsel %vm2537, %v448, %v1179
  %v2564 = vsel %vm2537, %v449, %v1181
  %v2567 = vsel %vm2537, %v450, %v1183
  %v2569 = vsel %vm2537, %v451, %v1185
  %v2572 = vsel %vm2537, %v452, %v1187
  %v2574 = vsel %vm2537, %v453, %v1189
  %v2577 = vsel %vm2537, %v454, %v1191
  %v2579 = vsel %vm2537, %v455, %v1193
  %v2582 = vsel %vm2537, %v456, %v1195
  %v2584 = vsel %vm2537, %v457, %v1197
  %v2587 = vsel %vm2537, %v458, %v1199
  %v2589 = vsel %vm2537, %v459, %v1201
  %v2592 = vsel %vm2537, %v460, %v1203
  %v2594 = vsel %vm2537, %v461, %v1205
  %v2597 = vsel %vm2537, %v462, %v1207
  %v2599 = vsel %vm2537, %v463, %v1209
  %v2602 = vsel %vm2537, %v464, %v1211
  %v2604 = vsel %vm2537, %v465, %v1213
  %v2607 = vsel %vm2537, %v466, %v1215
  %v2609 = vsel %vm2537, %v467, %v1217
  %v2612 = vsel %vm2537, %v468, %v1219
  %v2614 = vsel %vm2537, %v469, %v1221
  %v2617 = vsel %vm2537, %v470, %v1223
  %v2619 = vsel %vm2537, %v471, %v1225
  %v2622 = vsel %vm2537, %v472, %v1227
  %v2624 = vsel %vm2537, %v473, %v1229
  %v2627 = vsel %vm2537, %v474, %v1231
  %v2629 = vsel %vm2537, %v475, %v1233
  %v2632 = vsel %vm2537, %v476, %v1235
  %v2634 = vsel %vm2537, %v477, %v1237
  %v2637 = vsel %vm2537, %v478, %v1239
  %v2639 = vsel %vm2537, %v479, %v1241
  %v2642 = vsel %vm2537, %v480, %v1243
  %v2644 = vsel %vm2537, %v481, %v1245
  %v2647 = vsel %vm2537, %v482, %v1247
  %v2649 = vsel %vm2537, %v483, %v1249
  %v2652 = vsel %vm2537, %v484, %v1251
  %v2654 = vsel %vm2537, %v485, %v1253
  %v2657 = vsel %vm2537, %v486, %v1255
  %v2659 = vsel %vm2537, %v487, %v1257
  %v2662 = vsel %vm2537, %v488, %v1259
  %v2664 = vsel %vm2537, %v489, %v1261
  %v2667 = vsel %vm2537, %v490, %v1263
  %v2669 = vsel %vm2537, %v491, %v1265
  %v2672 = vsel %vm2537, %v492, %v1267
  %v2674 = vsel %vm2537, %v493, %v1269
  %v2677 = vsel %vm2537, %v494, %v1271
  %v2679 = vsel %vm2537, %v495, %v1273
  %v2682 = vsel %vm2537, %v496, %v1275
  %v2684 = vsel %vm2537, %v497, %v1277
  %v2687 = vsel %vm2537, %v498, %v1279
  %v2689 = vsel %vm2537, %v499, %v1281
  %v2692 = vsel %vm2537, %v500, %v1283
  %v2694 = vsel %vm2537, %v501, %v1285
  %v2697 = vsel %vm2537, %v502, %v1287
  %v2699 = vsel %vm2537, %v503, %v1289
  %v2702 = vsel %vm2537, %v504, %v1291
  %v2704 = vsel %vm2537, %v505, %v1293
  %v2707 = vsel %vm2537, %v506, %v1295
  %v2709 = vsel %vm2537, %v507, %v1297
  %v2712 = vsel %vm2537, %v508, %v1299
  %v2714 = vsel %vm2537, %v509, %v1301
  %v2717 = vsel %vm2537, %v510, %v1303
  %vm2718 = vcmask 64512
  %v2720 = vsel %vm2718, %v2539, %v1414
  %v2722 = vsel %vm2718, %v2542, %v1416
  %v2724 = vsel %vm2718, %v2544, %v1418
  %v2726 = vsel %vm2718, %v2547, %v1420
  %v2728 = vsel %vm2718, %v2549, %v1422
  %v2730 = vsel %vm2718, %v2552, %v1424
  %v2732 = vsel %vm2718, %v2554, %v1426
  %v2734 = vsel %vm2718, %v2557, %v1428
  %v2736 = vsel %vm2718, %v2559, %v1430
  %v2738 = vsel %vm2718, %v2562, %v1432
  %v2740 = vsel %vm2718, %v2564, %v1434
  %v2742 = vsel %vm2718, %v2567, %v1436
  %v2744 = vsel %vm2718, %v2569, %v1438
  %v2746 = vsel %vm2718, %v2572, %v1440
  %v2748 = vsel %vm2718, %v2574, %v1442
  %v2750 = vsel %vm2718, %v2577, %v1444
  %v2752 = vsel %vm2718, %v2579, %v1446
  %v2754 = vsel %vm2718, %v2582, %v1448
  %v2756 = vsel %vm2718, %v2584, %v1450
  %v2758 = vsel %vm2718, %v2587, %v1452
  %v2760 = vsel %vm2718, %v2589, %v1454
  %v2762 = vsel %vm2718, %v2592, %v1456
  %v2764 = vsel %vm2718, %v2594, %v1458
  %v2766 = vsel %vm2718, %v2597, %v1460
  %v2768 = vsel %vm2718, %v2599, %v1462
  %v2770 = vsel %vm2718, %v2602, %v1464
  %v2772 = vsel %vm2718, %v2604, %v1466
  %v2774 = vsel %vm2718, %v2607, %v1468
  %v2776 = vsel %vm2718, %v2609, %v1470
  %v2778 = vsel %vm2718, %v2612, %v1472
  %v2780 = vsel %vm2718, %v2614, %v1474
  %v2782 = vsel %vm2718, %v2617, %v1476
  %v2784 = vsel %vm2718, %v2619, %v1478
  %v2786 = vsel %vm2718, %v2622, %v1480
  %v2788 = vsel %vm2718, %v2624, %v1482
  %v2790 = vsel %vm2718, %v2627, %v1484
  %v2792 = vsel %vm2718, %v2629, %v1486
  %v2794 = vsel %vm2718, %v2632, %v1488
  %v2796 = vsel %vm2718, %v2634, %v1490
  %v2798 = vsel %vm2718, %v2637, %v1492
  %v2800 = vsel %vm2718, %v2639, %v1494
  %v2802 = vsel %vm2718, %v2642, %v1496
  %v2804 = vsel %vm2718, %v2644, %v1498
  %v2806 = vsel %vm2718, %v2647, %v1500
  %v2808 = vsel %vm2718, %v2649, %v1502
  %v2810 = vsel %vm2718, %v2652, %v1504
  %v2812 = vsel %vm2718, %v2654, %v1506
  %v2814 = vsel %vm2718, %v2657, %v1508
  %v2816 = vsel %vm2718, %v2659, %v1510
  %v2818 = vsel %vm2718, %v2662, %v1512
  %v2820 = vsel %vm2718, %v2664, %v1514
  %v2822 = vsel %vm2718, %v2667, %v1516
  %v2824 = vsel %vm2718, %v2669, %v1518
  %v2826 = vsel %vm2718, %v2672, %v1520
  %v2828 = vsel %vm2718, %v2674, %v1522
  %v2830 = vsel %vm2718, %v2677, %v1524
  %v2832 = vsel %vm2718, %v2679, %v1526
  %v2834 = vsel %vm2718, %v2682, %v1528
  %v2836 = vsel %vm2718, %v2684, %v1530
  %v2838 = vsel %vm2718, %v2687, %v1532
  %v2840 = vsel %vm2718, %v2689, %v1534
  %v2842 = vsel %vm2718, %v2692, %v1536
  %v2844 = vsel %vm2718, %v2694, %v1538
  %v2846 = vsel %vm2718, %v2697, %v1540
  %v2848 = vsel %vm2718, %v2699, %v1542
  %v2850 = vsel %vm2718, %v2702, %v1544
  %v2852 = vsel %vm2718, %v2704, %v1546
  %v2854 = vsel %vm2718, %v2707, %v1548
  %v2856 = vsel %vm2718, %v2709, %v1550
  %v2858 = vsel %vm2718, %v2712, %v1552
  %v2860 = vsel %vm2718, %v2714, %v1554
  %v2862 = vsel %vm2718, %v2717, %v1556
  %vm2863 = vcmask 97280
  %v2865 = vsel %vm2863, %v2720, %v1574
  %v2867 = vsel %vm2863, %v2722, %v1576
  %v2869 = vsel %vm2863, %v2724, %v1578
  %v2871 = vsel %vm2863, %v2726, %v1580
  %v2873 = vsel %vm2863, %v2728, %v1582
  %v2875 = vsel %vm2863, %v2730, %v1584
  %v2877 = vsel %vm2863, %v2732, %v1586
  %v2879 = vsel %vm2863, %v2734, %v1588
  %v2881 = vsel %vm2863, %v2736, %v1590
  %v2883 = vsel %vm2863, %v2738, %v1592
  %v2885 = vsel %vm2863, %v2740, %v1594
  %v2887 = vsel %vm2863, %v2742, %v1596
  %v2889 = vsel %vm2863, %v2744, %v1598
  %v2891 = vsel %vm2863, %v2746, %v1600
  %v2893 = vsel %vm2863, %v2748, %v1602
  %v2895 = vsel %vm2863, %v2750, %v1604
  %v2897 = vsel %vm2863, %v2752, %v1606
  %v2899 = vsel %vm2863, %v2754, %v1608
  %v2901 = vsel %vm2863, %v2756, %v1610
  %v2903 = vsel %vm2863, %v2758, %v1612
  %v2905 = vsel %vm2863, %v2760, %v1614
  %v2907 = vsel %vm2863, %v2762, %v1616
  %v2909 = vsel %vm2863, %v2764, %v1618
  %v2911 = vsel %vm2863, %v2766, %v1620
  %v2913 = vsel %vm2863, %v2768, %v1622
  %v2915 = vsel %vm2863, %v2770, %v1624
  %v2917 = vsel %vm2863, %v2772, %v1626
  %v2919 = vsel %vm2863, %v2774, %v1628
  %v2921 = vsel %vm2863, %v2776, %v1630
  %v2923 = vsel %vm2863, %v2778, %v1632
  %v2925 = vsel %vm2863, %v2780, %v1634
  %v2927 = vsel %vm2863, %v2782, %v1636
  %v2929 = vsel %vm2863, %v2784, %v1638
  %v2931 = vsel %vm2863, %v2786, %v1640
  %v2933 = vsel %vm2863, %v2788, %v1642
  %v2935 = vsel %vm2863, %v2790, %v1644
  %v2937 = vsel %vm2863, %v2792, %v1646
  %v2939 = vsel %vm2863, %v2794, %v1648
  %v2941 = vsel %vm2863, %v2796, %v1650
  %v2943 = vsel %vm2863, %v2798, %v1652
  %v2945 = vsel %vm2863, %v2800, %v1654
  %v2947 = vsel %vm2863, %v2802, %v1656
  %v2949 = vsel %vm2863, %v2804, %v1658
  %v2951 = vsel %vm2863, %v2806, %v1660
  %v2953 = vsel %vm2863, %v2808, %v1662
  %v2955 = vsel %vm2863, %v2810, %v1664
  %v2957 = vsel %vm2863, %v2812, %v1666
  %v2959 = vsel %vm2863, %v2814, %v1668
  %v2961 = vsel %vm2863, %v2816, %v1670
  %v2963 = vsel %vm2863, %v2818, %v1672
  %v2965 = vsel %vm2863, %v2820, %v1674
  %v2967 = vsel %vm2863, %v2822, %v1676
  %v2969 = vsel %vm2863, %v2824, %v1678
  %v2971 = vsel %vm2863, %v2826, %v1680
  %v2973 = vsel %vm2863, %v2828, %v1682
  %v2975 = vsel %vm2863, %v2830, %v1684
  %v2977 = vsel %vm2863, %v2832, %v1686
  %v2979 = vsel %vm2863, %v2834, %v1688
  %v2981 = vsel %vm2863, %v2836, %v1690
  %v2983 = vsel %vm2863, %v2838, %v1692
  %v2985 = vsel %vm2863, %v2840, %v1694
  %v2987 = vsel %vm2863, %v2842, %v1696
  %v2989 = vsel %vm2863, %v2844, %v1698
  %v2991 = vsel %vm2863, %v2846, %v1700
  %v2993 = vsel %vm2863, %v2848, %v1702
  %v2995 = vsel %vm2863, %v2850, %v1704
  %v2997 = vsel %vm2863, %v2852, %v1706
  %v2999 = vsel %vm2863, %v2854, %v1708
  %v3001 = vsel %vm2863, %v2856, %v1710
  %v3003 = vsel %vm2863, %v2858, %v1712
  %v3005 = vsel %vm2863, %v2860, %v1714
  %v3007 = vsel %vm2863, %v2862, %v1716
  %vm3008 = vcmask 130048
  %v3010 = vsel %vm3008, %v2865, %v1754
  %v3012 = vsel %vm3008, %v2867, %v1756
  %v3014 = vsel %vm3008, %v2869, %v1758
  %v3016 = vsel %vm3008, %v2871, %v1760
  %v3018 = vsel %vm3008, %v2873, %v1762
  %v3020 = vsel %vm3008, %v2875, %v1764
  %v3022 = vsel %vm3008, %v2877, %v1766
  %v3024 = vsel %vm3008, %v2879, %v1768
  %v3026 = vsel %vm3008, %v2881, %v1770
  %v3028 = vsel %vm3008, %v2883, %v1772
  %v3030 = vsel %vm3008, %v2885, %v1774
  %v3032 = vsel %vm3008, %v2887, %v1776
  %v3034 = vsel %vm3008, %v2889, %v1778
  %v3036 = vsel %vm3008, %v2891, %v1780
  %v3038 = vsel %vm3008, %v2893, %v1782
  %v3040 = vsel %vm3008, %v2895, %v1784
  %v3042 = vsel %vm3008, %v2897, %v1786
  %v3044 = vsel %vm3008, %v2899, %v1788
  %v3046 = vsel %vm3008, %v2901, %v1790
  %v3048 = vsel %vm3008, %v2903, %v1792
  %v3050 = vsel %vm3008, %v2905, %v1794
  %v3052 = vsel %vm3008, %v2907, %v1796
  %v3054 = vsel %vm3008, %v2909, %v1798
  %v3056 = vsel %vm3008, %v2911, %v1800
  %v3058 = vsel %vm3008, %v2913, %v1802
  %v3060 = vsel %vm3008, %v2915, %v1804
  %v3062 = vsel %vm3008, %v2917, %v1806
  %v3064 = vsel %vm3008, %v2919, %v1808
  %v3066 = vsel %vm3008, %v2921, %v1810
  %v3068 = vsel %vm3008, %v2923, %v1812
  %v3070 = vsel %vm3008, %v2925, %v1814
  %v3072 = vsel %vm3008, %v2927, %v1816
  %v3074 = vsel %vm3008, %v2929, %v1818
  %v3076 = vsel %vm3008, %v2931, %v1820
  %v3078 = vsel %vm3008, %v2933, %v1822
  %v3080 = vsel %vm3008, %v2935, %v1824
  %v3082 = vsel %vm3008, %v2937, %v1826
  %v3084 = vsel %vm3008, %v2939, %v1828
  %v3086 = vsel %vm3008, %v2941, %v1830
  %v3088 = vsel %vm3008, %v2943, %v1832
  %v3090 = vsel %vm3008, %v2945, %v1834
  %v3092 = vsel %vm3008, %v2947, %v1836
  %v3094 = vsel %vm3008, %v2949, %v1838
  %v3096 = vsel %vm3008, %v2951, %v1840
  %v3098 = vsel %vm3008, %v2953, %v1842
  %v3100 = vsel %vm3008, %v2955, %v1844
  %v3102 = vsel %vm3008, %v2957, %v1846
  %v3104 = vsel %vm3008, %v2959, %v1848
  %v3106 = vsel %vm3008, %v2961, %v1850
  %v3108 = vsel %vm3008, %v2963, %v1852
  %v3110 = vsel %vm3008, %v2965, %v1854
  %v3112 = vsel %vm3008, %v2967, %v1856
  %v3114 = vsel %vm3008, %v2969, %v1858
  %v3116 = vsel %vm3008, %v2971, %v1860
  %v3118 = vsel %vm3008, %v2973, %v1862
  %v3120 = vsel %vm3008, %v2975, %v1864
  %v3122 = vsel %vm3008, %v2977, %v1866
  %v3124 = vsel %vm3008, %v2979, %v1868
  %v3126 = vsel %vm3008, %v2981, %v1870
  %v3128 = vsel %vm3008, %v2983, %v1872
  %v3130 = vsel %vm3008, %v2985, %v1874
  %v3132 = vsel %vm3008, %v2987, %v1876
  %v3134 = vsel %vm3008, %v2989, %v1878
  %v3136 = vsel %vm3008, %v2991, %v1880
  %v3138 = vsel %vm3008, %v2993, %v1882
  %v3140 = vsel %vm3008, %v2995, %v1884
  %v3142 = vsel %vm3008, %v2997, %v1886
  %v3144 = vsel %vm3008, %v2999, %v1888
  %v3146 = vsel %vm3008, %v3001, %v1890
  %v3148 = vsel %vm3008, %v3003, %v1892
  %v3150 = vsel %vm3008, %v3005, %v1894
  %v3152 = vsel %vm3008, %v3007, %v1896
  %vm3153 = vcmask 162816
  %v3155 = vsel %vm3153, %v3010, %v1904
  %v3157 = vsel %vm3153, %v3012, %v1906
  %v3159 = vsel %vm3153, %v3014, %v1908
  %v3161 = vsel %vm3153, %v3016, %v1910
  %v3163 = vsel %vm3153, %v3018, %v1912
  %v3165 = vsel %vm3153, %v3020, %v1914
  %v3167 = vsel %vm3153, %v3022, %v1916
  %v3169 = vsel %vm3153, %v3024, %v1918
  %v3171 = vsel %vm3153, %v3026, %v1920
  %v3173 = vsel %vm3153, %v3028, %v1922
  %v3175 = vsel %vm3153, %v3030, %v1924
  %v3177 = vsel %vm3153, %v3032, %v1926
  %v3179 = vsel %vm3153, %v3034, %v1928
  %v3181 = vsel %vm3153, %v3036, %v1930
  %v3183 = vsel %vm3153, %v3038, %v1932
  %v3185 = vsel %vm3153, %v3040, %v1934
  %v3187 = vsel %vm3153, %v3042, %v1936
  %v3189 = vsel %vm3153, %v3044, %v1938
  %v3191 = vsel %vm3153, %v3046, %v1940
  %v3193 = vsel %vm3153, %v3048, %v1942
  %v3195 = vsel %vm3153, %v3050, %v1944
  %v3197 = vsel %vm3153, %v3052, %v1946
  %v3199 = vsel %vm3153, %v3054, %v1948
  %v3201 = vsel %vm3153, %v3056, %v1950
  %v3203 = vsel %vm3153, %v3058, %v1952
  %v3205 = vsel %vm3153, %v3060, %v1954
  %v3207 = vsel %vm3153, %v3062, %v1956
  %v3209 = vsel %vm3153, %v3064, %v1958
  %v3211 = vsel %vm3153, %v3066, %v1960
  %v3213 = vsel %vm3153, %v3068, %v1962
  %v3215 = vsel %vm3153, %v3070, %v1964
  %v3217 = vsel %vm3153, %v3072, %v1966
  %v3219 = vsel %vm3153, %v3074, %v1968
  %v3221 = vsel %vm3153, %v3076, %v1970
  %v3223 = vsel %vm3153, %v3078, %v1972
  %v3225 = vsel %vm3153, %v3080, %v1974
  %v3227 = vsel %vm3153, %v3082, %v1976
  %v3229 = vsel %vm3153, %v3084, %v1978
  %v3231 = vsel %vm3153, %v3086, %v1980
  %v3233 = vsel %vm3153, %v3088, %v1982
  %v3235 = vsel %vm3153, %v3090, %v1984
  %v3237 = vsel %vm3153, %v3092, %v1986
  %v3239 = vsel %vm3153, %v3094, %v1988
  %v3241 = vsel %vm3153, %v3096, %v1990
  %v3243 = vsel %vm3153, %v3098, %v1992
  %v3245 = vsel %vm3153, %v3100, %v1994
  %v3247 = vsel %vm3153, %v3102, %v1996
  %v3249 = vsel %vm3153, %v3104, %v1998
  %v3251 = vsel %vm3153, %v3106, %v2000
  %v3253 = vsel %vm3153, %v3108, %v2002
  %v3255 = vsel %vm3153, %v3110, %v2004
  %v3257 = vsel %vm3153, %v3112, %v2006
  %v3259 = vsel %vm3153, %v3114, %v2008
  %v3261 = vsel %vm3153, %v3116, %v2010
  %v3263 = vsel %vm3153, %v3118, %v2012
  %v3265 = vsel %vm3153, %v3120, %v2014
  %v3267 = vsel %vm3153, %v3122, %v2016
  %v3269 = vsel %vm3153, %v3124, %v2018
  %v3271 = vsel %vm3153, %v3126, %v2020
  %v3273 = vsel %vm3153, %v3128, %v2022
  %v3275 = vsel %vm3153, %v3130, %v2024
  %v3277 = vsel %vm3153, %v3132, %v2026
  %v3279 = vsel %vm3153, %v3134, %v2028
  %v3281 = vsel %vm3153, %v3136, %v2030
  %v3283 = vsel %vm3153, %v3138, %v2032
  %v3285 = vsel %vm3153, %v3140, %v2034
  %v3287 = vsel %vm3153, %v3142, %v2036
  %v3289 = vsel %vm3153, %v3144, %v2038
  %v3291 = vsel %vm3153, %v3146, %v2040
  %v3293 = vsel %vm3153, %v3148, %v2042
  %v3295 = vsel %vm3153, %v3150, %v2044
  %v3297 = vsel %vm3153, %v3152, %v2046
  %vm3298 = vcmask 195584
  %v3300 = vsel %vm3298, %v3155, %v2064
  %v3302 = vsel %vm3298, %v3157, %v2066
  %v3304 = vsel %vm3298, %v3159, %v2068
  %v3306 = vsel %vm3298, %v3161, %v2070
  %v3308 = vsel %vm3298, %v3163, %v2072
  %v3310 = vsel %vm3298, %v3165, %v2074
  %v3312 = vsel %vm3298, %v3167, %v2076
  %v3314 = vsel %vm3298, %v3169, %v2078
  %v3316 = vsel %vm3298, %v3171, %v2080
  %v3318 = vsel %vm3298, %v3173, %v2082
  %v3320 = vsel %vm3298, %v3175, %v2084
  %v3322 = vsel %vm3298, %v3177, %v2086
  %v3324 = vsel %vm3298, %v3179, %v2088
  %v3326 = vsel %vm3298, %v3181, %v2090
  %v3328 = vsel %vm3298, %v3183, %v2092
  %v3330 = vsel %vm3298, %v3185, %v2094
  %v3332 = vsel %vm3298, %v3187, %v2096
  %v3334 = vsel %vm3298, %v3189, %v2098
  %v3336 = vsel %vm3298, %v3191, %v2100
  %v3338 = vsel %vm3298, %v3193, %v2102
  %v3340 = vsel %vm3298, %v3195, %v2104
  %v3342 = vsel %vm3298, %v3197, %v2106
  %v3344 = vsel %vm3298, %v3199, %v2108
  %v3346 = vsel %vm3298, %v3201, %v2110
  %v3348 = vsel %vm3298, %v3203, %v2112
  %v3350 = vsel %vm3298, %v3205, %v2114
  %v3352 = vsel %vm3298, %v3207, %v2116
  %v3354 = vsel %vm3298, %v3209, %v2118
  %v3356 = vsel %vm3298, %v3211, %v2120
  %v3358 = vsel %vm3298, %v3213, %v2122
  %v3360 = vsel %vm3298, %v3215, %v2124
  %v3362 = vsel %vm3298, %v3217, %v2126
  %v3364 = vsel %vm3298, %v3219, %v2128
  %v3366 = vsel %vm3298, %v3221, %v2130
  %v3368 = vsel %vm3298, %v3223, %v2132
  %v3370 = vsel %vm3298, %v3225, %v2134
  %v3372 = vsel %vm3298, %v3227, %v2136
  %v3374 = vsel %vm3298, %v3229, %v2138
  %v3376 = vsel %vm3298, %v3231, %v2140
  %v3378 = vsel %vm3298, %v3233, %v2142
  %v3380 = vsel %vm3298, %v3235, %v2144
  %v3382 = vsel %vm3298, %v3237, %v2146
  %v3384 = vsel %vm3298, %v3239, %v2148
  %v3386 = vsel %vm3298, %v3241, %v2150
  %v3388 = vsel %vm3298, %v3243, %v2152
  %v3390 = vsel %vm3298, %v3245, %v2154
  %v3392 = vsel %vm3298, %v3247, %v2156
  %v3394 = vsel %vm3298, %v3249, %v2158
  %v3396 = vsel %vm3298, %v3251, %v2160
  %v3398 = vsel %vm3298, %v3253, %v2162
  %v3400 = vsel %vm3298, %v3255, %v2164
  %v3402 = vsel %vm3298, %v3257, %v2166
  %v3404 = vsel %vm3298, %v3259, %v2168
  %v3406 = vsel %vm3298, %v3261, %v2170
  %v3408 = vsel %vm3298, %v3263, %v2172
  %v3410 = vsel %vm3298, %v3265, %v2174
  %v3412 = vsel %vm3298, %v3267, %v2176
  %v3414 = vsel %vm3298, %v3269, %v2178
  %v3416 = vsel %vm3298, %v3271, %v2180
  %v3418 = vsel %vm3298, %v3273, %v2182
  %v3420 = vsel %vm3298, %v3275, %v2184
  %v3422 = vsel %vm3298, %v3277, %v2186
  %v3424 = vsel %vm3298, %v3279, %v2188
  %v3426 = vsel %vm3298, %v3281, %v2190
  %v3428 = vsel %vm3298, %v3283, %v2192
  %v3430 = vsel %vm3298, %v3285, %v2194
  %v3432 = vsel %vm3298, %v3287, %v2196
  %v3434 = vsel %vm3298, %v3289, %v2198
  %v3436 = vsel %vm3298, %v3291, %v2200
  %v3438 = vsel %vm3298, %v3293, %v2202
  %v3440 = vsel %vm3298, %v3295, %v2204
  %v3442 = vsel %vm3298, %v3297, %v2206
  %vm3443 = vcmask 228352
  %v3445 = vsel %vm3443, %v3300, %v2244
  %v3447 = vsel %vm3443, %v3302, %v2246
  %v3449 = vsel %vm3443, %v3304, %v2248
  %v3451 = vsel %vm3443, %v3306, %v2250
  %v3453 = vsel %vm3443, %v3308, %v2252
  %v3455 = vsel %vm3443, %v3310, %v2254
  %v3457 = vsel %vm3443, %v3312, %v2256
  %v3459 = vsel %vm3443, %v3314, %v2258
  %v3461 = vsel %vm3443, %v3316, %v2260
  %v3463 = vsel %vm3443, %v3318, %v2262
  %v3465 = vsel %vm3443, %v3320, %v2264
  %v3467 = vsel %vm3443, %v3322, %v2266
  %v3469 = vsel %vm3443, %v3324, %v2268
  %v3471 = vsel %vm3443, %v3326, %v2270
  %v3473 = vsel %vm3443, %v3328, %v2272
  %v3475 = vsel %vm3443, %v3330, %v2274
  %v3477 = vsel %vm3443, %v3332, %v2276
  %v3479 = vsel %vm3443, %v3334, %v2278
  %v3481 = vsel %vm3443, %v3336, %v2280
  %v3483 = vsel %vm3443, %v3338, %v2282
  %v3485 = vsel %vm3443, %v3340, %v2284
  %v3487 = vsel %vm3443, %v3342, %v2286
  %v3489 = vsel %vm3443, %v3344, %v2288
  %v3491 = vsel %vm3443, %v3346, %v2290
  %v3493 = vsel %vm3443, %v3348, %v2292
  %v3495 = vsel %vm3443, %v3350, %v2294
  %v3497 = vsel %vm3443, %v3352, %v2296
  %v3499 = vsel %vm3443, %v3354, %v2298
  %v3501 = vsel %vm3443, %v3356, %v2300
  %v3503 = vsel %vm3443, %v3358, %v2302
  %v3505 = vsel %vm3443, %v3360, %v2304
  %v3507 = vsel %vm3443, %v3362, %v2306
  %v3509 = vsel %vm3443, %v3364, %v2308
  %v3511 = vsel %vm3443, %v3366, %v2310
  %v3513 = vsel %vm3443, %v3368, %v2312
  %v3515 = vsel %vm3443, %v3370, %v2314
  %v3517 = vsel %vm3443, %v3372, %v2316
  %v3519 = vsel %vm3443, %v3374, %v2318
  %v3521 = vsel %vm3443, %v3376, %v2320
  %v3523 = vsel %vm3443, %v3378, %v2322
  %v3525 = vsel %vm3443, %v3380, %v2324
  %v3527 = vsel %vm3443, %v3382, %v2326
  %v3529 = vsel %vm3443, %v3384, %v2328
  %v3531 = vsel %vm3443, %v3386, %v2330
  %v3533 = vsel %vm3443, %v3388, %v2332
  %v3535 = vsel %vm3443, %v3390, %v2334
  %v3537 = vsel %vm3443, %v3392, %v2336
  %v3539 = vsel %vm3443, %v3394, %v2338
  %v3541 = vsel %vm3443, %v3396, %v2340
  %v3543 = vsel %vm3443, %v3398, %v2342
  %v3545 = vsel %vm3443, %v3400, %v2344
  %v3547 = vsel %vm3443, %v3402, %v2346
  %v3549 = vsel %vm3443, %v3404, %v2348
  %v3551 = vsel %vm3443, %v3406, %v2350
  %v3553 = vsel %vm3443, %v3408, %v2352
  %v3555 = vsel %vm3443, %v3410, %v2354
  %v3557 = vsel %vm3443, %v3412, %v2356
  %v3559 = vsel %vm3443, %v3414, %v2358
  %v3561 = vsel %vm3443, %v3416, %v2360
  %v3563 = vsel %vm3443, %v3418, %v2362
  %v3565 = vsel %vm3443, %v3420, %v2364
  %v3567 = vsel %vm3443, %v3422, %v2366
  %v3569 = vsel %vm3443, %v3424, %v2368
  %v3571 = vsel %vm3443, %v3426, %v2370
  %v3573 = vsel %vm3443, %v3428, %v2372
  %v3575 = vsel %vm3443, %v3430, %v2374
  %v3577 = vsel %vm3443, %v3432, %v2376
  %v3579 = vsel %vm3443, %v3434, %v2378
  %v3581 = vsel %vm3443, %v3436, %v2380
  %v3583 = vsel %vm3443, %v3438, %v2382
  %v3585 = vsel %vm3443, %v3440, %v2384
  %v3587 = vsel %vm3443, %v3442, %v2386
  %vm3588 = vcmask 261120
  %v3590 = vsel %vm3588, %v3445, %v2394
  %v3592 = vsel %vm3588, %v3447, %v2396
  %v3594 = vsel %vm3588, %v3449, %v2398
  %v3596 = vsel %vm3588, %v3451, %v2400
  %v3598 = vsel %vm3588, %v3453, %v2402
  %v3600 = vsel %vm3588, %v3455, %v2404
  %v3602 = vsel %vm3588, %v3457, %v2406
  %v3604 = vsel %vm3588, %v3459, %v2408
  %v3606 = vsel %vm3588, %v3461, %v2410
  %v3608 = vsel %vm3588, %v3463, %v2412
  %v3610 = vsel %vm3588, %v3465, %v2414
  %v3612 = vsel %vm3588, %v3467, %v2416
  %v3614 = vsel %vm3588, %v3469, %v2418
  %v3616 = vsel %vm3588, %v3471, %v2420
  %v3618 = vsel %vm3588, %v3473, %v2422
  %v3620 = vsel %vm3588, %v3475, %v2424
  %v3622 = vsel %vm3588, %v3477, %v2426
  %v3624 = vsel %vm3588, %v3479, %v2428
  %v3626 = vsel %vm3588, %v3481, %v2430
  %v3628 = vsel %vm3588, %v3483, %v2432
  %v3630 = vsel %vm3588, %v3485, %v2434
  %v3632 = vsel %vm3588, %v3487, %v2436
  %v3634 = vsel %vm3588, %v3489, %v2438
  %v3636 = vsel %vm3588, %v3491, %v2440
  %v3638 = vsel %vm3588, %v3493, %v2442
  %v3640 = vsel %vm3588, %v3495, %v2444
  %v3642 = vsel %vm3588, %v3497, %v2446
  %v3644 = vsel %vm3588, %v3499, %v2448
  %v3646 = vsel %vm3588, %v3501, %v2450
  %v3648 = vsel %vm3588, %v3503, %v2452
  %v3650 = vsel %vm3588, %v3505, %v2454
  %v3652 = vsel %vm3588, %v3507, %v2456
  %v3654 = vsel %vm3588, %v3509, %v2458
  %v3656 = vsel %vm3588, %v3511, %v2460
  %v3658 = vsel %vm3588, %v3513, %v2462
  %v3660 = vsel %vm3588, %v3515, %v2464
  %v3662 = vsel %vm3588, %v3517, %v2466
  %v3664 = vsel %vm3588, %v3519, %v2468
  %v3666 = vsel %vm3588, %v3521, %v2470
  %v3668 = vsel %vm3588, %v3523, %v2472
  %v3670 = vsel %vm3588, %v3525, %v2474
  %v3672 = vsel %vm3588, %v3527, %v2476
  %v3674 = vsel %vm3588, %v3529, %v2478
  %v3676 = vsel %vm3588, %v3531, %v2480
  %v3678 = vsel %vm3588, %v3533, %v2482
  %v3680 = vsel %vm3588, %v3535, %v2484
  %v3682 = vsel %vm3588, %v3537, %v2486
  %v3684 = vsel %vm3588, %v3539, %v2488
  %v3686 = vsel %vm3588, %v3541, %v2490
  %v3688 = vsel %vm3588, %v3543, %v2492
  %v3690 = vsel %vm3588, %v3545, %v2494
  %v3692 = vsel %vm3588, %v3547, %v2496
  %v3694 = vsel %vm3588, %v3549, %v2498
  %v3696 = vsel %vm3588, %v3551, %v2500
  %v3698 = vsel %vm3588, %v3553, %v2502
  %v3700 = vsel %vm3588, %v3555, %v2504
  %v3702 = vsel %vm3588, %v3557, %v2506
  %v3704 = vsel %vm3588, %v3559, %v2508
  %v3706 = vsel %vm3588, %v3561, %v2510
  %v3708 = vsel %vm3588, %v3563, %v2512
  %v3710 = vsel %vm3588, %v3565, %v2514
  %v3712 = vsel %vm3588, %v3567, %v2516
  %v3714 = vsel %vm3588, %v3569, %v2518
  %v3716 = vsel %vm3588, %v3571, %v2520
  %v3718 = vsel %vm3588, %v3573, %v2522
  %v3720 = vsel %vm3588, %v3575, %v2524
  %v3722 = vsel %vm3588, %v3577, %v2526
  %v3724 = vsel %vm3588, %v3579, %v2528
  %v3726 = vsel %vm3588, %v3581, %v2530
  %v3728 = vsel %vm3588, %v3583, %v2532
  %v3730 = vsel %vm3588, %v3585, %v2534
  %v3732 = vsel %vm3588, %v3587, %v2536
  %v3805 = vunpack.c.l.b16 %v3590
  %v3806 = vunpack.c.h.b16 %v3590
  %v3807 = vunpack.c.l.b16 %v3592
  %v3808 = vunpack.c.l.b16 %v3594
  %v3809 = vunpack.c.h.b16 %v3594
  %v3810 = vunpack.c.l.b16 %v3596
  %v3811 = vunpack.c.l.b16 %v3598
  %v3812 = vunpack.c.h.b16 %v3598
  %v3813 = vunpack.c.l.b16 %v3600
  %v3814 = vunpack.c.l.b16 %v3602
  %v3815 = vunpack.c.h.b16 %v3602
  %v3816 = vunpack.c.l.b16 %v3604
  %v3817 = vunpack.c.l.b16 %v3606
  %v3818 = vunpack.c.h.b16 %v3606
  %v3819 = vunpack.c.l.b16 %v3608
  %v3820 = vunpack.c.l.b16 %v3610
  %v3821 = vunpack.c.h.b16 %v3610
  %v3822 = vunpack.c.l.b16 %v3612
  %v3823 = vunpack.c.l.b16 %v3614
  %v3824 = vunpack.c.h.b16 %v3614
  %v3825 = vunpack.c.l.b16 %v3616
  %v3826 = vunpack.c.l.b16 %v3618
  %v3827 = vunpack.c.h.b16 %v3618
  %v3828 = vunpack.c.l.b16 %v3620
  %v3829 = vunpack.c.l.b16 %v3622
  %v3830 = vunpack.c.h.b16 %v3622
  %v3831 = vunpack.c.l.b16 %v3624
  %v3832 = vunpack.c.l.b16 %v3626
  %v3833 = vunpack.c.h.b16 %v3626
  %v3834 = vunpack.c.l.b16 %v3628
  %v3835 = vunpack.c.l.b16 %v3630
  %v3836 = vunpack.c.h.b16 %v3630
  %v3837 = vunpack.c.l.b16 %v3632
  %v3838 = vunpack.c.l.b16 %v3634
  %v3839 = vunpack.c.h.b16 %v3634
  %v3840 = vunpack.c.l.b16 %v3636
  %v3841 = vunpack.c.l.b16 %v3638
  %v3842 = vunpack.c.h.b16 %v3638
  %v3843 = vunpack.c.l.b16 %v3640
  %v3844 = vunpack.c.l.b16 %v3642
  %v3845 = vunpack.c.h.b16 %v3642
  %v3846 = vunpack.c.l.b16 %v3644
  %v3847 = vunpack.c.l.b16 %v3646
  %v3848 = vunpack.c.h.b16 %v3646
  %v3849 = vunpack.c.l.b16 %v3648
  %v3850 = vunpack.c.l.b16 %v3650
  %v3851 = vunpack.c.h.b16 %v3650
  %v3852 = vunpack.c.l.b16 %v3652
  %v3853 = vunpack.c.l.b16 %v3654
  %v3854 = vunpack.c.h.b16 %v3654
  %v3855 = vunpack.c.l.b16 %v3656
  %v3856 = vunpack.c.l.b16 %v3658
  %v3857 = vunpack.c.h.b16 %v3658
  %v3858 = vunpack.c.l.b16 %v3660
  %v3859 = vunpack.c.l.b16 %v3662
  %v3860 = vunpack.c.h.b16 %v3662
  %v3861 = vunpack.c.l.b16 %v3664
  %v3862 = vunpack.c.l.b16 %v3666
  %v3863 = vunpack.c.h.b16 %v3666
  %v3864 = vunpack.c.l.b16 %v3668
  %v3865 = vunpack.c.l.b16 %v3670
  %v3866 = vunpack.c.h.b16 %v3670
  %v3867 = vunpack.c.l.b16 %v3672
  %v3868 = vunpack.c.l.b16 %v3674
  %v3869 = vunpack.c.h.b16 %v3674
  %v3870 = vunpack.c.l.b16 %v3676
  %v3871 = vunpack.c.l.b16 %v3678
  %v3872 = vunpack.c.h.b16 %v3678
  %v3873 = vunpack.c.l.b16 %v3680
  %v3874 = vunpack.c.l.b16 %v3682
  %v3875 = vunpack.c.h.b16 %v3682
  %v3876 = vunpack.c.l.b16 %v3684
  %v3877 = vunpack.c.l.b16 %v3686
  %v3878 = vunpack.c.h.b16 %v3686
  %v3879 = vunpack.c.l.b16 %v3688
  %v3880 = vunpack.c.l.b16 %v3690
  %v3881 = vunpack.c.h.b16 %v3690
  %v3882 = vunpack.c.l.b16 %v3692
  %v3883 = vunpack.c.l.b16 %v3694
  %v3884 = vunpack.c.h.b16 %v3694
  %v3885 = vunpack.c.l.b16 %v3696
  %v3886 = vunpack.c.l.b16 %v3698
  %v3887 = vunpack.c.h.b16 %v3698
  %v3888 = vunpack.c.l.b16 %v3700
  %v3889 = vunpack.c.l.b16 %v3702
  %v3890 = vunpack.c.h.b16 %v3702
  %v3891 = vunpack.c.l.b16 %v3704
  %v3892 = vunpack.c.l.b16 %v3706
  %v3893 = vunpack.c.h.b16 %v3706
  %v3894 = vunpack.c.l.b16 %v3708
  %v3895 = vunpack.c.l.b16 %v3710
  %v3896 = vunpack.c.h.b16 %v3710
  %v3897 = vunpack.c.l.b16 %v3712
  %v3898 = vunpack.c.l.b16 %v3714
  %v3899 = vunpack.c.h.b16 %v3714
  %v3900 = vunpack.c.l.b16 %v3716
  %v3901 = vunpack.c.l.b16 %v3718
  %v3902 = vunpack.c.h.b16 %v3718
  %v3903 = vunpack.c.l.b16 %v3720
  %v3904 = vunpack.c.l.b16 %v3722
  %v3905 = vunpack.c.h.b16 %v3722
  %v3906 = vunpack.c.l.b16 %v3724
  %v3907 = vunpack.c.l.b16 %v3726
  %v3908 = vunpack.c.h.b16 %v3726
  %v3909 = vunpack.c.l.b16 %v3728
  %v3910 = vunpack.c.l.b16 %v3730
  %v3911 = vunpack.c.h.b16 %v3730
  %v3912 = vunpack.c.l.b16 %v3732
  %v3913 = vpack.c.b16 %v3806, %v3805
  %v3914 = vpack.c.b16 %v3808, %v3807
  %v3915 = vpack.c.b16 %v3810, %v3809
  %v3916 = vpack.c.b16 %v3812, %v3811
  %v3917 = vpack.c.b16 %v3814, %v3813
  %v3918 = vpack.c.b16 %v3816, %v3815
  %v3919 = vpack.c.b16 %v3818, %v3817
  %v3920 = vpack.c.b16 %v3820, %v3819
  %v3921 = vpack.c.b16 %v3822, %v3821
  %v3922 = vpack.c.b16 %v3824, %v3823
  %v3923 = vpack.c.b16 %v3826, %v3825
  %v3924 = vpack.c.b16 %v3828, %v3827
  %v3925 = vpack.c.b16 %v3830, %v3829
  %v3926 = vpack.c.b16 %v3832, %v3831
  %v3927 = vpack.c.b16 %v3834, %v3833
  %v3928 = vpack.c.b16 %v3836, %v3835
  %v3929 = vpack.c.b16 %v3838, %v3837
  %v3930 = vpack.c.b16 %v3840, %v3839
  %v3931 = vpack.c.b16 %v3842, %v3841
  %v3932 = vpack.c.b16 %v3844, %v3843
  %v3933 = vpack.c.b16 %v3846, %v3845
  %v3934 = vpack.c.b16 %v3848, %v3847
  %v3935 = vpack.c.b16 %v3850, %v3849
  %v3936 = vpack.c.b16 %v3852, %v3851
  %v3937 = vpack.c.b16 %v3854, %v3853
  %v3938 = vpack.c.b16 %v3856, %v3855
  %v3939 = vpack.c.b16 %v3858, %v3857
  %v3940 = vpack.c.b16 %v3860, %v3859
  %v3941 = vpack.c.b16 %v3862, %v3861
  %v3942 = vpack.c.b16 %v3864, %v3863
  %v3943 = vpack.c.b16 %v3866, %v3865
  %v3944 = vpack.c.b16 %v3868, %v3867
  %v3945 = vpack.c.b16 %v3870, %v3869
  %v3946 = vpack.c.b16 %v3872, %v3871
  %v3947 = vpack.c.b16 %v3874, %v3873
  %v3948 = vpack.c.b16 %v3876, %v3875
  %v3949 = vpack.c.b16 %v3878, %v3877
  %v3950 = vpack.c.b16 %v3880, %v3879
  %v3951 = vpack.c.b16 %v3882, %v3881
  %v3952 = vpack.c.b16 %v3884, %v3883
  %v3953 = vpack.c.b16 %v3886, %v3885
  %v3954 = vpack.c.b16 %v3888, %v3887
  %v3955 = vpack.c.b16 %v3890, %v3889
  %v3956 = vpack.c.b16 %v3892, %v3891
  %v3957 = vpack.c.b16 %v3894, %v3893
  %v3958 = vpack.c.b16 %v3896, %v3895
  %v3959 = vpack.c.b16 %v3898, %v3897
  %v3960 = vpack.c.b16 %v3900, %v3899
  %v3961 = vpack.c.b16 %v3902, %v3901
  %v3962 = vpack.c.b16 %v3904, %v3903
  %v3963 = vpack.c.b16 %v3906, %v3905
  %v3964 = vpack.c.b16 %v3908, %v3907
  %v3965 = vpack.c.b16 %v3910, %v3909
  %v3966 = vpack.c.b16 %v3912, %v3911
  %v3972 = vunpack.c.l.b16 %v218
  %v3973 = vunpack.c.l.b16 %v219
  %v3974 = vunpack.c.l.b16 %v220
  %v3975 = vunpack.c.l.b16 %v221
  %v3976 = vunpack.c.l.b16 %v222
  %v3977 = vpack.c.b16 %v3973, %v3972
  %v3978 = vpack.c.b16 %v3975, %v3974
  %v3979 = vpack.c.b16 %v3976, %v3976
  %vm3982 = vcmask 293888
  %v3984 = vsel %vm3982, %v3913, 0
  %v3987 = vsel %vm3982, %v3914, 0
  %v3990 = vsel %vm3982, %v3915, 0
  %v3993 = vsel %vm3982, %v3916, 0
  %v3996 = vsel %vm3982, %v3917, 0
  %v3999 = vsel %vm3982, %v3918, 0
  %v4002 = vsel %vm3982, %v3919, 0
  %v4005 = vsel %vm3982, %v3920, 0
  %v4008 = vsel %vm3982, %v3921, 0
  %v4011 = vsel %vm3982, %v3922, 0
  %v4014 = vsel %vm3982, %v3923, 0
  %v4017 = vsel %vm3982, %v3924, 0
  %v4020 = vsel %vm3982, %v3925, 0
  %v4023 = vsel %vm3982, %v3926, 0
  %v4026 = vsel %vm3982, %v3927, 0
  %v4029 = vsel %vm3982, %v3928, 0
  %v4032 = vsel %vm3982, %v3929, 0
  %v4035 = vsel %vm3982, %v3930, 0
  %v4038 = vsel %vm3982, %v3931, 0
  %v4041 = vsel %vm3982, %v3932, 0
  %v4044 = vsel %vm3982, %v3933, 0
  %v4047 = vsel %vm3982, %v3934, 0
  %v4050 = vsel %vm3982, %v3935, 0
  %v4053 = vsel %vm3982, %v3936, 0
  %v4056 = vsel %vm3982, %v3937, 0
  %v4059 = vsel %vm3982, %v3938, 0
  %v4062 = vsel %vm3982, %v3939, 0
  %v4065 = vsel %vm3982, %v3940, 0
  %v4068 = vsel %vm3982, %v3941, 0
  %v4071 = vsel %vm3982, %v3942, 0
  %v4074 = vsel %vm3982, %v3943, 0
  %v4077 = vsel %vm3982, %v3944, 0
  %v4080 = vsel %vm3982, %v3945, 0
  %v4083 = vsel %vm3982, %v3946, 0
  %v4086 = vsel %vm3982, %v3947, 0
  %v4089 = vsel %vm3982, %v3948, 0
  %v4092 = vsel %vm3982, %v3949, 0
  %v4095 = vsel %vm3982, %v3950, 0
  %v4098 = vsel %vm3982, %v3951, 0
  %v4101 = vsel %vm3982, %v3952, 0
  %v4104 = vsel %vm3982, %v3953, 0
  %v4107 = vsel %vm3982, %v3954, 0
  %v4110 = vsel %vm3982, %v3955, 0
  %v4113 = vsel %vm3982, %v3956, 0
  %v4116 = vsel %vm3982, %v3957, 0
  %v4119 = vsel %vm3982, %v3958, 0
  %v4122 = vsel %vm3982, %v3959, 0
  %v4125 = vsel %vm3982, %v3960, 0
  %v4128 = vsel %vm3982, %v3961, 0
  %v4131 = vsel %vm3982, %v3962, 0
  %v4134 = vsel %vm3982, %v3963, 0
  %v4137 = vsel %vm3982, %v3964, 0
  %v4140 = vsel %vm3982, %v3965, 0
  %v4143 = vsel %vm3982, %v3966, 0
  %vm4145 = vcmask 1041408
  %v4147 = vsel %vm4145, %v3979, 0
  %4149 = vmatprep.subr.bf16.mxu0 0
  %4150 = vmatpush1.bf16.msra.mxu0 %v3977
  %4151 = vmatprep.subr.bf16.mxu0 0
  %4152 = vmatpush1.bf16.msra.mxu0 %v3978
  %4153 = vmatprep.subr.bf16.mxu0 0
  %4154 = vmatpush1.bf16.msra.mxu0 %v4147
  %4155 = vmatprep.subr.bf16.mxu0 0
  %4156 = vmatpush1.bf16.msra.mxu0 0
  %4157 = vmatprep.subr.bf16.mxu0 0
  %4158 = vmatpush1.bf16.msra.mxu0 0
  %4159 = vmatprep.subr.bf16.mxu0 0
  %4160 = vmatpush1.bf16.msra.mxu0 0
  %4161 = vmatprep.subr.bf16.mxu0 0
  %4162 = vmatpush1.bf16.msra.mxu0 0
  %4163 = vmatprep.subr.bf16.mxu0 0
  %4164 = vmatpush1.bf16.msra.mxu0 0
  %4165 = vmatprep.subr.bf16.mxu0 0
  %4166 = vmatpush1.bf16.msra.mxu0 0
  %4167 = vmatprep.subr.bf16.mxu0 0
  %4168 = vmatpush1.bf16.msra.mxu0 0
  %4169 = vmatprep.subr.bf16.mxu0 0
  %4170 = vmatpush1.bf16.msra.mxu0 0
  %4171 = vmatprep.subr.bf16.mxu0 0
  %4172 = vmatpush1.bf16.msra.mxu0 0
  %4173 = vmatprep.subr.bf16.mxu0 0
  %4174 = vmatpush1.bf16.msra.mxu0 0
  %4175 = vmatprep.subr.bf16.mxu0 0
  %4176 = vmatpush1.bf16.msra.mxu0 0
  %4177 = vmatprep.subr.bf16.mxu0 0
  %4178 = vmatpush1.bf16.msra.mxu0 0
  %4179 = vmatprep.subr.bf16.mxu0 0
  %4180 = vmatpush1.bf16.msra.mxu0 0
  %4181 = vmatprep.mubr.bf16.mxu0 0
  %4182 = vmatmul.mubr.bf16.gmra.mrb[0].mxu0 %v3984
  %v4183 = vpop.f32.mrb[0].mxu0
  %v4184 = vadd.f32 0.0, %v4183
  %v4185 = vpop.f32.mrb[0].mxu0
  %v4186 = vpop.f32.mrb[0].mxu0
  %v4187 = vadd.f32 0.0, %v4186
  %v4188 = vpop.f32.mrb[0].mxu0
  %4189 = vmatprep.mubr.bf16.mxu0 0
  %4190 = vmatmul.mubr.bf16.gmra.mrb[0].mxu0 %v3987
  %v4191 = vpop.f32.mrb[0].mxu0
  %v4192 = vadd.f32 0.0, %v4191
  %v4193 = vpop.f32.mrb[0].mxu0
  %v4194 = vpop.f32.mrb[0].mxu0
  %v4195 = vadd.f32 0.0, %v4194
  %v4196 = vpop.f32.mrb[0].mxu0
  %4197 = vmatprep.mubr.bf16.mxu0 0
  %4198 = vmatmul.mubr.bf16.gmra.mrb[0].mxu0 %v3990
  %v4199 = vpop.f32.mrb[0].mxu0
  %v4200 = vadd.f32 0.0, %v4199
  %v4201 = vpop.f32.mrb[0].mxu0
  %v4202 = vpop.f32.mrb[0].mxu0
  %v4203 = vadd.f32 0.0, %v4202
  %v4204 = vpop.f32.mrb[0].mxu0
  %4205 = vmatprep.mubr.bf16.mxu0 0
  %4206 = vmatmul.mubr.bf16.gmra.mrb[0].mxu0 %v3993
  %v4207 = vpop.f32.mrb[0].mxu0
  %v4208 = vadd.f32 0.0, %v4207
  %v4209 = vpop.f32.mrb[0].mxu0
  %v4210 = vpop.f32.mrb[0].mxu0
  %v4211 = vadd.f32 0.0, %v4210
  %v4212 = vpop.f32.mrb[0].mxu0
  %4213 = vmatprep.mubr.bf16.mxu0 0
  %4214 = vmatmul.mubr.bf16.gmra.mrb[0].mxu0 %v3996
  %v4215 = vpop.f32.mrb[0].mxu0
  %v4216 = vadd.f32 0.0, %v4215
  %v4217 = vpop.f32.mrb[0].mxu0
  %v4218 = vpop.f32.mrb[0].mxu0
  %v4219 = vadd.f32 0.0, %v4218
  %v4220 = vpop.f32.mrb[0].mxu0
  %4221 = vmatprep.mubr.bf16.mxu0 0
  %4222 = vmatmul.mubr.bf16.gmra.mrb[0].mxu0 %v3999
  %v4223 = vpop.f32.mrb[0].mxu0
  %v4224 = vadd.f32 0.0, %v4223
  %v4225 = vpop.f32.mrb[0].mxu0
  %v4226 = vpop.f32.mrb[0].mxu0
  %v4227 = vadd.f32 0.0, %v4226
  %v4228 = vpop.f32.mrb[0].mxu0
  %4229 = vmatprep.mubr.bf16.mxu0 0
  %4230 = vmatmul.mubr.bf16.gmra.mrb[0].mxu0 %v4002
  %v4231 = vpop.f32.mrb[0].mxu0
  %v4232 = vadd.f32 0.0, %v4231
  %v4233 = vpop.f32.mrb[0].mxu0
  %v4234 = vpop.f32.mrb[0].mxu0
  %v4235 = vadd.f32 0.0, %v4234
  %v4236 = vpop.f32.mrb[0].mxu0
  %4237 = vmatprep.mubr.bf16.mxu0 0
  %4238 = vmatmul.mubr.bf16.gmra.mrb[0].mxu0 %v4005
  %v4239 = vpop.f32.mrb[0].mxu0
  %v4240 = vadd.f32 0.0, %v4239
  %v4241 = vpop.f32.mrb[0].mxu0
  %v4242 = vpop.f32.mrb[0].mxu0
  %v4243 = vadd.f32 0.0, %v4242
  %v4244 = vpop.f32.mrb[0].mxu0
  %4245 = vmatprep.mubr.bf16.mxu0 0
  %4246 = vmatmul.mubr.bf16.gmra.mrb[0].mxu0 %v4008
  %v4247 = vpop.f32.mrb[0].mxu0
  %v4248 = vadd.f32 0.0, %v4247
  %v4249 = vpop.f32.mrb[0].mxu0
  %v4250 = vpop.f32.mrb[0].mxu0
  %v4251 = vadd.f32 0.0, %v4250
  %v4252 = vpop.f32.mrb[0].mxu0
  %4253 = vmatprep.mubr.bf16.mxu0 0
  %4254 = vmatmul.mubr.bf16.gmra.mrb[0].mxu0 %v4011
  %v4255 = vpop.f32.mrb[0].mxu0
  %v4256 = vadd.f32 0.0, %v4255
  %v4257 = vpop.f32.mrb[0].mxu0
  %v4258 = vpop.f32.mrb[0].mxu0
  %v4259 = vadd.f32 0.0, %v4258
  %v4260 = vpop.f32.mrb[0].mxu0
  %4261 = vmatprep.mubr.bf16.mxu0 0
  %4262 = vmatmul.mubr.bf16.gmra.mrb[0].mxu0 %v4014
  %v4263 = vpop.f32.mrb[0].mxu0
  %v4264 = vadd.f32 0.0, %v4263
  %v4265 = vpop.f32.mrb[0].mxu0
  %v4266 = vpop.f32.mrb[0].mxu0
  %v4267 = vadd.f32 0.0, %v4266
  %v4268 = vpop.f32.mrb[0].mxu0
  %4269 = vmatprep.mubr.bf16.mxu0 0
  %4270 = vmatmul.mubr.bf16.gmra.mrb[0].mxu0 %v4017
  %v4271 = vpop.f32.mrb[0].mxu0
  %v4272 = vadd.f32 0.0, %v4271
  %v4273 = vpop.f32.mrb[0].mxu0
  %v4274 = vpop.f32.mrb[0].mxu0
  %v4275 = vadd.f32 0.0, %v4274
  %v4276 = vpop.f32.mrb[0].mxu0
  %4277 = vmatprep.mubr.bf16.mxu0 0
  %4278 = vmatmul.mubr.bf16.gmra.mrb[0].mxu0 %v4020
  %v4279 = vpop.f32.mrb[0].mxu0
  %v4280 = vadd.f32 0.0, %v4279
  %v4281 = vpop.f32.mrb[0].mxu0
  %v4282 = vpop.f32.mrb[0].mxu0
  %v4283 = vadd.f32 0.0, %v4282
  %v4284 = vpop.f32.mrb[0].mxu0
  %4285 = vmatprep.mubr.bf16.mxu0 0
  %4286 = vmatmul.mubr.bf16.gmra.mrb[0].mxu0 %v4023
  %v4287 = vpop.f32.mrb[0].mxu0
  %v4288 = vadd.f32 0.0, %v4287
  %v4289 = vpop.f32.mrb[0].mxu0
  %v4290 = vpop.f32.mrb[0].mxu0
  %v4291 = vadd.f32 0.0, %v4290
  %v4292 = vpop.f32.mrb[0].mxu0
  %4293 = vmatprep.mubr.bf16.mxu0 0
  %4294 = vmatmul.mubr.bf16.gmra.mrb[0].mxu0 %v4026
  %v4295 = vpop.f32.mrb[0].mxu0
  %v4296 = vadd.f32 0.0, %v4295
  %v4297 = vpop.f32.mrb[0].mxu0
  %v4298 = vpop.f32.mrb[0].mxu0
  %v4299 = vadd.f32 0.0, %v4298
  %v4300 = vpop.f32.mrb[0].mxu0
  %4301 = vmatprep.mubr.bf16.mxu0 0
  %4302 = vmatmul.mubr.bf16.gmra.mrb[0].mxu0 %v4029
  %v4303 = vpop.f32.mrb[0].mxu0
  %v4304 = vadd.f32 0.0, %v4303
  %v4305 = vpop.f32.mrb[0].mxu0
  %v4306 = vpop.f32.mrb[0].mxu0
  %v4307 = vadd.f32 0.0, %v4306
  %v4308 = vpop.f32.mrb[0].mxu0
  %4309 = vmatprep.mubr.bf16.mxu0 0
  %4310 = vmatmul.mubr.bf16.gmra.mrb[0].mxu0 %v4032
  %v4311 = vpop.f32.mrb[0].mxu0
  %v4312 = vadd.f32 0.0, %v4311
  %v4313 = vpop.f32.mrb[0].mxu0
  %v4314 = vpop.f32.mrb[0].mxu0
  %v4315 = vadd.f32 0.0, %v4314
  %v4316 = vpop.f32.mrb[0].mxu0
  %4317 = vmatprep.mubr.bf16.mxu0 0
  %4318 = vmatmul.mubr.bf16.gmra.mrb[0].mxu0 %v4035
  %v4319 = vpop.f32.mrb[0].mxu0
  %v4320 = vadd.f32 0.0, %v4319
  %v4321 = vpop.f32.mrb[0].mxu0
  %v4322 = vpop.f32.mrb[0].mxu0
  %v4323 = vadd.f32 0.0, %v4322
  %v4324 = vpop.f32.mrb[0].mxu0
  %4325 = vmatprep.mubr.bf16.mxu0 0
  %4326 = vmatmul.mubr.bf16.gmra.mrb[0].mxu0 %v4038
  %v4327 = vpop.f32.mrb[0].mxu0
  %v4328 = vadd.f32 0.0, %v4327
  %v4329 = vpop.f32.mrb[0].mxu0
  %v4330 = vpop.f32.mrb[0].mxu0
  %v4331 = vadd.f32 0.0, %v4330
  %v4332 = vpop.f32.mrb[0].mxu0
  %4333 = vmatprep.mubr.bf16.mxu0 0
  %4334 = vmatmul.mubr.bf16.gmra.mrb[0].mxu0 %v4041
  %v4335 = vpop.f32.mrb[0].mxu0
  %v4336 = vadd.f32 0.0, %v4335
  %v4337 = vpop.f32.mrb[0].mxu0
  %v4338 = vpop.f32.mrb[0].mxu0
  %v4339 = vadd.f32 0.0, %v4338
  %v4340 = vpop.f32.mrb[0].mxu0
  %4341 = vmatprep.mubr.bf16.mxu0 0
  %4342 = vmatmul.mubr.bf16.gmra.mrb[0].mxu0 %v4044
  %v4343 = vpop.f32.mrb[0].mxu0
  %v4344 = vadd.f32 0.0, %v4343
  %v4345 = vpop.f32.mrb[0].mxu0
  %v4346 = vpop.f32.mrb[0].mxu0
  %v4347 = vadd.f32 0.0, %v4346
  %v4348 = vpop.f32.mrb[0].mxu0
  %4349 = vmatprep.mubr.bf16.mxu0 0
  %4350 = vmatmul.mubr.bf16.gmra.mrb[0].mxu0 %v4047
  %v4351 = vpop.f32.mrb[0].mxu0
  %v4352 = vadd.f32 0.0, %v4351
  %v4353 = vpop.f32.mrb[0].mxu0
  %v4354 = vpop.f32.mrb[0].mxu0
  %v4355 = vadd.f32 0.0, %v4354
  %v4356 = vpop.f32.mrb[0].mxu0
  %4357 = vmatprep.mubr.bf16.mxu0 0
  %4358 = vmatmul.mubr.bf16.gmra.mrb[0].mxu0 %v4050
  %v4359 = vpop.f32.mrb[0].mxu0
  %v4360 = vadd.f32 0.0, %v4359
  %v4361 = vpop.f32.mrb[0].mxu0
  %v4362 = vpop.f32.mrb[0].mxu0
  %v4363 = vadd.f32 0.0, %v4362
  %v4364 = vpop.f32.mrb[0].mxu0
  %4365 = vmatprep.mubr.bf16.mxu0 0
  %4366 = vmatmul.mubr.bf16.gmra.mrb[0].mxu0 %v4053
  %v4367 = vpop.f32.mrb[0].mxu0
  %v4368 = vadd.f32 0.0, %v4367
  %v4369 = vpop.f32.mrb[0].mxu0
  %v4370 = vpop.f32.mrb[0].mxu0
  %v4371 = vadd.f32 0.0, %v4370
  %v4372 = vpop.f32.mrb[0].mxu0
  %4373 = vmatprep.mubr.bf16.mxu0 0
  %4374 = vmatmul.mubr.bf16.gmra.mrb[0].mxu0 %v4056
  %v4375 = vpop.f32.mrb[0].mxu0
  %v4376 = vadd.f32 0.0, %v4375
  %v4377 = vpop.f32.mrb[0].mxu0
  %v4378 = vpop.f32.mrb[0].mxu0
  %v4379 = vadd.f32 0.0, %v4378
  %v4380 = vpop.f32.mrb[0].mxu0
  %4381 = vmatprep.mubr.bf16.mxu0 0
  %4382 = vmatmul.mubr.bf16.gmra.mrb[0].mxu0 %v4059
  %v4383 = vpop.f32.mrb[0].mxu0
  %v4384 = vadd.f32 0.0, %v4383
  %v4385 = vpop.f32.mrb[0].mxu0
  %v4386 = vpop.f32.mrb[0].mxu0
  %v4387 = vadd.f32 0.0, %v4386
  %v4388 = vpop.f32.mrb[0].mxu0
  %4389 = vmatprep.mubr.bf16.mxu0 0
  %4390 = vmatmul.mubr.bf16.gmra.mrb[0].mxu0 %v4062
  %v4391 = vpop.f32.mrb[0].mxu0
  %v4392 = vadd.f32 0.0, %v4391
  %v4393 = vpop.f32.mrb[0].mxu0
  %v4394 = vpop.f32.mrb[0].mxu0
  %v4395 = vadd.f32 0.0, %v4394
  %v4396 = vpop.f32.mrb[0].mxu0
  %4397 = vmatprep.mubr.bf16.mxu0 0
  %4398 = vmatmul.mubr.bf16.gmra.mrb[0].mxu0 %v4065
  %v4399 = vpop.f32.mrb[0].mxu0
  %v4400 = vadd.f32 0.0, %v4399
  %v4401 = vpop.f32.mrb[0].mxu0
  %v4402 = vpop.f32.mrb[0].mxu0
  %v4403 = vadd.f32 0.0, %v4402
  %v4404 = vpop.f32.mrb[0].mxu0
  %4405 = vmatprep.mubr.bf16.mxu0 0
  %4406 = vmatmul.mubr.bf16.gmra.mrb[0].mxu0 %v4068
  %v4407 = vpop.f32.mrb[0].mxu0
  %v4408 = vadd.f32 0.0, %v4407
  %v4409 = vpop.f32.mrb[0].mxu0
  %v4410 = vpop.f32.mrb[0].mxu0
  %v4411 = vadd.f32 0.0, %v4410
  %v4412 = vpop.f32.mrb[0].mxu0
  %4413 = vmatprep.mubr.bf16.mxu0 0
  %4414 = vmatmul.mubr.bf16.gmra.mrb[0].mxu0 %v4071
  %v4415 = vpop.f32.mrb[0].mxu0
  %v4416 = vadd.f32 0.0, %v4415
  %v4417 = vpop.f32.mrb[0].mxu0
  %v4418 = vpop.f32.mrb[0].mxu0
  %v4419 = vadd.f32 0.0, %v4418
  %v4420 = vpop.f32.mrb[0].mxu0
  %4421 = vmatprep.mubr.bf16.mxu0 0
  %4422 = vmatmul.mubr.bf16.gmra.mrb[0].mxu0 %v4074
  %v4423 = vpop.f32.mrb[0].mxu0
  %v4424 = vadd.f32 0.0, %v4423
  %v4425 = vpop.f32.mrb[0].mxu0
  %v4426 = vpop.f32.mrb[0].mxu0
  %v4427 = vadd.f32 0.0, %v4426
  %v4428 = vpop.f32.mrb[0].mxu0
  %4429 = vmatprep.mubr.bf16.mxu0 0
  %4430 = vmatmul.mubr.bf16.gmra.mrb[0].mxu0 %v4077
  %v4431 = vpop.f32.mrb[0].mxu0
  %v4432 = vadd.f32 0.0, %v4431
  %v4433 = vpop.f32.mrb[0].mxu0
  %v4434 = vpop.f32.mrb[0].mxu0
  %v4435 = vadd.f32 0.0, %v4434
  %v4436 = vpop.f32.mrb[0].mxu0
  %4437 = vmatprep.mubr.bf16.mxu0 0
  %4438 = vmatmul.mubr.bf16.gmra.mrb[0].mxu0 %v4080
  %v4439 = vpop.f32.mrb[0].mxu0
  %v4440 = vadd.f32 0.0, %v4439
  %v4441 = vpop.f32.mrb[0].mxu0
  %v4442 = vpop.f32.mrb[0].mxu0
  %v4443 = vadd.f32 0.0, %v4442
  %v4444 = vpop.f32.mrb[0].mxu0
  %4445 = vmatprep.mubr.bf16.mxu0 0
  %4446 = vmatmul.mubr.bf16.gmra.mrb[0].mxu0 %v4083
  %v4447 = vpop.f32.mrb[0].mxu0
  %v4448 = vadd.f32 0.0, %v4447
  %v4449 = vpop.f32.mrb[0].mxu0
  %v4450 = vpop.f32.mrb[0].mxu0
  %v4451 = vadd.f32 0.0, %v4450
  %v4452 = vpop.f32.mrb[0].mxu0
  %4453 = vmatprep.mubr.bf16.mxu0 0
  %4454 = vmatmul.mubr.bf16.gmra.mrb[0].mxu0 %v4086
  %v4455 = vpop.f32.mrb[0].mxu0
  %v4456 = vadd.f32 0.0, %v4455
  %v4457 = vpop.f32.mrb[0].mxu0
  %v4458 = vpop.f32.mrb[0].mxu0
  %v4459 = vadd.f32 0.0, %v4458
  %v4460 = vpop.f32.mrb[0].mxu0
  %4461 = vmatprep.mubr.bf16.mxu0 0
  %4462 = vmatmul.mubr.bf16.gmra.mrb[0].mxu0 %v4089
  %v4463 = vpop.f32.mrb[0].mxu0
  %v4464 = vadd.f32 0.0, %v4463
  %v4465 = vpop.f32.mrb[0].mxu0
  %v4466 = vpop.f32.mrb[0].mxu0
  %v4467 = vadd.f32 0.0, %v4466
  %v4468 = vpop.f32.mrb[0].mxu0
  %4469 = vmatprep.mubr.bf16.mxu0 0
  %4470 = vmatmul.mubr.bf16.gmra.mrb[0].mxu0 %v4092
  %v4471 = vpop.f32.mrb[0].mxu0
  %v4472 = vadd.f32 0.0, %v4471
  %v4473 = vpop.f32.mrb[0].mxu0
  %v4474 = vpop.f32.mrb[0].mxu0
  %v4475 = vadd.f32 0.0, %v4474
  %v4476 = vpop.f32.mrb[0].mxu0
  %4477 = vmatprep.mubr.bf16.mxu0 0
  %4478 = vmatmul.mubr.bf16.gmra.mrb[0].mxu0 %v4095
  %v4479 = vpop.f32.mrb[0].mxu0
  %v4480 = vadd.f32 0.0, %v4479
  %v4481 = vpop.f32.mrb[0].mxu0
  %v4482 = vpop.f32.mrb[0].mxu0
  %v4483 = vadd.f32 0.0, %v4482
  %v4484 = vpop.f32.mrb[0].mxu0
  %4485 = vmatprep.mubr.bf16.mxu0 0
  %4486 = vmatmul.mubr.bf16.gmra.mrb[0].mxu0 %v4098
  %v4487 = vpop.f32.mrb[0].mxu0
  %v4488 = vadd.f32 0.0, %v4487
  %v4489 = vpop.f32.mrb[0].mxu0
  %v4490 = vpop.f32.mrb[0].mxu0
  %v4491 = vadd.f32 0.0, %v4490
  %v4492 = vpop.f32.mrb[0].mxu0
  %4493 = vmatprep.mubr.bf16.mxu0 0
  %4494 = vmatmul.mubr.bf16.gmra.mrb[0].mxu0 %v4101
  %v4495 = vpop.f32.mrb[0].mxu0
  %v4496 = vadd.f32 0.0, %v4495
  %v4497 = vpop.f32.mrb[0].mxu0
  %v4498 = vpop.f32.mrb[0].mxu0
  %v4499 = vadd.f32 0.0, %v4498
  %v4500 = vpop.f32.mrb[0].mxu0
  %4501 = vmatprep.mubr.bf16.mxu0 0
  %4502 = vmatmul.mubr.bf16.gmra.mrb[0].mxu0 %v4104
  %v4503 = vpop.f32.mrb[0].mxu0
  %v4504 = vadd.f32 0.0, %v4503
  %v4505 = vpop.f32.mrb[0].mxu0
  %v4506 = vpop.f32.mrb[0].mxu0
  %v4507 = vadd.f32 0.0, %v4506
  %v4508 = vpop.f32.mrb[0].mxu0
  %4509 = vmatprep.mubr.bf16.mxu0 0
  %4510 = vmatmul.mubr.bf16.gmra.mrb[0].mxu0 %v4107
  %v4511 = vpop.f32.mrb[0].mxu0
  %v4512 = vadd.f32 0.0, %v4511
  %v4513 = vpop.f32.mrb[0].mxu0
  %v4514 = vpop.f32.mrb[0].mxu0
  %v4515 = vadd.f32 0.0, %v4514
  %v4516 = vpop.f32.mrb[0].mxu0
  %4517 = vmatprep.mubr.bf16.mxu0 0
  %4518 = vmatmul.mubr.bf16.gmra.mrb[0].mxu0 %v4110
  %v4519 = vpop.f32.mrb[0].mxu0
  %v4520 = vadd.f32 0.0, %v4519
  %v4521 = vpop.f32.mrb[0].mxu0
  %v4522 = vpop.f32.mrb[0].mxu0
  %v4523 = vadd.f32 0.0, %v4522
  %v4524 = vpop.f32.mrb[0].mxu0
  %4525 = vmatprep.mubr.bf16.mxu0 0
  %4526 = vmatmul.mubr.bf16.gmra.mrb[0].mxu0 %v4113
  %v4527 = vpop.f32.mrb[0].mxu0
  %v4528 = vadd.f32 0.0, %v4527
  %v4529 = vpop.f32.mrb[0].mxu0
  %v4530 = vpop.f32.mrb[0].mxu0
  %v4531 = vadd.f32 0.0, %v4530
  %v4532 = vpop.f32.mrb[0].mxu0
  %4533 = vmatprep.mubr.bf16.mxu0 0
  %4534 = vmatmul.mubr.bf16.gmra.mrb[0].mxu0 %v4116
  %v4535 = vpop.f32.mrb[0].mxu0
  %v4536 = vadd.f32 0.0, %v4535
  %v4537 = vpop.f32.mrb[0].mxu0
  %v4538 = vpop.f32.mrb[0].mxu0
  %v4539 = vadd.f32 0.0, %v4538
  %v4540 = vpop.f32.mrb[0].mxu0
  %4541 = vmatprep.mubr.bf16.mxu0 0
  %4542 = vmatmul.mubr.bf16.gmra.mrb[0].mxu0 %v4119
  %v4543 = vpop.f32.mrb[0].mxu0
  %v4544 = vadd.f32 0.0, %v4543
  %v4545 = vpop.f32.mrb[0].mxu0
  %v4546 = vpop.f32.mrb[0].mxu0
  %v4547 = vadd.f32 0.0, %v4546
  %v4548 = vpop.f32.mrb[0].mxu0
  %4549 = vmatprep.mubr.bf16.mxu0 0
  %4550 = vmatmul.mubr.bf16.gmra.mrb[0].mxu0 %v4122
  %v4551 = vpop.f32.mrb[0].mxu0
  %v4552 = vadd.f32 0.0, %v4551
  %v4553 = vpop.f32.mrb[0].mxu0
  %v4554 = vpop.f32.mrb[0].mxu0
  %v4555 = vadd.f32 0.0, %v4554
  %v4556 = vpop.f32.mrb[0].mxu0
  %4557 = vmatprep.mubr.bf16.mxu0 0
  %4558 = vmatmul.mubr.bf16.gmra.mrb[0].mxu0 %v4125
  %v4559 = vpop.f32.mrb[0].mxu0
  %v4560 = vadd.f32 0.0, %v4559
  %v4561 = vpop.f32.mrb[0].mxu0
  %v4562 = vpop.f32.mrb[0].mxu0
  %v4563 = vadd.f32 0.0, %v4562
  %v4564 = vpop.f32.mrb[0].mxu0
  %4565 = vmatprep.mubr.bf16.mxu0 0
  %4566 = vmatmul.mubr.bf16.gmra.mrb[0].mxu0 %v4128
  %v4567 = vpop.f32.mrb[0].mxu0
  %v4568 = vadd.f32 0.0, %v4567
  %v4569 = vpop.f32.mrb[0].mxu0
  %v4570 = vpop.f32.mrb[0].mxu0
  %v4571 = vadd.f32 0.0, %v4570
  %v4572 = vpop.f32.mrb[0].mxu0
  %4573 = vmatprep.mubr.bf16.mxu0 0
  %4574 = vmatmul.mubr.bf16.gmra.mrb[0].mxu0 %v4131
  %v4575 = vpop.f32.mrb[0].mxu0
  %v4576 = vadd.f32 0.0, %v4575
  %v4577 = vpop.f32.mrb[0].mxu0
  %v4578 = vpop.f32.mrb[0].mxu0
  %v4579 = vadd.f32 0.0, %v4578
  %v4580 = vpop.f32.mrb[0].mxu0
  %4581 = vmatprep.mubr.bf16.mxu0 0
  %4582 = vmatmul.mubr.bf16.gmra.mrb[0].mxu0 %v4134
  %v4583 = vpop.f32.mrb[0].mxu0
  %v4584 = vadd.f32 0.0, %v4583
  %v4585 = vpop.f32.mrb[0].mxu0
  %v4586 = vpop.f32.mrb[0].mxu0
  %v4587 = vadd.f32 0.0, %v4586
  %v4588 = vpop.f32.mrb[0].mxu0
  %4589 = vmatprep.mubr.bf16.mxu0 0
  %4590 = vmatmul.mubr.bf16.gmra.mrb[0].mxu0 %v4137
  %v4591 = vpop.f32.mrb[0].mxu0
  %v4592 = vadd.f32 0.0, %v4591
  %v4593 = vpop.f32.mrb[0].mxu0
  %v4594 = vpop.f32.mrb[0].mxu0
  %v4595 = vadd.f32 0.0, %v4594
  %v4596 = vpop.f32.mrb[0].mxu0
  %4597 = vmatprep.mubr.bf16.mxu0 0
  %4598 = vmatmul.mubr.bf16.gmra.mrb[0].mxu0 %v4140
  %v4599 = vpop.f32.mrb[0].mxu0
  %v4600 = vadd.f32 0.0, %v4599
  %v4601 = vpop.f32.mrb[0].mxu0
  %v4602 = vpop.f32.mrb[0].mxu0
  %v4603 = vadd.f32 0.0, %v4602
  %v4604 = vpop.f32.mrb[0].mxu0
  %4605 = vmatprep.mubr.bf16.mxu0 0
  %4606 = vmatmul.mubr.bf16.gmra.mrb[0].mxu0 %v4143
  %v4607 = vpop.f32.mrb[0].mxu0
  %v4608 = vadd.f32 0.0, %v4607
  %v4609 = vpop.f32.mrb[0].mxu0
  %v4610 = vpop.f32.mrb[0].mxu0
  %v4611 = vadd.f32 0.0, %v4610
  %v4612 = vpop.f32.mrb[0].mxu0
  %4613 = vdwg.mxu0
  %v4614 = vld [vmem:[%s3] sm:$0x1]
  %v4615 = vld [vmem:[%s4] sm:$0x1]
  %v4616 = vmul.f32 %v4184, %v52
  %v4617 = vmul.f32 %v4187, %v53
  %v4618 = vmul.f32 %v4192, %v54
  %v4619 = vmul.f32 %v4195, %v55
  %v4620 = vmul.f32 %v4200, %v56
  %v4621 = vmul.f32 %v4203, %v57
  %v4622 = vmul.f32 %v4208, %v55
  %v4623 = vmul.f32 %v4211, %v56
  %v4624 = vmul.f32 %v4216, %v57
  %v4625 = vmul.f32 %v4219, %v55
  %v4626 = vmul.f32 %v4224, %v56
  %v4627 = vmul.f32 %v4227, %v57
  %v4628 = vmul.f32 %v4232, %v55
  %v4629 = vmul.f32 %v4235, %v56
  %v4630 = vmul.f32 %v4240, %v57
  %v4631 = vmul.f32 %v4243, %v55
  %v4632 = vmul.f32 %v4248, %v56
  %v4633 = vmul.f32 %v4251, %v57
  %v4634 = vmul.f32 %v4256, %v55
  %v4635 = vmul.f32 %v4259, %v56
  %v4636 = vmul.f32 %v4264, %v57
  %v4637 = vmul.f32 %v4267, %v55
  %v4638 = vmul.f32 %v4272, %v56
  %v4639 = vmul.f32 %v4275, %v57
  %v4640 = vmul.f32 %v4280, %v55
  %v4641 = vmul.f32 %v4283, %v56
  %v4642 = vmul.f32 %v4288, %v57
  %v4643 = vmul.f32 %v4291, %v55
  %v4644 = vmul.f32 %v4296, %v56
  %v4645 = vmul.f32 %v4299, %v57
  %v4646 = vmul.f32 %v4304, %v55
  %v4647 = vmul.f32 %v4307, %v56
  %v4648 = vmul.f32 %v4312, %v57
  %v4649 = vmul.f32 %v4315, %v55
  %v4650 = vmul.f32 %v4320, %v56
  %v4651 = vmul.f32 %v4323, %v57
  %v4652 = vmul.f32 %v4328, %v55
  %v4653 = vmul.f32 %v4331, %v56
  %v4654 = vmul.f32 %v4336, %v57
  %v4655 = vmul.f32 %v4339, %v55
  %v4656 = vmul.f32 %v4344, %v56
  %v4657 = vmul.f32 %v4347, %v57
  %v4658 = vmul.f32 %v4352, %v55
  %v4659 = vmul.f32 %v4355, %v56
  %v4660 = vmul.f32 %v4360, %v57
  %v4661 = vmul.f32 %v4363, %v55
  %v4662 = vmul.f32 %v4368, %v56
  %v4663 = vmul.f32 %v4371, %v57
  %v4664 = vmul.f32 %v4376, %v55
  %v4665 = vmul.f32 %v4379, %v56
  %v4666 = vmul.f32 %v4384, %v57
  %v4667 = vmul.f32 %v4387, %v52
  %v4668 = vmul.f32 %v4392, %v53
  %v4669 = vmul.f32 %v4395, %v54
  %v4670 = vmul.f32 %v4400, %v52
  %v4671 = vmul.f32 %v4403, %v53
  %v4672 = vmul.f32 %v4408, %v54
  %v4673 = vmul.f32 %v4411, %v55
  %v4674 = vmul.f32 %v4416, %v56
  %v4675 = vmul.f32 %v4419, %v57
  %v4676 = vmul.f32 %v4424, %v55
  %v4677 = vmul.f32 %v4427, %v56
  %v4678 = vmul.f32 %v4432, %v57
  %v4679 = vmul.f32 %v4435, %v55
  %v4680 = vmul.f32 %v4440, %v56
  %v4681 = vmul.f32 %v4443, %v57
  %v4682 = vmul.f32 %v4448, %v55
  %v4683 = vmul.f32 %v4451, %v56
  %v4684 = vmul.f32 %v4456, %v57
  %v4685 = vmul.f32 %v4459, %v55
  %v4686 = vmul.f32 %v4464, %v56
  %v4687 = vmul.f32 %v4467, %v57
  %v4688 = vmul.f32 %v4472, %v55
  %v4689 = vmul.f32 %v4475, %v56
  %v4690 = vmul.f32 %v4480, %v57
  %v4691 = vmul.f32 %v4483, %v55
  %v4692 = vmul.f32 %v4488, %v56
  %v4693 = vmul.f32 %v4491, %v57
  %v4694 = vmul.f32 %v4496, %v55
  %v4695 = vmul.f32 %v4499, %v56
  %v4696 = vmul.f32 %v4504, %v57
  %v4697 = vmul.f32 %v4507, %v55
  %v4698 = vmul.f32 %v4512, %v56
  %v4699 = vmul.f32 %v4515, %v57
  %v4700 = vmul.f32 %v4520, %v55
  %v4701 = vmul.f32 %v4523, %v56
  %v4702 = vmul.f32 %v4528, %v57
  %v4703 = vmul.f32 %v4531, %v55
  %v4704 = vmul.f32 %v4536, %v56
  %v4705 = vmul.f32 %v4539, %v57
  %v4706 = vmul.f32 %v4544, %v55
  %v4707 = vmul.f32 %v4547, %v56
  %v4708 = vmul.f32 %v4552, %v57
  %v4709 = vmul.f32 %v4555, %v55
  %v4710 = vmul.f32 %v4560, %v56
  %v4711 = vmul.f32 %v4563, %v57
  %v4712 = vmul.f32 %v4568, %v55
  %v4713 = vmul.f32 %v4571, %v56
  %v4714 = vmul.f32 %v4576, %v57
  %v4715 = vmul.f32 %v4579, %v55
  %v4716 = vmul.f32 %v4584, %v56
  %v4717 = vmul.f32 %v4587, %v57
  %v4718 = vmul.f32 %v4592, %v55
  %v4719 = vmul.f32 %v4595, %v56
  %v4720 = vmul.f32 %v4600, %v57
  %v4721 = vmul.f32 %v4603, %v52
  %v4722 = vmul.f32 %v4608, %v53
  %v4723 = vmul.f32 %v4611, %v54
  %v4724 = vsel %vm2537, %v4616, 0.0
  %v4725 = vsel %vm2537, %v4617, 0.0
  %v4726 = vadd.f32 %v4724, %v4725
  %v4727 = vsel %vm2537, %v4618, 0.0
  %v4728 = vadd.f32 %v4726, %v4727
  %v4729 = vsel %vm2537, %v4619, 0.0
  %v4730 = vadd.f32 %v4728, %v4729
  %v4731 = vsel %vm2537, %v4620, 0.0
  %v4732 = vadd.f32 %v4730, %v4731
  %v4733 = vsel %vm2537, %v4621, 0.0
  %v4734 = vadd.f32 %v4732, %v4733
  %v4735 = vsel %vm2537, %v4622, 0.0
  %v4736 = vadd.f32 %v4734, %v4735
  %v4737 = vsel %vm2537, %v4623, 0.0
  %v4738 = vadd.f32 %v4736, %v4737
  %v4739 = vsel %vm2537, %v4624, 0.0
  %v4740 = vadd.f32 %v4738, %v4739
  %v4741 = vsel %vm2537, %v4625, 0.0
  %v4742 = vadd.f32 %v4740, %v4741
  %v4743 = vsel %vm2537, %v4626, 0.0
  %v4744 = vadd.f32 %v4742, %v4743
  %v4745 = vsel %vm2537, %v4627, 0.0
  %v4746 = vadd.f32 %v4744, %v4745
  %v4747 = vsel %vm2537, %v4628, 0.0
  %v4748 = vadd.f32 %v4746, %v4747
  %v4749 = vsel %vm2537, %v4629, 0.0
  %v4750 = vadd.f32 %v4748, %v4749
  %v4751 = vsel %vm2537, %v4630, 0.0
  %v4752 = vadd.f32 %v4750, %v4751
  %v4753 = vsel %vm2537, %v4631, 0.0
  %v4754 = vadd.f32 %v4752, %v4753
  %v4755 = vsel %vm2537, %v4632, 0.0
  %v4756 = vadd.f32 %v4754, %v4755
  %v4757 = vsel %vm2537, %v4633, 0.0
  %v4758 = vadd.f32 %v4756, %v4757
  %v4759 = vsel %vm2537, %v4634, 0.0
  %v4760 = vadd.f32 %v4758, %v4759
  %v4761 = vsel %vm2537, %v4635, 0.0
  %v4762 = vadd.f32 %v4760, %v4761
  %v4763 = vsel %vm2537, %v4636, 0.0
  %v4764 = vadd.f32 %v4762, %v4763
  %v4765 = vsel %vm2537, %v4637, 0.0
  %v4766 = vadd.f32 %v4764, %v4765
  %v4767 = vsel %vm2537, %v4638, 0.0
  %v4768 = vadd.f32 %v4766, %v4767
  %v4769 = vsel %vm2537, %v4639, 0.0
  %v4770 = vadd.f32 %v4768, %v4769
  %v4771 = vsel %vm2537, %v4640, 0.0
  %v4772 = vadd.f32 %v4770, %v4771
  %v4773 = vsel %vm2537, %v4641, 0.0
  %v4774 = vadd.f32 %v4772, %v4773
  %v4775 = vsel %vm2537, %v4642, 0.0
  %v4776 = vadd.f32 %v4774, %v4775
  %v4777 = vsel %vm2537, %v4643, 0.0
  %v4778 = vadd.f32 %v4776, %v4777
  %v4779 = vsel %vm2537, %v4644, 0.0
  %v4780 = vadd.f32 %v4778, %v4779
  %v4781 = vsel %vm2537, %v4645, 0.0
  %v4782 = vadd.f32 %v4780, %v4781
  %v4783 = vsel %vm2537, %v4646, 0.0
  %v4784 = vadd.f32 %v4782, %v4783
  %v4785 = vsel %vm2537, %v4647, 0.0
  %v4786 = vadd.f32 %v4784, %v4785
  %v4787 = vsel %vm2537, %v4648, 0.0
  %v4788 = vadd.f32 %v4786, %v4787
  %v4789 = vsel %vm2537, %v4649, 0.0
  %v4790 = vadd.f32 %v4788, %v4789
  %v4791 = vsel %vm2537, %v4650, 0.0
  %v4792 = vadd.f32 %v4790, %v4791
  %v4793 = vsel %vm2537, %v4651, 0.0
  %v4794 = vadd.f32 %v4792, %v4793
  %v4795 = vsel %vm2537, %v4652, 0.0
  %v4796 = vadd.f32 %v4794, %v4795
  %v4797 = vsel %vm2537, %v4653, 0.0
  %v4798 = vadd.f32 %v4796, %v4797
  %v4799 = vsel %vm2537, %v4654, 0.0
  %v4800 = vadd.f32 %v4798, %v4799
  %v4801 = vsel %vm2537, %v4655, 0.0
  %v4802 = vadd.f32 %v4800, %v4801
  %v4803 = vsel %vm2537, %v4656, 0.0
  %v4804 = vadd.f32 %v4802, %v4803
  %v4805 = vsel %vm2537, %v4657, 0.0
  %v4806 = vadd.f32 %v4804, %v4805
  %v4807 = vsel %vm2537, %v4658, 0.0
  %v4808 = vadd.f32 %v4806, %v4807
  %v4809 = vsel %vm2537, %v4659, 0.0
  %v4810 = vadd.f32 %v4808, %v4809
  %v4811 = vsel %vm2537, %v4660, 0.0
  %v4812 = vadd.f32 %v4810, %v4811
  %v4813 = vsel %vm2537, %v4661, 0.0
  %v4814 = vadd.f32 %v4812, %v4813
  %v4815 = vsel %vm2537, %v4662, 0.0
  %v4816 = vadd.f32 %v4814, %v4815
  %v4817 = vsel %vm2537, %v4663, 0.0
  %v4818 = vadd.f32 %v4816, %v4817
  %v4819 = vsel %vm2537, %v4664, 0.0
  %v4820 = vadd.f32 %v4818, %v4819
  %v4821 = vsel %vm2537, %v4665, 0.0
  %v4822 = vadd.f32 %v4820, %v4821
  %v4823 = vsel %vm2537, %v4666, 0.0
  %v4824 = vadd.f32 %v4822, %v4823
  %v4825 = vsel %vm2537, %v4667, 0.0
  %v4826 = vadd.f32 %v4824, %v4825
  %v4827 = vsel %vm2537, %v4668, 0.0
  %v4828 = vadd.f32 %v4826, %v4827
  %v4829 = vsel %vm2537, %v4669, 0.0
  %v4830 = vadd.f32 %v4828, %v4829
  %v4831 = vsel %vm2537, %v4670, 0.0
  %v4832 = vadd.f32 %v4830, %v4831
  %v4833 = vsel %vm2537, %v4671, 0.0
  %v4834 = vadd.f32 %v4832, %v4833
  %v4835 = vsel %vm2537, %v4672, 0.0
  %v4836 = vadd.f32 %v4834, %v4835
  %v4837 = vsel %vm2537, %v4673, 0.0
  %v4838 = vadd.f32 %v4836, %v4837
  %v4839 = vsel %vm2537, %v4674, 0.0
  %v4840 = vadd.f32 %v4838, %v4839
  %v4841 = vsel %vm2537, %v4675, 0.0
  %v4842 = vadd.f32 %v4840, %v4841
  %v4843 = vsel %vm2537, %v4676, 0.0
  %v4844 = vadd.f32 %v4842, %v4843
  %v4845 = vsel %vm2537, %v4677, 0.0
  %v4846 = vadd.f32 %v4844, %v4845
  %v4847 = vsel %vm2537, %v4678, 0.0
  %v4848 = vadd.f32 %v4846, %v4847
  %v4849 = vsel %vm2537, %v4679, 0.0
  %v4850 = vadd.f32 %v4848, %v4849
  %v4851 = vsel %vm2537, %v4680, 0.0
  %v4852 = vadd.f32 %v4850, %v4851
  %v4853 = vsel %vm2537, %v4681, 0.0
  %v4854 = vadd.f32 %v4852, %v4853
  %v4855 = vsel %vm2537, %v4682, 0.0
  %v4856 = vadd.f32 %v4854, %v4855
  %v4857 = vsel %vm2537, %v4683, 0.0
  %v4858 = vadd.f32 %v4856, %v4857
  %v4859 = vsel %vm2537, %v4684, 0.0
  %v4860 = vadd.f32 %v4858, %v4859
  %v4861 = vsel %vm2537, %v4685, 0.0
  %v4862 = vadd.f32 %v4860, %v4861
  %v4863 = vsel %vm2537, %v4686, 0.0
  %v4864 = vadd.f32 %v4862, %v4863
  %v4865 = vsel %vm2537, %v4687, 0.0
  %v4866 = vadd.f32 %v4864, %v4865
  %v4867 = vsel %vm2537, %v4688, 0.0
  %v4868 = vadd.f32 %v4866, %v4867
  %v4869 = vsel %vm2537, %v4689, 0.0
  %v4870 = vadd.f32 %v4868, %v4869
  %v4871 = vsel %vm2537, %v4690, 0.0
  %v4872 = vadd.f32 %v4870, %v4871
  %v4873 = vsel %vm2537, %v4691, 0.0
  %v4874 = vadd.f32 %v4872, %v4873
  %v4875 = vsel %vm2537, %v4692, 0.0
  %v4876 = vadd.f32 %v4874, %v4875
  %v4877 = vsel %vm2537, %v4693, 0.0
  %v4878 = vadd.f32 %v4876, %v4877
  %v4879 = vsel %vm2537, %v4694, 0.0
  %v4880 = vadd.f32 %v4878, %v4879
  %v4881 = vsel %vm2537, %v4695, 0.0
  %v4882 = vadd.f32 %v4880, %v4881
  %v4883 = vsel %vm2537, %v4696, 0.0
  %v4884 = vadd.f32 %v4882, %v4883
  %v4885 = vsel %vm2537, %v4697, 0.0
  %v4886 = vadd.f32 %v4884, %v4885
  %v4887 = vsel %vm2537, %v4698, 0.0
  %v4888 = vadd.f32 %v4886, %v4887
  %v4889 = vsel %vm2537, %v4699, 0.0
  %v4890 = vadd.f32 %v4888, %v4889
  %v4891 = vsel %vm2537, %v4700, 0.0
  %v4892 = vadd.f32 %v4890, %v4891
  %v4893 = vsel %vm2537, %v4701, 0.0
  %v4894 = vadd.f32 %v4892, %v4893
  %v4895 = vsel %vm2537, %v4702, 0.0
  %v4896 = vadd.f32 %v4894, %v4895
  %v4897 = vsel %vm2537, %v4703, 0.0
  %v4898 = vadd.f32 %v4896, %v4897
  %v4899 = vsel %vm2537, %v4704, 0.0
  %v4900 = vadd.f32 %v4898, %v4899
  %v4901 = vsel %vm2537, %v4705, 0.0
  %v4902 = vadd.f32 %v4900, %v4901
  %v4903 = vsel %vm2537, %v4706, 0.0
  %v4904 = vadd.f32 %v4902, %v4903
  %v4905 = vsel %vm2537, %v4707, 0.0
  %v4906 = vadd.f32 %v4904, %v4905
  %v4907 = vsel %vm2537, %v4708, 0.0
  %v4908 = vadd.f32 %v4906, %v4907
  %v4909 = vsel %vm2537, %v4709, 0.0
  %v4910 = vadd.f32 %v4908, %v4909
  %v4911 = vsel %vm2537, %v4710, 0.0
  %v4912 = vadd.f32 %v4910, %v4911
  %v4913 = vsel %vm2537, %v4711, 0.0
  %v4914 = vadd.f32 %v4912, %v4913
  %v4915 = vsel %vm2537, %v4712, 0.0
  %v4916 = vadd.f32 %v4914, %v4915
  %v4917 = vsel %vm2537, %v4713, 0.0
  %v4918 = vadd.f32 %v4916, %v4917
  %v4919 = vsel %vm2537, %v4714, 0.0
  %v4920 = vadd.f32 %v4918, %v4919
  %v4921 = vsel %vm2537, %v4715, 0.0
  %v4922 = vadd.f32 %v4920, %v4921
  %v4923 = vsel %vm2537, %v4716, 0.0
  %v4924 = vadd.f32 %v4922, %v4923
  %v4925 = vsel %vm2537, %v4717, 0.0
  %v4926 = vadd.f32 %v4924, %v4925
  %v4927 = vsel %vm2537, %v4718, 0.0
  %v4928 = vadd.f32 %v4926, %v4927
  %v4929 = vsel %vm2537, %v4719, 0.0
  %v4930 = vadd.f32 %v4928, %v4929
  %v4931 = vsel %vm2537, %v4720, 0.0
  %v4932 = vadd.f32 %v4930, %v4931
  %v4933 = vsel %vm2537, %v4721, 0.0
  %v4934 = vadd.f32 %v4932, %v4933
  %v4935 = vsel %vm2537, %v4722, 0.0
  %v4936 = vadd.f32 %v4934, %v4935
  %v4937 = vsel %vm2537, %v4723, 0.0
  %v4938 = vadd.f32 %v4936, %v4937
  %v4939 = vrot.slane %v4938, 4
  %v4940 = vadd.f32 %v4938, %v4939
  %v4941 = vrot.slane %v4940, 2
  %v4942 = vadd.f32 %v4940, %v4941
  %v4943 = vrot.slane %v4942, 1
  %v4944 = vadd.f32 %v4942, %v4943
  %v4945 = vmul.f32 %v4944, 0.001953125
  %v4946 = vmul.f32 %v4616, %v4184
  %v4947 = vmul.f32 %v4617, %v4187
  %v4948 = vmul.f32 %v4618, %v4192
  %v4949 = vmul.f32 %v4619, %v4195
  %v4950 = vmul.f32 %v4620, %v4200
  %v4951 = vmul.f32 %v4621, %v4203
  %v4952 = vmul.f32 %v4622, %v4208
  %v4953 = vmul.f32 %v4623, %v4211
  %v4954 = vmul.f32 %v4624, %v4216
  %v4955 = vmul.f32 %v4625, %v4219
  %v4956 = vmul.f32 %v4626, %v4224
  %v4957 = vmul.f32 %v4627, %v4227
  %v4958 = vmul.f32 %v4628, %v4232
  %v4959 = vmul.f32 %v4629, %v4235
  %v4960 = vmul.f32 %v4630, %v4240
  %v4961 = vmul.f32 %v4631, %v4243
  %v4962 = vmul.f32 %v4632, %v4248
  %v4963 = vmul.f32 %v4633, %v4251
  %v4964 = vmul.f32 %v4634, %v4256
  %v4965 = vmul.f32 %v4635, %v4259
  %v4966 = vmul.f32 %v4636, %v4264
  %v4967 = vmul.f32 %v4637, %v4267
  %v4968 = vmul.f32 %v4638, %v4272
  %v4969 = vmul.f32 %v4639, %v4275
  %v4970 = vmul.f32 %v4640, %v4280
  %v4971 = vmul.f32 %v4641, %v4283
  %v4972 = vmul.f32 %v4642, %v4288
  %v4973 = vmul.f32 %v4643, %v4291
  %v4974 = vmul.f32 %v4644, %v4296
  %v4975 = vmul.f32 %v4645, %v4299
  %v4976 = vmul.f32 %v4646, %v4304
  %v4977 = vmul.f32 %v4647, %v4307
  %v4978 = vmul.f32 %v4648, %v4312
  %v4979 = vmul.f32 %v4649, %v4315
  %v4980 = vmul.f32 %v4650, %v4320
  %v4981 = vmul.f32 %v4651, %v4323
  %v4982 = vmul.f32 %v4652, %v4328
  %v4983 = vmul.f32 %v4653, %v4331
  %v4984 = vmul.f32 %v4654, %v4336
  %v4985 = vmul.f32 %v4655, %v4339
  %v4986 = vmul.f32 %v4656, %v4344
  %v4987 = vmul.f32 %v4657, %v4347
  %v4988 = vmul.f32 %v4658, %v4352
  %v4989 = vmul.f32 %v4659, %v4355
  %v4990 = vmul.f32 %v4660, %v4360
  %v4991 = vmul.f32 %v4661, %v4363
  %v4992 = vmul.f32 %v4662, %v4368
  %v4993 = vmul.f32 %v4663, %v4371
  %v4994 = vmul.f32 %v4664, %v4376
  %v4995 = vmul.f32 %v4665, %v4379
  %v4996 = vmul.f32 %v4666, %v4384
  %v4997 = vmul.f32 %v4667, %v4387
  %v4998 = vmul.f32 %v4668, %v4392
  %v4999 = vmul.f32 %v4669, %v4395
  %v5000 = vmul.f32 %v4670, %v4400
  %v5001 = vmul.f32 %v4671, %v4403
  %v5002 = vmul.f32 %v4672, %v4408
  %v5003 = vmul.f32 %v4673, %v4411
  %v5004 = vmul.f32 %v4674, %v4416
  %v5005 = vmul.f32 %v4675, %v4419
  %v5006 = vmul.f32 %v4676, %v4424
  %v5007 = vmul.f32 %v4677, %v4427
  %v5008 = vmul.f32 %v4678, %v4432
  %v5009 = vmul.f32 %v4679, %v4435
  %v5010 = vmul.f32 %v4680, %v4440
  %v5011 = vmul.f32 %v4681, %v4443
  %v5012 = vmul.f32 %v4682, %v4448
  %v5013 = vmul.f32 %v4683, %v4451
  %v5014 = vmul.f32 %v4684, %v4456
  %v5015 = vmul.f32 %v4685, %v4459
  %v5016 = vmul.f32 %v4686, %v4464
  %v5017 = vmul.f32 %v4687, %v4467
  %v5018 = vmul.f32 %v4688, %v4472
  %v5019 = vmul.f32 %v4689, %v4475
  %v5020 = vmul.f32 %v4690, %v4480
  %v5021 = vmul.f32 %v4691, %v4483
  %v5022 = vmul.f32 %v4692, %v4488
  %v5023 = vmul.f32 %v4693, %v4491
  %v5024 = vmul.f32 %v4694, %v4496
  %v5025 = vmul.f32 %v4695, %v4499
  %v5026 = vmul.f32 %v4696, %v4504
  %v5027 = vmul.f32 %v4697, %v4507
  %v5028 = vmul.f32 %v4698, %v4512
  %v5029 = vmul.f32 %v4699, %v4515
  %v5030 = vmul.f32 %v4700, %v4520
  %v5031 = vmul.f32 %v4701, %v4523
  %v5032 = vmul.f32 %v4702, %v4528
  %v5033 = vmul.f32 %v4703, %v4531
  %v5034 = vmul.f32 %v4704, %v4536
  %v5035 = vmul.f32 %v4705, %v4539
  %v5036 = vmul.f32 %v4706, %v4544
  %v5037 = vmul.f32 %v4707, %v4547
  %v5038 = vmul.f32 %v4708, %v4552
  %v5039 = vmul.f32 %v4709, %v4555
  %v5040 = vmul.f32 %v4710, %v4560
  %v5041 = vmul.f32 %v4711, %v4563
  %v5042 = vmul.f32 %v4712, %v4568
  %v5043 = vmul.f32 %v4713, %v4571
  %v5044 = vmul.f32 %v4714, %v4576
  %v5045 = vmul.f32 %v4715, %v4579
  %v5046 = vmul.f32 %v4716, %v4584
  %v5047 = vmul.f32 %v4717, %v4587
  %v5048 = vmul.f32 %v4718, %v4592
  %v5049 = vmul.f32 %v4719, %v4595
  %v5050 = vmul.f32 %v4720, %v4600
  %v5051 = vmul.f32 %v4721, %v4603
  %v5052 = vmul.f32 %v4722, %v4608
  %v5053 = vmul.f32 %v4723, %v4611
  %v5054 = vsel %vm2537, %v4946, 0.0
  %v5055 = vsel %vm2537, %v4947, 0.0
  %v5056 = vadd.f32 %v5054, %v5055
  %v5057 = vsel %vm2537, %v4948, 0.0
  %v5058 = vadd.f32 %v5056, %v5057
  %v5059 = vsel %vm2537, %v4949, 0.0
  %v5060 = vadd.f32 %v5058, %v5059
  %v5061 = vsel %vm2537, %v4950, 0.0
  %v5062 = vadd.f32 %v5060, %v5061
  %v5063 = vsel %vm2537, %v4951, 0.0
  %v5064 = vadd.f32 %v5062, %v5063
  %v5065 = vsel %vm2537, %v4952, 0.0
  %v5066 = vadd.f32 %v5064, %v5065
  %v5067 = vsel %vm2537, %v4953, 0.0
  %v5068 = vadd.f32 %v5066, %v5067
  %v5069 = vsel %vm2537, %v4954, 0.0
  %v5070 = vadd.f32 %v5068, %v5069
  %v5071 = vsel %vm2537, %v4955, 0.0
  %v5072 = vadd.f32 %v5070, %v5071
  %v5073 = vsel %vm2537, %v4956, 0.0
  %v5074 = vadd.f32 %v5072, %v5073
  %v5075 = vsel %vm2537, %v4957, 0.0
  %v5076 = vadd.f32 %v5074, %v5075
  %v5077 = vsel %vm2537, %v4958, 0.0
  %v5078 = vadd.f32 %v5076, %v5077
  %v5079 = vsel %vm2537, %v4959, 0.0
  %v5080 = vadd.f32 %v5078, %v5079
  %v5081 = vsel %vm2537, %v4960, 0.0
  %v5082 = vadd.f32 %v5080, %v5081
  %v5083 = vsel %vm2537, %v4961, 0.0
  %v5084 = vadd.f32 %v5082, %v5083
  %v5085 = vsel %vm2537, %v4962, 0.0
  %v5086 = vadd.f32 %v5084, %v5085
  %v5087 = vsel %vm2537, %v4963, 0.0
  %v5088 = vadd.f32 %v5086, %v5087
  %v5089 = vsel %vm2537, %v4964, 0.0
  %v5090 = vadd.f32 %v5088, %v5089
  %v5091 = vsel %vm2537, %v4965, 0.0
  %v5092 = vadd.f32 %v5090, %v5091
  %v5093 = vsel %vm2537, %v4966, 0.0
  %v5094 = vadd.f32 %v5092, %v5093
  %v5095 = vsel %vm2537, %v4967, 0.0
  %v5096 = vadd.f32 %v5094, %v5095
  %v5097 = vsel %vm2537, %v4968, 0.0
  %v5098 = vadd.f32 %v5096, %v5097
  %v5099 = vsel %vm2537, %v4969, 0.0
  %v5100 = vadd.f32 %v5098, %v5099
  %v5101 = vsel %vm2537, %v4970, 0.0
  %v5102 = vadd.f32 %v5100, %v5101
  %v5103 = vsel %vm2537, %v4971, 0.0
  %v5104 = vadd.f32 %v5102, %v5103
  %v5105 = vsel %vm2537, %v4972, 0.0
  %v5106 = vadd.f32 %v5104, %v5105
  %v5107 = vsel %vm2537, %v4973, 0.0
  %v5108 = vadd.f32 %v5106, %v5107
  %v5109 = vsel %vm2537, %v4974, 0.0
  %v5110 = vadd.f32 %v5108, %v5109
  %v5111 = vsel %vm2537, %v4975, 0.0
  %v5112 = vadd.f32 %v5110, %v5111
  %v5113 = vsel %vm2537, %v4976, 0.0
  %v5114 = vadd.f32 %v5112, %v5113
  %v5115 = vsel %vm2537, %v4977, 0.0
  %v5116 = vadd.f32 %v5114, %v5115
  %v5117 = vsel %vm2537, %v4978, 0.0
  %v5118 = vadd.f32 %v5116, %v5117
  %v5119 = vsel %vm2537, %v4979, 0.0
  %v5120 = vadd.f32 %v5118, %v5119
  %v5121 = vsel %vm2537, %v4980, 0.0
  %v5122 = vadd.f32 %v5120, %v5121
  %v5123 = vsel %vm2537, %v4981, 0.0
  %v5124 = vadd.f32 %v5122, %v5123
  %v5125 = vsel %vm2537, %v4982, 0.0
  %v5126 = vadd.f32 %v5124, %v5125
  %v5127 = vsel %vm2537, %v4983, 0.0
  %v5128 = vadd.f32 %v5126, %v5127
  %v5129 = vsel %vm2537, %v4984, 0.0
  %v5130 = vadd.f32 %v5128, %v5129
  %v5131 = vsel %vm2537, %v4985, 0.0
  %v5132 = vadd.f32 %v5130, %v5131
  %v5133 = vsel %vm2537, %v4986, 0.0
  %v5134 = vadd.f32 %v5132, %v5133
  %v5135 = vsel %vm2537, %v4987, 0.0
  %v5136 = vadd.f32 %v5134, %v5135
  %v5137 = vsel %vm2537, %v4988, 0.0
  %v5138 = vadd.f32 %v5136, %v5137
  %v5139 = vsel %vm2537, %v4989, 0.0
  %v5140 = vadd.f32 %v5138, %v5139
  %v5141 = vsel %vm2537, %v4990, 0.0
  %v5142 = vadd.f32 %v5140, %v5141
  %v5143 = vsel %vm2537, %v4991, 0.0
  %v5144 = vadd.f32 %v5142, %v5143
  %v5145 = vsel %vm2537, %v4992, 0.0
  %v5146 = vadd.f32 %v5144, %v5145
  %v5147 = vsel %vm2537, %v4993, 0.0
  %v5148 = vadd.f32 %v5146, %v5147
  %v5149 = vsel %vm2537, %v4994, 0.0
  %v5150 = vadd.f32 %v5148, %v5149
  %v5151 = vsel %vm2537, %v4995, 0.0
  %v5152 = vadd.f32 %v5150, %v5151
  %v5153 = vsel %vm2537, %v4996, 0.0
  %v5154 = vadd.f32 %v5152, %v5153
  %v5155 = vsel %vm2537, %v4997, 0.0
  %v5156 = vadd.f32 %v5154, %v5155
  %v5157 = vsel %vm2537, %v4998, 0.0
  %v5158 = vadd.f32 %v5156, %v5157
  %v5159 = vsel %vm2537, %v4999, 0.0
  %v5160 = vadd.f32 %v5158, %v5159
  %v5161 = vsel %vm2537, %v5000, 0.0
  %v5162 = vadd.f32 %v5160, %v5161
  %v5163 = vsel %vm2537, %v5001, 0.0
  %v5164 = vadd.f32 %v5162, %v5163
  %v5165 = vsel %vm2537, %v5002, 0.0
  %v5166 = vadd.f32 %v5164, %v5165
  %v5167 = vsel %vm2537, %v5003, 0.0
  %v5168 = vadd.f32 %v5166, %v5167
  %v5169 = vsel %vm2537, %v5004, 0.0
  %v5170 = vadd.f32 %v5168, %v5169
  %v5171 = vsel %vm2537, %v5005, 0.0
  %v5172 = vadd.f32 %v5170, %v5171
  %v5173 = vsel %vm2537, %v5006, 0.0
  %v5174 = vadd.f32 %v5172, %v5173
  %v5175 = vsel %vm2537, %v5007, 0.0
  %v5176 = vadd.f32 %v5174, %v5175
  %v5177 = vsel %vm2537, %v5008, 0.0
  %v5178 = vadd.f32 %v5176, %v5177
  %v5179 = vsel %vm2537, %v5009, 0.0
  %v5180 = vadd.f32 %v5178, %v5179
  %v5181 = vsel %vm2537, %v5010, 0.0
  %v5182 = vadd.f32 %v5180, %v5181
  %v5183 = vsel %vm2537, %v5011, 0.0
  %v5184 = vadd.f32 %v5182, %v5183
  %v5185 = vsel %vm2537, %v5012, 0.0
  %v5186 = vadd.f32 %v5184, %v5185
  %v5187 = vsel %vm2537, %v5013, 0.0
  %v5188 = vadd.f32 %v5186, %v5187
  %v5189 = vsel %vm2537, %v5014, 0.0
  %v5190 = vadd.f32 %v5188, %v5189
  %v5191 = vsel %vm2537, %v5015, 0.0
  %v5192 = vadd.f32 %v5190, %v5191
  %v5193 = vsel %vm2537, %v5016, 0.0
  %v5194 = vadd.f32 %v5192, %v5193
  %v5195 = vsel %vm2537, %v5017, 0.0
  %v5196 = vadd.f32 %v5194, %v5195
  %v5197 = vsel %vm2537, %v5018, 0.0
  %v5198 = vadd.f32 %v5196, %v5197
  %v5199 = vsel %vm2537, %v5019, 0.0
  %v5200 = vadd.f32 %v5198, %v5199
  %v5201 = vsel %vm2537, %v5020, 0.0
  %v5202 = vadd.f32 %v5200, %v5201
  %v5203 = vsel %vm2537, %v5021, 0.0
  %v5204 = vadd.f32 %v5202, %v5203
  %v5205 = vsel %vm2537, %v5022, 0.0
  %v5206 = vadd.f32 %v5204, %v5205
  %v5207 = vsel %vm2537, %v5023, 0.0
  %v5208 = vadd.f32 %v5206, %v5207
  %v5209 = vsel %vm2537, %v5024, 0.0
  %v5210 = vadd.f32 %v5208, %v5209
  %v5211 = vsel %vm2537, %v5025, 0.0
  %v5212 = vadd.f32 %v5210, %v5211
  %v5213 = vsel %vm2537, %v5026, 0.0
  %v5214 = vadd.f32 %v5212, %v5213
  %v5215 = vsel %vm2537, %v5027, 0.0
  %v5216 = vadd.f32 %v5214, %v5215
  %v5217 = vsel %vm2537, %v5028, 0.0
  %v5218 = vadd.f32 %v5216, %v5217
  %v5219 = vsel %vm2537, %v5029, 0.0
  %v5220 = vadd.f32 %v5218, %v5219
  %v5221 = vsel %vm2537, %v5030, 0.0
  %v5222 = vadd.f32 %v5220, %v5221
  %v5223 = vsel %vm2537, %v5031, 0.0
  %v5224 = vadd.f32 %v5222, %v5223
  %v5225 = vsel %vm2537, %v5032, 0.0
  %v5226 = vadd.f32 %v5224, %v5225
  %v5227 = vsel %vm2537, %v5033, 0.0
  %v5228 = vadd.f32 %v5226, %v5227
  %v5229 = vsel %vm2537, %v5034, 0.0
  %v5230 = vadd.f32 %v5228, %v5229
  %v5231 = vsel %vm2537, %v5035, 0.0
  %v5232 = vadd.f32 %v5230, %v5231
  %v5233 = vsel %vm2537, %v5036, 0.0
  %v5234 = vadd.f32 %v5232, %v5233
  %v5235 = vsel %vm2537, %v5037, 0.0
  %v5236 = vadd.f32 %v5234, %v5235
  %v5237 = vsel %vm2537, %v5038, 0.0
  %v5238 = vadd.f32 %v5236, %v5237
  %v5239 = vsel %vm2537, %v5039, 0.0
  %v5240 = vadd.f32 %v5238, %v5239
  %v5241 = vsel %vm2537, %v5040, 0.0
  %v5242 = vadd.f32 %v5240, %v5241
  %v5243 = vsel %vm2537, %v5041, 0.0
  %v5244 = vadd.f32 %v5242, %v5243
  %v5245 = vsel %vm2537, %v5042, 0.0
  %v5246 = vadd.f32 %v5244, %v5245
  %v5247 = vsel %vm2537, %v5043, 0.0
  %v5248 = vadd.f32 %v5246, %v5247
  %v5249 = vsel %vm2537, %v5044, 0.0
  %v5250 = vadd.f32 %v5248, %v5249
  %v5251 = vsel %vm2537, %v5045, 0.0
  %v5252 = vadd.f32 %v5250, %v5251
  %v5253 = vsel %vm2537, %v5046, 0.0
  %v5254 = vadd.f32 %v5252, %v5253
  %v5255 = vsel %vm2537, %v5047, 0.0
  %v5256 = vadd.f32 %v5254, %v5255
  %v5257 = vsel %vm2537, %v5048, 0.0
  %v5258 = vadd.f32 %v5256, %v5257
  %v5259 = vsel %vm2537, %v5049, 0.0
  %v5260 = vadd.f32 %v5258, %v5259
  %v5261 = vsel %vm2537, %v5050, 0.0
  %v5262 = vadd.f32 %v5260, %v5261
  %v5263 = vsel %vm2537, %v5051, 0.0
  %v5264 = vadd.f32 %v5262, %v5263
  %v5265 = vsel %vm2537, %v5052, 0.0
  %v5266 = vadd.f32 %v5264, %v5265
  %v5267 = vsel %vm2537, %v5053, 0.0
  %v5268 = vadd.f32 %v5266, %v5267
  %v5269 = vrot.slane %v5268, 4
  %v5270 = vadd.f32 %v5268, %v5269
  %v5271 = vrot.slane %v5270, 2
  %v5272 = vadd.f32 %v5270, %v5271
  %v5273 = vrot.slane %v5272, 1
  %v5274 = vadd.f32 %v5272, %v5273
  %v5275 = vmul.f32 %v5274, 0.001953125
  %v5276 = vmul.f32 %v4945, %v4945
  %v5277 = vsub.f32 %v5275, %v5276
  %v5278 = vmax.f32 %v5277, 0.0
  %v5279 = vsub.f32 %v4184, %v4945
  %v5280 = vsub.f32 %v4187, %v4945
  %v5281 = vsub.f32 %v4192, %v4945
  %v5282 = vsub.f32 %v4195, %v4945
  %v5283 = vsub.f32 %v4200, %v4945
  %v5284 = vsub.f32 %v4203, %v4945
  %v5285 = vsub.f32 %v4208, %v4945
  %v5286 = vsub.f32 %v4211, %v4945
  %v5287 = vsub.f32 %v4216, %v4945
  %v5288 = vsub.f32 %v4219, %v4945
  %v5289 = vsub.f32 %v4224, %v4945
  %v5290 = vsub.f32 %v4227, %v4945
  %v5291 = vsub.f32 %v4232, %v4945
  %v5292 = vsub.f32 %v4235, %v4945
  %v5293 = vsub.f32 %v4240, %v4945
  %v5294 = vsub.f32 %v4243, %v4945
  %v5295 = vsub.f32 %v4248, %v4945
  %v5296 = vsub.f32 %v4251, %v4945
  %v5297 = vsub.f32 %v4256, %v4945
  %v5298 = vsub.f32 %v4259, %v4945
  %v5299 = vsub.f32 %v4264, %v4945
  %v5300 = vsub.f32 %v4267, %v4945
  %v5301 = vsub.f32 %v4272, %v4945
  %v5302 = vsub.f32 %v4275, %v4945
  %v5303 = vsub.f32 %v4280, %v4945
  %v5304 = vsub.f32 %v4283, %v4945
  %v5305 = vsub.f32 %v4288, %v4945
  %v5306 = vsub.f32 %v4291, %v4945
  %v5307 = vsub.f32 %v4296, %v4945
  %v5308 = vsub.f32 %v4299, %v4945
  %v5309 = vsub.f32 %v4304, %v4945
  %v5310 = vsub.f32 %v4307, %v4945
  %v5311 = vsub.f32 %v4312, %v4945
  %v5312 = vsub.f32 %v4315, %v4945
  %v5313 = vsub.f32 %v4320, %v4945
  %v5314 = vsub.f32 %v4323, %v4945
  %v5315 = vsub.f32 %v4328, %v4945
  %v5316 = vsub.f32 %v4331, %v4945
  %v5317 = vsub.f32 %v4336, %v4945
  %v5318 = vsub.f32 %v4339, %v4945
  %v5319 = vsub.f32 %v4344, %v4945
  %v5320 = vsub.f32 %v4347, %v4945
  %v5321 = vsub.f32 %v4352, %v4945
  %v5322 = vsub.f32 %v4355, %v4945
  %v5323 = vsub.f32 %v4360, %v4945
  %v5324 = vsub.f32 %v4363, %v4945
  %v5325 = vsub.f32 %v4368, %v4945
  %v5326 = vsub.f32 %v4371, %v4945
  %v5327 = vsub.f32 %v4376, %v4945
  %v5328 = vsub.f32 %v4379, %v4945
  %v5329 = vsub.f32 %v4384, %v4945
  %v5330 = vsub.f32 %v4387, %v4945
  %v5331 = vsub.f32 %v4392, %v4945
  %v5332 = vsub.f32 %v4395, %v4945
  %v5333 = vsub.f32 %v4400, %v4945
  %v5334 = vsub.f32 %v4403, %v4945
  %v5335 = vsub.f32 %v4408, %v4945
  %v5336 = vsub.f32 %v4411, %v4945
  %v5337 = vsub.f32 %v4416, %v4945
  %v5338 = vsub.f32 %v4419, %v4945
  %v5339 = vsub.f32 %v4424, %v4945
  %v5340 = vsub.f32 %v4427, %v4945
  %v5341 = vsub.f32 %v4432, %v4945
  %v5342 = vsub.f32 %v4435, %v4945
  %v5343 = vsub.f32 %v4440, %v4945
  %v5344 = vsub.f32 %v4443, %v4945
  %v5345 = vsub.f32 %v4448, %v4945
  %v5346 = vsub.f32 %v4451, %v4945
  %v5347 = vsub.f32 %v4456, %v4945
  %v5348 = vsub.f32 %v4459, %v4945
  %v5349 = vsub.f32 %v4464, %v4945
  %v5350 = vsub.f32 %v4467, %v4945
  %v5351 = vsub.f32 %v4472, %v4945
  %v5352 = vsub.f32 %v4475, %v4945
  %v5353 = vsub.f32 %v4480, %v4945
  %v5354 = vsub.f32 %v4483, %v4945
  %v5355 = vsub.f32 %v4488, %v4945
  %v5356 = vsub.f32 %v4491, %v4945
  %v5357 = vsub.f32 %v4496, %v4945
  %v5358 = vsub.f32 %v4499, %v4945
  %v5359 = vsub.f32 %v4504, %v4945
  %v5360 = vsub.f32 %v4507, %v4945
  %v5361 = vsub.f32 %v4512, %v4945
  %v5362 = vsub.f32 %v4515, %v4945
  %v5363 = vsub.f32 %v4520, %v4945
  %v5364 = vsub.f32 %v4523, %v4945
  %v5365 = vsub.f32 %v4528, %v4945
  %v5366 = vsub.f32 %v4531, %v4945
  %v5367 = vsub.f32 %v4536, %v4945
  %v5368 = vsub.f32 %v4539, %v4945
  %v5369 = vsub.f32 %v4544, %v4945
  %v5370 = vsub.f32 %v4547, %v4945
  %v5371 = vsub.f32 %v4552, %v4945
  %v5372 = vsub.f32 %v4555, %v4945
  %v5373 = vsub.f32 %v4560, %v4945
  %v5374 = vsub.f32 %v4563, %v4945
  %v5375 = vsub.f32 %v4568, %v4945
  %v5376 = vsub.f32 %v4571, %v4945
  %v5377 = vsub.f32 %v4576, %v4945
  %v5378 = vsub.f32 %v4579, %v4945
  %v5379 = vsub.f32 %v4584, %v4945
  %v5380 = vsub.f32 %v4587, %v4945
  %v5381 = vsub.f32 %v4592, %v4945
  %v5382 = vsub.f32 %v4595, %v4945
  %v5383 = vsub.f32 %v4600, %v4945
  %v5384 = vsub.f32 %v4603, %v4945
  %v5385 = vsub.f32 %v4608, %v4945
  %v5386 = vsub.f32 %v4611, %v4945
  %v5387 = vadd.f32 %v5278, 1e-05
  %v5388 = vrsqrt.pop %v5387
  %v5389 = vmul.f32 %v5388, %v4614
  %v5390 = vlaneseq
  %v5391 = vshrl.u32 %v5390, 7
  %v5392 = vsub.s32 0, %v5391
  %v5393 = vrot.slane %v5389, %v5392
  %v5394 = vmul.f32 %v5279, %v5393
  %v5395 = vmul.f32 %v5280, %v5393
  %v5396 = vmul.f32 %v5281, %v5393
  %v5397 = vmul.f32 %v5282, %v5393
  %v5398 = vmul.f32 %v5283, %v5393
  %v5399 = vmul.f32 %v5284, %v5393
  %v5400 = vmul.f32 %v5285, %v5393
  %v5401 = vmul.f32 %v5286, %v5393
  %v5402 = vmul.f32 %v5287, %v5393
  %v5403 = vmul.f32 %v5288, %v5393
  %v5404 = vmul.f32 %v5289, %v5393
  %v5405 = vmul.f32 %v5290, %v5393
  %v5406 = vmul.f32 %v5291, %v5393
  %v5407 = vmul.f32 %v5292, %v5393
  %v5408 = vmul.f32 %v5293, %v5393
  %v5409 = vmul.f32 %v5294, %v5393
  %v5410 = vmul.f32 %v5295, %v5393
  %v5411 = vmul.f32 %v5296, %v5393
  %v5412 = vmul.f32 %v5297, %v5393
  %v5413 = vmul.f32 %v5298, %v5393
  %v5414 = vmul.f32 %v5299, %v5393
  %v5415 = vmul.f32 %v5300, %v5393
  %v5416 = vmul.f32 %v5301, %v5393
  %v5417 = vmul.f32 %v5302, %v5393
  %v5418 = vmul.f32 %v5303, %v5393
  %v5419 = vmul.f32 %v5304, %v5393
  %v5420 = vmul.f32 %v5305, %v5393
  %v5421 = vmul.f32 %v5306, %v5393
  %v5422 = vmul.f32 %v5307, %v5393
  %v5423 = vmul.f32 %v5308, %v5393
  %v5424 = vmul.f32 %v5309, %v5393
  %v5425 = vmul.f32 %v5310, %v5393
  %v5426 = vmul.f32 %v5311, %v5393
  %v5427 = vmul.f32 %v5312, %v5393
  %v5428 = vmul.f32 %v5313, %v5393
  %v5429 = vmul.f32 %v5314, %v5393
  %v5430 = vmul.f32 %v5315, %v5393
  %v5431 = vmul.f32 %v5316, %v5393
  %v5432 = vmul.f32 %v5317, %v5393
  %v5433 = vmul.f32 %v5318, %v5393
  %v5434 = vmul.f32 %v5319, %v5393
  %v5435 = vmul.f32 %v5320, %v5393
  %v5436 = vmul.f32 %v5321, %v5393
  %v5437 = vmul.f32 %v5322, %v5393
  %v5438 = vmul.f32 %v5323, %v5393
  %v5439 = vmul.f32 %v5324, %v5393
  %v5440 = vmul.f32 %v5325, %v5393
  %v5441 = vmul.f32 %v5326, %v5393
  %v5442 = vmul.f32 %v5327, %v5393
  %v5443 = vmul.f32 %v5328, %v5393
  %v5444 = vmul.f32 %v5329, %v5393
  %v5445 = vmul.f32 %v5330, %v5393
  %v5446 = vmul.f32 %v5331, %v5393
  %v5447 = vmul.f32 %v5332, %v5393
  %v5448 = vmul.f32 %v5333, %v5393
  %v5449 = vmul.f32 %v5334, %v5393
  %v5450 = vmul.f32 %v5335, %v5393
  %v5451 = vmul.f32 %v5336, %v5393
  %v5452 = vmul.f32 %v5337, %v5393
  %v5453 = vmul.f32 %v5338, %v5393
  %v5454 = vmul.f32 %v5339, %v5393
  %v5455 = vmul.f32 %v5340, %v5393
  %v5456 = vmul.f32 %v5341, %v5393
  %v5457 = vmul.f32 %v5342, %v5393
  %v5458 = vmul.f32 %v5343, %v5393
  %v5459 = vmul.f32 %v5344, %v5393
  %v5460 = vmul.f32 %v5345, %v5393
  %v5461 = vmul.f32 %v5346, %v5393
  %v5462 = vmul.f32 %v5347, %v5393
  %v5463 = vmul.f32 %v5348, %v5393
  %v5464 = vmul.f32 %v5349, %v5393
  %v5465 = vmul.f32 %v5350, %v5393
  %v5466 = vmul.f32 %v5351, %v5393
  %v5467 = vmul.f32 %v5352, %v5393
  %v5468 = vmul.f32 %v5353, %v5393
  %v5469 = vmul.f32 %v5354, %v5393
  %v5470 = vmul.f32 %v5355, %v5393
  %v5471 = vmul.f32 %v5356, %v5393
  %v5472 = vmul.f32 %v5357, %v5393
  %v5473 = vmul.f32 %v5358, %v5393
  %v5474 = vmul.f32 %v5359, %v5393
  %v5475 = vmul.f32 %v5360, %v5393
  %v5476 = vmul.f32 %v5361, %v5393
  %v5477 = vmul.f32 %v5362, %v5393
  %v5478 = vmul.f32 %v5363, %v5393
  %v5479 = vmul.f32 %v5364, %v5393
  %v5480 = vmul.f32 %v5365, %v5393
  %v5481 = vmul.f32 %v5366, %v5393
  %v5482 = vmul.f32 %v5367, %v5393
  %v5483 = vmul.f32 %v5368, %v5393
  %v5484 = vmul.f32 %v5369, %v5393
  %v5485 = vmul.f32 %v5370, %v5393
  %v5486 = vmul.f32 %v5371, %v5393
  %v5487 = vmul.f32 %v5372, %v5393
  %v5488 = vmul.f32 %v5373, %v5393
  %v5489 = vmul.f32 %v5374, %v5393
  %v5490 = vmul.f32 %v5375, %v5393
  %v5491 = vmul.f32 %v5376, %v5393
  %v5492 = vmul.f32 %v5377, %v5393
  %v5493 = vmul.f32 %v5378, %v5393
  %v5494 = vmul.f32 %v5379, %v5393
  %v5495 = vmul.f32 %v5380, %v5393
  %v5496 = vmul.f32 %v5381, %v5393
  %v5497 = vmul.f32 %v5382, %v5393
  %v5498 = vmul.f32 %v5383, %v5393
  %v5499 = vmul.f32 %v5384, %v5393
  %v5500 = vmul.f32 %v5385, %v5393
  %v5501 = vmul.f32 %v5386, %v5393
  %v5503 = vlaneseq
  %v5504 = vshrl.u32 %v5503, 7
  %v5505 = vsub.s32 0, %v5504
  %v5506 = vrot.slane %v4615, %v5505
  %v5508 = vadd.f32 %v5394, %v5506
  %v5509 = vadd.f32 %v5395, %v5506
  %v5510 = vadd.f32 %v5396, %v5506
  %v5511 = vadd.f32 %v5397, %v5506
  %v5512 = vadd.f32 %v5398, %v5506
  %v5513 = vadd.f32 %v5399, %v5506
  %v5514 = vadd.f32 %v5400, %v5506
  %v5515 = vadd.f32 %v5401, %v5506
  %v5516 = vadd.f32 %v5402, %v5506
  %v5517 = vadd.f32 %v5403, %v5506
  %v5518 = vadd.f32 %v5404, %v5506
  %v5519 = vadd.f32 %v5405, %v5506
  %v5520 = vadd.f32 %v5406, %v5506
  %v5521 = vadd.f32 %v5407, %v5506
  %v5522 = vadd.f32 %v5408, %v5506
  %v5523 = vadd.f32 %v5409, %v5506
  %v5524 = vadd.f32 %v5410, %v5506
  %v5525 = vadd.f32 %v5411, %v5506
  %v5526 = vadd.f32 %v5412, %v5506
  %v5527 = vadd.f32 %v5413, %v5506
  %v5528 = vadd.f32 %v5414, %v5506
  %v5529 = vadd.f32 %v5415, %v5506
  %v5530 = vadd.f32 %v5416, %v5506
  %v5531 = vadd.f32 %v5417, %v5506
  %v5532 = vadd.f32 %v5418, %v5506
  %v5533 = vadd.f32 %v5419, %v5506
  %v5534 = vadd.f32 %v5420, %v5506
  %v5535 = vadd.f32 %v5421, %v5506
  %v5536 = vadd.f32 %v5422, %v5506
  %v5537 = vadd.f32 %v5423, %v5506
  %v5538 = vadd.f32 %v5424, %v5506
  %v5539 = vadd.f32 %v5425, %v5506
  %v5540 = vadd.f32 %v5426, %v5506
  %v5541 = vadd.f32 %v5427, %v5506
  %v5542 = vadd.f32 %v5428, %v5506
  %v5543 = vadd.f32 %v5429, %v5506
  %v5544 = vadd.f32 %v5430, %v5506
  %v5545 = vadd.f32 %v5431, %v5506
  %v5546 = vadd.f32 %v5432, %v5506
  %v5547 = vadd.f32 %v5433, %v5506
  %v5548 = vadd.f32 %v5434, %v5506
  %v5549 = vadd.f32 %v5435, %v5506
  %v5550 = vadd.f32 %v5436, %v5506
  %v5551 = vadd.f32 %v5437, %v5506
  %v5552 = vadd.f32 %v5438, %v5506
  %v5553 = vadd.f32 %v5439, %v5506
  %v5554 = vadd.f32 %v5440, %v5506
  %v5555 = vadd.f32 %v5441, %v5506
  %v5556 = vadd.f32 %v5442, %v5506
  %v5557 = vadd.f32 %v5443, %v5506
  %v5558 = vadd.f32 %v5444, %v5506
  %v5559 = vadd.f32 %v5445, %v5506
  %v5560 = vadd.f32 %v5446, %v5506
  %v5561 = vadd.f32 %v5447, %v5506
  %v5562 = vadd.f32 %v5448, %v5506
  %v5563 = vadd.f32 %v5449, %v5506
  %v5564 = vadd.f32 %v5450, %v5506
  %v5565 = vadd.f32 %v5451, %v5506
  %v5566 = vadd.f32 %v5452, %v5506
  %v5567 = vadd.f32 %v5453, %v5506
  %v5568 = vadd.f32 %v5454, %v5506
  %v5569 = vadd.f32 %v5455, %v5506
  %v5570 = vadd.f32 %v5456, %v5506
  %v5571 = vadd.f32 %v5457, %v5506
  %v5572 = vadd.f32 %v5458, %v5506
  %v5573 = vadd.f32 %v5459, %v5506
  %v5574 = vadd.f32 %v5460, %v5506
  %v5575 = vadd.f32 %v5461, %v5506
  %v5576 = vadd.f32 %v5462, %v5506
  %v5577 = vadd.f32 %v5463, %v5506
  %v5578 = vadd.f32 %v5464, %v5506
  %v5579 = vadd.f32 %v5465, %v5506
  %v5580 = vadd.f32 %v5466, %v5506
  %v5581 = vadd.f32 %v5467, %v5506
  %v5582 = vadd.f32 %v5468, %v5506
  %v5583 = vadd.f32 %v5469, %v5506
  %v5584 = vadd.f32 %v5470, %v5506
  %v5585 = vadd.f32 %v5471, %v5506
  %v5586 = vadd.f32 %v5472, %v5506
  %v5587 = vadd.f32 %v5473, %v5506
  %v5588 = vadd.f32 %v5474, %v5506
  %v5589 = vadd.f32 %v5475, %v5506
  %v5590 = vadd.f32 %v5476, %v5506
  %v5591 = vadd.f32 %v5477, %v5506
  %v5592 = vadd.f32 %v5478, %v5506
  %v5593 = vadd.f32 %v5479, %v5506
  %v5594 = vadd.f32 %v5480, %v5506
  %v5595 = vadd.f32 %v5481, %v5506
  %v5596 = vadd.f32 %v5482, %v5506
  %v5597 = vadd.f32 %v5483, %v5506
  %v5598 = vadd.f32 %v5484, %v5506
  %v5599 = vadd.f32 %v5485, %v5506
  %v5600 = vadd.f32 %v5486, %v5506
  %v5601 = vadd.f32 %v5487, %v5506
  %v5602 = vadd.f32 %v5488, %v5506
  %v5603 = vadd.f32 %v5489, %v5506
  %v5604 = vadd.f32 %v5490, %v5506
  %v5605 = vadd.f32 %v5491, %v5506
  %v5606 = vadd.f32 %v5492, %v5506
  %v5607 = vadd.f32 %v5493, %v5506
  %v5608 = vadd.f32 %v5494, %v5506
  %v5609 = vadd.f32 %v5495, %v5506
  %v5610 = vadd.f32 %v5496, %v5506
  %v5611 = vadd.f32 %v5497, %v5506
  %v5612 = vadd.f32 %v5498, %v5506
  %v5613 = vadd.f32 %v5499, %v5506
  %v5614 = vadd.f32 %v5500, %v5506
  %v5615 = vadd.f32 %v5501, %v5506
  %v5616 = vmax.f32 %v5508, 0.0
  %v5617 = vmax.f32 %v5509, 0.0
  %v5618 = vmax.f32 %v5510, 0.0
  %v5619 = vmax.f32 %v5511, 0.0
  %v5620 = vmax.f32 %v5512, 0.0
  %v5621 = vmax.f32 %v5513, 0.0
  %v5622 = vmax.f32 %v5514, 0.0
  %v5623 = vmax.f32 %v5515, 0.0
  %v5624 = vmax.f32 %v5516, 0.0
  %v5625 = vmax.f32 %v5517, 0.0
  %v5626 = vmax.f32 %v5518, 0.0
  %v5627 = vmax.f32 %v5519, 0.0
  %v5628 = vmax.f32 %v5520, 0.0
  %v5629 = vmax.f32 %v5521, 0.0
  %v5630 = vmax.f32 %v5522, 0.0
  %v5631 = vmax.f32 %v5523, 0.0
  %v5632 = vmax.f32 %v5524, 0.0
  %v5633 = vmax.f32 %v5525, 0.0
  %v5634 = vmax.f32 %v5526, 0.0
  %v5635 = vmax.f32 %v5527, 0.0
  %v5636 = vmax.f32 %v5528, 0.0
  %v5637 = vmax.f32 %v5529, 0.0
  %v5638 = vmax.f32 %v5530, 0.0
  %v5639 = vmax.f32 %v5531, 0.0
  %v5640 = vmax.f32 %v5532, 0.0
  %v5641 = vmax.f32 %v5533, 0.0
  %v5642 = vmax.f32 %v5534, 0.0
  %v5643 = vmax.f32 %v5535, 0.0
  %v5644 = vmax.f32 %v5536, 0.0
  %v5645 = vmax.f32 %v5537, 0.0
  %v5646 = vmax.f32 %v5538, 0.0
  %v5647 = vmax.f32 %v5539, 0.0
  %v5648 = vmax.f32 %v5540, 0.0
  %v5649 = vmax.f32 %v5541, 0.0
  %v5650 = vmax.f32 %v5542, 0.0
  %v5651 = vmax.f32 %v5543, 0.0
  %v5652 = vmax.f32 %v5544, 0.0
  %v5653 = vmax.f32 %v5545, 0.0
  %v5654 = vmax.f32 %v5546, 0.0
  %v5655 = vmax.f32 %v5547, 0.0
  %v5656 = vmax.f32 %v5548, 0.0
  %v5657 = vmax.f32 %v5549, 0.0
  %v5658 = vmax.f32 %v5550, 0.0
  %v5659 = vmax.f32 %v5551, 0.0
  %v5660 = vmax.f32 %v5552, 0.0
  %v5661 = vmax.f32 %v5553, 0.0
  %v5662 = vmax.f32 %v5554, 0.0
  %v5663 = vmax.f32 %v5555, 0.0
  %v5664 = vmax.f32 %v5556, 0.0
  %v5665 = vmax.f32 %v5557, 0.0
  %v5666 = vmax.f32 %v5558, 0.0
  %v5667 = vmax.f32 %v5559, 0.0
  %v5668 = vmax.f32 %v5560, 0.0
  %v5669 = vmax.f32 %v5561, 0.0
  %v5670 = vmax.f32 %v5562, 0.0
  %v5671 = vmax.f32 %v5563, 0.0
  %v5672 = vmax.f32 %v5564, 0.0
  %v5673 = vmax.f32 %v5565, 0.0
  %v5674 = vmax.f32 %v5566, 0.0
  %v5675 = vmax.f32 %v5567, 0.0
  %v5676 = vmax.f32 %v5568, 0.0
  %v5677 = vmax.f32 %v5569, 0.0
  %v5678 = vmax.f32 %v5570, 0.0
  %v5679 = vmax.f32 %v5571, 0.0
  %v5680 = vmax.f32 %v5572, 0.0
  %v5681 = vmax.f32 %v5573, 0.0
  %v5682 = vmax.f32 %v5574, 0.0
  %v5683 = vmax.f32 %v5575, 0.0
  %v5684 = vmax.f32 %v5576, 0.0
  %v5685 = vmax.f32 %v5577, 0.0
  %v5686 = vmax.f32 %v5578, 0.0
  %v5687 = vmax.f32 %v5579, 0.0
  %v5688 = vmax.f32 %v5580, 0.0
  %v5689 = vmax.f32 %v5581, 0.0
  %v5690 = vmax.f32 %v5582, 0.0
  %v5691 = vmax.f32 %v5583, 0.0
  %v5692 = vmax.f32 %v5584, 0.0
  %v5693 = vmax.f32 %v5585, 0.0
  %v5694 = vmax.f32 %v5586, 0.0
  %v5695 = vmax.f32 %v5587, 0.0
  %v5696 = vmax.f32 %v5588, 0.0
  %v5697 = vmax.f32 %v5589, 0.0
  %v5698 = vmax.f32 %v5590, 0.0
  %v5699 = vmax.f32 %v5591, 0.0
  %v5700 = vmax.f32 %v5592, 0.0
  %v5701 = vmax.f32 %v5593, 0.0
  %v5702 = vmax.f32 %v5594, 0.0
  %v5703 = vmax.f32 %v5595, 0.0
  %v5704 = vmax.f32 %v5596, 0.0
  %v5705 = vmax.f32 %v5597, 0.0
  %v5706 = vmax.f32 %v5598, 0.0
  %v5707 = vmax.f32 %v5599, 0.0
  %v5708 = vmax.f32 %v5600, 0.0
  %v5709 = vmax.f32 %v5601, 0.0
  %v5710 = vmax.f32 %v5602, 0.0
  %v5711 = vmax.f32 %v5603, 0.0
  %v5712 = vmax.f32 %v5604, 0.0
  %v5713 = vmax.f32 %v5605, 0.0
  %v5714 = vmax.f32 %v5606, 0.0
  %v5715 = vmax.f32 %v5607, 0.0
  %v5716 = vmax.f32 %v5608, 0.0
  %v5717 = vmax.f32 %v5609, 0.0
  %v5718 = vmax.f32 %v5610, 0.0
  %v5719 = vmax.f32 %v5611, 0.0
  %v5720 = vmax.f32 %v5612, 0.0
  %v5721 = vmax.f32 %v5613, 0.0
  %v5722 = vmax.f32 %v5614, 0.0
  %v5723 = vmax.f32 %v5615, 0.0
  %v5724 = vmul.f32 %v5616, %v52
  %v5725 = vmul.f32 %v5617, %v53
  %v5726 = vmul.f32 %v5618, %v54
  %v5727 = vmul.f32 %v5619, %v55
  %v5728 = vmul.f32 %v5620, %v56
  %v5729 = vmul.f32 %v5621, %v57
  %v5730 = vmul.f32 %v5622, %v55
  %v5731 = vmul.f32 %v5623, %v56
  %v5732 = vmul.f32 %v5624, %v57
  %v5733 = vmul.f32 %v5625, %v55
  %v5734 = vmul.f32 %v5626, %v56
  %v5735 = vmul.f32 %v5627, %v57
  %v5736 = vmul.f32 %v5628, %v55
  %v5737 = vmul.f32 %v5629, %v56
  %v5738 = vmul.f32 %v5630, %v57
  %v5739 = vmul.f32 %v5631, %v55
  %v5740 = vmul.f32 %v5632, %v56
  %v5741 = vmul.f32 %v5633, %v57
  %v5742 = vmul.f32 %v5634, %v55
  %v5743 = vmul.f32 %v5635, %v56
  %v5744 = vmul.f32 %v5636, %v57
  %v5745 = vmul.f32 %v5637, %v55
  %v5746 = vmul.f32 %v5638, %v56
  %v5747 = vmul.f32 %v5639, %v57
  %v5748 = vmul.f32 %v5640, %v55
  %v5749 = vmul.f32 %v5641, %v56
  %v5750 = vmul.f32 %v5642, %v57
  %v5751 = vmul.f32 %v5643, %v55
  %v5752 = vmul.f32 %v5644, %v56
  %v5753 = vmul.f32 %v5645, %v57
  %v5754 = vmul.f32 %v5646, %v55
  %v5755 = vmul.f32 %v5647, %v56
  %v5756 = vmul.f32 %v5648, %v57
  %v5757 = vmul.f32 %v5649, %v55
  %v5758 = vmul.f32 %v5650, %v56
  %v5759 = vmul.f32 %v5651, %v57
  %v5760 = vmul.f32 %v5652, %v55
  %v5761 = vmul.f32 %v5653, %v56
  %v5762 = vmul.f32 %v5654, %v57
  %v5763 = vmul.f32 %v5655, %v55
  %v5764 = vmul.f32 %v5656, %v56
  %v5765 = vmul.f32 %v5657, %v57
  %v5766 = vmul.f32 %v5658, %v55
  %v5767 = vmul.f32 %v5659, %v56
  %v5768 = vmul.f32 %v5660, %v57
  %v5769 = vmul.f32 %v5661, %v55
  %v5770 = vmul.f32 %v5662, %v56
  %v5771 = vmul.f32 %v5663, %v57
  %v5772 = vmul.f32 %v5664, %v55
  %v5773 = vmul.f32 %v5665, %v56
  %v5774 = vmul.f32 %v5666, %v57
  %v5775 = vmul.f32 %v5667, %v52
  %v5776 = vmul.f32 %v5668, %v53
  %v5777 = vmul.f32 %v5669, %v54
  %v5778 = vmul.f32 %v5670, %v52
  %v5779 = vmul.f32 %v5671, %v53
  %v5780 = vmul.f32 %v5672, %v54
  %v5781 = vmul.f32 %v5673, %v55
  %v5782 = vmul.f32 %v5674, %v56
  %v5783 = vmul.f32 %v5675, %v57
  %v5784 = vmul.f32 %v5676, %v55
  %v5785 = vmul.f32 %v5677, %v56
  %v5786 = vmul.f32 %v5678, %v57
  %v5787 = vmul.f32 %v5679, %v55
  %v5788 = vmul.f32 %v5680, %v56
  %v5789 = vmul.f32 %v5681, %v57
  %v5790 = vmul.f32 %v5682, %v55
  %v5791 = vmul.f32 %v5683, %v56
  %v5792 = vmul.f32 %v5684, %v57
  %v5793 = vmul.f32 %v5685, %v55
  %v5794 = vmul.f32 %v5686, %v56
  %v5795 = vmul.f32 %v5687, %v57
  %v5796 = vmul.f32 %v5688, %v55
  %v5797 = vmul.f32 %v5689, %v56
  %v5798 = vmul.f32 %v5690, %v57
  %v5799 = vmul.f32 %v5691, %v55
  %v5800 = vmul.f32 %v5692, %v56
  %v5801 = vmul.f32 %v5693, %v57
  %v5802 = vmul.f32 %v5694, %v55
  %v5803 = vmul.f32 %v5695, %v56
  %v5804 = vmul.f32 %v5696, %v57
  %v5805 = vmul.f32 %v5697, %v55
  %v5806 = vmul.f32 %v5698, %v56
  %v5807 = vmul.f32 %v5699, %v57
  %v5808 = vmul.f32 %v5700, %v55
  %v5809 = vmul.f32 %v5701, %v56
  %v5810 = vmul.f32 %v5702, %v57
  %v5811 = vmul.f32 %v5703, %v55
  %v5812 = vmul.f32 %v5704, %v56
  %v5813 = vmul.f32 %v5705, %v57
  %v5814 = vmul.f32 %v5706, %v55
  %v5815 = vmul.f32 %v5707, %v56
  %v5816 = vmul.f32 %v5708, %v57
  %v5817 = vmul.f32 %v5709, %v55
  %v5818 = vmul.f32 %v5710, %v56
  %v5819 = vmul.f32 %v5711, %v57
  %v5820 = vmul.f32 %v5712, %v55
  %v5821 = vmul.f32 %v5713, %v56
  %v5822 = vmul.f32 %v5714, %v57
  %v5823 = vmul.f32 %v5715, %v55
  %v5824 = vmul.f32 %v5716, %v56
  %v5825 = vmul.f32 %v5717, %v57
  %v5826 = vmul.f32 %v5718, %v55
  %v5827 = vmul.f32 %v5719, %v56
  %v5828 = vmul.f32 %v5720, %v57
  %v5829 = vmul.f32 %v5721, %v52
  %v5830 = vmul.f32 %v5722, %v53
  %v5831 = vmul.f32 %v5723, %v54
  %v5832 = vpack.c.bf16 %v5725, %v5724
  %v5833 = vpack.c.bf16 %v5726, %v5726
  %v5834 = vpack.c.bf16 %v5728, %v5727
  %v5835 = vpack.c.bf16 %v5729, %v5729
  %v5836 = vpack.c.bf16 %v5731, %v5730
  %v5837 = vpack.c.bf16 %v5732, %v5732
  %v5838 = vpack.c.bf16 %v5734, %v5733
  %v5839 = vpack.c.bf16 %v5735, %v5735
  %v5840 = vpack.c.bf16 %v5737, %v5736
  %v5841 = vpack.c.bf16 %v5738, %v5738
  %v5842 = vpack.c.bf16 %v5740, %v5739
  %v5843 = vpack.c.bf16 %v5741, %v5741
  %v5844 = vpack.c.bf16 %v5743, %v5742
  %v5845 = vpack.c.bf16 %v5744, %v5744
  %v5846 = vpack.c.bf16 %v5746, %v5745
  %v5847 = vpack.c.bf16 %v5747, %v5747
  %v5848 = vpack.c.bf16 %v5749, %v5748
  %v5849 = vpack.c.bf16 %v5750, %v5750
  %v5850 = vpack.c.bf16 %v5752, %v5751
  %v5851 = vpack.c.bf16 %v5753, %v5753
  %v5852 = vpack.c.bf16 %v5755, %v5754
  %v5853 = vpack.c.bf16 %v5756, %v5756
  %v5854 = vpack.c.bf16 %v5758, %v5757
  %v5855 = vpack.c.bf16 %v5759, %v5759
  %v5856 = vpack.c.bf16 %v5761, %v5760
  %v5857 = vpack.c.bf16 %v5762, %v5762
  %v5858 = vpack.c.bf16 %v5764, %v5763
  %v5859 = vpack.c.bf16 %v5765, %v5765
  %v5860 = vpack.c.bf16 %v5767, %v5766
  %v5861 = vpack.c.bf16 %v5768, %v5768
  %v5862 = vpack.c.bf16 %v5770, %v5769
  %v5863 = vpack.c.bf16 %v5771, %v5771
  %v5864 = vpack.c.bf16 %v5773, %v5772
  %v5865 = vpack.c.bf16 %v5774, %v5774
  %v5866 = vpack.c.bf16 %v5776, %v5775
  %v5867 = vpack.c.bf16 %v5777, %v5777
  %v5868 = vpack.c.bf16 %v5779, %v5778
  %v5869 = vpack.c.bf16 %v5780, %v5780
  %v5870 = vpack.c.bf16 %v5782, %v5781
  %v5871 = vpack.c.bf16 %v5783, %v5783
  %v5872 = vpack.c.bf16 %v5785, %v5784
  %v5873 = vpack.c.bf16 %v5786, %v5786
  %v5874 = vpack.c.bf16 %v5788, %v5787
  %v5875 = vpack.c.bf16 %v5789, %v5789
  %v5876 = vpack.c.bf16 %v5791, %v5790
  %v5877 = vpack.c.bf16 %v5792, %v5792
  %v5878 = vpack.c.bf16 %v5794, %v5793
  %v5879 = vpack.c.bf16 %v5795, %v5795
  %v5880 = vpack.c.bf16 %v5797, %v5796
  %v5881 = vpack.c.bf16 %v5798, %v5798
  %v5882 = vpack.c.bf16 %v5800, %v5799
  %v5883 = vpack.c.bf16 %v5801, %v5801
  %v5884 = vpack.c.bf16 %v5803, %v5802
  %v5885 = vpack.c.bf16 %v5804, %v5804
  %v5886 = vpack.c.bf16 %v5806, %v5805
  %v5887 = vpack.c.bf16 %v5807, %v5807
  %v5888 = vpack.c.bf16 %v5809, %v5808
  %v5889 = vpack.c.bf16 %v5810, %v5810
  %v5890 = vpack.c.bf16 %v5812, %v5811
  %v5891 = vpack.c.bf16 %v5813, %v5813
  %v5892 = vpack.c.bf16 %v5815, %v5814
  %v5893 = vpack.c.bf16 %v5816, %v5816
  %v5894 = vpack.c.bf16 %v5818, %v5817
  %v5895 = vpack.c.bf16 %v5819, %v5819
  %v5896 = vpack.c.bf16 %v5821, %v5820
  %v5897 = vpack.c.bf16 %v5822, %v5822
  %v5898 = vpack.c.bf16 %v5824, %v5823
  %v5899 = vpack.c.bf16 %v5825, %v5825
  %v5900 = vpack.c.bf16 %v5827, %v5826
  %v5901 = vpack.c.bf16 %v5828, %v5828
  %v5902 = vpack.c.bf16 %v5830, %v5829
  %v5903 = vpack.c.bf16 %v5831, %v5831
  %v5904 = vld [vmem:[%s5] sm:$0xf]
  %v5905 = vld [vmem:[%s5 + $0x4] sm:$0xf]
  %v5906 = vld [vmem:[%s5 + $0x8] sm:$0xf]
  %v5907 = vld [vmem:[%s5 + $0xc] sm:$0xf]
  %v5908 = vld [vmem:[%s5 + $0x10] sm:$0x3]
  %v5910 = vshrl.u32 %v5832, 16
  %v5912 = vshll.u32 %v5832, 16
  %v5914 = vrot.slane %v5912, 1
  %v5915 = vor.u32 %v5910, %v5914
  %v5917 = vshll.u32 %v5833, 16
  %v5919 = vrot.slane %v5917, 1
  %v5920 = vsel %vm619, %v5915, %v5919
  %v5922 = vshrl.u32 %v5834, 16
  %v5924 = vshll.u32 %v5834, 16
  %v5926 = vrot.slane %v5924, 1
  %v5927 = vor.u32 %v5922, %v5926
  %v5929 = vshll.u32 %v5835, 16
  %v5931 = vrot.slane %v5929, 1
  %v5932 = vsel %vm619, %v5927, %v5931
  %v5934 = vshrl.u32 %v5836, 16
  %v5936 = vshll.u32 %v5836, 16
  %v5938 = vrot.slane %v5936, 1
  %v5939 = vor.u32 %v5934, %v5938
  %v5941 = vshll.u32 %v5837, 16
  %v5943 = vrot.slane %v5941, 1
  %v5944 = vsel %vm619, %v5939, %v5943
  %v5946 = vshrl.u32 %v5838, 16
  %v5948 = vshll.u32 %v5838, 16
  %v5950 = vrot.slane %v5948, 1
  %v5951 = vor.u32 %v5946, %v5950
  %v5953 = vshll.u32 %v5839, 16
  %v5955 = vrot.slane %v5953, 1
  %v5956 = vsel %vm619, %v5951, %v5955
  %v5958 = vshrl.u32 %v5840, 16
  %v5960 = vshll.u32 %v5840, 16
  %v5962 = vrot.slane %v5960, 1
  %v5963 = vor.u32 %v5958, %v5962
  %v5965 = vshll.u32 %v5841, 16
  %v5967 = vrot.slane %v5965, 1
  %v5968 = vsel %vm619, %v5963, %v5967
  %v5970 = vshrl.u32 %v5842, 16
  %v5972 = vshll.u32 %v5842, 16
  %v5974 = vrot.slane %v5972, 1
  %v5975 = vor.u32 %v5970, %v5974
  %v5977 = vshll.u32 %v5843, 16
  %v5979 = vrot.slane %v5977, 1
  %v5980 = vsel %vm619, %v5975, %v5979
  %v5982 = vshrl.u32 %v5844, 16
  %v5984 = vshll.u32 %v5844, 16
  %v5986 = vrot.slane %v5984, 1
  %v5987 = vor.u32 %v5982, %v5986
  %v5989 = vshll.u32 %v5845, 16
  %v5991 = vrot.slane %v5989, 1
  %v5992 = vsel %vm619, %v5987, %v5991
  %v5994 = vshrl.u32 %v5846, 16
  %v5996 = vshll.u32 %v5846, 16
  %v5998 = vrot.slane %v5996, 1
  %v5999 = vor.u32 %v5994, %v5998
  %v6001 = vshll.u32 %v5847, 16
  %v6003 = vrot.slane %v6001, 1
  %v6004 = vsel %vm619, %v5999, %v6003
  %v6006 = vshrl.u32 %v5848, 16
  %v6008 = vshll.u32 %v5848, 16
  %v6010 = vrot.slane %v6008, 1
  %v6011 = vor.u32 %v6006, %v6010
  %v6013 = vshll.u32 %v5849, 16
  %v6015 = vrot.slane %v6013, 1
  %v6016 = vsel %vm619, %v6011, %v6015
  %v6018 = vshrl.u32 %v5850, 16
  %v6020 = vshll.u32 %v5850, 16
  %v6022 = vrot.slane %v6020, 1
  %v6023 = vor.u32 %v6018, %v6022
  %v6025 = vshll.u32 %v5851, 16
  %v6027 = vrot.slane %v6025, 1
  %v6028 = vsel %vm619, %v6023, %v6027
  %v6030 = vshrl.u32 %v5852, 16
  %v6032 = vshll.u32 %v5852, 16
  %v6034 = vrot.slane %v6032, 1
  %v6035 = vor.u32 %v6030, %v6034
  %v6037 = vshll.u32 %v5853, 16
  %v6039 = vrot.slane %v6037, 1
  %v6040 = vsel %vm619, %v6035, %v6039
  %v6042 = vshrl.u32 %v5854, 16
  %v6044 = vshll.u32 %v5854, 16
  %v6046 = vrot.slane %v6044, 1
  %v6047 = vor.u32 %v6042, %v6046
  %v6049 = vshll.u32 %v5855, 16
  %v6051 = vrot.slane %v6049, 1
  %v6052 = vsel %vm619, %v6047, %v6051
  %v6054 = vshrl.u32 %v5856, 16
  %v6056 = vshll.u32 %v5856, 16
  %v6058 = vrot.slane %v6056, 1
  %v6059 = vor.u32 %v6054, %v6058
  %v6061 = vshll.u32 %v5857, 16
  %v6063 = vrot.slane %v6061, 1
  %v6064 = vsel %vm619, %v6059, %v6063
  %v6066 = vshrl.u32 %v5858, 16
  %v6068 = vshll.u32 %v5858, 16
  %v6070 = vrot.slane %v6068, 1
  %v6071 = vor.u32 %v6066, %v6070
  %v6073 = vshll.u32 %v5859, 16
  %v6075 = vrot.slane %v6073, 1
  %v6076 = vsel %vm619, %v6071, %v6075
  %v6078 = vshrl.u32 %v5860, 16
  %v6080 = vshll.u32 %v5860, 16
  %v6082 = vrot.slane %v6080, 1
  %v6083 = vor.u32 %v6078, %v6082
  %v6085 = vshll.u32 %v5861, 16
  %v6087 = vrot.slane %v6085, 1
  %v6088 = vsel %vm619, %v6083, %v6087
  %v6090 = vshrl.u32 %v5862, 16
  %v6092 = vshll.u32 %v5862, 16
  %v6094 = vrot.slane %v6092, 1
  %v6095 = vor.u32 %v6090, %v6094
  %v6097 = vshll.u32 %v5863, 16
  %v6099 = vrot.slane %v6097, 1
  %v6100 = vsel %vm619, %v6095, %v6099
  %v6102 = vshrl.u32 %v5868, 16
  %v6104 = vshll.u32 %v5868, 16
  %v6106 = vrot.slane %v6104, 1
  %v6107 = vor.u32 %v6102, %v6106
  %v6109 = vshll.u32 %v5869, 16
  %v6111 = vrot.slane %v6109, 1
  %v6112 = vsel %vm619, %v6107, %v6111
  %v6114 = vshrl.u32 %v5870, 16
  %v6116 = vshll.u32 %v5870, 16
  %v6118 = vrot.slane %v6116, 1
  %v6119 = vor.u32 %v6114, %v6118
  %v6121 = vshll.u32 %v5871, 16
  %v6123 = vrot.slane %v6121, 1
  %v6124 = vsel %vm619, %v6119, %v6123
  %v6126 = vshrl.u32 %v5872, 16
  %v6128 = vshll.u32 %v5872, 16
  %v6130 = vrot.slane %v6128, 1
  %v6131 = vor.u32 %v6126, %v6130
  %v6133 = vshll.u32 %v5873, 16
  %v6135 = vrot.slane %v6133, 1
  %v6136 = vsel %vm619, %v6131, %v6135
  %v6138 = vshrl.u32 %v5874, 16
  %v6140 = vshll.u32 %v5874, 16
  %v6142 = vrot.slane %v6140, 1
  %v6143 = vor.u32 %v6138, %v6142
  %v6145 = vshll.u32 %v5875, 16
  %v6147 = vrot.slane %v6145, 1
  %v6148 = vsel %vm619, %v6143, %v6147
  %v6150 = vshrl.u32 %v5876, 16
  %v6152 = vshll.u32 %v5876, 16
  %v6154 = vrot.slane %v6152, 1
  %v6155 = vor.u32 %v6150, %v6154
  %v6157 = vshll.u32 %v5877, 16
  %v6159 = vrot.slane %v6157, 1
  %v6160 = vsel %vm619, %v6155, %v6159
  %v6162 = vshrl.u32 %v5878, 16
  %v6164 = vshll.u32 %v5878, 16
  %v6166 = vrot.slane %v6164, 1
  %v6167 = vor.u32 %v6162, %v6166
  %v6169 = vshll.u32 %v5879, 16
  %v6171 = vrot.slane %v6169, 1
  %v6172 = vsel %vm619, %v6167, %v6171
  %v6174 = vshrl.u32 %v5880, 16
  %v6176 = vshll.u32 %v5880, 16
  %v6178 = vrot.slane %v6176, 1
  %v6179 = vor.u32 %v6174, %v6178
  %v6181 = vshll.u32 %v5881, 16
  %v6183 = vrot.slane %v6181, 1
  %v6184 = vsel %vm619, %v6179, %v6183
  %v6186 = vshrl.u32 %v5882, 16
  %v6188 = vshll.u32 %v5882, 16
  %v6190 = vrot.slane %v6188, 1
  %v6191 = vor.u32 %v6186, %v6190
  %v6193 = vshll.u32 %v5883, 16
  %v6195 = vrot.slane %v6193, 1
  %v6196 = vsel %vm619, %v6191, %v6195
  %v6198 = vshrl.u32 %v5884, 16
  %v6200 = vshll.u32 %v5884, 16
  %v6202 = vrot.slane %v6200, 1
  %v6203 = vor.u32 %v6198, %v6202
  %v6205 = vshll.u32 %v5885, 16
  %v6207 = vrot.slane %v6205, 1
  %v6208 = vsel %vm619, %v6203, %v6207
  %v6210 = vshrl.u32 %v5886, 16
  %v6212 = vshll.u32 %v5886, 16
  %v6214 = vrot.slane %v6212, 1
  %v6215 = vor.u32 %v6210, %v6214
  %v6217 = vshll.u32 %v5887, 16
  %v6219 = vrot.slane %v6217, 1
  %v6220 = vsel %vm619, %v6215, %v6219
  %v6222 = vshrl.u32 %v5888, 16
  %v6224 = vshll.u32 %v5888, 16
  %v6226 = vrot.slane %v6224, 1
  %v6227 = vor.u32 %v6222, %v6226
  %v6229 = vshll.u32 %v5889, 16
  %v6231 = vrot.slane %v6229, 1
  %v6232 = vsel %vm619, %v6227, %v6231
  %v6234 = vshrl.u32 %v5890, 16
  %v6236 = vshll.u32 %v5890, 16
  %v6238 = vrot.slane %v6236, 1
  %v6239 = vor.u32 %v6234, %v6238
  %v6241 = vshll.u32 %v5891, 16
  %v6243 = vrot.slane %v6241, 1
  %v6244 = vsel %vm619, %v6239, %v6243
  %v6246 = vshrl.u32 %v5892, 16
  %v6248 = vshll.u32 %v5892, 16
  %v6250 = vrot.slane %v6248, 1
  %v6251 = vor.u32 %v6246, %v6250
  %v6253 = vshll.u32 %v5893, 16
  %v6255 = vrot.slane %v6253, 1
  %v6256 = vsel %vm619, %v6251, %v6255
  %v6258 = vshrl.u32 %v5894, 16
  %v6260 = vshll.u32 %v5894, 16
  %v6262 = vrot.slane %v6260, 1
  %v6263 = vor.u32 %v6258, %v6262
  %v6265 = vshll.u32 %v5895, 16
  %v6267 = vrot.slane %v6265, 1
  %v6268 = vsel %vm619, %v6263, %v6267
  %v6270 = vshrl.u32 %v5896, 16
  %v6272 = vshll.u32 %v5896, 16
  %v6274 = vrot.slane %v6272, 1
  %v6275 = vor.u32 %v6270, %v6274
  %v6277 = vshll.u32 %v5897, 16
  %v6279 = vrot.slane %v6277, 1
  %v6280 = vsel %vm619, %v6275, %v6279
  %v6282 = vshrl.u32 %v5898, 16
  %v6284 = vshll.u32 %v5898, 16
  %v6286 = vrot.slane %v6284, 1
  %v6287 = vor.u32 %v6282, %v6286
  %v6289 = vshll.u32 %v5899, 16
  %v6291 = vrot.slane %v6289, 1
  %v6292 = vsel %vm619, %v6287, %v6291
  %6293 = vrot.lane.b32.xlu0 %v5920, 4
  %v6294 = vpop.permute.xlu0 %6293
  %6295 = vrot.lane.b32.xlu0 %v5932, 4
  %v6296 = vpop.permute.xlu0 %6295
  %6297 = vrot.lane.b32.xlu0 %v5944, 4
  %v6298 = vpop.permute.xlu0 %6297
  %6299 = vrot.lane.b32.xlu0 %v5956, 4
  %v6300 = vpop.permute.xlu0 %6299
  %6301 = vrot.lane.b32.xlu0 %v5968, 4
  %v6302 = vpop.permute.xlu0 %6301
  %6303 = vrot.lane.b32.xlu0 %v5980, 4
  %v6304 = vpop.permute.xlu0 %6303
  %6305 = vrot.lane.b32.xlu0 %v5992, 4
  %v6306 = vpop.permute.xlu0 %6305
  %6307 = vrot.lane.b32.xlu0 %v6004, 4
  %v6308 = vpop.permute.xlu0 %6307
  %6309 = vrot.lane.b32.xlu0 %v6016, 4
  %v6310 = vpop.permute.xlu0 %6309
  %6311 = vrot.lane.b32.xlu0 %v6028, 4
  %v6312 = vpop.permute.xlu0 %6311
  %6313 = vrot.lane.b32.xlu0 %v6040, 4
  %v6314 = vpop.permute.xlu0 %6313
  %6315 = vrot.lane.b32.xlu0 %v6052, 4
  %v6316 = vpop.permute.xlu0 %6315
  %6317 = vrot.lane.b32.xlu0 %v6064, 4
  %v6318 = vpop.permute.xlu0 %6317
  %6319 = vrot.lane.b32.xlu0 %v6076, 4
  %v6320 = vpop.permute.xlu0 %6319
  %6321 = vrot.lane.b32.xlu0 %v6088, 4
  %v6322 = vpop.permute.xlu0 %6321
  %6323 = vrot.lane.b32.xlu0 %v6100, 4
  %v6324 = vpop.permute.xlu0 %6323
  %6325 = vrot.lane.b32.xlu0 %v6112, 4
  %v6326 = vpop.permute.xlu0 %6325
  %6327 = vrot.lane.b32.xlu0 %v6124, 4
  %v6328 = vpop.permute.xlu0 %6327
  %6329 = vrot.lane.b32.xlu0 %v6136, 4
  %v6330 = vpop.permute.xlu0 %6329
  %6331 = vrot.lane.b32.xlu0 %v6148, 4
  %v6332 = vpop.permute.xlu0 %6331
  %6333 = vrot.lane.b32.xlu0 %v6160, 4
  %v6334 = vpop.permute.xlu0 %6333
  %6335 = vrot.lane.b32.xlu0 %v6172, 4
  %v6336 = vpop.permute.xlu0 %6335
  %6337 = vrot.lane.b32.xlu0 %v6184, 4
  %v6338 = vpop.permute.xlu0 %6337
  %6339 = vrot.lane.b32.xlu0 %v6196, 4
  %v6340 = vpop.permute.xlu0 %6339
  %6341 = vrot.lane.b32.xlu0 %v6208, 4
  %v6342 = vpop.permute.xlu0 %6341
  %6343 = vrot.lane.b32.xlu0 %v6220, 4
  %v6344 = vpop.permute.xlu0 %6343
  %6345 = vrot.lane.b32.xlu0 %v6232, 4
  %v6346 = vpop.permute.xlu0 %6345
  %6347 = vrot.lane.b32.xlu0 %v6244, 4
  %v6348 = vpop.permute.xlu0 %6347
  %6349 = vrot.lane.b32.xlu0 %v6256, 4
  %v6350 = vpop.permute.xlu0 %6349
  %6351 = vrot.lane.b32.xlu0 %v6268, 4
  %v6352 = vpop.permute.xlu0 %6351
  %6353 = vrot.lane.b32.xlu0 %v6280, 4
  %v6354 = vpop.permute.xlu0 %6353
  %6355 = vrot.lane.b32.xlu0 %v6292, 4
  %v6356 = vpop.permute.xlu0 %6355
  %v6421 = vrot.slane %v5832, 1
  %v6422 = vrot.slane %v5833, 1
  %v6423 = vsel %vm1304, %v6421, %v6422
  %v6424 = vrot.slane %v5834, 1
  %v6425 = vrot.slane %v5835, 1
  %v6426 = vsel %vm1304, %v6424, %v6425
  %v6427 = vrot.slane %v5836, 1
  %v6428 = vrot.slane %v5837, 1
  %v6429 = vsel %vm1304, %v6427, %v6428
  %v6430 = vrot.slane %v5838, 1
  %v6431 = vrot.slane %v5839, 1
  %v6432 = vsel %vm1304, %v6430, %v6431
  %v6433 = vrot.slane %v5840, 1
  %v6434 = vrot.slane %v5841, 1
  %v6435 = vsel %vm1304, %v6433, %v6434
  %v6436 = vrot.slane %v5842, 1
  %v6437 = vrot.slane %v5843, 1
  %v6438 = vsel %vm1304, %v6436, %v6437
  %v6439 = vrot.slane %v5844, 1
  %v6440 = vrot.slane %v5845, 1
  %v6441 = vsel %vm1304, %v6439, %v6440
  %v6442 = vrot.slane %v5846, 1
  %v6443 = vrot.slane %v5847, 1
  %v6444 = vsel %vm1304, %v6442, %v6443
  %v6445 = vrot.slane %v5848, 1
  %v6446 = vrot.slane %v5849, 1
  %v6447 = vsel %vm1304, %v6445, %v6446
  %v6448 = vrot.slane %v5850, 1
  %v6449 = vrot.slane %v5851, 1
  %v6450 = vsel %vm1304, %v6448, %v6449
  %v6451 = vrot.slane %v5852, 1
  %v6452 = vrot.slane %v5853, 1
  %v6453 = vsel %vm1304, %v6451, %v6452
  %v6454 = vrot.slane %v5854, 1
  %v6455 = vrot.slane %v5855, 1
  %v6456 = vsel %vm1304, %v6454, %v6455
  %v6457 = vrot.slane %v5856, 1
  %v6458 = vrot.slane %v5857, 1
  %v6459 = vsel %vm1304, %v6457, %v6458
  %v6460 = vrot.slane %v5858, 1
  %v6461 = vrot.slane %v5859, 1
  %v6462 = vsel %vm1304, %v6460, %v6461
  %v6463 = vrot.slane %v5860, 1
  %v6464 = vrot.slane %v5861, 1
  %v6465 = vsel %vm1304, %v6463, %v6464
  %v6466 = vrot.slane %v5862, 1
  %v6467 = vrot.slane %v5863, 1
  %v6468 = vsel %vm1304, %v6466, %v6467
  %v6469 = vrot.slane %v5868, 1
  %v6470 = vrot.slane %v5869, 1
  %v6471 = vsel %vm1304, %v6469, %v6470
  %v6472 = vrot.slane %v5870, 1
  %v6473 = vrot.slane %v5871, 1
  %v6474 = vsel %vm1304, %v6472, %v6473
  %v6475 = vrot.slane %v5872, 1
  %v6476 = vrot.slane %v5873, 1
  %v6477 = vsel %vm1304, %v6475, %v6476
  %v6478 = vrot.slane %v5874, 1
  %v6479 = vrot.slane %v5875, 1
  %v6480 = vsel %vm1304, %v6478, %v6479
  %v6481 = vrot.slane %v5876, 1
  %v6482 = vrot.slane %v5877, 1
  %v6483 = vsel %vm1304, %v6481, %v6482
  %v6484 = vrot.slane %v5878, 1
  %v6485 = vrot.slane %v5879, 1
  %v6486 = vsel %vm1304, %v6484, %v6485
  %v6487 = vrot.slane %v5880, 1
  %v6488 = vrot.slane %v5881, 1
  %v6489 = vsel %vm1304, %v6487, %v6488
  %v6490 = vrot.slane %v5882, 1
  %v6491 = vrot.slane %v5883, 1
  %v6492 = vsel %vm1304, %v6490, %v6491
  %v6493 = vrot.slane %v5884, 1
  %v6494 = vrot.slane %v5885, 1
  %v6495 = vsel %vm1304, %v6493, %v6494
  %v6496 = vrot.slane %v5886, 1
  %v6497 = vrot.slane %v5887, 1
  %v6498 = vsel %vm1304, %v6496, %v6497
  %v6499 = vrot.slane %v5888, 1
  %v6500 = vrot.slane %v5889, 1
  %v6501 = vsel %vm1304, %v6499, %v6500
  %v6502 = vrot.slane %v5890, 1
  %v6503 = vrot.slane %v5891, 1
  %v6504 = vsel %vm1304, %v6502, %v6503
  %v6505 = vrot.slane %v5892, 1
  %v6506 = vrot.slane %v5893, 1
  %v6507 = vsel %vm1304, %v6505, %v6506
  %v6508 = vrot.slane %v5894, 1
  %v6509 = vrot.slane %v5895, 1
  %v6510 = vsel %vm1304, %v6508, %v6509
  %v6511 = vrot.slane %v5896, 1
  %v6512 = vrot.slane %v5897, 1
  %v6513 = vsel %vm1304, %v6511, %v6512
  %v6514 = vrot.slane %v5898, 1
  %v6515 = vrot.slane %v5899, 1
  %v6516 = vsel %vm1304, %v6514, %v6515
  %6517 = vrot.lane.b32.xlu0 %v6423, 8
  %v6518 = vpop.permute.xlu0 %6517
  %6519 = vrot.lane.b32.xlu0 %v6426, 8
  %v6520 = vpop.permute.xlu0 %6519
  %6521 = vrot.lane.b32.xlu0 %v6429, 8
  %v6522 = vpop.permute.xlu0 %6521
  %6523 = vrot.lane.b32.xlu0 %v6432, 8
  %v6524 = vpop.permute.xlu0 %6523
  %6525 = vrot.lane.b32.xlu0 %v6435, 8
  %v6526 = vpop.permute.xlu0 %6525
  %6527 = vrot.lane.b32.xlu0 %v6438, 8
  %v6528 = vpop.permute.xlu0 %6527
  %6529 = vrot.lane.b32.xlu0 %v6441, 8
  %v6530 = vpop.permute.xlu0 %6529
  %6531 = vrot.lane.b32.xlu0 %v6444, 8
  %v6532 = vpop.permute.xlu0 %6531
  %6533 = vrot.lane.b32.xlu0 %v6447, 8
  %v6534 = vpop.permute.xlu0 %6533
  %6535 = vrot.lane.b32.xlu0 %v6450, 8
  %v6536 = vpop.permute.xlu0 %6535
  %6537 = vrot.lane.b32.xlu0 %v6453, 8
  %v6538 = vpop.permute.xlu0 %6537
  %6539 = vrot.lane.b32.xlu0 %v6456, 8
  %v6540 = vpop.permute.xlu0 %6539
  %6541 = vrot.lane.b32.xlu0 %v6459, 8
  %v6542 = vpop.permute.xlu0 %6541
  %6543 = vrot.lane.b32.xlu0 %v6462, 8
  %v6544 = vpop.permute.xlu0 %6543
  %6545 = vrot.lane.b32.xlu0 %v6465, 8
  %v6546 = vpop.permute.xlu0 %6545
  %6547 = vrot.lane.b32.xlu0 %v6468, 8
  %v6548 = vpop.permute.xlu0 %6547
  %6549 = vrot.lane.b32.xlu0 %v6471, 8
  %v6550 = vpop.permute.xlu0 %6549
  %6551 = vrot.lane.b32.xlu0 %v6474, 8
  %v6552 = vpop.permute.xlu0 %6551
  %6553 = vrot.lane.b32.xlu0 %v6477, 8
  %v6554 = vpop.permute.xlu0 %6553
  %6555 = vrot.lane.b32.xlu0 %v6480, 8
  %v6556 = vpop.permute.xlu0 %6555
  %6557 = vrot.lane.b32.xlu0 %v6483, 8
  %v6558 = vpop.permute.xlu0 %6557
  %6559 = vrot.lane.b32.xlu0 %v6486, 8
  %v6560 = vpop.permute.xlu0 %6559
  %6561 = vrot.lane.b32.xlu0 %v6489, 8
  %v6562 = vpop.permute.xlu0 %6561
  %6563 = vrot.lane.b32.xlu0 %v6492, 8
  %v6564 = vpop.permute.xlu0 %6563
  %6565 = vrot.lane.b32.xlu0 %v6495, 8
  %v6566 = vpop.permute.xlu0 %6565
  %6567 = vrot.lane.b32.xlu0 %v6498, 8
  %v6568 = vpop.permute.xlu0 %6567
  %6569 = vrot.lane.b32.xlu0 %v6501, 8
  %v6570 = vpop.permute.xlu0 %6569
  %6571 = vrot.lane.b32.xlu0 %v6504, 8
  %v6572 = vpop.permute.xlu0 %6571
  %6573 = vrot.lane.b32.xlu0 %v6507, 8
  %v6574 = vpop.permute.xlu0 %6573
  %6575 = vrot.lane.b32.xlu0 %v6510, 8
  %v6576 = vpop.permute.xlu0 %6575
  %6577 = vrot.lane.b32.xlu0 %v6513, 8
  %v6578 = vpop.permute.xlu0 %6577
  %6579 = vrot.lane.b32.xlu0 %v6516, 8
  %v6580 = vpop.permute.xlu0 %6579
  %6583 = vrot.lane.b32.xlu0 %v5834, 12
  %v6584 = vpop.permute.xlu0 %6583
  %6585 = vrot.lane.b32.xlu0 %v5836, 12
  %v6586 = vpop.permute.xlu0 %6585
  %6587 = vrot.lane.b32.xlu0 %v5838, 12
  %v6588 = vpop.permute.xlu0 %6587
  %6589 = vrot.lane.b32.xlu0 %v5840, 12
  %v6590 = vpop.permute.xlu0 %6589
  %6591 = vrot.lane.b32.xlu0 %v5842, 12
  %v6592 = vpop.permute.xlu0 %6591
  %6593 = vrot.lane.b32.xlu0 %v5844, 12
  %v6594 = vpop.permute.xlu0 %6593
  %6595 = vrot.lane.b32.xlu0 %v5846, 12
  %v6596 = vpop.permute.xlu0 %6595
  %6597 = vrot.lane.b32.xlu0 %v5848, 12
  %v6598 = vpop.permute.xlu0 %6597
  %6599 = vrot.lane.b32.xlu0 %v5850, 12
  %v6600 = vpop.permute.xlu0 %6599
  %6601 = vrot.lane.b32.xlu0 %v5852, 12
  %v6602 = vpop.permute.xlu0 %6601
  %6603 = vrot.lane.b32.xlu0 %v5854, 12
  %v6604 = vpop.permute.xlu0 %6603
  %6605 = vrot.lane.b32.xlu0 %v5856, 12
  %v6606 = vpop.permute.xlu0 %6605
  %6607 = vrot.lane.b32.xlu0 %v5858, 12
  %v6608 = vpop.permute.xlu0 %6607
  %6609 = vrot.lane.b32.xlu0 %v5860, 12
  %v6610 = vpop.permute.xlu0 %6609
  %6611 = vrot.lane.b32.xlu0 %v5862, 12
  %v6612 = vpop.permute.xlu0 %6611
  %6613 = vrot.lane.b32.xlu0 %v5864, 12
  %v6614 = vpop.permute.xlu0 %6613
  %6615 = vrot.lane.b32.xlu0 %v5870, 12
  %v6616 = vpop.permute.xlu0 %6615
  %6617 = vrot.lane.b32.xlu0 %v5872, 12
  %v6618 = vpop.permute.xlu0 %6617
  %6619 = vrot.lane.b32.xlu0 %v5874, 12
  %v6620 = vpop.permute.xlu0 %6619
  %6621 = vrot.lane.b32.xlu0 %v5876, 12
  %v6622 = vpop.permute.xlu0 %6621
  %6623 = vrot.lane.b32.xlu0 %v5878, 12
  %v6624 = vpop.permute.xlu0 %6623
  %6625 = vrot.lane.b32.xlu0 %v5880, 12
  %v6626 = vpop.permute.xlu0 %6625
  %6627 = vrot.lane.b32.xlu0 %v5882, 12
  %v6628 = vpop.permute.xlu0 %6627
  %6629 = vrot.lane.b32.xlu0 %v5884, 12
  %v6630 = vpop.permute.xlu0 %6629
  %6631 = vrot.lane.b32.xlu0 %v5886, 12
  %v6632 = vpop.permute.xlu0 %6631
  %6633 = vrot.lane.b32.xlu0 %v5888, 12
  %v6634 = vpop.permute.xlu0 %6633
  %6635 = vrot.lane.b32.xlu0 %v5890, 12
  %v6636 = vpop.permute.xlu0 %6635
  %6637 = vrot.lane.b32.xlu0 %v5892, 12
  %v6638 = vpop.permute.xlu0 %6637
  %6639 = vrot.lane.b32.xlu0 %v5894, 12
  %v6640 = vpop.permute.xlu0 %6639
  %6641 = vrot.lane.b32.xlu0 %v5896, 12
  %v6642 = vpop.permute.xlu0 %6641
  %6643 = vrot.lane.b32.xlu0 %v5898, 12
  %v6644 = vpop.permute.xlu0 %6643
  %6645 = vrot.lane.b32.xlu0 %v5900, 12
  %v6646 = vpop.permute.xlu0 %6645
  %v6648 = vshrl.u32 %v5864, 16
  %v6650 = vshll.u32 %v5864, 16
  %v6652 = vrot.slane %v6650, 1
  %v6653 = vor.u32 %v6648, %v6652
  %v6655 = vshll.u32 %v5865, 16
  %v6657 = vrot.slane %v6655, 1
  %v6658 = vsel %vm619, %v6653, %v6657
  %v6660 = vshrl.u32 %v5900, 16
  %v6662 = vshll.u32 %v5900, 16
  %v6664 = vrot.slane %v6662, 1
  %v6665 = vor.u32 %v6660, %v6664
  %v6667 = vshll.u32 %v5901, 16
  %v6669 = vrot.slane %v6667, 1
  %v6670 = vsel %vm619, %v6665, %v6669
  %6671 = vrot.lane.b32.xlu0 %v5932, 16
  %v6672 = vpop.permute.xlu0 %6671
  %6673 = vrot.lane.b32.xlu0 %v5944, 16
  %v6674 = vpop.permute.xlu0 %6673
  %6675 = vrot.lane.b32.xlu0 %v5956, 16
  %v6676 = vpop.permute.xlu0 %6675
  %6677 = vrot.lane.b32.xlu0 %v5968, 16
  %v6678 = vpop.permute.xlu0 %6677
  %6679 = vrot.lane.b32.xlu0 %v5980, 16
  %v6680 = vpop.permute.xlu0 %6679
  %6681 = vrot.lane.b32.xlu0 %v5992, 16
  %v6682 = vpop.permute.xlu0 %6681
  %6683 = vrot.lane.b32.xlu0 %v6004, 16
  %v6684 = vpop.permute.xlu0 %6683
  %6685 = vrot.lane.b32.xlu0 %v6016, 16
  %v6686 = vpop.permute.xlu0 %6685
  %6687 = vrot.lane.b32.xlu0 %v6028, 16
  %v6688 = vpop.permute.xlu0 %6687
  %6689 = vrot.lane.b32.xlu0 %v6040, 16
  %v6690 = vpop.permute.xlu0 %6689
  %6691 = vrot.lane.b32.xlu0 %v6052, 16
  %v6692 = vpop.permute.xlu0 %6691
  %6693 = vrot.lane.b32.xlu0 %v6064, 16
  %v6694 = vpop.permute.xlu0 %6693
  %6695 = vrot.lane.b32.xlu0 %v6076, 16
  %v6696 = vpop.permute.xlu0 %6695
  %6697 = vrot.lane.b32.xlu0 %v6088, 16
  %v6698 = vpop.permute.xlu0 %6697
  %6699 = vrot.lane.b32.xlu0 %v6100, 16
  %v6700 = vpop.permute.xlu0 %6699
  %6701 = vrot.lane.b32.xlu0 %v6658, 16
  %v6702 = vpop.permute.xlu0 %6701
  %6703 = vrot.lane.b32.xlu0 %v6124, 16
  %v6704 = vpop.permute.xlu0 %6703
  %6705 = vrot.lane.b32.xlu0 %v6136, 16
  %v6706 = vpop.permute.xlu0 %6705
  %6707 = vrot.lane.b32.xlu0 %v6148, 16
  %v6708 = vpop.permute.xlu0 %6707
  %6709 = vrot.lane.b32.xlu0 %v6160, 16
  %v6710 = vpop.permute.xlu0 %6709
  %6711 = vrot.lane.b32.xlu0 %v6172, 16
  %v6712 = vpop.permute.xlu0 %6711
  %6713 = vrot.lane.b32.xlu0 %v6184, 16
  %v6714 = vpop.permute.xlu0 %6713
  %6715 = vrot.lane.b32.xlu0 %v6196, 16
  %v6716 = vpop.permute.xlu0 %6715
  %6717 = vrot.lane.b32.xlu0 %v6208, 16
  %v6718 = vpop.permute.xlu0 %6717
  %6719 = vrot.lane.b32.xlu0 %v6220, 16
  %v6720 = vpop.permute.xlu0 %6719
  %6721 = vrot.lane.b32.xlu0 %v6232, 16
  %v6722 = vpop.permute.xlu0 %6721
  %6723 = vrot.lane.b32.xlu0 %v6244, 16
  %v6724 = vpop.permute.xlu0 %6723
  %6725 = vrot.lane.b32.xlu0 %v6256, 16
  %v6726 = vpop.permute.xlu0 %6725
  %6727 = vrot.lane.b32.xlu0 %v6268, 16
  %v6728 = vpop.permute.xlu0 %6727
  %6729 = vrot.lane.b32.xlu0 %v6280, 16
  %v6730 = vpop.permute.xlu0 %6729
  %6731 = vrot.lane.b32.xlu0 %v6292, 16
  %v6732 = vpop.permute.xlu0 %6731
  %6733 = vrot.lane.b32.xlu0 %v6670, 16
  %v6734 = vpop.permute.xlu0 %6733
  %v6737 = vrot.slane %v5864, 1
  %v6738 = vrot.slane %v5865, 1
  %v6739 = vsel %vm1304, %v6737, %v6738
  %v6740 = vrot.slane %v5900, 1
  %v6741 = vrot.slane %v5901, 1
  %v6742 = vsel %vm1304, %v6740, %v6741
  %6743 = vrot.lane.b32.xlu0 %v6426, 20
  %v6744 = vpop.permute.xlu0 %6743
  %6745 = vrot.lane.b32.xlu0 %v6429, 20
  %v6746 = vpop.permute.xlu0 %6745
  %6747 = vrot.lane.b32.xlu0 %v6432, 20
  %v6748 = vpop.permute.xlu0 %6747
  %6749 = vrot.lane.b32.xlu0 %v6435, 20
  %v6750 = vpop.permute.xlu0 %6749
  %6751 = vrot.lane.b32.xlu0 %v6438, 20
  %v6752 = vpop.permute.xlu0 %6751
  %6753 = vrot.lane.b32.xlu0 %v6441, 20
  %v6754 = vpop.permute.xlu0 %6753
  %6755 = vrot.lane.b32.xlu0 %v6444, 20
  %v6756 = vpop.permute.xlu0 %6755
  %6757 = vrot.lane.b32.xlu0 %v6447, 20
  %v6758 = vpop.permute.xlu0 %6757
  %6759 = vrot.lane.b32.xlu0 %v6450, 20
  %v6760 = vpop.permute.xlu0 %6759
  %6761 = vrot.lane.b32.xlu0 %v6453, 20
  %v6762 = vpop.permute.xlu0 %6761
  %6763 = vrot.lane.b32.xlu0 %v6456, 20
  %v6764 = vpop.permute.xlu0 %6763
  %6765 = vrot.lane.b32.xlu0 %v6459, 20
  %v6766 = vpop.permute.xlu0 %6765
  %6767 = vrot.lane.b32.xlu0 %v6462, 20
  %v6768 = vpop.permute.xlu0 %6767
  %6769 = vrot.lane.b32.xlu0 %v6465, 20
  %v6770 = vpop.permute.xlu0 %6769
  %6771 = vrot.lane.b32.xlu0 %v6468, 20
  %v6772 = vpop.permute.xlu0 %6771
  %6773 = vrot.lane.b32.xlu0 %v6739, 20
  %v6774 = vpop.permute.xlu0 %6773
  %6775 = vrot.lane.b32.xlu0 %v6474, 20
  %v6776 = vpop.permute.xlu0 %6775
  %6777 = vrot.lane.b32.xlu0 %v6477, 20
  %v6778 = vpop.permute.xlu0 %6777
  %6779 = vrot.lane.b32.xlu0 %v6480, 20
  %v6780 = vpop.permute.xlu0 %6779
  %6781 = vrot.lane.b32.xlu0 %v6483, 20
  %v6782 = vpop.permute.xlu0 %6781
  %6783 = vrot.lane.b32.xlu0 %v6486, 20
  %v6784 = vpop.permute.xlu0 %6783
  %6785 = vrot.lane.b32.xlu0 %v6489, 20
  %v6786 = vpop.permute.xlu0 %6785
  %6787 = vrot.lane.b32.xlu0 %v6492, 20
  %v6788 = vpop.permute.xlu0 %6787
  %6789 = vrot.lane.b32.xlu0 %v6495, 20
  %v6790 = vpop.permute.xlu0 %6789
  %6791 = vrot.lane.b32.xlu0 %v6498, 20
  %v6792 = vpop.permute.xlu0 %6791
  %6793 = vrot.lane.b32.xlu0 %v6501, 20
  %v6794 = vpop.permute.xlu0 %6793
  %6795 = vrot.lane.b32.xlu0 %v6504, 20
  %v6796 = vpop.permute.xlu0 %6795
  %6797 = vrot.lane.b32.xlu0 %v6507, 20
  %v6798 = vpop.permute.xlu0 %6797
  %6799 = vrot.lane.b32.xlu0 %v6510, 20
  %v6800 = vpop.permute.xlu0 %6799
  %6801 = vrot.lane.b32.xlu0 %v6513, 20
  %v6802 = vpop.permute.xlu0 %6801
  %6803 = vrot.lane.b32.xlu0 %v6516, 20
  %v6804 = vpop.permute.xlu0 %6803
  %6805 = vrot.lane.b32.xlu0 %v6742, 20
  %v6806 = vpop.permute.xlu0 %6805
  %6809 = vrot.lane.b32.xlu0 %v5836, 24
  %v6810 = vpop.permute.xlu0 %6809
  %6811 = vrot.lane.b32.xlu0 %v5838, 24
  %v6812 = vpop.permute.xlu0 %6811
  %6813 = vrot.lane.b32.xlu0 %v5840, 24
  %v6814 = vpop.permute.xlu0 %6813
  %6815 = vrot.lane.b32.xlu0 %v5842, 24
  %v6816 = vpop.permute.xlu0 %6815
  %6817 = vrot.lane.b32.xlu0 %v5844, 24
  %v6818 = vpop.permute.xlu0 %6817
  %6819 = vrot.lane.b32.xlu0 %v5846, 24
  %v6820 = vpop.permute.xlu0 %6819
  %6821 = vrot.lane.b32.xlu0 %v5848, 24
  %v6822 = vpop.permute.xlu0 %6821
  %6823 = vrot.lane.b32.xlu0 %v5850, 24
  %v6824 = vpop.permute.xlu0 %6823
  %6825 = vrot.lane.b32.xlu0 %v5852, 24
  %v6826 = vpop.permute.xlu0 %6825
  %6827 = vrot.lane.b32.xlu0 %v5854, 24
  %v6828 = vpop.permute.xlu0 %6827
  %6829 = vrot.lane.b32.xlu0 %v5856, 24
  %v6830 = vpop.permute.xlu0 %6829
  %6831 = vrot.lane.b32.xlu0 %v5858, 24
  %v6832 = vpop.permute.xlu0 %6831
  %6833 = vrot.lane.b32.xlu0 %v5860, 24
  %v6834 = vpop.permute.xlu0 %6833
  %6835 = vrot.lane.b32.xlu0 %v5862, 24
  %v6836 = vpop.permute.xlu0 %6835
  %6837 = vrot.lane.b32.xlu0 %v5864, 24
  %v6838 = vpop.permute.xlu0 %6837
  %6839 = vrot.lane.b32.xlu0 %v5866, 24
  %v6840 = vpop.permute.xlu0 %6839
  %6841 = vrot.lane.b32.xlu0 %v5872, 24
  %v6842 = vpop.permute.xlu0 %6841
  %6843 = vrot.lane.b32.xlu0 %v5874, 24
  %v6844 = vpop.permute.xlu0 %6843
  %6845 = vrot.lane.b32.xlu0 %v5876, 24
  %v6846 = vpop.permute.xlu0 %6845
  %6847 = vrot.lane.b32.xlu0 %v5878, 24
  %v6848 = vpop.permute.xlu0 %6847
  %6849 = vrot.lane.b32.xlu0 %v5880, 24
  %v6850 = vpop.permute.xlu0 %6849
  %6851 = vrot.lane.b32.xlu0 %v5882, 24
  %v6852 = vpop.permute.xlu0 %6851
  %6853 = vrot.lane.b32.xlu0 %v5884, 24
  %v6854 = vpop.permute.xlu0 %6853
  %6855 = vrot.lane.b32.xlu0 %v5886, 24
  %v6856 = vpop.permute.xlu0 %6855
  %6857 = vrot.lane.b32.xlu0 %v5888, 24
  %v6858 = vpop.permute.xlu0 %6857
  %6859 = vrot.lane.b32.xlu0 %v5890, 24
  %v6860 = vpop.permute.xlu0 %6859
  %6861 = vrot.lane.b32.xlu0 %v5892, 24
  %v6862 = vpop.permute.xlu0 %6861
  %6863 = vrot.lane.b32.xlu0 %v5894, 24
  %v6864 = vpop.permute.xlu0 %6863
  %6865 = vrot.lane.b32.xlu0 %v5896, 24
  %v6866 = vpop.permute.xlu0 %6865
  %6867 = vrot.lane.b32.xlu0 %v5898, 24
  %v6868 = vpop.permute.xlu0 %6867
  %6869 = vrot.lane.b32.xlu0 %v5900, 24
  %v6870 = vpop.permute.xlu0 %6869
  %6871 = vrot.lane.b32.xlu0 %v5902, 24
  %v6872 = vpop.permute.xlu0 %6871
  %v6874 = vshrl.u32 %v5866, 16
  %v6876 = vshll.u32 %v5866, 16
  %v6878 = vrot.slane %v6876, 1
  %v6879 = vor.u32 %v6874, %v6878
  %v6881 = vshll.u32 %v5867, 16
  %v6883 = vrot.slane %v6881, 1
  %v6884 = vsel %vm619, %v6879, %v6883
  %v6886 = vshrl.u32 %v5902, 16
  %v6888 = vshll.u32 %v5902, 16
  %v6890 = vrot.slane %v6888, 1
  %v6891 = vor.u32 %v6886, %v6890
  %v6893 = vshll.u32 %v5903, 16
  %v6895 = vrot.slane %v6893, 1
  %v6896 = vsel %vm619, %v6891, %v6895
  %6897 = vrot.lane.b32.xlu0 %v5944, 28
  %v6898 = vpop.permute.xlu0 %6897
  %6899 = vrot.lane.b32.xlu0 %v5956, 28
  %v6900 = vpop.permute.xlu0 %6899
  %6901 = vrot.lane.b32.xlu0 %v5968, 28
  %v6902 = vpop.permute.xlu0 %6901
  %6903 = vrot.lane.b32.xlu0 %v5980, 28
  %v6904 = vpop.permute.xlu0 %6903
  %6905 = vrot.lane.b32.xlu0 %v5992, 28
  %v6906 = vpop.permute.xlu0 %6905
  %6907 = vrot.lane.b32.xlu0 %v6004, 28
  %v6908 = vpop.permute.xlu0 %6907
  %6909 = vrot.lane.b32.xlu0 %v6016, 28
  %v6910 = vpop.permute.xlu0 %6909
  %6911 = vrot.lane.b32.xlu0 %v6028, 28
  %v6912 = vpop.permute.xlu0 %6911
  %6913 = vrot.lane.b32.xlu0 %v6040, 28
  %v6914 = vpop.permute.xlu0 %6913
  %6915 = vrot.lane.b32.xlu0 %v6052, 28
  %v6916 = vpop.permute.xlu0 %6915
  %6917 = vrot.lane.b32.xlu0 %v6064, 28
  %v6918 = vpop.permute.xlu0 %6917
  %6919 = vrot.lane.b32.xlu0 %v6076, 28
  %v6920 = vpop.permute.xlu0 %6919
  %6921 = vrot.lane.b32.xlu0 %v6088, 28
  %v6922 = vpop.permute.xlu0 %6921
  %6923 = vrot.lane.b32.xlu0 %v6100, 28
  %v6924 = vpop.permute.xlu0 %6923
  %6925 = vrot.lane.b32.xlu0 %v6658, 28
  %v6926 = vpop.permute.xlu0 %6925
  %6927 = vrot.lane.b32.xlu0 %v6884, 28
  %v6928 = vpop.permute.xlu0 %6927
  %6929 = vrot.lane.b32.xlu0 %v6136, 28
  %v6930 = vpop.permute.xlu0 %6929
  %6931 = vrot.lane.b32.xlu0 %v6148, 28
  %v6932 = vpop.permute.xlu0 %6931
  %6933 = vrot.lane.b32.xlu0 %v6160, 28
  %v6934 = vpop.permute.xlu0 %6933
  %6935 = vrot.lane.b32.xlu0 %v6172, 28
  %v6936 = vpop.permute.xlu0 %6935
  %6937 = vrot.lane.b32.xlu0 %v6184, 28
  %v6938 = vpop.permute.xlu0 %6937
  %6939 = vrot.lane.b32.xlu0 %v6196, 28
  %v6940 = vpop.permute.xlu0 %6939
  %6941 = vrot.lane.b32.xlu0 %v6208, 28
  %v6942 = vpop.permute.xlu0 %6941
  %6943 = vrot.lane.b32.xlu0 %v6220, 28
  %v6944 = vpop.permute.xlu0 %6943
  %6945 = vrot.lane.b32.xlu0 %v6232, 28
  %v6946 = vpop.permute.xlu0 %6945
  %6947 = vrot.lane.b32.xlu0 %v6244, 28
  %v6948 = vpop.permute.xlu0 %6947
  %6949 = vrot.lane.b32.xlu0 %v6256, 28
  %v6950 = vpop.permute.xlu0 %6949
  %6951 = vrot.lane.b32.xlu0 %v6268, 28
  %v6952 = vpop.permute.xlu0 %6951
  %6953 = vrot.lane.b32.xlu0 %v6280, 28
  %v6954 = vpop.permute.xlu0 %6953
  %6955 = vrot.lane.b32.xlu0 %v6292, 28
  %v6956 = vpop.permute.xlu0 %6955
  %6957 = vrot.lane.b32.xlu0 %v6670, 28
  %v6958 = vpop.permute.xlu0 %6957
  %6959 = vrot.lane.b32.xlu0 %v6896, 28
  %v6960 = vpop.permute.xlu0 %6959
  %v6963 = vrot.slane %v5866, 1
  %v6964 = vrot.slane %v5867, 1
  %v6965 = vsel %vm1304, %v6963, %v6964
  %v6966 = vrot.slane %v5902, 1
  %v6967 = vrot.slane %v5903, 1
  %v6968 = vsel %vm1304, %v6966, %v6967
  %6969 = vrot.lane.b32.xlu0 %v6429, 32
  %v6970 = vpop.permute.xlu0 %6969
  %6971 = vrot.lane.b32.xlu0 %v6432, 32
  %v6972 = vpop.permute.xlu0 %6971
  %6973 = vrot.lane.b32.xlu0 %v6435, 32
  %v6974 = vpop.permute.xlu0 %6973
  %6975 = vrot.lane.b32.xlu0 %v6438, 32
  %v6976 = vpop.permute.xlu0 %6975
  %6977 = vrot.lane.b32.xlu0 %v6441, 32
  %v6978 = vpop.permute.xlu0 %6977
  %6979 = vrot.lane.b32.xlu0 %v6444, 32
  %v6980 = vpop.permute.xlu0 %6979
  %6981 = vrot.lane.b32.xlu0 %v6447, 32
  %v6982 = vpop.permute.xlu0 %6981
  %6983 = vrot.lane.b32.xlu0 %v6450, 32
  %v6984 = vpop.permute.xlu0 %6983
  %6985 = vrot.lane.b32.xlu0 %v6453, 32
  %v6986 = vpop.permute.xlu0 %6985
  %6987 = vrot.lane.b32.xlu0 %v6456, 32
  %v6988 = vpop.permute.xlu0 %6987
  %6989 = vrot.lane.b32.xlu0 %v6459, 32
  %v6990 = vpop.permute.xlu0 %6989
  %6991 = vrot.lane.b32.xlu0 %v6462, 32
  %v6992 = vpop.permute.xlu0 %6991
  %6993 = vrot.lane.b32.xlu0 %v6465, 32
  %v6994 = vpop.permute.xlu0 %6993
  %6995 = vrot.lane.b32.xlu0 %v6468, 32
  %v6996 = vpop.permute.xlu0 %6995
  %6997 = vrot.lane.b32.xlu0 %v6739, 32
  %v6998 = vpop.permute.xlu0 %6997
  %6999 = vrot.lane.b32.xlu0 %v6965, 32
  %v7000 = vpop.permute.xlu0 %6999
  %7001 = vrot.lane.b32.xlu0 %v6477, 32
  %v7002 = vpop.permute.xlu0 %7001
  %7003 = vrot.lane.b32.xlu0 %v6480, 32
  %v7004 = vpop.permute.xlu0 %7003
  %7005 = vrot.lane.b32.xlu0 %v6483, 32
  %v7006 = vpop.permute.xlu0 %7005
  %7007 = vrot.lane.b32.xlu0 %v6486, 32
  %v7008 = vpop.permute.xlu0 %7007
  %7009 = vrot.lane.b32.xlu0 %v6489, 32
  %v7010 = vpop.permute.xlu0 %7009
  %7011 = vrot.lane.b32.xlu0 %v6492, 32
  %v7012 = vpop.permute.xlu0 %7011
  %7013 = vrot.lane.b32.xlu0 %v6495, 32
  %v7014 = vpop.permute.xlu0 %7013
  %7015 = vrot.lane.b32.xlu0 %v6498, 32
  %v7016 = vpop.permute.xlu0 %7015
  %7017 = vrot.lane.b32.xlu0 %v6501, 32
  %v7018 = vpop.permute.xlu0 %7017
  %7019 = vrot.lane.b32.xlu0 %v6504, 32
  %v7020 = vpop.permute.xlu0 %7019
  %7021 = vrot.lane.b32.xlu0 %v6507, 32
  %v7022 = vpop.permute.xlu0 %7021
  %7023 = vrot.lane.b32.xlu0 %v6510, 32
  %v7024 = vpop.permute.xlu0 %7023
  %7025 = vrot.lane.b32.xlu0 %v6513, 32
  %v7026 = vpop.permute.xlu0 %7025
  %7027 = vrot.lane.b32.xlu0 %v6516, 32
  %v7028 = vpop.permute.xlu0 %7027
  %7029 = vrot.lane.b32.xlu0 %v6742, 32
  %v7030 = vpop.permute.xlu0 %7029
  %7031 = vrot.lane.b32.xlu0 %v6968, 32
  %v7032 = vpop.permute.xlu0 %7031
  %v7034 = vsel %vm2537, %v5832, %v6294
  %v7036 = vsel %vm2537, %v5834, %v6296
  %v7038 = vsel %vm2537, %v5836, %v6298
  %v7040 = vsel %vm2537, %v5838, %v6300
  %v7042 = vsel %vm2537, %v5840, %v6302
  %v7044 = vsel %vm2537, %v5842, %v6304
  %v7046 = vsel %vm2537, %v5844, %v6306
  %v7048 = vsel %vm2537, %v5846, %v6308
  %v7050 = vsel %vm2537, %v5848, %v6310
  %v7052 = vsel %vm2537, %v5850, %v6312
  %v7054 = vsel %vm2537, %v5852, %v6314
  %v7056 = vsel %vm2537, %v5854, %v6316
  %v7058 = vsel %vm2537, %v5856, %v6318
  %v7060 = vsel %vm2537, %v5858, %v6320
  %v7062 = vsel %vm2537, %v5860, %v6322
  %v7064 = vsel %vm2537, %v5862, %v6324
  %v7066 = vsel %vm2537, %v5868, %v6326
  %v7068 = vsel %vm2537, %v5870, %v6328
  %v7070 = vsel %vm2537, %v5872, %v6330
  %v7072 = vsel %vm2537, %v5874, %v6332
  %v7074 = vsel %vm2537, %v5876, %v6334
  %v7076 = vsel %vm2537, %v5878, %v6336
  %v7078 = vsel %vm2537, %v5880, %v6338
  %v7080 = vsel %vm2537, %v5882, %v6340
  %v7082 = vsel %vm2537, %v5884, %v6342
  %v7084 = vsel %vm2537, %v5886, %v6344
  %v7086 = vsel %vm2537, %v5888, %v6346
  %v7088 = vsel %vm2537, %v5890, %v6348
  %v7090 = vsel %vm2537, %v5892, %v6350
  %v7092 = vsel %vm2537, %v5894, %v6352
  %v7094 = vsel %vm2537, %v5896, %v6354
  %v7096 = vsel %vm2537, %v5898, %v6356
  %v7098 = vsel %vm2718, %v7034, %v6518
  %v7100 = vsel %vm2718, %v7036, %v6520
  %v7102 = vsel %vm2718, %v7038, %v6522
  %v7104 = vsel %vm2718, %v7040, %v6524
  %v7106 = vsel %vm2718, %v7042, %v6526
  %v7108 = vsel %vm2718, %v7044, %v6528
  %v7110 = vsel %vm2718, %v7046, %v6530
  %v7112 = vsel %vm2718, %v7048, %v6532
  %v7114 = vsel %vm2718, %v7050, %v6534
  %v7116 = vsel %vm2718, %v7052, %v6536
  %v7118 = vsel %vm2718, %v7054, %v6538
  %v7120 = vsel %vm2718, %v7056, %v6540
  %v7122 = vsel %vm2718, %v7058, %v6542
  %v7124 = vsel %vm2718, %v7060, %v6544
  %v7126 = vsel %vm2718, %v7062, %v6546
  %v7128 = vsel %vm2718, %v7064, %v6548
  %v7130 = vsel %vm2718, %v7066, %v6550
  %v7132 = vsel %vm2718, %v7068, %v6552
  %v7134 = vsel %vm2718, %v7070, %v6554
  %v7136 = vsel %vm2718, %v7072, %v6556
  %v7138 = vsel %vm2718, %v7074, %v6558
  %v7140 = vsel %vm2718, %v7076, %v6560
  %v7142 = vsel %vm2718, %v7078, %v6562
  %v7144 = vsel %vm2718, %v7080, %v6564
  %v7146 = vsel %vm2718, %v7082, %v6566
  %v7148 = vsel %vm2718, %v7084, %v6568
  %v7150 = vsel %vm2718, %v7086, %v6570
  %v7152 = vsel %vm2718, %v7088, %v6572
  %v7154 = vsel %vm2718, %v7090, %v6574
  %v7156 = vsel %vm2718, %v7092, %v6576
  %v7158 = vsel %vm2718, %v7094, %v6578
  %v7160 = vsel %vm2718, %v7096, %v6580
  %v7162 = vsel %vm2863, %v7098, %v6584
  %v7164 = vsel %vm2863, %v7100, %v6586
  %v7166 = vsel %vm2863, %v7102, %v6588
  %v7168 = vsel %vm2863, %v7104, %v6590
  %v7170 = vsel %vm2863, %v7106, %v6592
  %v7172 = vsel %vm2863, %v7108, %v6594
  %v7174 = vsel %vm2863, %v7110, %v6596
  %v7176 = vsel %vm2863, %v7112, %v6598
  %v7178 = vsel %vm2863, %v7114, %v6600
  %v7180 = vsel %vm2863, %v7116, %v6602
  %v7182 = vsel %vm2863, %v7118, %v6604
  %v7184 = vsel %vm2863, %v7120, %v6606
  %v7186 = vsel %vm2863, %v7122, %v6608
  %v7188 = vsel %vm2863, %v7124, %v6610
  %v7190 = vsel %vm2863, %v7126, %v6612
  %v7192 = vsel %vm2863, %v7128, %v6614
  %v7194 = vsel %vm2863, %v7130, %v6616
  %v7196 = vsel %vm2863, %v7132, %v6618
  %v7198 = vsel %vm2863, %v7134, %v6620
  %v7200 = vsel %vm2863, %v7136, %v6622
  %v7202 = vsel %vm2863, %v7138, %v6624
  %v7204 = vsel %vm2863, %v7140, %v6626
  %v7206 = vsel %vm2863, %v7142, %v6628
  %v7208 = vsel %vm2863, %v7144, %v6630
  %v7210 = vsel %vm2863, %v7146, %v6632
  %v7212 = vsel %vm2863, %v7148, %v6634
  %v7214 = vsel %vm2863, %v7150, %v6636
  %v7216 = vsel %vm2863, %v7152, %v6638
  %v7218 = vsel %vm2863, %v7154, %v6640
  %v7220 = vsel %vm2863, %v7156, %v6642
  %v7222 = vsel %vm2863, %v7158, %v6644
  %v7224 = vsel %vm2863, %v7160, %v6646
  %v7226 = vsel %vm3008, %v7162, %v6672
  %v7228 = vsel %vm3008, %v7164, %v6674
  %v7230 = vsel %vm3008, %v7166, %v6676
  %v7232 = vsel %vm3008, %v7168, %v6678
  %v7234 = vsel %vm3008, %v7170, %v6680
  %v7236 = vsel %vm3008, %v7172, %v6682
  %v7238 = vsel %vm3008, %v7174, %v6684
  %v7240 = vsel %vm3008, %v7176, %v6686
  %v7242 = vsel %vm3008, %v7178, %v6688
  %v7244 = vsel %vm3008, %v7180, %v6690
  %v7246 = vsel %vm3008, %v7182, %v6692
  %v7248 = vsel %vm3008, %v7184, %v6694
  %v7250 = vsel %vm3008, %v7186, %v6696
  %v7252 = vsel %vm3008, %v7188, %v6698
  %v7254 = vsel %vm3008, %v7190, %v6700
  %v7256 = vsel %vm3008, %v7192, %v6702
  %v7258 = vsel %vm3008, %v7194, %v6704
  %v7260 = vsel %vm3008, %v7196, %v6706
  %v7262 = vsel %vm3008, %v7198, %v6708
  %v7264 = vsel %vm3008, %v7200, %v6710
  %v7266 = vsel %vm3008, %v7202, %v6712
  %v7268 = vsel %vm3008, %v7204, %v6714
  %v7270 = vsel %vm3008, %v7206, %v6716
  %v7272 = vsel %vm3008, %v7208, %v6718
  %v7274 = vsel %vm3008, %v7210, %v6720
  %v7276 = vsel %vm3008, %v7212, %v6722
  %v7278 = vsel %vm3008, %v7214, %v6724
  %v7280 = vsel %vm3008, %v7216, %v6726
  %v7282 = vsel %vm3008, %v7218, %v6728
  %v7284 = vsel %vm3008, %v7220, %v6730
  %v7286 = vsel %vm3008, %v7222, %v6732
  %v7288 = vsel %vm3008, %v7224, %v6734
  %v7290 = vsel %vm3153, %v7226, %v6744
  %v7292 = vsel %vm3153, %v7228, %v6746
  %v7294 = vsel %vm3153, %v7230, %v6748
  %v7296 = vsel %vm3153, %v7232, %v6750
  %v7298 = vsel %vm3153, %v7234, %v6752
  %v7300 = vsel %vm3153, %v7236, %v6754
  %v7302 = vsel %vm3153, %v7238, %v6756
  %v7304 = vsel %vm3153, %v7240, %v6758
  %v7306 = vsel %vm3153, %v7242, %v6760
  %v7308 = vsel %vm3153, %v7244, %v6762
  %v7310 = vsel %vm3153, %v7246, %v6764
  %v7312 = vsel %vm3153, %v7248, %v6766
  %v7314 = vsel %vm3153, %v7250, %v6768
  %v7316 = vsel %vm3153, %v7252, %v6770
  %v7318 = vsel %vm3153, %v7254, %v6772
  %v7320 = vsel %vm3153, %v7256, %v6774
  %v7322 = vsel %vm3153, %v7258, %v6776
  %v7324 = vsel %vm3153, %v7260, %v6778
  %v7326 = vsel %vm3153, %v7262, %v6780
  %v7328 = vsel %vm3153, %v7264, %v6782
  %v7330 = vsel %vm3153, %v7266, %v6784
  %v7332 = vsel %vm3153, %v7268, %v6786
  %v7334 = vsel %vm3153, %v7270, %v6788
  %v7336 = vsel %vm3153, %v7272, %v6790
  %v7338 = vsel %vm3153, %v7274, %v6792
  %v7340 = vsel %vm3153, %v7276, %v6794
  %v7342 = vsel %vm3153, %v7278, %v6796
  %v7344 = vsel %vm3153, %v7280, %v6798
  %v7346 = vsel %vm3153, %v7282, %v6800
  %v7348 = vsel %vm3153, %v7284, %v6802
  %v7350 = vsel %vm3153, %v7286, %v6804
  %v7352 = vsel %vm3153, %v7288, %v6806
  %v7354 = vsel %vm3298, %v7290, %v6810
  %v7356 = vsel %vm3298, %v7292, %v6812
  %v7358 = vsel %vm3298, %v7294, %v6814
  %v7360 = vsel %vm3298, %v7296, %v6816
  %v7362 = vsel %vm3298, %v7298, %v6818
  %v7364 = vsel %vm3298, %v7300, %v6820
  %v7366 = vsel %vm3298, %v7302, %v6822
  %v7368 = vsel %vm3298, %v7304, %v6824
  %v7370 = vsel %vm3298, %v7306, %v6826
  %v7372 = vsel %vm3298, %v7308, %v6828
  %v7374 = vsel %vm3298, %v7310, %v6830
  %v7376 = vsel %vm3298, %v7312, %v6832
  %v7378 = vsel %vm3298, %v7314, %v6834
  %v7380 = vsel %vm3298, %v7316, %v6836
  %v7382 = vsel %vm3298, %v7318, %v6838
  %v7384 = vsel %vm3298, %v7320, %v6840
  %v7386 = vsel %vm3298, %v7322, %v6842
  %v7388 = vsel %vm3298, %v7324, %v6844
  %v7390 = vsel %vm3298, %v7326, %v6846
  %v7392 = vsel %vm3298, %v7328, %v6848
  %v7394 = vsel %vm3298, %v7330, %v6850
  %v7396 = vsel %vm3298, %v7332, %v6852
  %v7398 = vsel %vm3298, %v7334, %v6854
  %v7400 = vsel %vm3298, %v7336, %v6856
  %v7402 = vsel %vm3298, %v7338, %v6858
  %v7404 = vsel %vm3298, %v7340, %v6860
  %v7406 = vsel %vm3298, %v7342, %v6862
  %v7408 = vsel %vm3298, %v7344, %v6864
  %v7410 = vsel %vm3298, %v7346, %v6866
  %v7412 = vsel %vm3298, %v7348, %v6868
  %v7414 = vsel %vm3298, %v7350, %v6870
  %v7416 = vsel %vm3298, %v7352, %v6872
  %v7418 = vsel %vm3443, %v7354, %v6898
  %v7420 = vsel %vm3443, %v7356, %v6900
  %v7422 = vsel %vm3443, %v7358, %v6902
  %v7424 = vsel %vm3443, %v7360, %v6904
  %v7426 = vsel %vm3443, %v7362, %v6906
  %v7428 = vsel %vm3443, %v7364, %v6908
  %v7430 = vsel %vm3443, %v7366, %v6910
  %v7432 = vsel %vm3443, %v7368, %v6912
  %v7434 = vsel %vm3443, %v7370, %v6914
  %v7436 = vsel %vm3443, %v7372, %v6916
  %v7438 = vsel %vm3443, %v7374, %v6918
  %v7440 = vsel %vm3443, %v7376, %v6920
  %v7442 = vsel %vm3443, %v7378, %v6922
  %v7444 = vsel %vm3443, %v7380, %v6924
  %v7446 = vsel %vm3443, %v7382, %v6926
  %v7448 = vsel %vm3443, %v7384, %v6928
  %v7450 = vsel %vm3443, %v7386, %v6930
  %v7452 = vsel %vm3443, %v7388, %v6932
  %v7454 = vsel %vm3443, %v7390, %v6934
  %v7456 = vsel %vm3443, %v7392, %v6936
  %v7458 = vsel %vm3443, %v7394, %v6938
  %v7460 = vsel %vm3443, %v7396, %v6940
  %v7462 = vsel %vm3443, %v7398, %v6942
  %v7464 = vsel %vm3443, %v7400, %v6944
  %v7466 = vsel %vm3443, %v7402, %v6946
  %v7468 = vsel %vm3443, %v7404, %v6948
  %v7470 = vsel %vm3443, %v7406, %v6950
  %v7472 = vsel %vm3443, %v7408, %v6952
  %v7474 = vsel %vm3443, %v7410, %v6954
  %v7476 = vsel %vm3443, %v7412, %v6956
  %v7478 = vsel %vm3443, %v7414, %v6958
  %v7480 = vsel %vm3443, %v7416, %v6960
  %v7482 = vsel %vm3588, %v7418, %v6970
  %v7484 = vsel %vm3588, %v7420, %v6972
  %v7486 = vsel %vm3588, %v7422, %v6974
  %v7488 = vsel %vm3588, %v7424, %v6976
  %v7490 = vsel %vm3588, %v7426, %v6978
  %v7492 = vsel %vm3588, %v7428, %v6980
  %v7494 = vsel %vm3588, %v7430, %v6982
  %v7496 = vsel %vm3588, %v7432, %v6984
  %v7498 = vsel %vm3588, %v7434, %v6986
  %v7500 = vsel %vm3588, %v7436, %v6988
  %v7502 = vsel %vm3588, %v7438, %v6990
  %v7504 = vsel %vm3588, %v7440, %v6992
  %v7506 = vsel %vm3588, %v7442, %v6994
  %v7508 = vsel %vm3588, %v7444, %v6996
  %v7510 = vsel %vm3588, %v7446, %v6998
  %v7512 = vsel %vm3588, %v7448, %v7000
  %v7514 = vsel %vm3588, %v7450, %v7002
  %v7516 = vsel %vm3588, %v7452, %v7004
  %v7518 = vsel %vm3588, %v7454, %v7006
  %v7520 = vsel %vm3588, %v7456, %v7008
  %v7522 = vsel %vm3588, %v7458, %v7010
  %v7524 = vsel %vm3588, %v7460, %v7012
  %v7526 = vsel %vm3588, %v7462, %v7014
  %v7528 = vsel %vm3588, %v7464, %v7016
  %v7530 = vsel %vm3588, %v7466, %v7018
  %v7532 = vsel %vm3588, %v7468, %v7020
  %v7534 = vsel %vm3588, %v7470, %v7022
  %v7536 = vsel %vm3588, %v7472, %v7024
  %v7538 = vsel %vm3588, %v7474, %v7026
  %v7540 = vsel %vm3588, %v7476, %v7028
  %v7542 = vsel %vm3588, %v7478, %v7030
  %v7544 = vsel %vm3588, %v7480, %v7032
  %v7550 = vunpack.c.l.b16 %v5904
  %v7551 = vunpack.c.l.b16 %v5905
  %v7552 = vunpack.c.l.b16 %v5906
  %v7553 = vunpack.c.l.b16 %v5907
  %v7554 = vunpack.c.l.b16 %v5908
  %v7555 = vpack.c.b16 %v7551, %v7550
  %v7556 = vpack.c.b16 %v7553, %v7552
  %v7557 = vpack.c.b16 %v7554, %v7554
  %v7560 = vsel %vm3982, %v7482, 0
  %v7562 = vsel %vm3982, %v7484, 0
  %v7564 = vsel %vm3982, %v7486, 0
  %v7566 = vsel %vm3982, %v7488, 0
  %v7568 = vsel %vm3982, %v7490, 0
  %v7570 = vsel %vm3982, %v7492, 0
  %v7572 = vsel %vm3982, %v7494, 0
  %v7574 = vsel %vm3982, %v7496, 0
  %v7576 = vsel %vm3982, %v7498, 0
  %v7578 = vsel %vm3982, %v7500, 0
  %v7580 = vsel %vm3982, %v7502, 0
  %v7582 = vsel %vm3982, %v7504, 0
  %v7584 = vsel %vm3982, %v7506, 0
  %v7586 = vsel %vm3982, %v7508, 0
  %v7588 = vsel %vm3982, %v7510, 0
  %v7590 = vsel %vm3982, %v7512, 0
  %v7592 = vsel %vm3982, %v7514, 0
  %v7594 = vsel %vm3982, %v7516, 0
  %v7596 = vsel %vm3982, %v7518, 0
  %v7598 = vsel %vm3982, %v7520, 0
  %v7600 = vsel %vm3982, %v7522, 0
  %v7602 = vsel %vm3982, %v7524, 0
  %v7604 = vsel %vm3982, %v7526, 0
  %v7606 = vsel %vm3982, %v7528, 0
  %v7608 = vsel %vm3982, %v7530, 0
  %v7610 = vsel %vm3982, %v7532, 0
  %v7612 = vsel %vm3982, %v7534, 0
  %v7614 = vsel %vm3982, %v7536, 0
  %v7616 = vsel %vm3982, %v7538, 0
  %v7618 = vsel %vm3982, %v7540, 0
  %v7620 = vsel %vm3982, %v7542, 0
  %v7622 = vsel %vm3982, %v7544, 0
  %v7625 = vsel %vm4145, %v7557, 0
  %7627 = vmatprep.subr.bf16.mxu0 0
  %7628 = vmatpush1.bf16.msra.mxu0 %v7555
  %7629 = vmatprep.subr.bf16.mxu0 0
  %7630 = vmatpush1.bf16.msra.mxu0 %v7556
  %7631 = vmatprep.subr.bf16.mxu0 0
  %7632 = vmatpush1.bf16.msra.mxu0 %v7625
  %7633 = vmatprep.subr.bf16.mxu0 0
  %7634 = vmatpush1.bf16.msra.mxu0 0
  %7635 = vmatprep.subr.bf16.mxu0 0
  %7636 = vmatpush1.bf16.msra.mxu0 0
  %7637 = vmatprep.subr.bf16.mxu0 0
  %7638 = vmatpush1.bf16.msra.mxu0 0
  %7639 = vmatprep.subr.bf16.mxu0 0
  %7640 = vmatpush1.bf16.msra.mxu0 0
  %7641 = vmatprep.subr.bf16.mxu0 0
  %7642 = vmatpush1.bf16.msra.mxu0 0
  %7643 = vmatprep.subr.bf16.mxu0 0
  %7644 = vmatpush1.bf16.msra.mxu0 0
  %7645 = vmatprep.subr.bf16.mxu0 0
  %7646 = vmatpush1.bf16.msra.mxu0 0
  %7647 = vmatprep.subr.bf16.mxu0 0
  %7648 = vmatpush1.bf16.msra.mxu0 0
  %7649 = vmatprep.subr.bf16.mxu0 0
  %7650 = vmatpush1.bf16.msra.mxu0 0
  %7651 = vmatprep.subr.bf16.mxu0 0
  %7652 = vmatpush1.bf16.msra.mxu0 0
  %7653 = vmatprep.subr.bf16.mxu0 0
  %7654 = vmatpush1.bf16.msra.mxu0 0
  %7655 = vmatprep.subr.bf16.mxu0 0
  %7656 = vmatpush1.bf16.msra.mxu0 0
  %7657 = vmatprep.subr.bf16.mxu0 0
  %7658 = vmatpush1.bf16.msra.mxu0 0
  %7659 = vmatprep.mubr.bf16.mxu0 0
  %7660 = vmatmul.mubr.bf16.gmra.mrb[0].mxu0 %v7560
  %v7661 = vpop.f32.mrb[0].mxu0
  %v7662 = vadd.f32 0.0, %v7661
  %v7663 = vpop.f32.mrb[0].mxu0
  %v7664 = vpop.f32.mrb[0].mxu0
  %v7665 = vadd.f32 0.0, %v7664
  %v7666 = vpop.f32.mrb[0].mxu0
  %7667 = vmatprep.mubr.bf16.mxu0 0
  %7668 = vmatmul.mubr.bf16.gmra.mrb[0].mxu0 %v7562
  %v7669 = vpop.f32.mrb[0].mxu0
  %v7670 = vadd.f32 0.0, %v7669
  %v7671 = vpop.f32.mrb[0].mxu0
  %v7672 = vpop.f32.mrb[0].mxu0
  %v7673 = vadd.f32 0.0, %v7672
  %v7674 = vpop.f32.mrb[0].mxu0
  %7675 = vmatprep.mubr.bf16.mxu0 0
  %7676 = vmatmul.mubr.bf16.gmra.mrb[0].mxu0 %v7564
  %v7677 = vpop.f32.mrb[0].mxu0
  %v7678 = vadd.f32 0.0, %v7677
  %v7679 = vpop.f32.mrb[0].mxu0
  %v7680 = vpop.f32.mrb[0].mxu0
  %v7681 = vadd.f32 0.0, %v7680
  %v7682 = vpop.f32.mrb[0].mxu0
  %7683 = vmatprep.mubr.bf16.mxu0 0
  %7684 = vmatmul.mubr.bf16.gmra.mrb[0].mxu0 %v7566
  %v7685 = vpop.f32.mrb[0].mxu0
  %v7686 = vadd.f32 0.0, %v7685
  %v7687 = vpop.f32.mrb[0].mxu0
  %v7688 = vpop.f32.mrb[0].mxu0
  %v7689 = vadd.f32 0.0, %v7688
  %v7690 = vpop.f32.mrb[0].mxu0
  %7691 = vmatprep.mubr.bf16.mxu0 0
  %7692 = vmatmul.mubr.bf16.gmra.mrb[0].mxu0 %v7568
  %v7693 = vpop.f32.mrb[0].mxu0
  %v7694 = vadd.f32 0.0, %v7693
  %v7695 = vpop.f32.mrb[0].mxu0
  %v7696 = vpop.f32.mrb[0].mxu0
  %v7697 = vadd.f32 0.0, %v7696
  %v7698 = vpop.f32.mrb[0].mxu0
  %7699 = vmatprep.mubr.bf16.mxu0 0
  %7700 = vmatmul.mubr.bf16.gmra.mrb[0].mxu0 %v7570
  %v7701 = vpop.f32.mrb[0].mxu0
  %v7702 = vadd.f32 0.0, %v7701
  %v7703 = vpop.f32.mrb[0].mxu0
  %v7704 = vpop.f32.mrb[0].mxu0
  %v7705 = vadd.f32 0.0, %v7704
  %v7706 = vpop.f32.mrb[0].mxu0
  %7707 = vmatprep.mubr.bf16.mxu0 0
  %7708 = vmatmul.mubr.bf16.gmra.mrb[0].mxu0 %v7572
  %v7709 = vpop.f32.mrb[0].mxu0
  %v7710 = vadd.f32 0.0, %v7709
  %v7711 = vpop.f32.mrb[0].mxu0
  %v7712 = vpop.f32.mrb[0].mxu0
  %v7713 = vadd.f32 0.0, %v7712
  %v7714 = vpop.f32.mrb[0].mxu0
  %7715 = vmatprep.mubr.bf16.mxu0 0
  %7716 = vmatmul.mubr.bf16.gmra.mrb[0].mxu0 %v7574
  %v7717 = vpop.f32.mrb[0].mxu0
  %v7718 = vadd.f32 0.0, %v7717
  %v7719 = vpop.f32.mrb[0].mxu0
  %v7720 = vpop.f32.mrb[0].mxu0
  %v7721 = vadd.f32 0.0, %v7720
  %v7722 = vpop.f32.mrb[0].mxu0
  %7723 = vmatprep.mubr.bf16.mxu0 0
  %7724 = vmatmul.mubr.bf16.gmra.mrb[0].mxu0 %v7576
  %v7725 = vpop.f32.mrb[0].mxu0
  %v7726 = vadd.f32 0.0, %v7725
  %v7727 = vpop.f32.mrb[0].mxu0
  %v7728 = vpop.f32.mrb[0].mxu0
  %v7729 = vadd.f32 0.0, %v7728
  %v7730 = vpop.f32.mrb[0].mxu0
  %7731 = vmatprep.mubr.bf16.mxu0 0
  %7732 = vmatmul.mubr.bf16.gmra.mrb[0].mxu0 %v7578
  %v7733 = vpop.f32.mrb[0].mxu0
  %v7734 = vadd.f32 0.0, %v7733
  %v7735 = vpop.f32.mrb[0].mxu0
  %v7736 = vpop.f32.mrb[0].mxu0
  %v7737 = vadd.f32 0.0, %v7736
  %v7738 = vpop.f32.mrb[0].mxu0
  %7739 = vmatprep.mubr.bf16.mxu0 0
  %7740 = vmatmul.mubr.bf16.gmra.mrb[0].mxu0 %v7580
  %v7741 = vpop.f32.mrb[0].mxu0
  %v7742 = vadd.f32 0.0, %v7741
  %v7743 = vpop.f32.mrb[0].mxu0
  %v7744 = vpop.f32.mrb[0].mxu0
  %v7745 = vadd.f32 0.0, %v7744
  %v7746 = vpop.f32.mrb[0].mxu0
  %7747 = vmatprep.mubr.bf16.mxu0 0
  %7748 = vmatmul.mubr.bf16.gmra.mrb[0].mxu0 %v7582
  %v7749 = vpop.f32.mrb[0].mxu0
  %v7750 = vadd.f32 0.0, %v7749
  %v7751 = vpop.f32.mrb[0].mxu0
  %v7752 = vpop.f32.mrb[0].mxu0
  %v7753 = vadd.f32 0.0, %v7752
  %v7754 = vpop.f32.mrb[0].mxu0
  %7755 = vmatprep.mubr.bf16.mxu0 0
  %7756 = vmatmul.mubr.bf16.gmra.mrb[0].mxu0 %v7584
  %v7757 = vpop.f32.mrb[0].mxu0
  %v7758 = vadd.f32 0.0, %v7757
  %v7759 = vpop.f32.mrb[0].mxu0
  %v7760 = vpop.f32.mrb[0].mxu0
  %v7761 = vadd.f32 0.0, %v7760
  %v7762 = vpop.f32.mrb[0].mxu0
  %7763 = vmatprep.mubr.bf16.mxu0 0
  %7764 = vmatmul.mubr.bf16.gmra.mrb[0].mxu0 %v7586
  %v7765 = vpop.f32.mrb[0].mxu0
  %v7766 = vadd.f32 0.0, %v7765
  %v7767 = vpop.f32.mrb[0].mxu0
  %v7768 = vpop.f32.mrb[0].mxu0
  %v7769 = vadd.f32 0.0, %v7768
  %v7770 = vpop.f32.mrb[0].mxu0
  %7771 = vmatprep.mubr.bf16.mxu0 0
  %7772 = vmatmul.mubr.bf16.gmra.mrb[0].mxu0 %v7588
  %v7773 = vpop.f32.mrb[0].mxu0
  %v7774 = vadd.f32 0.0, %v7773
  %v7775 = vpop.f32.mrb[0].mxu0
  %v7776 = vpop.f32.mrb[0].mxu0
  %v7777 = vadd.f32 0.0, %v7776
  %v7778 = vpop.f32.mrb[0].mxu0
  %7779 = vmatprep.mubr.bf16.mxu0 0
  %7780 = vmatmul.mubr.bf16.gmra.mrb[0].mxu0 %v7590
  %v7781 = vpop.f32.mrb[0].mxu0
  %v7782 = vadd.f32 0.0, %v7781
  %v7783 = vpop.f32.mrb[0].mxu0
  %v7784 = vpop.f32.mrb[0].mxu0
  %v7785 = vadd.f32 0.0, %v7784
  %v7786 = vpop.f32.mrb[0].mxu0
  %7787 = vmatprep.mubr.bf16.mxu0 0
  %7788 = vmatmul.mubr.bf16.gmra.mrb[0].mxu0 %v7592
  %v7789 = vpop.f32.mrb[0].mxu0
  %v7790 = vadd.f32 0.0, %v7789
  %v7791 = vpop.f32.mrb[0].mxu0
  %v7792 = vpop.f32.mrb[0].mxu0
  %v7793 = vadd.f32 0.0, %v7792
  %v7794 = vpop.f32.mrb[0].mxu0
  %7795 = vmatprep.mubr.bf16.mxu0 0
  %7796 = vmatmul.mubr.bf16.gmra.mrb[0].mxu0 %v7594
  %v7797 = vpop.f32.mrb[0].mxu0
  %v7798 = vadd.f32 0.0, %v7797
  %v7799 = vpop.f32.mrb[0].mxu0
  %v7800 = vpop.f32.mrb[0].mxu0
  %v7801 = vadd.f32 0.0, %v7800
  %v7802 = vpop.f32.mrb[0].mxu0
  %7803 = vmatprep.mubr.bf16.mxu0 0
  %7804 = vmatmul.mubr.bf16.gmra.mrb[0].mxu0 %v7596
  %v7805 = vpop.f32.mrb[0].mxu0
  %v7806 = vadd.f32 0.0, %v7805
  %v7807 = vpop.f32.mrb[0].mxu0
  %v7808 = vpop.f32.mrb[0].mxu0
  %v7809 = vadd.f32 0.0, %v7808
  %v7810 = vpop.f32.mrb[0].mxu0
  %7811 = vmatprep.mubr.bf16.mxu0 0
  %7812 = vmatmul.mubr.bf16.gmra.mrb[0].mxu0 %v7598
  %v7813 = vpop.f32.mrb[0].mxu0
  %v7814 = vadd.f32 0.0, %v7813
  %v7815 = vpop.f32.mrb[0].mxu0
  %v7816 = vpop.f32.mrb[0].mxu0
  %v7817 = vadd.f32 0.0, %v7816
  %v7818 = vpop.f32.mrb[0].mxu0
  %7819 = vmatprep.mubr.bf16.mxu0 0
  %7820 = vmatmul.mubr.bf16.gmra.mrb[0].mxu0 %v7600
  %v7821 = vpop.f32.mrb[0].mxu0
  %v7822 = vadd.f32 0.0, %v7821
  %v7823 = vpop.f32.mrb[0].mxu0
  %v7824 = vpop.f32.mrb[0].mxu0
  %v7825 = vadd.f32 0.0, %v7824
  %v7826 = vpop.f32.mrb[0].mxu0
  %7827 = vmatprep.mubr.bf16.mxu0 0
  %7828 = vmatmul.mubr.bf16.gmra.mrb[0].mxu0 %v7602
  %v7829 = vpop.f32.mrb[0].mxu0
  %v7830 = vadd.f32 0.0, %v7829
  %v7831 = vpop.f32.mrb[0].mxu0
  %v7832 = vpop.f32.mrb[0].mxu0
  %v7833 = vadd.f32 0.0, %v7832
  %v7834 = vpop.f32.mrb[0].mxu0
  %7835 = vmatprep.mubr.bf16.mxu0 0
  %7836 = vmatmul.mubr.bf16.gmra.mrb[0].mxu0 %v7604
  %v7837 = vpop.f32.mrb[0].mxu0
  %v7838 = vadd.f32 0.0, %v7837
  %v7839 = vpop.f32.mrb[0].mxu0
  %v7840 = vpop.f32.mrb[0].mxu0
  %v7841 = vadd.f32 0.0, %v7840
  %v7842 = vpop.f32.mrb[0].mxu0
  %7843 = vmatprep.mubr.bf16.mxu0 0
  %7844 = vmatmul.mubr.bf16.gmra.mrb[0].mxu0 %v7606
  %v7845 = vpop.f32.mrb[0].mxu0
  %v7846 = vadd.f32 0.0, %v7845
  %v7847 = vpop.f32.mrb[0].mxu0
  %v7848 = vpop.f32.mrb[0].mxu0
  %v7849 = vadd.f32 0.0, %v7848
  %v7850 = vpop.f32.mrb[0].mxu0
  %7851 = vmatprep.mubr.bf16.mxu0 0
  %7852 = vmatmul.mubr.bf16.gmra.mrb[0].mxu0 %v7608
  %v7853 = vpop.f32.mrb[0].mxu0
  %v7854 = vadd.f32 0.0, %v7853
  %v7855 = vpop.f32.mrb[0].mxu0
  %v7856 = vpop.f32.mrb[0].mxu0
  %v7857 = vadd.f32 0.0, %v7856
  %v7858 = vpop.f32.mrb[0].mxu0
  %7859 = vmatprep.mubr.bf16.mxu0 0
  %7860 = vmatmul.mubr.bf16.gmra.mrb[0].mxu0 %v7610
  %v7861 = vpop.f32.mrb[0].mxu0
  %v7862 = vadd.f32 0.0, %v7861
  %v7863 = vpop.f32.mrb[0].mxu0
  %v7864 = vpop.f32.mrb[0].mxu0
  %v7865 = vadd.f32 0.0, %v7864
  %v7866 = vpop.f32.mrb[0].mxu0
  %7867 = vmatprep.mubr.bf16.mxu0 0
  %7868 = vmatmul.mubr.bf16.gmra.mrb[0].mxu0 %v7612
  %v7869 = vpop.f32.mrb[0].mxu0
  %v7870 = vadd.f32 0.0, %v7869
  %v7871 = vpop.f32.mrb[0].mxu0
  %v7872 = vpop.f32.mrb[0].mxu0
  %v7873 = vadd.f32 0.0, %v7872
  %v7874 = vpop.f32.mrb[0].mxu0
  %7875 = vmatprep.mubr.bf16.mxu0 0
  %7876 = vmatmul.mubr.bf16.gmra.mrb[0].mxu0 %v7614
  %v7877 = vpop.f32.mrb[0].mxu0
  %v7878 = vadd.f32 0.0, %v7877
  %v7879 = vpop.f32.mrb[0].mxu0
  %v7880 = vpop.f32.mrb[0].mxu0
  %v7881 = vadd.f32 0.0, %v7880
  %v7882 = vpop.f32.mrb[0].mxu0
  %7883 = vmatprep.mubr.bf16.mxu0 0
  %7884 = vmatmul.mubr.bf16.gmra.mrb[0].mxu0 %v7616
  %v7885 = vpop.f32.mrb[0].mxu0
  %v7886 = vadd.f32 0.0, %v7885
  %v7887 = vpop.f32.mrb[0].mxu0
  %v7888 = vpop.f32.mrb[0].mxu0
  %v7889 = vadd.f32 0.0, %v7888
  %v7890 = vpop.f32.mrb[0].mxu0
  %7891 = vmatprep.mubr.bf16.mxu0 0
  %7892 = vmatmul.mubr.bf16.gmra.mrb[0].mxu0 %v7618
  %v7893 = vpop.f32.mrb[0].mxu0
  %v7894 = vadd.f32 0.0, %v7893
  %v7895 = vpop.f32.mrb[0].mxu0
  %v7896 = vpop.f32.mrb[0].mxu0
  %v7897 = vadd.f32 0.0, %v7896
  %v7898 = vpop.f32.mrb[0].mxu0
  %7899 = vmatprep.mubr.bf16.mxu0 0
  %7900 = vmatmul.mubr.bf16.gmra.mrb[0].mxu0 %v7620
  %v7901 = vpop.f32.mrb[0].mxu0
  %v7902 = vadd.f32 0.0, %v7901
  %v7903 = vpop.f32.mrb[0].mxu0
  %v7904 = vpop.f32.mrb[0].mxu0
  %v7905 = vadd.f32 0.0, %v7904
  %v7906 = vpop.f32.mrb[0].mxu0
  %7907 = vmatprep.mubr.bf16.mxu0 0
  %7908 = vmatmul.mubr.bf16.gmra.mrb[0].mxu0 %v7622
  %v7909 = vpop.f32.mrb[0].mxu0
  %v7910 = vadd.f32 0.0, %v7909
  %v7911 = vpop.f32.mrb[0].mxu0
  %v7912 = vpop.f32.mrb[0].mxu0
  %v7913 = vadd.f32 0.0, %v7912
  %v7914 = vpop.f32.mrb[0].mxu0
  %7915 = vdwg.mxu0
  %v7916 = vld [vmem:[%s6] sm:$0x1]
  %v7917 = vld [vmem:[%s7] sm:$0x1]
  %v7918 = vsel %vm2537, %v7662, 0.0
  %v7919 = vsel %vm2537, %v7665, 0.0
  %v7920 = vadd.f32 %v7918, %v7919
  %v7921 = vsel %vm2537, %v7670, 0.0
  %v7922 = vadd.f32 %v7920, %v7921
  %v7923 = vsel %vm2537, %v7673, 0.0
  %v7924 = vadd.f32 %v7922, %v7923
  %v7925 = vsel %vm2537, %v7678, 0.0
  %v7926 = vadd.f32 %v7924, %v7925
  %v7927 = vsel %vm2537, %v7681, 0.0
  %v7928 = vadd.f32 %v7926, %v7927
  %v7929 = vsel %vm2537, %v7686, 0.0
  %v7930 = vadd.f32 %v7928, %v7929
  %v7931 = vsel %vm2537, %v7689, 0.0
  %v7932 = vadd.f32 %v7930, %v7931
  %v7933 = vsel %vm2537, %v7694, 0.0
  %v7934 = vadd.f32 %v7932, %v7933
  %v7935 = vsel %vm2537, %v7697, 0.0
  %v7936 = vadd.f32 %v7934, %v7935
  %v7937 = vsel %vm2537, %v7702, 0.0
  %v7938 = vadd.f32 %v7936, %v7937
  %v7939 = vsel %vm2537, %v7705, 0.0
  %v7940 = vadd.f32 %v7938, %v7939
  %v7941 = vsel %vm2537, %v7710, 0.0
  %v7942 = vadd.f32 %v7940, %v7941
  %v7943 = vsel %vm2537, %v7713, 0.0
  %v7944 = vadd.f32 %v7942, %v7943
  %v7945 = vsel %vm2537, %v7718, 0.0
  %v7946 = vadd.f32 %v7944, %v7945
  %v7947 = vsel %vm2537, %v7721, 0.0
  %v7948 = vadd.f32 %v7946, %v7947
  %v7949 = vsel %vm2537, %v7726, 0.0
  %v7950 = vadd.f32 %v7948, %v7949
  %v7951 = vsel %vm2537, %v7729, 0.0
  %v7952 = vadd.f32 %v7950, %v7951
  %v7953 = vsel %vm2537, %v7734, 0.0
  %v7954 = vadd.f32 %v7952, %v7953
  %v7955 = vsel %vm2537, %v7737, 0.0
  %v7956 = vadd.f32 %v7954, %v7955
  %v7957 = vsel %vm2537, %v7742, 0.0
  %v7958 = vadd.f32 %v7956, %v7957
  %v7959 = vsel %vm2537, %v7745, 0.0
  %v7960 = vadd.f32 %v7958, %v7959
  %v7961 = vsel %vm2537, %v7750, 0.0
  %v7962 = vadd.f32 %v7960, %v7961
  %v7963 = vsel %vm2537, %v7753, 0.0
  %v7964 = vadd.f32 %v7962, %v7963
  %v7965 = vsel %vm2537, %v7758, 0.0
  %v7966 = vadd.f32 %v7964, %v7965
  %v7967 = vsel %vm2537, %v7761, 0.0
  %v7968 = vadd.f32 %v7966, %v7967
  %v7969 = vsel %vm2537, %v7766, 0.0
  %v7970 = vadd.f32 %v7968, %v7969
  %v7971 = vsel %vm2537, %v7769, 0.0
  %v7972 = vadd.f32 %v7970, %v7971
  %v7973 = vsel %vm2537, %v7774, 0.0
  %v7974 = vadd.f32 %v7972, %v7973
  %v7975 = vsel %vm2537, %v7777, 0.0
  %v7976 = vadd.f32 %v7974, %v7975
  %v7977 = vsel %vm2537, %v7782, 0.0
  %v7978 = vadd.f32 %v7976, %v7977
  %v7979 = vsel %vm2537, %v7785, 0.0
  %v7980 = vadd.f32 %v7978, %v7979
  %v7981 = vsel %vm2537, %v7790, 0.0
  %v7982 = vadd.f32 %v7980, %v7981
  %v7983 = vsel %vm2537, %v7793, 0.0
  %v7984 = vadd.f32 %v7982, %v7983
  %v7985 = vsel %vm2537, %v7798, 0.0
  %v7986 = vadd.f32 %v7984, %v7985
  %v7987 = vsel %vm2537, %v7801, 0.0
  %v7988 = vadd.f32 %v7986, %v7987
  %v7989 = vsel %vm2537, %v7806, 0.0
  %v7990 = vadd.f32 %v7988, %v7989
  %v7991 = vsel %vm2537, %v7809, 0.0
  %v7992 = vadd.f32 %v7990, %v7991
  %v7993 = vsel %vm2537, %v7814, 0.0
  %v7994 = vadd.f32 %v7992, %v7993
  %v7995 = vsel %vm2537, %v7817, 0.0
  %v7996 = vadd.f32 %v7994, %v7995
  %v7997 = vsel %vm2537, %v7822, 0.0
  %v7998 = vadd.f32 %v7996, %v7997
  %v7999 = vsel %vm2537, %v7825, 0.0
  %v8000 = vadd.f32 %v7998, %v7999
  %v8001 = vsel %vm2537, %v7830, 0.0
  %v8002 = vadd.f32 %v8000, %v8001
  %v8003 = vsel %vm2537, %v7833, 0.0
  %v8004 = vadd.f32 %v8002, %v8003
  %v8005 = vsel %vm2537, %v7838, 0.0
  %v8006 = vadd.f32 %v8004, %v8005
  %v8007 = vsel %vm2537, %v7841, 0.0
  %v8008 = vadd.f32 %v8006, %v8007
  %v8009 = vsel %vm2537, %v7846, 0.0
  %v8010 = vadd.f32 %v8008, %v8009
  %v8011 = vsel %vm2537, %v7849, 0.0
  %v8012 = vadd.f32 %v8010, %v8011
  %v8013 = vsel %vm2537, %v7854, 0.0
  %v8014 = vadd.f32 %v8012, %v8013
  %v8015 = vsel %vm2537, %v7857, 0.0
  %v8016 = vadd.f32 %v8014, %v8015
  %v8017 = vsel %vm2537, %v7862, 0.0
  %v8018 = vadd.f32 %v8016, %v8017
  %v8019 = vsel %vm2537, %v7865, 0.0
  %v8020 = vadd.f32 %v8018, %v8019
  %v8021 = vsel %vm2537, %v7870, 0.0
  %v8022 = vadd.f32 %v8020, %v8021
  %v8023 = vsel %vm2537, %v7873, 0.0
  %v8024 = vadd.f32 %v8022, %v8023
  %v8025 = vsel %vm2537, %v7878, 0.0
  %v8026 = vadd.f32 %v8024, %v8025
  %v8027 = vsel %vm2537, %v7881, 0.0
  %v8028 = vadd.f32 %v8026, %v8027
  %v8029 = vsel %vm2537, %v7886, 0.0
  %v8030 = vadd.f32 %v8028, %v8029
  %v8031 = vsel %vm2537, %v7889, 0.0
  %v8032 = vadd.f32 %v8030, %v8031
  %v8033 = vsel %vm2537, %v7894, 0.0
  %v8034 = vadd.f32 %v8032, %v8033
  %v8035 = vsel %vm2537, %v7897, 0.0
  %v8036 = vadd.f32 %v8034, %v8035
  %v8037 = vsel %vm2537, %v7902, 0.0
  %v8038 = vadd.f32 %v8036, %v8037
  %v8039 = vsel %vm2537, %v7905, 0.0
  %v8040 = vadd.f32 %v8038, %v8039
  %v8041 = vsel %vm2537, %v7910, 0.0
  %v8042 = vadd.f32 %v8040, %v8041
  %v8043 = vsel %vm2537, %v7913, 0.0
  %v8044 = vadd.f32 %v8042, %v8043
  %v8045 = vrot.slane %v8044, 4
  %v8046 = vadd.f32 %v8044, %v8045
  %v8047 = vrot.slane %v8046, 2
  %v8048 = vadd.f32 %v8046, %v8047
  %v8049 = vrot.slane %v8048, 1
  %v8050 = vadd.f32 %v8048, %v8049
  %v8051 = vmul.f32 %v8050, 0.001953125
  %v8052 = vmul.f32 %v7662, %v7662
  %v8053 = vmul.f32 %v7665, %v7665
  %v8054 = vmul.f32 %v7670, %v7670
  %v8055 = vmul.f32 %v7673, %v7673
  %v8056 = vmul.f32 %v7678, %v7678
  %v8057 = vmul.f32 %v7681, %v7681
  %v8058 = vmul.f32 %v7686, %v7686
  %v8059 = vmul.f32 %v7689, %v7689
  %v8060 = vmul.f32 %v7694, %v7694
  %v8061 = vmul.f32 %v7697, %v7697
  %v8062 = vmul.f32 %v7702, %v7702
  %v8063 = vmul.f32 %v7705, %v7705
  %v8064 = vmul.f32 %v7710, %v7710
  %v8065 = vmul.f32 %v7713, %v7713
  %v8066 = vmul.f32 %v7718, %v7718
  %v8067 = vmul.f32 %v7721, %v7721
  %v8068 = vmul.f32 %v7726, %v7726
  %v8069 = vmul.f32 %v7729, %v7729
  %v8070 = vmul.f32 %v7734, %v7734
  %v8071 = vmul.f32 %v7737, %v7737
  %v8072 = vmul.f32 %v7742, %v7742
  %v8073 = vmul.f32 %v7745, %v7745
  %v8074 = vmul.f32 %v7750, %v7750
  %v8075 = vmul.f32 %v7753, %v7753
  %v8076 = vmul.f32 %v7758, %v7758
  %v8077 = vmul.f32 %v7761, %v7761
  %v8078 = vmul.f32 %v7766, %v7766
  %v8079 = vmul.f32 %v7769, %v7769
  %v8080 = vmul.f32 %v7774, %v7774
  %v8081 = vmul.f32 %v7777, %v7777
  %v8082 = vmul.f32 %v7782, %v7782
  %v8083 = vmul.f32 %v7785, %v7785
  %v8084 = vmul.f32 %v7790, %v7790
  %v8085 = vmul.f32 %v7793, %v7793
  %v8086 = vmul.f32 %v7798, %v7798
  %v8087 = vmul.f32 %v7801, %v7801
  %v8088 = vmul.f32 %v7806, %v7806
  %v8089 = vmul.f32 %v7809, %v7809
  %v8090 = vmul.f32 %v7814, %v7814
  %v8091 = vmul.f32 %v7817, %v7817
  %v8092 = vmul.f32 %v7822, %v7822
  %v8093 = vmul.f32 %v7825, %v7825
  %v8094 = vmul.f32 %v7830, %v7830
  %v8095 = vmul.f32 %v7833, %v7833
  %v8096 = vmul.f32 %v7838, %v7838
  %v8097 = vmul.f32 %v7841, %v7841
  %v8098 = vmul.f32 %v7846, %v7846
  %v8099 = vmul.f32 %v7849, %v7849
  %v8100 = vmul.f32 %v7854, %v7854
  %v8101 = vmul.f32 %v7857, %v7857
  %v8102 = vmul.f32 %v7862, %v7862
  %v8103 = vmul.f32 %v7865, %v7865
  %v8104 = vmul.f32 %v7870, %v7870
  %v8105 = vmul.f32 %v7873, %v7873
  %v8106 = vmul.f32 %v7878, %v7878
  %v8107 = vmul.f32 %v7881, %v7881
  %v8108 = vmul.f32 %v7886, %v7886
  %v8109 = vmul.f32 %v7889, %v7889
  %v8110 = vmul.f32 %v7894, %v7894
  %v8111 = vmul.f32 %v7897, %v7897
  %v8112 = vmul.f32 %v7902, %v7902
  %v8113 = vmul.f32 %v7905, %v7905
  %v8114 = vmul.f32 %v7910, %v7910
  %v8115 = vmul.f32 %v7913, %v7913
  %v8116 = vsel %vm2537, %v8052, 0.0
  %v8117 = vsel %vm2537, %v8053, 0.0
  %v8118 = vadd.f32 %v8116, %v8117
  %v8119 = vsel %vm2537, %v8054, 0.0
  %v8120 = vadd.f32 %v8118, %v8119
  %v8121 = vsel %vm2537, %v8055, 0.0
  %v8122 = vadd.f32 %v8120, %v8121
  %v8123 = vsel %vm2537, %v8056, 0.0
  %v8124 = vadd.f32 %v8122, %v8123
  %v8125 = vsel %vm2537, %v8057, 0.0
  %v8126 = vadd.f32 %v8124, %v8125
  %v8127 = vsel %vm2537, %v8058, 0.0
  %v8128 = vadd.f32 %v8126, %v8127
  %v8129 = vsel %vm2537, %v8059, 0.0
  %v8130 = vadd.f32 %v8128, %v8129
  %v8131 = vsel %vm2537, %v8060, 0.0
  %v8132 = vadd.f32 %v8130, %v8131
  %v8133 = vsel %vm2537, %v8061, 0.0
  %v8134 = vadd.f32 %v8132, %v8133
  %v8135 = vsel %vm2537, %v8062, 0.0
  %v8136 = vadd.f32 %v8134, %v8135
  %v8137 = vsel %vm2537, %v8063, 0.0
  %v8138 = vadd.f32 %v8136, %v8137
  %v8139 = vsel %vm2537, %v8064, 0.0
  %v8140 = vadd.f32 %v8138, %v8139
  %v8141 = vsel %vm2537, %v8065, 0.0
  %v8142 = vadd.f32 %v8140, %v8141
  %v8143 = vsel %vm2537, %v8066, 0.0
  %v8144 = vadd.f32 %v8142, %v8143
  %v8145 = vsel %vm2537, %v8067, 0.0
  %v8146 = vadd.f32 %v8144, %v8145
  %v8147 = vsel %vm2537, %v8068, 0.0
  %v8148 = vadd.f32 %v8146, %v8147
  %v8149 = vsel %vm2537, %v8069, 0.0
  %v8150 = vadd.f32 %v8148, %v8149
  %v8151 = vsel %vm2537, %v8070, 0.0
  %v8152 = vadd.f32 %v8150, %v8151
  %v8153 = vsel %vm2537, %v8071, 0.0
  %v8154 = vadd.f32 %v8152, %v8153
  %v8155 = vsel %vm2537, %v8072, 0.0
  %v8156 = vadd.f32 %v8154, %v8155
  %v8157 = vsel %vm2537, %v8073, 0.0
  %v8158 = vadd.f32 %v8156, %v8157
  %v8159 = vsel %vm2537, %v8074, 0.0
  %v8160 = vadd.f32 %v8158, %v8159
  %v8161 = vsel %vm2537, %v8075, 0.0
  %v8162 = vadd.f32 %v8160, %v8161
  %v8163 = vsel %vm2537, %v8076, 0.0
  %v8164 = vadd.f32 %v8162, %v8163
  %v8165 = vsel %vm2537, %v8077, 0.0
  %v8166 = vadd.f32 %v8164, %v8165
  %v8167 = vsel %vm2537, %v8078, 0.0
  %v8168 = vadd.f32 %v8166, %v8167
  %v8169 = vsel %vm2537, %v8079, 0.0
  %v8170 = vadd.f32 %v8168, %v8169
  %v8171 = vsel %vm2537, %v8080, 0.0
  %v8172 = vadd.f32 %v8170, %v8171
  %v8173 = vsel %vm2537, %v8081, 0.0
  %v8174 = vadd.f32 %v8172, %v8173
  %v8175 = vsel %vm2537, %v8082, 0.0
  %v8176 = vadd.f32 %v8174, %v8175
  %v8177 = vsel %vm2537, %v8083, 0.0
  %v8178 = vadd.f32 %v8176, %v8177
  %v8179 = vsel %vm2537, %v8084, 0.0
  %v8180 = vadd.f32 %v8178, %v8179
  %v8181 = vsel %vm2537, %v8085, 0.0
  %v8182 = vadd.f32 %v8180, %v8181
  %v8183 = vsel %vm2537, %v8086, 0.0
  %v8184 = vadd.f32 %v8182, %v8183
  %v8185 = vsel %vm2537, %v8087, 0.0
  %v8186 = vadd.f32 %v8184, %v8185
  %v8187 = vsel %vm2537, %v8088, 0.0
  %v8188 = vadd.f32 %v8186, %v8187
  %v8189 = vsel %vm2537, %v8089, 0.0
  %v8190 = vadd.f32 %v8188, %v8189
  %v8191 = vsel %vm2537, %v8090, 0.0
  %v8192 = vadd.f32 %v8190, %v8191
  %v8193 = vsel %vm2537, %v8091, 0.0
  %v8194 = vadd.f32 %v8192, %v8193
  %v8195 = vsel %vm2537, %v8092, 0.0
  %v8196 = vadd.f32 %v8194, %v8195
  %v8197 = vsel %vm2537, %v8093, 0.0
  %v8198 = vadd.f32 %v8196, %v8197
  %v8199 = vsel %vm2537, %v8094, 0.0
  %v8200 = vadd.f32 %v8198, %v8199
  %v8201 = vsel %vm2537, %v8095, 0.0
  %v8202 = vadd.f32 %v8200, %v8201
  %v8203 = vsel %vm2537, %v8096, 0.0
  %v8204 = vadd.f32 %v8202, %v8203
  %v8205 = vsel %vm2537, %v8097, 0.0
  %v8206 = vadd.f32 %v8204, %v8205
  %v8207 = vsel %vm2537, %v8098, 0.0
  %v8208 = vadd.f32 %v8206, %v8207
  %v8209 = vsel %vm2537, %v8099, 0.0
  %v8210 = vadd.f32 %v8208, %v8209
  %v8211 = vsel %vm2537, %v8100, 0.0
  %v8212 = vadd.f32 %v8210, %v8211
  %v8213 = vsel %vm2537, %v8101, 0.0
  %v8214 = vadd.f32 %v8212, %v8213
  %v8215 = vsel %vm2537, %v8102, 0.0
  %v8216 = vadd.f32 %v8214, %v8215
  %v8217 = vsel %vm2537, %v8103, 0.0
  %v8218 = vadd.f32 %v8216, %v8217
  %v8219 = vsel %vm2537, %v8104, 0.0
  %v8220 = vadd.f32 %v8218, %v8219
  %v8221 = vsel %vm2537, %v8105, 0.0
  %v8222 = vadd.f32 %v8220, %v8221
  %v8223 = vsel %vm2537, %v8106, 0.0
  %v8224 = vadd.f32 %v8222, %v8223
  %v8225 = vsel %vm2537, %v8107, 0.0
  %v8226 = vadd.f32 %v8224, %v8225
  %v8227 = vsel %vm2537, %v8108, 0.0
  %v8228 = vadd.f32 %v8226, %v8227
  %v8229 = vsel %vm2537, %v8109, 0.0
  %v8230 = vadd.f32 %v8228, %v8229
  %v8231 = vsel %vm2537, %v8110, 0.0
  %v8232 = vadd.f32 %v8230, %v8231
  %v8233 = vsel %vm2537, %v8111, 0.0
  %v8234 = vadd.f32 %v8232, %v8233
  %v8235 = vsel %vm2537, %v8112, 0.0
  %v8236 = vadd.f32 %v8234, %v8235
  %v8237 = vsel %vm2537, %v8113, 0.0
  %v8238 = vadd.f32 %v8236, %v8237
  %v8239 = vsel %vm2537, %v8114, 0.0
  %v8240 = vadd.f32 %v8238, %v8239
  %v8241 = vsel %vm2537, %v8115, 0.0
  %v8242 = vadd.f32 %v8240, %v8241
  %v8243 = vrot.slane %v8242, 4
  %v8244 = vadd.f32 %v8242, %v8243
  %v8245 = vrot.slane %v8244, 2
  %v8246 = vadd.f32 %v8244, %v8245
  %v8247 = vrot.slane %v8246, 1
  %v8248 = vadd.f32 %v8246, %v8247
  %v8249 = vmul.f32 %v8248, 0.001953125
  %v8250 = vmul.f32 %v8051, %v8051
  %v8251 = vsub.f32 %v8249, %v8250
  %v8252 = vmax.f32 %v8251, 0.0
  %v8253 = vsub.f32 %v7662, %v8051
  %v8254 = vsub.f32 %v7665, %v8051
  %v8255 = vsub.f32 %v7670, %v8051
  %v8256 = vsub.f32 %v7673, %v8051
  %v8257 = vsub.f32 %v7678, %v8051
  %v8258 = vsub.f32 %v7681, %v8051
  %v8259 = vsub.f32 %v7686, %v8051
  %v8260 = vsub.f32 %v7689, %v8051
  %v8261 = vsub.f32 %v7694, %v8051
  %v8262 = vsub.f32 %v7697, %v8051
  %v8263 = vsub.f32 %v7702, %v8051
  %v8264 = vsub.f32 %v7705, %v8051
  %v8265 = vsub.f32 %v7710, %v8051
  %v8266 = vsub.f32 %v7713, %v8051
  %v8267 = vsub.f32 %v7718, %v8051
  %v8268 = vsub.f32 %v7721, %v8051
  %v8269 = vsub.f32 %v7726, %v8051
  %v8270 = vsub.f32 %v7729, %v8051
  %v8271 = vsub.f32 %v7734, %v8051
  %v8272 = vsub.f32 %v7737, %v8051
  %v8273 = vsub.f32 %v7742, %v8051
  %v8274 = vsub.f32 %v7745, %v8051
  %v8275 = vsub.f32 %v7750, %v8051
  %v8276 = vsub.f32 %v7753, %v8051
  %v8277 = vsub.f32 %v7758, %v8051
  %v8278 = vsub.f32 %v7761, %v8051
  %v8279 = vsub.f32 %v7766, %v8051
  %v8280 = vsub.f32 %v7769, %v8051
  %v8281 = vsub.f32 %v7774, %v8051
  %v8282 = vsub.f32 %v7777, %v8051
  %v8283 = vsub.f32 %v7782, %v8051
  %v8284 = vsub.f32 %v7785, %v8051
  %v8285 = vsub.f32 %v7790, %v8051
  %v8286 = vsub.f32 %v7793, %v8051
  %v8287 = vsub.f32 %v7798, %v8051
  %v8288 = vsub.f32 %v7801, %v8051
  %v8289 = vsub.f32 %v7806, %v8051
  %v8290 = vsub.f32 %v7809, %v8051
  %v8291 = vsub.f32 %v7814, %v8051
  %v8292 = vsub.f32 %v7817, %v8051
  %v8293 = vsub.f32 %v7822, %v8051
  %v8294 = vsub.f32 %v7825, %v8051
  %v8295 = vsub.f32 %v7830, %v8051
  %v8296 = vsub.f32 %v7833, %v8051
  %v8297 = vsub.f32 %v7838, %v8051
  %v8298 = vsub.f32 %v7841, %v8051
  %v8299 = vsub.f32 %v7846, %v8051
  %v8300 = vsub.f32 %v7849, %v8051
  %v8301 = vsub.f32 %v7854, %v8051
  %v8302 = vsub.f32 %v7857, %v8051
  %v8303 = vsub.f32 %v7862, %v8051
  %v8304 = vsub.f32 %v7865, %v8051
  %v8305 = vsub.f32 %v7870, %v8051
  %v8306 = vsub.f32 %v7873, %v8051
  %v8307 = vsub.f32 %v7878, %v8051
  %v8308 = vsub.f32 %v7881, %v8051
  %v8309 = vsub.f32 %v7886, %v8051
  %v8310 = vsub.f32 %v7889, %v8051
  %v8311 = vsub.f32 %v7894, %v8051
  %v8312 = vsub.f32 %v7897, %v8051
  %v8313 = vsub.f32 %v7902, %v8051
  %v8314 = vsub.f32 %v7905, %v8051
  %v8315 = vsub.f32 %v7910, %v8051
  %v8316 = vsub.f32 %v7913, %v8051
  %v8317 = vadd.f32 %v8252, 1e-05
  %v8318 = vrsqrt.pop %v8317
  %v8319 = vmul.f32 %v8318, %v7916
  %v8320 = vlaneseq
  %v8321 = vshrl.u32 %v8320, 7
  %v8322 = vsub.s32 0, %v8321
  %v8323 = vrot.slane %v8319, %v8322
  %v8324 = vmul.f32 %v8253, %v8323
  %v8325 = vmul.f32 %v8254, %v8323
  %v8326 = vmul.f32 %v8255, %v8323
  %v8327 = vmul.f32 %v8256, %v8323
  %v8328 = vmul.f32 %v8257, %v8323
  %v8329 = vmul.f32 %v8258, %v8323
  %v8330 = vmul.f32 %v8259, %v8323
  %v8331 = vmul.f32 %v8260, %v8323
  %v8332 = vmul.f32 %v8261, %v8323
  %v8333 = vmul.f32 %v8262, %v8323
  %v8334 = vmul.f32 %v8263, %v8323
  %v8335 = vmul.f32 %v8264, %v8323
  %v8336 = vmul.f32 %v8265, %v8323
  %v8337 = vmul.f32 %v8266, %v8323
  %v8338 = vmul.f32 %v8267, %v8323
  %v8339 = vmul.f32 %v8268, %v8323
  %v8340 = vmul.f32 %v8269, %v8323
  %v8341 = vmul.f32 %v8270, %v8323
  %v8342 = vmul.f32 %v8271, %v8323
  %v8343 = vmul.f32 %v8272, %v8323
  %v8344 = vmul.f32 %v8273, %v8323
  %v8345 = vmul.f32 %v8274, %v8323
  %v8346 = vmul.f32 %v8275, %v8323
  %v8347 = vmul.f32 %v8276, %v8323
  %v8348 = vmul.f32 %v8277, %v8323
  %v8349 = vmul.f32 %v8278, %v8323
  %v8350 = vmul.f32 %v8279, %v8323
  %v8351 = vmul.f32 %v8280, %v8323
  %v8352 = vmul.f32 %v8281, %v8323
  %v8353 = vmul.f32 %v8282, %v8323
  %v8354 = vmul.f32 %v8283, %v8323
  %v8355 = vmul.f32 %v8284, %v8323
  %v8356 = vmul.f32 %v8285, %v8323
  %v8357 = vmul.f32 %v8286, %v8323
  %v8358 = vmul.f32 %v8287, %v8323
  %v8359 = vmul.f32 %v8288, %v8323
  %v8360 = vmul.f32 %v8289, %v8323
  %v8361 = vmul.f32 %v8290, %v8323
  %v8362 = vmul.f32 %v8291, %v8323
  %v8363 = vmul.f32 %v8292, %v8323
  %v8364 = vmul.f32 %v8293, %v8323
  %v8365 = vmul.f32 %v8294, %v8323
  %v8366 = vmul.f32 %v8295, %v8323
  %v8367 = vmul.f32 %v8296, %v8323
  %v8368 = vmul.f32 %v8297, %v8323
  %v8369 = vmul.f32 %v8298, %v8323
  %v8370 = vmul.f32 %v8299, %v8323
  %v8371 = vmul.f32 %v8300, %v8323
  %v8372 = vmul.f32 %v8301, %v8323
  %v8373 = vmul.f32 %v8302, %v8323
  %v8374 = vmul.f32 %v8303, %v8323
  %v8375 = vmul.f32 %v8304, %v8323
  %v8376 = vmul.f32 %v8305, %v8323
  %v8377 = vmul.f32 %v8306, %v8323
  %v8378 = vmul.f32 %v8307, %v8323
  %v8379 = vmul.f32 %v8308, %v8323
  %v8380 = vmul.f32 %v8309, %v8323
  %v8381 = vmul.f32 %v8310, %v8323
  %v8382 = vmul.f32 %v8311, %v8323
  %v8383 = vmul.f32 %v8312, %v8323
  %v8384 = vmul.f32 %v8313, %v8323
  %v8385 = vmul.f32 %v8314, %v8323
  %v8386 = vmul.f32 %v8315, %v8323
  %v8387 = vmul.f32 %v8316, %v8323
  %v8389 = vlaneseq
  %v8390 = vshrl.u32 %v8389, 7
  %v8391 = vsub.s32 0, %v8390
  %v8392 = vrot.slane %v7917, %v8391
  %v8394 = vadd.f32 %v8324, %v8392
  %v8395 = vadd.f32 %v8325, %v8392
  %v8396 = vadd.f32 %v8326, %v8392
  %v8397 = vadd.f32 %v8327, %v8392
  %v8398 = vadd.f32 %v8328, %v8392
  %v8399 = vadd.f32 %v8329, %v8392
  %v8400 = vadd.f32 %v8330, %v8392
  %v8401 = vadd.f32 %v8331, %v8392
  %v8402 = vadd.f32 %v8332, %v8392
  %v8403 = vadd.f32 %v8333, %v8392
  %v8404 = vadd.f32 %v8334, %v8392
  %v8405 = vadd.f32 %v8335, %v8392
  %v8406 = vadd.f32 %v8336, %v8392
  %v8407 = vadd.f32 %v8337, %v8392
  %v8408 = vadd.f32 %v8338, %v8392
  %v8409 = vadd.f32 %v8339, %v8392
  %v8410 = vadd.f32 %v8340, %v8392
  %v8411 = vadd.f32 %v8341, %v8392
  %v8412 = vadd.f32 %v8342, %v8392
  %v8413 = vadd.f32 %v8343, %v8392
  %v8414 = vadd.f32 %v8344, %v8392
  %v8415 = vadd.f32 %v8345, %v8392
  %v8416 = vadd.f32 %v8346, %v8392
  %v8417 = vadd.f32 %v8347, %v8392
  %v8418 = vadd.f32 %v8348, %v8392
  %v8419 = vadd.f32 %v8349, %v8392
  %v8420 = vadd.f32 %v8350, %v8392
  %v8421 = vadd.f32 %v8351, %v8392
  %v8422 = vadd.f32 %v8352, %v8392
  %v8423 = vadd.f32 %v8353, %v8392
  %v8424 = vadd.f32 %v8354, %v8392
  %v8425 = vadd.f32 %v8355, %v8392
  %v8426 = vadd.f32 %v8356, %v8392
  %v8427 = vadd.f32 %v8357, %v8392
  %v8428 = vadd.f32 %v8358, %v8392
  %v8429 = vadd.f32 %v8359, %v8392
  %v8430 = vadd.f32 %v8360, %v8392
  %v8431 = vadd.f32 %v8361, %v8392
  %v8432 = vadd.f32 %v8362, %v8392
  %v8433 = vadd.f32 %v8363, %v8392
  %v8434 = vadd.f32 %v8364, %v8392
  %v8435 = vadd.f32 %v8365, %v8392
  %v8436 = vadd.f32 %v8366, %v8392
  %v8437 = vadd.f32 %v8367, %v8392
  %v8438 = vadd.f32 %v8368, %v8392
  %v8439 = vadd.f32 %v8369, %v8392
  %v8440 = vadd.f32 %v8370, %v8392
  %v8441 = vadd.f32 %v8371, %v8392
  %v8442 = vadd.f32 %v8372, %v8392
  %v8443 = vadd.f32 %v8373, %v8392
  %v8444 = vadd.f32 %v8374, %v8392
  %v8445 = vadd.f32 %v8375, %v8392
  %v8446 = vadd.f32 %v8376, %v8392
  %v8447 = vadd.f32 %v8377, %v8392
  %v8448 = vadd.f32 %v8378, %v8392
  %v8449 = vadd.f32 %v8379, %v8392
  %v8450 = vadd.f32 %v8380, %v8392
  %v8451 = vadd.f32 %v8381, %v8392
  %v8452 = vadd.f32 %v8382, %v8392
  %v8453 = vadd.f32 %v8383, %v8392
  %v8454 = vadd.f32 %v8384, %v8392
  %v8455 = vadd.f32 %v8385, %v8392
  %v8456 = vadd.f32 %v8386, %v8392
  %v8457 = vadd.f32 %v8387, %v8392
  %v8458 = vmax.f32 %v8394, 0.0
  %v8459 = vmax.f32 %v8395, 0.0
  %v8460 = vmax.f32 %v8396, 0.0
  %v8461 = vmax.f32 %v8397, 0.0
  %v8462 = vmax.f32 %v8398, 0.0
  %v8463 = vmax.f32 %v8399, 0.0
  %v8464 = vmax.f32 %v8400, 0.0
  %v8465 = vmax.f32 %v8401, 0.0
  %v8466 = vmax.f32 %v8402, 0.0
  %v8467 = vmax.f32 %v8403, 0.0
  %v8468 = vmax.f32 %v8404, 0.0
  %v8469 = vmax.f32 %v8405, 0.0
  %v8470 = vmax.f32 %v8406, 0.0
  %v8471 = vmax.f32 %v8407, 0.0
  %v8472 = vmax.f32 %v8408, 0.0
  %v8473 = vmax.f32 %v8409, 0.0
  %v8474 = vmax.f32 %v8410, 0.0
  %v8475 = vmax.f32 %v8411, 0.0
  %v8476 = vmax.f32 %v8412, 0.0
  %v8477 = vmax.f32 %v8413, 0.0
  %v8478 = vmax.f32 %v8414, 0.0
  %v8479 = vmax.f32 %v8415, 0.0
  %v8480 = vmax.f32 %v8416, 0.0
  %v8481 = vmax.f32 %v8417, 0.0
  %v8482 = vmax.f32 %v8418, 0.0
  %v8483 = vmax.f32 %v8419, 0.0
  %v8484 = vmax.f32 %v8420, 0.0
  %v8485 = vmax.f32 %v8421, 0.0
  %v8486 = vmax.f32 %v8422, 0.0
  %v8487 = vmax.f32 %v8423, 0.0
  %v8488 = vmax.f32 %v8424, 0.0
  %v8489 = vmax.f32 %v8425, 0.0
  %v8490 = vmax.f32 %v8426, 0.0
  %v8491 = vmax.f32 %v8427, 0.0
  %v8492 = vmax.f32 %v8428, 0.0
  %v8493 = vmax.f32 %v8429, 0.0
  %v8494 = vmax.f32 %v8430, 0.0
  %v8495 = vmax.f32 %v8431, 0.0
  %v8496 = vmax.f32 %v8432, 0.0
  %v8497 = vmax.f32 %v8433, 0.0
  %v8498 = vmax.f32 %v8434, 0.0
  %v8499 = vmax.f32 %v8435, 0.0
  %v8500 = vmax.f32 %v8436, 0.0
  %v8501 = vmax.f32 %v8437, 0.0
  %v8502 = vmax.f32 %v8438, 0.0
  %v8503 = vmax.f32 %v8439, 0.0
  %v8504 = vmax.f32 %v8440, 0.0
  %v8505 = vmax.f32 %v8441, 0.0
  %v8506 = vmax.f32 %v8442, 0.0
  %v8507 = vmax.f32 %v8443, 0.0
  %v8508 = vmax.f32 %v8444, 0.0
  %v8509 = vmax.f32 %v8445, 0.0
  %v8510 = vmax.f32 %v8446, 0.0
  %v8511 = vmax.f32 %v8447, 0.0
  %v8512 = vmax.f32 %v8448, 0.0
  %v8513 = vmax.f32 %v8449, 0.0
  %v8514 = vmax.f32 %v8450, 0.0
  %v8515 = vmax.f32 %v8451, 0.0
  %v8516 = vmax.f32 %v8452, 0.0
  %v8517 = vmax.f32 %v8453, 0.0
  %v8518 = vmax.f32 %v8454, 0.0
  %v8519 = vmax.f32 %v8455, 0.0
  %v8520 = vmax.f32 %v8456, 0.0
  %v8521 = vmax.f32 %v8457, 0.0
  %v8522 = vld [vmem:[%s1] sm:$0xff]
  %v8523 = vld [vmem:[%s1 + $0x8] sm:$0xff]
  %v8524 = vld [vmem:[%s1 + $0x10] sm:$0xff]
  %v8525 = vld [vmem:[%s1 + $0x18] sm:$0xff]
  %v8526 = vld [vmem:[%s1 + $0x20] sm:$0xff]
  %v8527 = vld [vmem:[%s1 + $0x28] sm:$0xff]
  %v8528 = vld [vmem:[%s1 + $0x30] sm:$0xff]
  %v8529 = vld [vmem:[%s1 + $0x38] sm:$0xff]
  %v8530 = vld [vmem:[%s1 + $0x40] sm:$0xff]
  %v8531 = vld [vmem:[%s1 + $0x48] sm:$0xff]
  %v8532 = vld [vmem:[%s1 + $0x50] sm:$0xff]
  %v8533 = vld [vmem:[%s1 + $0x58] sm:$0xff]
  %v8534 = vld [vmem:[%s1 + $0x60] sm:$0xff]
  %v8535 = vld [vmem:[%s1 + $0x68] sm:$0xff]
  %v8536 = vld [vmem:[%s1 + $0x70] sm:$0xff]
  %v8537 = vld [vmem:[%s1 + $0x78] sm:$0xff]
  %v8538 = vld [vmem:[%s1 + $0x80] sm:$0xff]
  %v8539 = vld [vmem:[%s1 + $0x88] sm:$0xff]
  %v8540 = vld [vmem:[%s1 + $0x90] sm:$0xff]
  %v8541 = vld [vmem:[%s1 + $0x98] sm:$0xff]
  %v8542 = vld [vmem:[%s1 + $0xa0] sm:$0xff]
  %v8543 = vld [vmem:[%s1 + $0xa8] sm:$0xff]
  %v8544 = vld [vmem:[%s1 + $0xb0] sm:$0xff]
  %v8545 = vld [vmem:[%s1 + $0xb8] sm:$0xff]
  %v8546 = vld [vmem:[%s1 + $0xc0] sm:$0xff]
  %v8547 = vld [vmem:[%s1 + $0xc8] sm:$0xff]
  %v8548 = vld [vmem:[%s1 + $0xd0] sm:$0xff]
  %v8549 = vld [vmem:[%s1 + $0xd8] sm:$0xff]
  %v8550 = vld [vmem:[%s1 + $0xe0] sm:$0xff]
  %v8551 = vld [vmem:[%s1 + $0xe8] sm:$0xff]
  %v8552 = vld [vmem:[%s1 + $0xf0] sm:$0xff]
  %v8553 = vld [vmem:[%s1 + $0xf8] sm:$0xff]
  %v8554 = vld [vmem:[%s1 + $0x100] sm:$0xff]
  %v8555 = vld [vmem:[%s1 + $0x108] sm:$0xff]
  %v8556 = vld [vmem:[%s1 + $0x110] sm:$0xff]
  %v8557 = vld [vmem:[%s1 + $0x118] sm:$0xff]
  %v8558 = vld [vmem:[%s1 + $0x120] sm:$0xff]
  %v8559 = vld [vmem:[%s1 + $0x128] sm:$0xff]
  %v8560 = vld [vmem:[%s1 + $0x130] sm:$0xff]
  %v8561 = vld [vmem:[%s1 + $0x138] sm:$0xff]
  %v8562 = vld [vmem:[%s1 + $0x140] sm:$0xff]
  %v8563 = vld [vmem:[%s1 + $0x148] sm:$0xff]
  %v8564 = vld [vmem:[%s1 + $0x150] sm:$0xff]
  %v8565 = vld [vmem:[%s1 + $0x158] sm:$0xff]
  %v8566 = vld [vmem:[%s1 + $0x160] sm:$0xff]
  %v8567 = vld [vmem:[%s1 + $0x168] sm:$0xff]
  %v8568 = vld [vmem:[%s1 + $0x170] sm:$0xff]
  %v8569 = vld [vmem:[%s1 + $0x178] sm:$0xff]
  %v8570 = vld [vmem:[%s1 + $0x180] sm:$0xff]
  %v8571 = vld [vmem:[%s1 + $0x188] sm:$0xff]
  %v8572 = vld [vmem:[%s1 + $0x190] sm:$0xff]
  %v8573 = vld [vmem:[%s1 + $0x198] sm:$0xff]
  %v8574 = vld [vmem:[%s1 + $0x1a0] sm:$0xff]
  %v8575 = vld [vmem:[%s1 + $0x1a8] sm:$0xff]
  %v8576 = vld [vmem:[%s1 + $0x1b0] sm:$0xff]
  %v8577 = vld [vmem:[%s1 + $0x1b8] sm:$0xff]
  %v8578 = vld [vmem:[%s1 + $0x1c0] sm:$0xff]
  %v8579 = vld [vmem:[%s1 + $0x1c8] sm:$0xff]
  %v8580 = vld [vmem:[%s1 + $0x1d0] sm:$0xff]
  %v8581 = vld [vmem:[%s1 + $0x1d8] sm:$0xff]
  %v8582 = vld [vmem:[%s1 + $0x1e0] sm:$0xff]
  %v8583 = vld [vmem:[%s1 + $0x1e8] sm:$0xff]
  %v8584 = vld [vmem:[%s1 + $0x1f0] sm:$0xff]
  %v8585 = vld [vmem:[%s1 + $0x1f8] sm:$0xff]
  %v8586 = vadd.f32 %v8458, %v8522
  %v8587 = vadd.f32 %v8459, %v8523
  %v8588 = vadd.f32 %v8460, %v8524
  %v8589 = vadd.f32 %v8461, %v8525
  %v8590 = vadd.f32 %v8462, %v8526
  %v8591 = vadd.f32 %v8463, %v8527
  %v8592 = vadd.f32 %v8464, %v8528
  %v8593 = vadd.f32 %v8465, %v8529
  %v8594 = vadd.f32 %v8466, %v8530
  %v8595 = vadd.f32 %v8467, %v8531
  %v8596 = vadd.f32 %v8468, %v8532
  %v8597 = vadd.f32 %v8469, %v8533
  %v8598 = vadd.f32 %v8470, %v8534
  %v8599 = vadd.f32 %v8471, %v8535
  %v8600 = vadd.f32 %v8472, %v8536
  %v8601 = vadd.f32 %v8473, %v8537
  %v8602 = vadd.f32 %v8474, %v8538
  %v8603 = vadd.f32 %v8475, %v8539
  %v8604 = vadd.f32 %v8476, %v8540
  %v8605 = vadd.f32 %v8477, %v8541
  %v8606 = vadd.f32 %v8478, %v8542
  %v8607 = vadd.f32 %v8479, %v8543
  %v8608 = vadd.f32 %v8480, %v8544
  %v8609 = vadd.f32 %v8481, %v8545
  %v8610 = vadd.f32 %v8482, %v8546
  %v8611 = vadd.f32 %v8483, %v8547
  %v8612 = vadd.f32 %v8484, %v8548
  %v8613 = vadd.f32 %v8485, %v8549
  %v8614 = vadd.f32 %v8486, %v8550
  %v8615 = vadd.f32 %v8487, %v8551
  %v8616 = vadd.f32 %v8488, %v8552
  %v8617 = vadd.f32 %v8489, %v8553
  %v8618 = vadd.f32 %v8490, %v8554
  %v8619 = vadd.f32 %v8491, %v8555
  %v8620 = vadd.f32 %v8492, %v8556
  %v8621 = vadd.f32 %v8493, %v8557
  %v8622 = vadd.f32 %v8494, %v8558
  %v8623 = vadd.f32 %v8495, %v8559
  %v8624 = vadd.f32 %v8496, %v8560
  %v8625 = vadd.f32 %v8497, %v8561
  %v8626 = vadd.f32 %v8498, %v8562
  %v8627 = vadd.f32 %v8499, %v8563
  %v8628 = vadd.f32 %v8500, %v8564
  %v8629 = vadd.f32 %v8501, %v8565
  %v8630 = vadd.f32 %v8502, %v8566
  %v8631 = vadd.f32 %v8503, %v8567
  %v8632 = vadd.f32 %v8504, %v8568
  %v8633 = vadd.f32 %v8505, %v8569
  %v8634 = vadd.f32 %v8506, %v8570
  %v8635 = vadd.f32 %v8507, %v8571
  %v8636 = vadd.f32 %v8508, %v8572
  %v8637 = vadd.f32 %v8509, %v8573
  %v8638 = vadd.f32 %v8510, %v8574
  %v8639 = vadd.f32 %v8511, %v8575
  %v8640 = vadd.f32 %v8512, %v8576
  %v8641 = vadd.f32 %v8513, %v8577
  %v8642 = vadd.f32 %v8514, %v8578
  %v8643 = vadd.f32 %v8515, %v8579
  %v8644 = vadd.f32 %v8516, %v8580
  %v8645 = vadd.f32 %v8517, %v8581
  %v8646 = vadd.f32 %v8518, %v8582
  %v8647 = vadd.f32 %v8519, %v8583
  %v8648 = vadd.f32 %v8520, %v8584
  %v8649 = vadd.f32 %v8521, %v8585
  %v8650 = vmax.f32 %v8586, 0.0
  %v8651 = vmax.f32 %v8587, 0.0
  %v8652 = vmax.f32 %v8588, 0.0
  %v8653 = vmax.f32 %v8589, 0.0
  %v8654 = vmax.f32 %v8590, 0.0
  %v8655 = vmax.f32 %v8591, 0.0
  %v8656 = vmax.f32 %v8592, 0.0
  %v8657 = vmax.f32 %v8593, 0.0
  %v8658 = vmax.f32 %v8594, 0.0
  %v8659 = vmax.f32 %v8595, 0.0
  %v8660 = vmax.f32 %v8596, 0.0
  %v8661 = vmax.f32 %v8597, 0.0
  %v8662 = vmax.f32 %v8598, 0.0
  %v8663 = vmax.f32 %v8599, 0.0
  %v8664 = vmax.f32 %v8600, 0.0
  %v8665 = vmax.f32 %v8601, 0.0
  %v8666 = vmax.f32 %v8602, 0.0
  %v8667 = vmax.f32 %v8603, 0.0
  %v8668 = vmax.f32 %v8604, 0.0
  %v8669 = vmax.f32 %v8605, 0.0
  %v8670 = vmax.f32 %v8606, 0.0
  %v8671 = vmax.f32 %v8607, 0.0
  %v8672 = vmax.f32 %v8608, 0.0
  %v8673 = vmax.f32 %v8609, 0.0
  %v8674 = vmax.f32 %v8610, 0.0
  %v8675 = vmax.f32 %v8611, 0.0
  %v8676 = vmax.f32 %v8612, 0.0
  %v8677 = vmax.f32 %v8613, 0.0
  %v8678 = vmax.f32 %v8614, 0.0
  %v8679 = vmax.f32 %v8615, 0.0
  %v8680 = vmax.f32 %v8616, 0.0
  %v8681 = vmax.f32 %v8617, 0.0
  %v8682 = vmax.f32 %v8618, 0.0
  %v8683 = vmax.f32 %v8619, 0.0
  %v8684 = vmax.f32 %v8620, 0.0
  %v8685 = vmax.f32 %v8621, 0.0
  %v8686 = vmax.f32 %v8622, 0.0
  %v8687 = vmax.f32 %v8623, 0.0
  %v8688 = vmax.f32 %v8624, 0.0
  %v8689 = vmax.f32 %v8625, 0.0
  %v8690 = vmax.f32 %v8626, 0.0
  %v8691 = vmax.f32 %v8627, 0.0
  %v8692 = vmax.f32 %v8628, 0.0
  %v8693 = vmax.f32 %v8629, 0.0
  %v8694 = vmax.f32 %v8630, 0.0
  %v8695 = vmax.f32 %v8631, 0.0
  %v8696 = vmax.f32 %v8632, 0.0
  %v8697 = vmax.f32 %v8633, 0.0
  %v8698 = vmax.f32 %v8634, 0.0
  %v8699 = vmax.f32 %v8635, 0.0
  %v8700 = vmax.f32 %v8636, 0.0
  %v8701 = vmax.f32 %v8637, 0.0
  %v8702 = vmax.f32 %v8638, 0.0
  %v8703 = vmax.f32 %v8639, 0.0
  %v8704 = vmax.f32 %v8640, 0.0
  %v8705 = vmax.f32 %v8641, 0.0
  %v8706 = vmax.f32 %v8642, 0.0
  %v8707 = vmax.f32 %v8643, 0.0
  %v8708 = vmax.f32 %v8644, 0.0
  %v8709 = vmax.f32 %v8645, 0.0
  %v8710 = vmax.f32 %v8646, 0.0
  %v8711 = vmax.f32 %v8647, 0.0
  %v8712 = vmax.f32 %v8648, 0.0
  %v8713 = vmax.f32 %v8649, 0.0
  %8714 = vst.msk [vmem:[%s8] sm:$0xff] %vm2537, %v8650
  %8715 = vst.msk [vmem:[%s8 + $0x8] sm:$0xff] %vm2537, %v8651
  %8716 = vst.msk [vmem:[%s8 + $0x10] sm:$0xff] %vm2537, %v8652
  %8717 = vst.msk [vmem:[%s8 + $0x18] sm:$0xff] %vm2537, %v8653
  %8718 = vst.msk [vmem:[%s8 + $0x20] sm:$0xff] %vm2537, %v8654
  %8719 = vst.msk [vmem:[%s8 + $0x28] sm:$0xff] %vm2537, %v8655
  %8720 = vst.msk [vmem:[%s8 + $0x30] sm:$0xff] %vm2537, %v8656
  %8721 = vst.msk [vmem:[%s8 + $0x38] sm:$0xff] %vm2537, %v8657
  %8722 = vst.msk [vmem:[%s8 + $0x40] sm:$0xff] %vm2537, %v8658
  %8723 = vst.msk [vmem:[%s8 + $0x48] sm:$0xff] %vm2537, %v8659
  %8724 = vst.msk [vmem:[%s8 + $0x50] sm:$0xff] %vm2537, %v8660
  %8725 = vst.msk [vmem:[%s8 + $0x58] sm:$0xff] %vm2537, %v8661
  %8726 = vst.msk [vmem:[%s8 + $0x60] sm:$0xff] %vm2537, %v8662
  %8727 = vst.msk [vmem:[%s8 + $0x68] sm:$0xff] %vm2537, %v8663
  %8728 = vst.msk [vmem:[%s8 + $0x70] sm:$0xff] %vm2537, %v8664
  %8729 = vst.msk [vmem:[%s8 + $0x78] sm:$0xff] %vm2537, %v8665
  %8730 = vst.msk [vmem:[%s8 + $0x80] sm:$0xff] %vm2537, %v8666
  %8731 = vst.msk [vmem:[%s8 + $0x88] sm:$0xff] %vm2537, %v8667
  %8732 = vst.msk [vmem:[%s8 + $0x90] sm:$0xff] %vm2537, %v8668
  %8733 = vst.msk [vmem:[%s8 + $0x98] sm:$0xff] %vm2537, %v8669
  %8734 = vst.msk [vmem:[%s8 + $0xa0] sm:$0xff] %vm2537, %v8670
  %8735 = vst.msk [vmem:[%s8 + $0xa8] sm:$0xff] %vm2537, %v8671
  %8736 = vst.msk [vmem:[%s8 + $0xb0] sm:$0xff] %vm2537, %v8672
  %8737 = vst.msk [vmem:[%s8 + $0xb8] sm:$0xff] %vm2537, %v8673
  %8738 = vst.msk [vmem:[%s8 + $0xc0] sm:$0xff] %vm2537, %v8674
  %8739 = vst.msk [vmem:[%s8 + $0xc8] sm:$0xff] %vm2537, %v8675
  %8740 = vst.msk [vmem:[%s8 + $0xd0] sm:$0xff] %vm2537, %v8676
  %8741 = vst.msk [vmem:[%s8 + $0xd8] sm:$0xff] %vm2537, %v8677
  %8742 = vst.msk [vmem:[%s8 + $0xe0] sm:$0xff] %vm2537, %v8678
  %8743 = vst.msk [vmem:[%s8 + $0xe8] sm:$0xff] %vm2537, %v8679
  %8744 = vst.msk [vmem:[%s8 + $0xf0] sm:$0xff] %vm2537, %v8680
  %8745 = vst.msk [vmem:[%s8 + $0xf8] sm:$0xff] %vm2537, %v8681
  %8746 = vst.msk [vmem:[%s8 + $0x100] sm:$0xff] %vm2537, %v8682
  %8747 = vst.msk [vmem:[%s8 + $0x108] sm:$0xff] %vm2537, %v8683
  %8748 = vst.msk [vmem:[%s8 + $0x110] sm:$0xff] %vm2537, %v8684
  %8749 = vst.msk [vmem:[%s8 + $0x118] sm:$0xff] %vm2537, %v8685
  %8750 = vst.msk [vmem:[%s8 + $0x120] sm:$0xff] %vm2537, %v8686
  %8751 = vst.msk [vmem:[%s8 + $0x128] sm:$0xff] %vm2537, %v8687
  %8752 = vst.msk [vmem:[%s8 + $0x130] sm:$0xff] %vm2537, %v8688
  %8753 = vst.msk [vmem:[%s8 + $0x138] sm:$0xff] %vm2537, %v8689
  %8754 = vst.msk [vmem:[%s8 + $0x140] sm:$0xff] %vm2537, %v8690
  %8755 = vst.msk [vmem:[%s8 + $0x148] sm:$0xff] %vm2537, %v8691
  %8756 = vst.msk [vmem:[%s8 + $0x150] sm:$0xff] %vm2537, %v8692
  %8757 = vst.msk [vmem:[%s8 + $0x158] sm:$0xff] %vm2537, %v8693
  %8758 = vst.msk [vmem:[%s8 + $0x160] sm:$0xff] %vm2537, %v8694
  %8759 = vst.msk [vmem:[%s8 + $0x168] sm:$0xff] %vm2537, %v8695
  %8760 = vst.msk [vmem:[%s8 + $0x170] sm:$0xff] %vm2537, %v8696
  %8761 = vst.msk [vmem:[%s8 + $0x178] sm:$0xff] %vm2537, %v8697
  %8762 = vst.msk [vmem:[%s8 + $0x180] sm:$0xff] %vm2537, %v8698
  %8763 = vst.msk [vmem:[%s8 + $0x188] sm:$0xff] %vm2537, %v8699
  %8764 = vst.msk [vmem:[%s8 + $0x190] sm:$0xff] %vm2537, %v8700
  %8765 = vst.msk [vmem:[%s8 + $0x198] sm:$0xff] %vm2537, %v8701
  %8766 = vst.msk [vmem:[%s8 + $0x1a0] sm:$0xff] %vm2537, %v8702
  %8767 = vst.msk [vmem:[%s8 + $0x1a8] sm:$0xff] %vm2537, %v8703
  %8768 = vst.msk [vmem:[%s8 + $0x1b0] sm:$0xff] %vm2537, %v8704
  %8769 = vst.msk [vmem:[%s8 + $0x1b8] sm:$0xff] %vm2537, %v8705
  %8770 = vst.msk [vmem:[%s8 + $0x1c0] sm:$0xff] %vm2537, %v8706
  %8771 = vst.msk [vmem:[%s8 + $0x1c8] sm:$0xff] %vm2537, %v8707
  %8772 = vst.msk [vmem:[%s8 + $0x1d0] sm:$0xff] %vm2537, %v8708
  %8773 = vst.msk [vmem:[%s8 + $0x1d8] sm:$0xff] %vm2537, %v8709
  %8774 = vst.msk [vmem:[%s8 + $0x1e0] sm:$0xff] %vm2537, %v8710
  %8775 = vst.msk [vmem:[%s8 + $0x1e8] sm:$0xff] %vm2537, %v8711
  %8776 = vst.msk [vmem:[%s8 + $0x1f0] sm:$0xff] %vm2537, %v8712
  %8777 = vst.msk [vmem:[%s8 + $0x1f8] sm:$0xff] %vm2537, %v8713
  // Predicated region
  $region34: #{tpu_custom_call.1} parent=0 // pred_check
    _
  $region35: #{tpu_custom_call.1} parent=0 // pred_check_branch
    %8779 = sbr.rel (0) target = $region37
  $region36: #{tpu_custom_call.1} parent=0 // pred_region
    _
  $region37: #{tpu_custom_call.1} parent=0 // pred_fallthru
    _
  // Predicated region
  $region38: #{tpu_custom_call.1} parent=0 // pred_check
    _
  $region39: #{tpu_custom_call.1} parent=0 // pred_check_branch
    %8781 = sbr.rel (0) target = $region41
  $region40: #{tpu_custom_call.1} parent=0 // pred_region
    _
  $region41: #{tpu_custom_call.1} parent=0 // pred_fallthru
    _

</llo_original>
